<compile_context>
chip_gen: v7x
topology: tpu7x:2x2x1
jax: 0.10.0
libtpu: 0.0.40
codegen_flags: <defaults>
</compile_context>

<pallas_src>
import functools
import math

import jax
import jax.numpy as jnp
import numpy as np
from jax.experimental import pallas as pl
from jax.experimental.pallas import tpu as pltpu

_LN_EPS = 1e-5
_SQRT_2_OVER_PI = 0.7978845608028654
_NEG_INF = -1e30


def _gelu_tanh(y):
    # tanh-approximate GELU (GPT backbone); y*y*y is cheaper than y**3 on the VPU.
    return 0.5 * y * (1.0 + jnp.tanh(_SQRT_2_OVER_PI * (y + 0.044715 * (y * y * y))))


# ----------------------------- fused Pallas kernel ---------------------------

def _fused_actor_kernel(obs_ref, slab_ref, out_ref, *, offsets, num_layers,
                        num_heads, embed_dim, ctx_len, batch_block):
    """Whole TransformerActor forward for one block of Bt batch elements."""
    T, E, H, Bt = ctx_len, embed_dim, num_heads, batch_block
    Dh = E // H
    N = Bt * T
    scale = 1.0 / math.sqrt(Dh)

    def get(name, row_start=0, nrows=None, ncols=None):
        r0, nr, nc = offsets[name]
        nrows = nr if nrows is None else nrows
        ncols = nc if ncols is None else ncols
        r = r0 + row_start
        return slab_ref[r:r + nrows, :ncols]

    def linear(x, name):
        return (jnp.dot(x, get(name + "_w"), preferred_element_type=jnp.float32)
                + get(name + "_b"))

    def layernorm(x, name):
        gb = get(name)                                   # (2, E): row0=gamma, row1=beta
        mu = jnp.mean(x, axis=-1, keepdims=True)
        xc = x - mu
        var = jnp.mean(xc * xc, axis=-1, keepdims=True)
        return xc * jax.lax.rsqrt(var + _LN_EPS) * gb[0:1, :] + gb[1:2, :]

    # Hoisted additive causal-mask bias (0 / -1e30): one vadd per score, shared by
    # all layers/heads (JAX won't CSE broadcasts, so build it exactly once).
    row = jax.lax.broadcasted_iota(jnp.int32, (T, T), 0)
    col = jax.lax.broadcasted_iota(jnp.int32, (T, T), 1)
    mask_bias = jnp.where(col <= row, 0.0, _NEG_INF).astype(jnp.float32)[None]  # (1,T,T)

    # --- ObservationEncoder: MLP(obs_in -> hidden -> out), ReLU hidden ---------
    x = obs_ref[...].astype(jnp.float32)                 # (N, obs_in)
    x = jnp.maximum(linear(x, "enc0"), 0.0)
    x = linear(x, "enc1")                                # (N, input_dim)

    # --- input_embedding: Linear -> +positional -> LayerNorm (Dropout=identity) -
    x = linear(x, "emb") + get("pos")                    # (N, E), pos pre-tiled to N rows
    x = layernorm(x, "eln")

    # --- GPT backbone: pre-LN blocks (causal MHA + GELU MLP) --------------------
    # TODO(synk): at E~512, stack per-layer weights [L,...] and make the layer a
    # grid axis (or fori_loop with manual prefetch) instead of this Python unroll.
    for l in range(num_layers):
        xn = layernorm(x, f"b{l}_ln1")                   # (N, E)
        xn3 = xn.reshape(Bt, T, E)                       # sublane split (T % 8 == 0): free
        att = None
        for h in range(H):
            # Per-head weights are 8-aligned ROW blocks of the slab (free slices);
            # no 16-lane output slicing, no stack, no concat.
            qw = get(f"b{l}_qw", row_start=h * E, nrows=E, ncols=Dh)
            kw = get(f"b{l}_kw", row_start=h * E, nrows=E, ncols=Dh)
            vw = get(f"b{l}_vw", row_start=h * E, nrows=E, ncols=Dh)
            qb = get(f"b{l}_qb", row_start=h, nrows=1, ncols=Dh)
            kb = get(f"b{l}_kb", row_start=h, nrows=1, ncols=Dh)
            vb = get(f"b{l}_vb", row_start=h, nrows=1, ncols=Dh)
            q = (jnp.dot(xn, qw, preferred_element_type=jnp.float32) + qb).reshape(Bt, T, Dh)
            k = (jnp.dot(xn, kw, preferred_element_type=jnp.float32) + kb).reshape(Bt, T, Dh)
            v = (jnp.dot(xn, vw, preferred_element_type=jnp.float32) + vb).reshape(Bt, T, Dh)

            s = jnp.einsum("btd,bsd->bts", q, k,
                           preferred_element_type=jnp.float32) * scale + mask_bias
            s = s - jnp.max(s, axis=-1, keepdims=True)
            p = jnp.exp(s)
            p = p * pl.reciprocal(jnp.sum(p, axis=-1, keepdims=True), approx=True)
            o = jnp.einsum("bts,bsd->btd", p, v,
                           preferred_element_type=jnp.float32).reshape(N, Dh)

            # Head merge folded into the output projection matmul (no concat):
            pw = get(f"b{l}_pw", row_start=h * Dh, nrows=Dh, ncols=E)
            ctb = jnp.dot(o, pw, preferred_element_type=jnp.float32)
            att = ctb if att is None else att + ctb
        x = x + att + get(f"b{l}_pb")                    # residual 1

        xn = layernorm(x, f"b{l}_ln2")
        m = _gelu_tanh(linear(xn, f"b{l}_fc"))
        x = x + linear(m, f"b{l}_mlp")                   # residual 2

    # --- final LayerNorm + MLP decoder (ReLU hidden, linear out, non-GMM) -------
    x = layernorm(x, "lnf")
    x = jnp.maximum(linear(x, "dec0"), 0.0)
    y = linear(x, "dec1")                                # (N, A_pad) lane-dense store
    out_ref[...] = y.astype(out_ref.dtype)


# ----------------------------- parameter slab packing ------------------------

def _pack_params(params, cfg, batch_block, action_pad):
    """Pack every param into one f32 slab; returns (slab, {name: (row, rows, cols)})."""
    E, H = cfg["embed_dim"], cfg["num_heads"]
    Dh = E // H
    entries = []

    def add(name, arr):
        arr = jnp.asarray(arr, jnp.float32)
        entries.append((name, arr))

    def add_dense(name, p, pad_cols=None):
        w, b = p["w"], p["b"]
        if pad_cols is not None and pad_cols > w.shape[1]:
            w = jnp.pad(w, ((0, 0), (0, pad_cols - w.shape[1])))
            b = jnp.pad(b, ((0, pad_cols - b.shape[0]),))
        add(name + "_w", w)
        add(name + "_b", b.reshape(1, -1))

    def add_ln(name, p):
        add(name, jnp.stack([p["g"], p["b"]], axis=0))   # (2, E)

    def headify(w):   # (E, E) head-interleaved columns -> (H*E, Dh) head-major rows
        return w.reshape(E, H, Dh).transpose(1, 0, 2).reshape(H * E, Dh)

    add_dense("enc0", params["obs_enc"]["l0"])
    add_dense("enc1", params["obs_enc"]["l1"])
    add_dense("emb", params["embedding"])
    pos = params["embed_timestep"][0]                    # (T, E)
    add("pos", jnp.tile(pos, (batch_block, 1)))          # (Bt*T, E), pre-tiled once
    add_ln("eln", params["embed_ln"])
    for l, blk in enumerate(params["blocks"]):
        add_ln(f"b{l}_ln1", blk["ln1"])
        qkv_w, qkv_b = blk["attn_qkv"]["w"], blk["attn_qkv"]["b"]
        add(f"b{l}_qw", headify(qkv_w[:, 0 * E:1 * E]))
        add(f"b{l}_qb", qkv_b[0 * E:1 * E].reshape(H, Dh))
        add(f"b{l}_kw", headify(qkv_w[:, 1 * E:2 * E]))
        add(f"b{l}_kb", qkv_b[1 * E:2 * E].reshape(H, Dh))
        add(f"b{l}_vw", headify(qkv_w[:, 2 * E:3 * E]))
        add(f"b{l}_vb", qkv_b[2 * E:3 * E].reshape(H, Dh))
        add(f"b{l}_pw", blk["attn_proj"]["w"])           # (E, E), rows = concat head dim
        add(f"b{l}_pb", blk["attn_proj"]["b"].reshape(1, -1))
        add_ln(f"b{l}_ln2", blk["ln2"])
        add_dense(f"b{l}_fc", blk["mlp_fc"])
        add_dense(f"b{l}_mlp", blk["mlp_proj"])
    add_ln("lnf", params["ln_f"])
    add_dense("dec0", params["dec"]["l0"])
    add_dense("dec1", params["dec"]["l1"], pad_cols=action_pad)

    width = max(int(a.shape[1]) for _, a in entries)
    width = ((width + 127) // 128) * 128                 # lane-tile aligned slab width
    offsets = {}
    padded = []
    r = 0
    for name, a in entries:
        nr, nc = int(a.shape[0]), int(a.shape[1])
        nr_pad = ((nr + 7) // 8) * 8                     # sublane-tile aligned row start
        offsets[name] = (r, nr, nc)
        padded.append(jnp.pad(a, ((0, nr_pad - nr), (0, width - nc))))
        r += nr_pad
    slab = jnp.concatenate(padded, axis=0)
    return slab, offsets


# ----------------------------- wrapper ----------------------------------------

def _pick_batch_block(batch):
    """Largest divisor of batch <= 8 that still leaves a grid of length >= 2."""
    best = 1
    for d in range(1, min(batch, 8) + 1):
        if batch % d == 0 and (batch // d >= 2 or batch == 1):
            best = d
    return best


def transformer_actor_forward_pallas(params, obs, cfg):
    """Returns outputs['predictions'] of TransformerActor.forward_train (actions=None)."""
    B, T, obs_in = obs.shape
    A = cfg["action_dim"]
    A_pad = 128                                          # lane-dense output store
    E, H = cfg["embed_dim"], cfg["num_heads"]
    Bt = _pick_batch_block(B)

    slab, offsets = _pack_params(params, cfg, Bt, A_pad)
    obs2 = obs.reshape(B * T, obs_in).astype(jnp.float32)   # (Bt*T) rows per grid step

    kern = functools.partial(
        _fused_actor_kernel, offsets=offsets, num_layers=cfg["num_layers"],
        num_heads=H, embed_dim=E, ctx_len=T, batch_block=Bt)

    out = pl.pallas_call(
        kern,
        out_shape=jax.ShapeDtypeStruct((B * T, A_pad), jnp.float32),
        grid=(B // Bt,),
        in_specs=[pl.BlockSpec((Bt * T, obs_in), lambda b: (b, 0)),
                  pl.BlockSpec(slab.shape, lambda b: (0, 0))],   # one slab DMA, resident
        out_specs=pl.BlockSpec((Bt * T, A_pad), lambda b: (b, 0)),
        compiler_params=pltpu.CompilerParams(
            dimension_semantics=("parallel",),           # shard batch blocks across TCs
            vmem_limit_bytes=32 * 1024 * 1024,
        ),
    )(obs2, slab)
    return out[:, :A].reshape(B, T, A)


# ----------------------------- pure-JAX reference -----------------------------

def transformer_actor_forward_ref(params, obs, cfg):
    E, H = cfg["embed_dim"], cfg["num_heads"]
    B, T, _ = obs.shape
    Dh = E // H

    def lin(x, p, act=None):
        y = x @ p["w"] + p["b"]
        if act == "relu":
            return jnp.maximum(y, 0.0)
        if act == "gelu":
            return _gelu_tanh(y)
        return y

    def ln(x, p):
        mu = jnp.mean(x, axis=-1, keepdims=True)
        var = jnp.mean((x - mu) ** 2, axis=-1, keepdims=True)
        return (x - mu) * jax.lax.rsqrt(var + _LN_EPS) * p["g"] + p["b"]

    x = lin(obs, params["obs_enc"]["l0"], "relu")
    x = lin(x, params["obs_enc"]["l1"])
    x = lin(x, params["embedding"]) + params["embed_timestep"]
    x = ln(x, params["embed_ln"])

    row = jax.lax.broadcasted_iota(jnp.int32, (T, T), 0)
    col = jax.lax.broadcasted_iota(jnp.int32, (T, T), 1)
    causal = col <= row

    for blk in params["blocks"]:
        xn = ln(x, blk["ln1"])
        qkv = lin(xn, blk["attn_qkv"])
        q, k, v = jnp.split(qkv, 3, axis=-1)

        def split_heads(z):
            return z.reshape(B, T, H, Dh).transpose(0, 2, 1, 3)

        qh, kh, vh = split_heads(q), split_heads(k), split_heads(v)
        s = jnp.einsum("bhqd,bhkd->bhqk", qh, kh) / math.sqrt(Dh)
        s = jnp.where(causal[None, None], s, _NEG_INF)
        p = jax.nn.softmax(s, axis=-1)
        o = jnp.einsum("bhqk,bhkd->bhqd", p, vh)
        o = o.transpose(0, 2, 1, 3).reshape(B, T, E)
        x = x + lin(o, blk["attn_proj"])
        xn = ln(x, blk["ln2"])
        x = x + lin(lin(xn, blk["mlp_fc"], "gelu"), blk["mlp_proj"])

    x = ln(x, params["ln_f"])
    x = lin(x, params["dec"]["l0"], "relu")
    return lin(x, params["dec"]["l1"])


# ----------------------------- init -------------------------------------------

def _dense_init(key, din, dout):
    w = jax.random.normal(key, (din, dout), jnp.float32) * 0.02
    return {"w": w, "b": jnp.zeros((dout,), jnp.float32)}


def init_params(key, cfg):
    E = cfg["embed_dim"]
    keys = iter(jax.random.split(key, 64))
    p = {}
    p["obs_enc"] = {
        "l0": _dense_init(next(keys), cfg["obs_in"], cfg["obs_enc_hidden"]),
        "l1": _dense_init(next(keys), cfg["obs_enc_hidden"], cfg["obs_enc_out"]),
    }
    p["embedding"] = _dense_init(next(keys), cfg["obs_enc_out"], E)
    # nn.Parameter(torch.zeros(1, context_length, embed_dim))
    p["embed_timestep"] = jnp.zeros((1, cfg["context_length"], E), jnp.float32)
    p["embed_ln"] = {"g": jnp.ones((E,), jnp.float32), "b": jnp.zeros((E,), jnp.float32)}
    blocks = []
    for _ in range(cfg["num_layers"]):
        blocks.append({
            "ln1": {"g": jnp.ones((E,), jnp.float32), "b": jnp.zeros((E,), jnp.float32)},
            "attn_qkv": _dense_init(next(keys), E, 3 * E),
            "attn_proj": _dense_init(next(keys), E, E),
            "ln2": {"g": jnp.ones((E,), jnp.float32), "b": jnp.zeros((E,), jnp.float32)},
            "mlp_fc": _dense_init(next(keys), E, 4 * E),
            "mlp_proj": _dense_init(next(keys), 4 * E, E),
        })
    p["blocks"] = blocks
    p["ln_f"] = {"g": jnp.ones((E,), jnp.float32), "b": jnp.zeros((E,), jnp.float32)}
    p["dec"] = {
        "l0": _dense_init(next(keys), E, cfg["dec_hidden"]),
        "l1": _dense_init(next(keys), cfg["dec_hidden"], cfg["action_dim"]),
    }
    return p


# ----------------------------- main --------------------------------------------

if __name__ == "__main__":
    cfg = dict(
        batch=4,              # -> batch block Bt=2, grid=2 (keeps 2 TCs busy on v7x)
        context_length=8,
        obs_in=10,
        obs_enc_hidden=32,
        obs_enc_out=16,       # transformer_input_dim
        embed_dim=64,
        num_heads=4,
        num_layers=2,
        dec_hidden=32,
        action_dim=4,
    )

    key = jax.random.PRNGKey(0)
    pkey, okey = jax.random.split(key)
    params = init_params(pkey, cfg)
    obs = jax.random.normal(
        okey, (cfg["batch"], cfg["context_length"], cfg["obs_in"]), jnp.float32
    )

    preds = transformer_actor_forward_pallas(params, obs, cfg)
    preds = jax.block_until_ready(preds)

    ref = transformer_actor_forward_ref(params, obs, cfg)
    ref = jax.block_until_ready(ref)

    assert preds.shape == (cfg["batch"], cfg["context_length"], cfg["action_dim"])
    assert np.allclose(np.asarray(preds), np.asarray(ref), atol=2e-3, rtol=2e-3), (
        "max abs diff = %g" % float(np.max(np.abs(np.asarray(preds) - np.asarray(ref)))))
    print("KERNEL_OK")
</pallas_src>

<mosaic_0001>
module attributes {stable_mosaic.version = 11 : i64} {
  func.func @_fused_actor_kernel(%arg0: i32, %arg1: memref<16x10xf32, #tpu.memory_space<vmem>>, %arg2: memref<2664x256xf32, #tpu.memory_space<vmem>>, %arg3: memref<16x128xf32, #tpu.memory_space<vmem>>) attributes {dimension_semantics = [#tpu.dimension_semantics<parallel>], iteration_bounds = array<i64: 2>, scalar_prefetch = 0 : i64, scratch_operands = 0 : i64, tpu.core_type = #tpu.core_type<tc>, window_params = [{transform_indices = @transform_0, window_bounds = array<i64: 16, 10>}, {pipeline_mode = #tpu.pipeline_mode<synchronous>, transform_indices = @transform_1, window_bounds = array<i64: 2664, 256>}, {transform_indices = @transform_2, window_bounds = array<i64: 16, 128>}]} {
    %0 = tpu.iota {dimensions = array<i32: 0>} : vector<8x8xi32>
    %1 = tpu.iota {dimensions = array<i32: 1>} : vector<8x8xi32>
    %2 = arith.cmpi sle, %1, %0 : vector<8x8xi32>
    %cst = arith.constant 0.000000e+00 : f32
    %cst_0 = arith.constant -1.000000e+30 : f32
    %3 = vector.broadcast %cst : f32 to vector<8x8xf32>
    %4 = vector.broadcast %cst_0 : f32 to vector<8x8xf32>
    %5 = arith.select %2, %3, %4 : vector<8x8xi1>, vector<8x8xf32>
    %6 = vector.shape_cast %5 : vector<8x8xf32> to vector<1x8x8xf32>
    %c0 = arith.constant 0 : index
    %c0_1 = arith.constant 0 : index
    %7 = vector.load %arg1[%c0, %c0_1] : memref<16x10xf32, #tpu.memory_space<vmem>>, vector<16x10xf32>
    %c0_2 = arith.constant 0 : index
    %c0_3 = arith.constant 0 : index
    %8 = vector.load %arg2[%c0_2, %c0_3] : memref<2664x256xf32, #tpu.memory_space<vmem>>, vector<10x32xf32>
    %cst_4 = arith.constant dense<0.000000e+00> : vector<16x32xf32>
    %9 = tpu.matmul %7, %8, %cst_4 {dimension_numbers = #tpu.dot_dimension_numbers<[1], [0], [0], [1], [0, 0, 1, 1], [], []>} : vector<16x10xf32>, vector<10x32xf32>, vector<16x32xf32> -> vector<16x32xf32>
    %c16 = arith.constant 16 : index
    %c0_5 = arith.constant 0 : index
    %10 = vector.load %arg2[%c16, %c0_5] : memref<2664x256xf32, #tpu.memory_space<vmem>>, vector<1x32xf32>
    %11 = vector.broadcast %10 : vector<1x32xf32> to vector<16x32xf32>
    %12 = arith.addf %9, %11 : vector<16x32xf32>
    %cst_6 = arith.constant 0.000000e+00 : f32
    %13 = vector.broadcast %cst_6 : f32 to vector<16x32xf32>
    %14 = arith.maximumf %12, %13 : vector<16x32xf32>
    %c24 = arith.constant 24 : index
    %c0_7 = arith.constant 0 : index
    %15 = vector.load %arg2[%c24, %c0_7] : memref<2664x256xf32, #tpu.memory_space<vmem>>, vector<32x16xf32>
    %cst_8 = arith.constant dense<0.000000e+00> : vector<16x16xf32>
    %16 = tpu.matmul %14, %15, %cst_8 {dimension_numbers = #tpu.dot_dimension_numbers<[1], [0], [0], [1], [0, 0, 1, 1], [], []>} : vector<16x32xf32>, vector<32x16xf32>, vector<16x16xf32> -> vector<16x16xf32>
    %c56 = arith.constant 56 : index
    %c0_9 = arith.constant 0 : index
    %17 = vector.load %arg2[%c56, %c0_9] : memref<2664x256xf32, #tpu.memory_space<vmem>>, vector<1x16xf32>
    %18 = vector.broadcast %17 : vector<1x16xf32> to vector<16x16xf32>
    %19 = arith.addf %16, %18 : vector<16x16xf32>
    %c64 = arith.constant 64 : index
    %c0_10 = arith.constant 0 : index
    %20 = vector.load %arg2[%c64, %c0_10] : memref<2664x256xf32, #tpu.memory_space<vmem>>, vector<16x64xf32>
    %cst_11 = arith.constant dense<0.000000e+00> : vector<16x64xf32>
    %21 = tpu.matmul %19, %20, %cst_11 {dimension_numbers = #tpu.dot_dimension_numbers<[1], [0], [0], [1], [0, 0, 1, 1], [], []>} : vector<16x16xf32>, vector<16x64xf32>, vector<16x64xf32> -> vector<16x64xf32>
    %c80 = arith.constant 80 : index
    %c0_12 = arith.constant 0 : index
    %22 = vector.load %arg2[%c80, %c0_12] : memref<2664x256xf32, #tpu.memory_space<vmem>>, vector<1x64xf32>
    %23 = vector.broadcast %22 : vector<1x64xf32> to vector<16x64xf32>
    %24 = arith.addf %21, %23 : vector<16x64xf32>
    %c88 = arith.constant 88 : index
    %c0_13 = arith.constant 0 : index
    %25 = vector.load %arg2[%c88, %c0_13] : memref<2664x256xf32, #tpu.memory_space<vmem>>, vector<16x64xf32>
    %26 = arith.addf %24, %25 : vector<16x64xf32>
    %c104 = arith.constant 104 : index
    %c0_14 = arith.constant 0 : index
    %27 = vector.load %arg2[%c104, %c0_14] : memref<2664x256xf32, #tpu.memory_space<vmem>>, vector<2x64xf32>
    %cst_15 = arith.constant dense<0.000000e+00> : vector<16xf32>
    %28 = vector.multi_reduction <add>, %26, %cst_15 [1] : vector<16x64xf32> to vector<16xf32>
    %29 = vector.shape_cast %28 : vector<16xf32> to vector<16x1xf32>
    %cst_16 = arith.constant 6.400000e+01 : f32
    %30 = vector.broadcast %cst_16 : f32 to vector<16x1xf32>
    %31 = arith.divf %29, %30 : vector<16x1xf32>
    %32 = vector.broadcast %31 : vector<16x1xf32> to vector<16x64xf32>
    %33 = arith.subf %26, %32 : vector<16x64xf32>
    %34 = arith.mulf %33, %33 : vector<16x64xf32>
    %cst_17 = arith.constant dense<0.000000e+00> : vector<16xf32>
    %35 = vector.multi_reduction <add>, %34, %cst_17 [1] : vector<16x64xf32> to vector<16xf32>
    %36 = vector.shape_cast %35 : vector<16xf32> to vector<16x1xf32>
    %cst_18 = arith.constant 6.400000e+01 : f32
    %37 = vector.broadcast %cst_18 : f32 to vector<16x1xf32>
    %38 = arith.divf %36, %37 : vector<16x1xf32>
    %cst_19 = arith.constant 9.99999974E-6 : f32
    %39 = vector.broadcast %cst_19 : f32 to vector<16x1xf32>
    %40 = arith.addf %38, %39 : vector<16x1xf32>
    %41 = math.rsqrt %40 : vector<16x1xf32>
    %42 = vector.broadcast %41 : vector<16x1xf32> to vector<16x64xf32>
    %43 = arith.mulf %33, %42 : vector<16x64xf32>
    %44 = vector.extract_strided_slice %27 {offsets = [0, 0], sizes = [1, 64], strides = [1, 1]} : vector<2x64xf32> to vector<1x64xf32>
    %45 = vector.broadcast %44 : vector<1x64xf32> to vector<16x64xf32>
    %46 = arith.mulf %43, %45 : vector<16x64xf32>
    %47 = vector.extract_strided_slice %27 {offsets = [1, 0], sizes = [1, 64], strides = [1, 1]} : vector<2x64xf32> to vector<1x64xf32>
    %48 = vector.broadcast %47 : vector<1x64xf32> to vector<16x64xf32>
    %49 = arith.addf %46, %48 : vector<16x64xf32>
    %c112 = arith.constant 112 : index
    %c0_20 = arith.constant 0 : index
    %50 = vector.load %arg2[%c112, %c0_20] : memref<2664x256xf32, #tpu.memory_space<vmem>>, vector<2x64xf32>
    %cst_21 = arith.constant dense<0.000000e+00> : vector<16xf32>
    %51 = vector.multi_reduction <add>, %49, %cst_21 [1] : vector<16x64xf32> to vector<16xf32>
    %52 = vector.shape_cast %51 : vector<16xf32> to vector<16x1xf32>
    %cst_22 = arith.constant 6.400000e+01 : f32
    %53 = vector.broadcast %cst_22 : f32 to vector<16x1xf32>
    %54 = arith.divf %52, %53 : vector<16x1xf32>
    %55 = vector.broadcast %54 : vector<16x1xf32> to vector<16x64xf32>
    %56 = arith.subf %49, %55 : vector<16x64xf32>
    %57 = arith.mulf %56, %56 : vector<16x64xf32>
    %cst_23 = arith.constant dense<0.000000e+00> : vector<16xf32>
    %58 = vector.multi_reduction <add>, %57, %cst_23 [1] : vector<16x64xf32> to vector<16xf32>
    %59 = vector.shape_cast %58 : vector<16xf32> to vector<16x1xf32>
    %cst_24 = arith.constant 6.400000e+01 : f32
    %60 = vector.broadcast %cst_24 : f32 to vector<16x1xf32>
    %61 = arith.divf %59, %60 : vector<16x1xf32>
    %cst_25 = arith.constant 9.99999974E-6 : f32
    %62 = vector.broadcast %cst_25 : f32 to vector<16x1xf32>
    %63 = arith.addf %61, %62 : vector<16x1xf32>
    %64 = math.rsqrt %63 : vector<16x1xf32>
    %65 = vector.broadcast %64 : vector<16x1xf32> to vector<16x64xf32>
    %66 = arith.mulf %56, %65 : vector<16x64xf32>
    %67 = vector.extract_strided_slice %50 {offsets = [0, 0], sizes = [1, 64], strides = [1, 1]} : vector<2x64xf32> to vector<1x64xf32>
    %68 = vector.broadcast %67 : vector<1x64xf32> to vector<16x64xf32>
    %69 = arith.mulf %66, %68 : vector<16x64xf32>
    %70 = vector.extract_strided_slice %50 {offsets = [1, 0], sizes = [1, 64], strides = [1, 1]} : vector<2x64xf32> to vector<1x64xf32>
    %71 = vector.broadcast %70 : vector<1x64xf32> to vector<16x64xf32>
    %72 = arith.addf %69, %71 : vector<16x64xf32>
    %c120 = arith.constant 120 : index
    %c0_26 = arith.constant 0 : index
    %73 = vector.load %arg2[%c120, %c0_26] : memref<2664x256xf32, #tpu.memory_space<vmem>>, vector<64x16xf32>
    %c384 = arith.constant 384 : index
    %c0_27 = arith.constant 0 : index
    %74 = vector.load %arg2[%c384, %c0_27] : memref<2664x256xf32, #tpu.memory_space<vmem>>, vector<64x16xf32>
    %c648 = arith.constant 648 : index
    %c0_28 = arith.constant 0 : index
    %75 = vector.load %arg2[%c648, %c0_28] : memref<2664x256xf32, #tpu.memory_space<vmem>>, vector<64x16xf32>
    %c376 = arith.constant 376 : index
    %c0_29 = arith.constant 0 : index
    %76 = vector.load %arg2[%c376, %c0_29] : memref<2664x256xf32, #tpu.memory_space<vmem>>, vector<1x16xf32>
    %c640 = arith.constant 640 : index
    %c0_30 = arith.constant 0 : index
    %77 = vector.load %arg2[%c640, %c0_30] : memref<2664x256xf32, #tpu.memory_space<vmem>>, vector<1x16xf32>
    %c904 = arith.constant 904 : index
    %c0_31 = arith.constant 0 : index
    %78 = vector.load %arg2[%c904, %c0_31] : memref<2664x256xf32, #tpu.memory_space<vmem>>, vector<1x16xf32>
    %cst_32 = arith.constant dense<0.000000e+00> : vector<16x16xf32>
    %79 = tpu.matmul %72, %73, %cst_32 {dimension_numbers = #tpu.dot_dimension_numbers<[1], [0], [0], [1], [0, 0, 1, 1], [], []>} : vector<16x64xf32>, vector<64x16xf32>, vector<16x16xf32> -> vector<16x16xf32>
    %80 = vector.broadcast %76 : vector<1x16xf32> to vector<16x16xf32>
    %81 = arith.addf %79, %80 : vector<16x16xf32>
    %82 = vector.shape_cast %81 : vector<16x16xf32> to vector<2x8x16xf32>
    %cst_33 = arith.constant dense<0.000000e+00> : vector<16x16xf32>
    %83 = tpu.matmul %72, %74, %cst_33 {dimension_numbers = #tpu.dot_dimension_numbers<[1], [0], [0], [1], [0, 0, 1, 1], [], []>} : vector<16x64xf32>, vector<64x16xf32>, vector<16x16xf32> -> vector<16x16xf32>
    %84 = vector.broadcast %77 : vector<1x16xf32> to vector<16x16xf32>
    %85 = arith.addf %83, %84 : vector<16x16xf32>
    %86 = vector.shape_cast %85 : vector<16x16xf32> to vector<2x8x16xf32>
    %cst_34 = arith.constant dense<0.000000e+00> : vector<16x16xf32>
    %87 = tpu.matmul %72, %75, %cst_34 {dimension_numbers = #tpu.dot_dimension_numbers<[1], [0], [0], [1], [0, 0, 1, 1], [], []>} : vector<16x64xf32>, vector<64x16xf32>, vector<16x16xf32> -> vector<16x16xf32>
    %88 = vector.broadcast %78 : vector<1x16xf32> to vector<16x16xf32>
    %89 = arith.addf %87, %88 : vector<16x16xf32>
    %90 = vector.shape_cast %89 : vector<16x16xf32> to vector<2x8x16xf32>
    "tpu.trace_start"() <{level = 10 : i32, message = "btd,bsd->bts"}> : () -> ()
    %cst_35 = arith.constant dense<0.000000e+00> : vector<2x8x8xf32>
    %91 = tpu.matmul %82, %86, %cst_35 {dimension_numbers = #tpu.dot_dimension_numbers<[2], [2], [1], [1], [0, 0, 0, 1, 1, 1], [0], [0]>} : vector<2x8x16xf32>, vector<2x8x16xf32>, vector<2x8x8xf32> -> vector<2x8x8xf32>
    "tpu.trace_stop"() : () -> ()
    %cst_36 = arith.constant 2.500000e-01 : f32
    %92 = vector.broadcast %cst_36 : f32 to vector<2x8x8xf32>
    %93 = arith.mulf %91, %92 : vector<2x8x8xf32>
    %94 = vector.broadcast %6 : vector<1x8x8xf32> to vector<2x8x8xf32>
    %95 = arith.addf %93, %94 : vector<2x8x8xf32>
    %cst_37 = arith.constant dense<0xFF800000> : vector<2x8xf32>
    %96 = vector.multi_reduction <maximumf>, %95, %cst_37 [2] : vector<2x8x8xf32> to vector<2x8xf32>
    %97 = vector.shape_cast %96 : vector<2x8xf32> to vector<2x8x1xf32>
    %98 = vector.broadcast %97 : vector<2x8x1xf32> to vector<2x8x8xf32>
    %99 = arith.subf %95, %98 : vector<2x8x8xf32>
    %100 = math.exp %99 : vector<2x8x8xf32>
    %cst_38 = arith.constant dense<0.000000e+00> : vector<2x8xf32>
    %101 = vector.multi_reduction <add>, %100, %cst_38 [2] : vector<2x8x8xf32> to vector<2x8xf32>
    %102 = vector.shape_cast %101 : vector<2x8xf32> to vector<2x8x1xf32>
    %103 = tpu.reciprocal %102 {approx = true} : vector<2x8x1xf32> -> vector<2x8x1xf32>
    %104 = vector.broadcast %103 : vector<2x8x1xf32> to vector<2x8x8xf32>
    %105 = arith.mulf %100, %104 : vector<2x8x8xf32>
    "tpu.trace_start"() <{level = 10 : i32, message = "bts,bsd->btd"}> : () -> ()
    %cst_39 = arith.constant dense<0.000000e+00> : vector<2x8x16xf32>
    %106 = tpu.matmul %105, %90, %cst_39 {dimension_numbers = #tpu.dot_dimension_numbers<[2], [1], [1], [2], [0, 0, 0, 1, 1, 2], [0], [0]>} : vector<2x8x8xf32>, vector<2x8x16xf32>, vector<2x8x16xf32> -> vector<2x8x16xf32>
    "tpu.trace_stop"() : () -> ()
    %107 = vector.shape_cast %106 : vector<2x8x16xf32> to vector<16x16xf32>
    %c912 = arith.constant 912 : index
    %c0_40 = arith.constant 0 : index
    %108 = vector.load %arg2[%c912, %c0_40] : memref<2664x256xf32, #tpu.memory_space<vmem>>, vector<16x64xf32>
    %cst_41 = arith.constant dense<0.000000e+00> : vector<16x64xf32>
    %109 = tpu.matmul %107, %108, %cst_41 {dimension_numbers = #tpu.dot_dimension_numbers<[1], [0], [0], [1], [0, 0, 1, 1], [], []>} : vector<16x16xf32>, vector<16x64xf32>, vector<16x64xf32> -> vector<16x64xf32>
    %c184 = arith.constant 184 : index
    %c0_42 = arith.constant 0 : index
    %110 = vector.load %arg2[%c184, %c0_42] : memref<2664x256xf32, #tpu.memory_space<vmem>>, vector<64x16xf32>
    %c448 = arith.constant 448 : index
    %c0_43 = arith.constant 0 : index
    %111 = vector.load %arg2[%c448, %c0_43] : memref<2664x256xf32, #tpu.memory_space<vmem>>, vector<64x16xf32>
    %c712 = arith.constant 712 : index
    %c0_44 = arith.constant 0 : index
    %112 = vector.load %arg2[%c712, %c0_44] : memref<2664x256xf32, #tpu.memory_space<vmem>>, vector<64x16xf32>
    %c377 = arith.constant 377 : index
    %c0_45 = arith.constant 0 : index
    %113 = vector.load %arg2[%c377, %c0_45] : memref<2664x256xf32, #tpu.memory_space<vmem>>, vector<1x16xf32>
    %c641 = arith.constant 641 : index
    %c0_46 = arith.constant 0 : index
    %114 = vector.load %arg2[%c641, %c0_46] : memref<2664x256xf32, #tpu.memory_space<vmem>>, vector<1x16xf32>
    %c905 = arith.constant 905 : index
    %c0_47 = arith.constant 0 : index
    %115 = vector.load %arg2[%c905, %c0_47] : memref<2664x256xf32, #tpu.memory_space<vmem>>, vector<1x16xf32>
    %cst_48 = arith.constant dense<0.000000e+00> : vector<16x16xf32>
    %116 = tpu.matmul %72, %110, %cst_48 {dimension_numbers = #tpu.dot_dimension_numbers<[1], [0], [0], [1], [0, 0, 1, 1], [], []>} : vector<16x64xf32>, vector<64x16xf32>, vector<16x16xf32> -> vector<16x16xf32>
    %117 = vector.broadcast %113 : vector<1x16xf32> to vector<16x16xf32>
    %118 = arith.addf %116, %117 : vector<16x16xf32>
    %119 = vector.shape_cast %118 : vector<16x16xf32> to vector<2x8x16xf32>
    %cst_49 = arith.constant dense<0.000000e+00> : vector<16x16xf32>
    %120 = tpu.matmul %72, %111, %cst_49 {dimension_numbers = #tpu.dot_dimension_numbers<[1], [0], [0], [1], [0, 0, 1, 1], [], []>} : vector<16x64xf32>, vector<64x16xf32>, vector<16x16xf32> -> vector<16x16xf32>
    %121 = vector.broadcast %114 : vector<1x16xf32> to vector<16x16xf32>
    %122 = arith.addf %120, %121 : vector<16x16xf32>
    %123 = vector.shape_cast %122 : vector<16x16xf32> to vector<2x8x16xf32>
    %cst_50 = arith.constant dense<0.000000e+00> : vector<16x16xf32>
    %124 = tpu.matmul %72, %112, %cst_50 {dimension_numbers = #tpu.dot_dimension_numbers<[1], [0], [0], [1], [0, 0, 1, 1], [], []>} : vector<16x64xf32>, vector<64x16xf32>, vector<16x16xf32> -> vector<16x16xf32>
    %125 = vector.broadcast %115 : vector<1x16xf32> to vector<16x16xf32>
    %126 = arith.addf %124, %125 : vector<16x16xf32>
    %127 = vector.shape_cast %126 : vector<16x16xf32> to vector<2x8x16xf32>
    "tpu.trace_start"() <{level = 10 : i32, message = "btd,bsd->bts"}> : () -> ()
    %cst_51 = arith.constant dense<0.000000e+00> : vector<2x8x8xf32>
    %128 = tpu.matmul %119, %123, %cst_51 {dimension_numbers = #tpu.dot_dimension_numbers<[2], [2], [1], [1], [0, 0, 0, 1, 1, 1], [0], [0]>} : vector<2x8x16xf32>, vector<2x8x16xf32>, vector<2x8x8xf32> -> vector<2x8x8xf32>
    "tpu.trace_stop"() : () -> ()
    %cst_52 = arith.constant 2.500000e-01 : f32
    %129 = vector.broadcast %cst_52 : f32 to vector<2x8x8xf32>
    %130 = arith.mulf %128, %129 : vector<2x8x8xf32>
    %131 = vector.broadcast %6 : vector<1x8x8xf32> to vector<2x8x8xf32>
    %132 = arith.addf %130, %131 : vector<2x8x8xf32>
    %cst_53 = arith.constant dense<0xFF800000> : vector<2x8xf32>
    %133 = vector.multi_reduction <maximumf>, %132, %cst_53 [2] : vector<2x8x8xf32> to vector<2x8xf32>
    %134 = vector.shape_cast %133 : vector<2x8xf32> to vector<2x8x1xf32>
    %135 = vector.broadcast %134 : vector<2x8x1xf32> to vector<2x8x8xf32>
    %136 = arith.subf %132, %135 : vector<2x8x8xf32>
    %137 = math.exp %136 : vector<2x8x8xf32>
    %cst_54 = arith.constant dense<0.000000e+00> : vector<2x8xf32>
    %138 = vector.multi_reduction <add>, %137, %cst_54 [2] : vector<2x8x8xf32> to vector<2x8xf32>
    %139 = vector.shape_cast %138 : vector<2x8xf32> to vector<2x8x1xf32>
    %140 = tpu.reciprocal %139 {approx = true} : vector<2x8x1xf32> -> vector<2x8x1xf32>
    %141 = vector.broadcast %140 : vector<2x8x1xf32> to vector<2x8x8xf32>
    %142 = arith.mulf %137, %141 : vector<2x8x8xf32>
    "tpu.trace_start"() <{level = 10 : i32, message = "bts,bsd->btd"}> : () -> ()
    %cst_55 = arith.constant dense<0.000000e+00> : vector<2x8x16xf32>
    %143 = tpu.matmul %142, %127, %cst_55 {dimension_numbers = #tpu.dot_dimension_numbers<[2], [1], [1], [2], [0, 0, 0, 1, 1, 2], [0], [0]>} : vector<2x8x8xf32>, vector<2x8x16xf32>, vector<2x8x16xf32> -> vector<2x8x16xf32>
    "tpu.trace_stop"() : () -> ()
    %144 = vector.shape_cast %143 : vector<2x8x16xf32> to vector<16x16xf32>
    %c928 = arith.constant 928 : index
    %c0_56 = arith.constant 0 : index
    %145 = vector.load %arg2[%c928, %c0_56] : memref<2664x256xf32, #tpu.memory_space<vmem>>, vector<16x64xf32>
    %cst_57 = arith.constant dense<0.000000e+00> : vector<16x64xf32>
    %146 = tpu.matmul %144, %145, %cst_57 {dimension_numbers = #tpu.dot_dimension_numbers<[1], [0], [0], [1], [0, 0, 1, 1], [], []>} : vector<16x16xf32>, vector<16x64xf32>, vector<16x64xf32> -> vector<16x64xf32>
    %147 = arith.addf %109, %146 : vector<16x64xf32>
    %c248 = arith.constant 248 : index
    %c0_58 = arith.constant 0 : index
    %148 = vector.load %arg2[%c248, %c0_58] : memref<2664x256xf32, #tpu.memory_space<vmem>>, vector<64x16xf32>
    %c512 = arith.constant 512 : index
    %c0_59 = arith.constant 0 : index
    %149 = vector.load %arg2[%c512, %c0_59] : memref<2664x256xf32, #tpu.memory_space<vmem>>, vector<64x16xf32>
    %c776 = arith.constant 776 : index
    %c0_60 = arith.constant 0 : index
    %150 = vector.load %arg2[%c776, %c0_60] : memref<2664x256xf32, #tpu.memory_space<vmem>>, vector<64x16xf32>
    %c378 = arith.constant 378 : index
    %c0_61 = arith.constant 0 : index
    %151 = vector.load %arg2[%c378, %c0_61] : memref<2664x256xf32, #tpu.memory_space<vmem>>, vector<1x16xf32>
    %c642 = arith.constant 642 : index
    %c0_62 = arith.constant 0 : index
    %152 = vector.load %arg2[%c642, %c0_62] : memref<2664x256xf32, #tpu.memory_space<vmem>>, vector<1x16xf32>
    %c906 = arith.constant 906 : index
    %c0_63 = arith.constant 0 : index
    %153 = vector.load %arg2[%c906, %c0_63] : memref<2664x256xf32, #tpu.memory_space<vmem>>, vector<1x16xf32>
    %cst_64 = arith.constant dense<0.000000e+00> : vector<16x16xf32>
    %154 = tpu.matmul %72, %148, %cst_64 {dimension_numbers = #tpu.dot_dimension_numbers<[1], [0], [0], [1], [0, 0, 1, 1], [], []>} : vector<16x64xf32>, vector<64x16xf32>, vector<16x16xf32> -> vector<16x16xf32>
    %155 = vector.broadcast %151 : vector<1x16xf32> to vector<16x16xf32>
    %156 = arith.addf %154, %155 : vector<16x16xf32>
    %157 = vector.shape_cast %156 : vector<16x16xf32> to vector<2x8x16xf32>
    %cst_65 = arith.constant dense<0.000000e+00> : vector<16x16xf32>
    %158 = tpu.matmul %72, %149, %cst_65 {dimension_numbers = #tpu.dot_dimension_numbers<[1], [0], [0], [1], [0, 0, 1, 1], [], []>} : vector<16x64xf32>, vector<64x16xf32>, vector<16x16xf32> -> vector<16x16xf32>
    %159 = vector.broadcast %152 : vector<1x16xf32> to vector<16x16xf32>
    %160 = arith.addf %158, %159 : vector<16x16xf32>
    %161 = vector.shape_cast %160 : vector<16x16xf32> to vector<2x8x16xf32>
    %cst_66 = arith.constant dense<0.000000e+00> : vector<16x16xf32>
    %162 = tpu.matmul %72, %150, %cst_66 {dimension_numbers = #tpu.dot_dimension_numbers<[1], [0], [0], [1], [0, 0, 1, 1], [], []>} : vector<16x64xf32>, vector<64x16xf32>, vector<16x16xf32> -> vector<16x16xf32>
    %163 = vector.broadcast %153 : vector<1x16xf32> to vector<16x16xf32>
    %164 = arith.addf %162, %163 : vector<16x16xf32>
    %165 = vector.shape_cast %164 : vector<16x16xf32> to vector<2x8x16xf32>
    "tpu.trace_start"() <{level = 10 : i32, message = "btd,bsd->bts"}> : () -> ()
    %cst_67 = arith.constant dense<0.000000e+00> : vector<2x8x8xf32>
    %166 = tpu.matmul %157, %161, %cst_67 {dimension_numbers = #tpu.dot_dimension_numbers<[2], [2], [1], [1], [0, 0, 0, 1, 1, 1], [0], [0]>} : vector<2x8x16xf32>, vector<2x8x16xf32>, vector<2x8x8xf32> -> vector<2x8x8xf32>
    "tpu.trace_stop"() : () -> ()
    %cst_68 = arith.constant 2.500000e-01 : f32
    %167 = vector.broadcast %cst_68 : f32 to vector<2x8x8xf32>
    %168 = arith.mulf %166, %167 : vector<2x8x8xf32>
    %169 = vector.broadcast %6 : vector<1x8x8xf32> to vector<2x8x8xf32>
    %170 = arith.addf %168, %169 : vector<2x8x8xf32>
    %cst_69 = arith.constant dense<0xFF800000> : vector<2x8xf32>
    %171 = vector.multi_reduction <maximumf>, %170, %cst_69 [2] : vector<2x8x8xf32> to vector<2x8xf32>
    %172 = vector.shape_cast %171 : vector<2x8xf32> to vector<2x8x1xf32>
    %173 = vector.broadcast %172 : vector<2x8x1xf32> to vector<2x8x8xf32>
    %174 = arith.subf %170, %173 : vector<2x8x8xf32>
    %175 = math.exp %174 : vector<2x8x8xf32>
    %cst_70 = arith.constant dense<0.000000e+00> : vector<2x8xf32>
    %176 = vector.multi_reduction <add>, %175, %cst_70 [2] : vector<2x8x8xf32> to vector<2x8xf32>
    %177 = vector.shape_cast %176 : vector<2x8xf32> to vector<2x8x1xf32>
    %178 = tpu.reciprocal %177 {approx = true} : vector<2x8x1xf32> -> vector<2x8x1xf32>
    %179 = vector.broadcast %178 : vector<2x8x1xf32> to vector<2x8x8xf32>
    %180 = arith.mulf %175, %179 : vector<2x8x8xf32>
    "tpu.trace_start"() <{level = 10 : i32, message = "bts,bsd->btd"}> : () -> ()
    %cst_71 = arith.constant dense<0.000000e+00> : vector<2x8x16xf32>
    %181 = tpu.matmul %180, %165, %cst_71 {dimension_numbers = #tpu.dot_dimension_numbers<[2], [1], [1], [2], [0, 0, 0, 1, 1, 2], [0], [0]>} : vector<2x8x8xf32>, vector<2x8x16xf32>, vector<2x8x16xf32> -> vector<2x8x16xf32>
    "tpu.trace_stop"() : () -> ()
    %182 = vector.shape_cast %181 : vector<2x8x16xf32> to vector<16x16xf32>
    %c944 = arith.constant 944 : index
    %c0_72 = arith.constant 0 : index
    %183 = vector.load %arg2[%c944, %c0_72] : memref<2664x256xf32, #tpu.memory_space<vmem>>, vector<16x64xf32>
    %cst_73 = arith.constant dense<0.000000e+00> : vector<16x64xf32>
    %184 = tpu.matmul %182, %183, %cst_73 {dimension_numbers = #tpu.dot_dimension_numbers<[1], [0], [0], [1], [0, 0, 1, 1], [], []>} : vector<16x16xf32>, vector<16x64xf32>, vector<16x64xf32> -> vector<16x64xf32>
    %185 = arith.addf %147, %184 : vector<16x64xf32>
    %c312 = arith.constant 312 : index
    %c0_74 = arith.constant 0 : index
    %186 = vector.load %arg2[%c312, %c0_74] : memref<2664x256xf32, #tpu.memory_space<vmem>>, vector<64x16xf32>
    %c576 = arith.constant 576 : index
    %c0_75 = arith.constant 0 : index
    %187 = vector.load %arg2[%c576, %c0_75] : memref<2664x256xf32, #tpu.memory_space<vmem>>, vector<64x16xf32>
    %c840 = arith.constant 840 : index
    %c0_76 = arith.constant 0 : index
    %188 = vector.load %arg2[%c840, %c0_76] : memref<2664x256xf32, #tpu.memory_space<vmem>>, vector<64x16xf32>
    %c379 = arith.constant 379 : index
    %c0_77 = arith.constant 0 : index
    %189 = vector.load %arg2[%c379, %c0_77] : memref<2664x256xf32, #tpu.memory_space<vmem>>, vector<1x16xf32>
    %c643 = arith.constant 643 : index
    %c0_78 = arith.constant 0 : index
    %190 = vector.load %arg2[%c643, %c0_78] : memref<2664x256xf32, #tpu.memory_space<vmem>>, vector<1x16xf32>
    %c907 = arith.constant 907 : index
    %c0_79 = arith.constant 0 : index
    %191 = vector.load %arg2[%c907, %c0_79] : memref<2664x256xf32, #tpu.memory_space<vmem>>, vector<1x16xf32>
    %cst_80 = arith.constant dense<0.000000e+00> : vector<16x16xf32>
    %192 = tpu.matmul %72, %186, %cst_80 {dimension_numbers = #tpu.dot_dimension_numbers<[1], [0], [0], [1], [0, 0, 1, 1], [], []>} : vector<16x64xf32>, vector<64x16xf32>, vector<16x16xf32> -> vector<16x16xf32>
    %193 = vector.broadcast %189 : vector<1x16xf32> to vector<16x16xf32>
    %194 = arith.addf %192, %193 : vector<16x16xf32>
    %195 = vector.shape_cast %194 : vector<16x16xf32> to vector<2x8x16xf32>
    %cst_81 = arith.constant dense<0.000000e+00> : vector<16x16xf32>
    %196 = tpu.matmul %72, %187, %cst_81 {dimension_numbers = #tpu.dot_dimension_numbers<[1], [0], [0], [1], [0, 0, 1, 1], [], []>} : vector<16x64xf32>, vector<64x16xf32>, vector<16x16xf32> -> vector<16x16xf32>
    %197 = vector.broadcast %190 : vector<1x16xf32> to vector<16x16xf32>
    %198 = arith.addf %196, %197 : vector<16x16xf32>
    %199 = vector.shape_cast %198 : vector<16x16xf32> to vector<2x8x16xf32>
    %cst_82 = arith.constant dense<0.000000e+00> : vector<16x16xf32>
    %200 = tpu.matmul %72, %188, %cst_82 {dimension_numbers = #tpu.dot_dimension_numbers<[1], [0], [0], [1], [0, 0, 1, 1], [], []>} : vector<16x64xf32>, vector<64x16xf32>, vector<16x16xf32> -> vector<16x16xf32>
    %201 = vector.broadcast %191 : vector<1x16xf32> to vector<16x16xf32>
    %202 = arith.addf %200, %201 : vector<16x16xf32>
    %203 = vector.shape_cast %202 : vector<16x16xf32> to vector<2x8x16xf32>
    "tpu.trace_start"() <{level = 10 : i32, message = "btd,bsd->bts"}> : () -> ()
    %cst_83 = arith.constant dense<0.000000e+00> : vector<2x8x8xf32>
    %204 = tpu.matmul %195, %199, %cst_83 {dimension_numbers = #tpu.dot_dimension_numbers<[2], [2], [1], [1], [0, 0, 0, 1, 1, 1], [0], [0]>} : vector<2x8x16xf32>, vector<2x8x16xf32>, vector<2x8x8xf32> -> vector<2x8x8xf32>
    "tpu.trace_stop"() : () -> ()
    %cst_84 = arith.constant 2.500000e-01 : f32
    %205 = vector.broadcast %cst_84 : f32 to vector<2x8x8xf32>
    %206 = arith.mulf %204, %205 : vector<2x8x8xf32>
    %207 = vector.broadcast %6 : vector<1x8x8xf32> to vector<2x8x8xf32>
    %208 = arith.addf %206, %207 : vector<2x8x8xf32>
    %cst_85 = arith.constant dense<0xFF800000> : vector<2x8xf32>
    %209 = vector.multi_reduction <maximumf>, %208, %cst_85 [2] : vector<2x8x8xf32> to vector<2x8xf32>
    %210 = vector.shape_cast %209 : vector<2x8xf32> to vector<2x8x1xf32>
    %211 = vector.broadcast %210 : vector<2x8x1xf32> to vector<2x8x8xf32>
    %212 = arith.subf %208, %211 : vector<2x8x8xf32>
    %213 = math.exp %212 : vector<2x8x8xf32>
    %cst_86 = arith.constant dense<0.000000e+00> : vector<2x8xf32>
    %214 = vector.multi_reduction <add>, %213, %cst_86 [2] : vector<2x8x8xf32> to vector<2x8xf32>
    %215 = vector.shape_cast %214 : vector<2x8xf32> to vector<2x8x1xf32>
    %216 = tpu.reciprocal %215 {approx = true} : vector<2x8x1xf32> -> vector<2x8x1xf32>
    %217 = vector.broadcast %216 : vector<2x8x1xf32> to vector<2x8x8xf32>
    %218 = arith.mulf %213, %217 : vector<2x8x8xf32>
    "tpu.trace_start"() <{level = 10 : i32, message = "bts,bsd->btd"}> : () -> ()
    %cst_87 = arith.constant dense<0.000000e+00> : vector<2x8x16xf32>
    %219 = tpu.matmul %218, %203, %cst_87 {dimension_numbers = #tpu.dot_dimension_numbers<[2], [1], [1], [2], [0, 0, 0, 1, 1, 2], [0], [0]>} : vector<2x8x8xf32>, vector<2x8x16xf32>, vector<2x8x16xf32> -> vector<2x8x16xf32>
    "tpu.trace_stop"() : () -> ()
    %220 = vector.shape_cast %219 : vector<2x8x16xf32> to vector<16x16xf32>
    %c960 = arith.constant 960 : index
    %c0_88 = arith.constant 0 : index
    %221 = vector.load %arg2[%c960, %c0_88] : memref<2664x256xf32, #tpu.memory_space<vmem>>, vector<16x64xf32>
    %cst_89 = arith.constant dense<0.000000e+00> : vector<16x64xf32>
    %222 = tpu.matmul %220, %221, %cst_89 {dimension_numbers = #tpu.dot_dimension_numbers<[1], [0], [0], [1], [0, 0, 1, 1], [], []>} : vector<16x16xf32>, vector<16x64xf32>, vector<16x64xf32> -> vector<16x64xf32>
    %223 = arith.addf %185, %222 : vector<16x64xf32>
    %224 = arith.addf %49, %223 : vector<16x64xf32>
    %c976 = arith.constant 976 : index
    %c0_90 = arith.constant 0 : index
    %225 = vector.load %arg2[%c976, %c0_90] : memref<2664x256xf32, #tpu.memory_space<vmem>>, vector<1x64xf32>
    %226 = vector.broadcast %225 : vector<1x64xf32> to vector<16x64xf32>
    %227 = arith.addf %224, %226 : vector<16x64xf32>
    %c984 = arith.constant 984 : index
    %c0_91 = arith.constant 0 : index
    %228 = vector.load %arg2[%c984, %c0_91] : memref<2664x256xf32, #tpu.memory_space<vmem>>, vector<2x64xf32>
    %cst_92 = arith.constant dense<0.000000e+00> : vector<16xf32>
    %229 = vector.multi_reduction <add>, %227, %cst_92 [1] : vector<16x64xf32> to vector<16xf32>
    %230 = vector.shape_cast %229 : vector<16xf32> to vector<16x1xf32>
    %cst_93 = arith.constant 6.400000e+01 : f32
    %231 = vector.broadcast %cst_93 : f32 to vector<16x1xf32>
    %232 = arith.divf %230, %231 : vector<16x1xf32>
    %233 = vector.broadcast %232 : vector<16x1xf32> to vector<16x64xf32>
    %234 = arith.subf %227, %233 : vector<16x64xf32>
    %235 = arith.mulf %234, %234 : vector<16x64xf32>
    %cst_94 = arith.constant dense<0.000000e+00> : vector<16xf32>
    %236 = vector.multi_reduction <add>, %235, %cst_94 [1] : vector<16x64xf32> to vector<16xf32>
    %237 = vector.shape_cast %236 : vector<16xf32> to vector<16x1xf32>
    %cst_95 = arith.constant 6.400000e+01 : f32
    %238 = vector.broadcast %cst_95 : f32 to vector<16x1xf32>
    %239 = arith.divf %237, %238 : vector<16x1xf32>
    %cst_96 = arith.constant 9.99999974E-6 : f32
    %240 = vector.broadcast %cst_96 : f32 to vector<16x1xf32>
    %241 = arith.addf %239, %240 : vector<16x1xf32>
    %242 = math.rsqrt %241 : vector<16x1xf32>
    %243 = vector.broadcast %242 : vector<16x1xf32> to vector<16x64xf32>
    %244 = arith.mulf %234, %243 : vector<16x64xf32>
    %245 = vector.extract_strided_slice %228 {offsets = [0, 0], sizes = [1, 64], strides = [1, 1]} : vector<2x64xf32> to vector<1x64xf32>
    %246 = vector.broadcast %245 : vector<1x64xf32> to vector<16x64xf32>
    %247 = arith.mulf %244, %246 : vector<16x64xf32>
    %248 = vector.extract_strided_slice %228 {offsets = [1, 0], sizes = [1, 64], strides = [1, 1]} : vector<2x64xf32> to vector<1x64xf32>
    %249 = vector.broadcast %248 : vector<1x64xf32> to vector<16x64xf32>
    %250 = arith.addf %247, %249 : vector<16x64xf32>
    %c992 = arith.constant 992 : index
    %c0_97 = arith.constant 0 : index
    %251 = vector.load %arg2[%c992, %c0_97] : memref<2664x256xf32, #tpu.memory_space<vmem>>, vector<64x256xf32>
    %cst_98 = arith.constant dense<0.000000e+00> : vector<16x256xf32>
    %252 = tpu.matmul %250, %251, %cst_98 {dimension_numbers = #tpu.dot_dimension_numbers<[1], [0], [0], [1], [0, 0, 1, 1], [], []>} : vector<16x64xf32>, vector<64x256xf32>, vector<16x256xf32> -> vector<16x256xf32>
    %c1056 = arith.constant 1056 : index
    %c0_99 = arith.constant 0 : index
    %253 = vector.load %arg2[%c1056, %c0_99] : memref<2664x256xf32, #tpu.memory_space<vmem>>, vector<1x256xf32>
    %254 = vector.broadcast %253 : vector<1x256xf32> to vector<16x256xf32>
    %255 = arith.addf %252, %254 : vector<16x256xf32>
    %cst_100 = arith.constant 5.000000e-01 : f32
    %256 = vector.broadcast %cst_100 : f32 to vector<16x256xf32>
    %257 = arith.mulf %256, %255 : vector<16x256xf32>
    %258 = arith.mulf %255, %255 : vector<16x256xf32>
    %259 = arith.mulf %258, %255 : vector<16x256xf32>
    %cst_101 = arith.constant 4.471500e-02 : f32
    %260 = vector.broadcast %cst_101 : f32 to vector<16x256xf32>
    %261 = arith.mulf %260, %259 : vector<16x256xf32>
    %262 = arith.addf %255, %261 : vector<16x256xf32>
    %cst_102 = arith.constant 0.797884583 : f32
    %263 = vector.broadcast %cst_102 : f32 to vector<16x256xf32>
    %264 = arith.mulf %263, %262 : vector<16x256xf32>
    %265 = math.tanh %264 : vector<16x256xf32>
    %cst_103 = arith.constant 1.000000e+00 : f32
    %266 = vector.broadcast %cst_103 : f32 to vector<16x256xf32>
    %267 = arith.addf %266, %265 : vector<16x256xf32>
    %268 = arith.mulf %257, %267 : vector<16x256xf32>
    %c1064 = arith.constant 1064 : index
    %c0_104 = arith.constant 0 : index
    %269 = vector.load %arg2[%c1064, %c0_104] : memref<2664x256xf32, #tpu.memory_space<vmem>>, vector<256x64xf32>
    %cst_105 = arith.constant dense<0.000000e+00> : vector<16x64xf32>
    %270 = tpu.matmul %268, %269, %cst_105 {dimension_numbers = #tpu.dot_dimension_numbers<[1], [0], [0], [1], [0, 0, 1, 1], [], []>} : vector<16x256xf32>, vector<256x64xf32>, vector<16x64xf32> -> vector<16x64xf32>
    %c1320 = arith.constant 1320 : index
    %c0_106 = arith.constant 0 : index
    %271 = vector.load %arg2[%c1320, %c0_106] : memref<2664x256xf32, #tpu.memory_space<vmem>>, vector<1x64xf32>
    %272 = vector.broadcast %271 : vector<1x64xf32> to vector<16x64xf32>
    %273 = arith.addf %270, %272 : vector<16x64xf32>
    %274 = arith.addf %227, %273 : vector<16x64xf32>
    %c1328 = arith.constant 1328 : index
    %c0_107 = arith.constant 0 : index
    %275 = vector.load %arg2[%c1328, %c0_107] : memref<2664x256xf32, #tpu.memory_space<vmem>>, vector<2x64xf32>
    %cst_108 = arith.constant dense<0.000000e+00> : vector<16xf32>
    %276 = vector.multi_reduction <add>, %274, %cst_108 [1] : vector<16x64xf32> to vector<16xf32>
    %277 = vector.shape_cast %276 : vector<16xf32> to vector<16x1xf32>
    %cst_109 = arith.constant 6.400000e+01 : f32
    %278 = vector.broadcast %cst_109 : f32 to vector<16x1xf32>
    %279 = arith.divf %277, %278 : vector<16x1xf32>
    %280 = vector.broadcast %279 : vector<16x1xf32> to vector<16x64xf32>
    %281 = arith.subf %274, %280 : vector<16x64xf32>
    %282 = arith.mulf %281, %281 : vector<16x64xf32>
    %cst_110 = arith.constant dense<0.000000e+00> : vector<16xf32>
    %283 = vector.multi_reduction <add>, %282, %cst_110 [1] : vector<16x64xf32> to vector<16xf32>
    %284 = vector.shape_cast %283 : vector<16xf32> to vector<16x1xf32>
    %cst_111 = arith.constant 6.400000e+01 : f32
    %285 = vector.broadcast %cst_111 : f32 to vector<16x1xf32>
    %286 = arith.divf %284, %285 : vector<16x1xf32>
    %cst_112 = arith.constant 9.99999974E-6 : f32
    %287 = vector.broadcast %cst_112 : f32 to vector<16x1xf32>
    %288 = arith.addf %286, %287 : vector<16x1xf32>
    %289 = math.rsqrt %288 : vector<16x1xf32>
    %290 = vector.broadcast %289 : vector<16x1xf32> to vector<16x64xf32>
    %291 = arith.mulf %281, %290 : vector<16x64xf32>
    %292 = vector.extract_strided_slice %275 {offsets = [0, 0], sizes = [1, 64], strides = [1, 1]} : vector<2x64xf32> to vector<1x64xf32>
    %293 = vector.broadcast %292 : vector<1x64xf32> to vector<16x64xf32>
    %294 = arith.mulf %291, %293 : vector<16x64xf32>
    %295 = vector.extract_strided_slice %275 {offsets = [1, 0], sizes = [1, 64], strides = [1, 1]} : vector<2x64xf32> to vector<1x64xf32>
    %296 = vector.broadcast %295 : vector<1x64xf32> to vector<16x64xf32>
    %297 = arith.addf %294, %296 : vector<16x64xf32>
    %c1336 = arith.constant 1336 : index
    %c0_113 = arith.constant 0 : index
    %298 = vector.load %arg2[%c1336, %c0_113] : memref<2664x256xf32, #tpu.memory_space<vmem>>, vector<64x16xf32>
    %c1600 = arith.constant 1600 : index
    %c0_114 = arith.constant 0 : index
    %299 = vector.load %arg2[%c1600, %c0_114] : memref<2664x256xf32, #tpu.memory_space<vmem>>, vector<64x16xf32>
    %c1864 = arith.constant 1864 : index
    %c0_115 = arith.constant 0 : index
    %300 = vector.load %arg2[%c1864, %c0_115] : memref<2664x256xf32, #tpu.memory_space<vmem>>, vector<64x16xf32>
    %c1592 = arith.constant 1592 : index
    %c0_116 = arith.constant 0 : index
    %301 = vector.load %arg2[%c1592, %c0_116] : memref<2664x256xf32, #tpu.memory_space<vmem>>, vector<1x16xf32>
    %c1856 = arith.constant 1856 : index
    %c0_117 = arith.constant 0 : index
    %302 = vector.load %arg2[%c1856, %c0_117] : memref<2664x256xf32, #tpu.memory_space<vmem>>, vector<1x16xf32>
    %c2120 = arith.constant 2120 : index
    %c0_118 = arith.constant 0 : index
    %303 = vector.load %arg2[%c2120, %c0_118] : memref<2664x256xf32, #tpu.memory_space<vmem>>, vector<1x16xf32>
    %cst_119 = arith.constant dense<0.000000e+00> : vector<16x16xf32>
    %304 = tpu.matmul %297, %298, %cst_119 {dimension_numbers = #tpu.dot_dimension_numbers<[1], [0], [0], [1], [0, 0, 1, 1], [], []>} : vector<16x64xf32>, vector<64x16xf32>, vector<16x16xf32> -> vector<16x16xf32>
    %305 = vector.broadcast %301 : vector<1x16xf32> to vector<16x16xf32>
    %306 = arith.addf %304, %305 : vector<16x16xf32>
    %307 = vector.shape_cast %306 : vector<16x16xf32> to vector<2x8x16xf32>
    %cst_120 = arith.constant dense<0.000000e+00> : vector<16x16xf32>
    %308 = tpu.matmul %297, %299, %cst_120 {dimension_numbers = #tpu.dot_dimension_numbers<[1], [0], [0], [1], [0, 0, 1, 1], [], []>} : vector<16x64xf32>, vector<64x16xf32>, vector<16x16xf32> -> vector<16x16xf32>
    %309 = vector.broadcast %302 : vector<1x16xf32> to vector<16x16xf32>
    %310 = arith.addf %308, %309 : vector<16x16xf32>
    %311 = vector.shape_cast %310 : vector<16x16xf32> to vector<2x8x16xf32>
    %cst_121 = arith.constant dense<0.000000e+00> : vector<16x16xf32>
    %312 = tpu.matmul %297, %300, %cst_121 {dimension_numbers = #tpu.dot_dimension_numbers<[1], [0], [0], [1], [0, 0, 1, 1], [], []>} : vector<16x64xf32>, vector<64x16xf32>, vector<16x16xf32> -> vector<16x16xf32>
    %313 = vector.broadcast %303 : vector<1x16xf32> to vector<16x16xf32>
    %314 = arith.addf %312, %313 : vector<16x16xf32>
    %315 = vector.shape_cast %314 : vector<16x16xf32> to vector<2x8x16xf32>
    "tpu.trace_start"() <{level = 10 : i32, message = "btd,bsd->bts"}> : () -> ()
    %cst_122 = arith.constant dense<0.000000e+00> : vector<2x8x8xf32>
    %316 = tpu.matmul %307, %311, %cst_122 {dimension_numbers = #tpu.dot_dimension_numbers<[2], [2], [1], [1], [0, 0, 0, 1, 1, 1], [0], [0]>} : vector<2x8x16xf32>, vector<2x8x16xf32>, vector<2x8x8xf32> -> vector<2x8x8xf32>
    "tpu.trace_stop"() : () -> ()
    %cst_123 = arith.constant 2.500000e-01 : f32
    %317 = vector.broadcast %cst_123 : f32 to vector<2x8x8xf32>
    %318 = arith.mulf %316, %317 : vector<2x8x8xf32>
    %319 = vector.broadcast %6 : vector<1x8x8xf32> to vector<2x8x8xf32>
    %320 = arith.addf %318, %319 : vector<2x8x8xf32>
    %cst_124 = arith.constant dense<0xFF800000> : vector<2x8xf32>
    %321 = vector.multi_reduction <maximumf>, %320, %cst_124 [2] : vector<2x8x8xf32> to vector<2x8xf32>
    %322 = vector.shape_cast %321 : vector<2x8xf32> to vector<2x8x1xf32>
    %323 = vector.broadcast %322 : vector<2x8x1xf32> to vector<2x8x8xf32>
    %324 = arith.subf %320, %323 : vector<2x8x8xf32>
    %325 = math.exp %324 : vector<2x8x8xf32>
    %cst_125 = arith.constant dense<0.000000e+00> : vector<2x8xf32>
    %326 = vector.multi_reduction <add>, %325, %cst_125 [2] : vector<2x8x8xf32> to vector<2x8xf32>
    %327 = vector.shape_cast %326 : vector<2x8xf32> to vector<2x8x1xf32>
    %328 = tpu.reciprocal %327 {approx = true} : vector<2x8x1xf32> -> vector<2x8x1xf32>
    %329 = vector.broadcast %328 : vector<2x8x1xf32> to vector<2x8x8xf32>
    %330 = arith.mulf %325, %329 : vector<2x8x8xf32>
    "tpu.trace_start"() <{level = 10 : i32, message = "bts,bsd->btd"}> : () -> ()
    %cst_126 = arith.constant dense<0.000000e+00> : vector<2x8x16xf32>
    %331 = tpu.matmul %330, %315, %cst_126 {dimension_numbers = #tpu.dot_dimension_numbers<[2], [1], [1], [2], [0, 0, 0, 1, 1, 2], [0], [0]>} : vector<2x8x8xf32>, vector<2x8x16xf32>, vector<2x8x16xf32> -> vector<2x8x16xf32>
    "tpu.trace_stop"() : () -> ()
    %332 = vector.shape_cast %331 : vector<2x8x16xf32> to vector<16x16xf32>
    %c2128 = arith.constant 2128 : index
    %c0_127 = arith.constant 0 : index
    %333 = vector.load %arg2[%c2128, %c0_127] : memref<2664x256xf32, #tpu.memory_space<vmem>>, vector<16x64xf32>
    %cst_128 = arith.constant dense<0.000000e+00> : vector<16x64xf32>
    %334 = tpu.matmul %332, %333, %cst_128 {dimension_numbers = #tpu.dot_dimension_numbers<[1], [0], [0], [1], [0, 0, 1, 1], [], []>} : vector<16x16xf32>, vector<16x64xf32>, vector<16x64xf32> -> vector<16x64xf32>
    %c1400 = arith.constant 1400 : index
    %c0_129 = arith.constant 0 : index
    %335 = vector.load %arg2[%c1400, %c0_129] : memref<2664x256xf32, #tpu.memory_space<vmem>>, vector<64x16xf32>
    %c1664 = arith.constant 1664 : index
    %c0_130 = arith.constant 0 : index
    %336 = vector.load %arg2[%c1664, %c0_130] : memref<2664x256xf32, #tpu.memory_space<vmem>>, vector<64x16xf32>
    %c1928 = arith.constant 1928 : index
    %c0_131 = arith.constant 0 : index
    %337 = vector.load %arg2[%c1928, %c0_131] : memref<2664x256xf32, #tpu.memory_space<vmem>>, vector<64x16xf32>
    %c1593 = arith.constant 1593 : index
    %c0_132 = arith.constant 0 : index
    %338 = vector.load %arg2[%c1593, %c0_132] : memref<2664x256xf32, #tpu.memory_space<vmem>>, vector<1x16xf32>
    %c1857 = arith.constant 1857 : index
    %c0_133 = arith.constant 0 : index
    %339 = vector.load %arg2[%c1857, %c0_133] : memref<2664x256xf32, #tpu.memory_space<vmem>>, vector<1x16xf32>
    %c2121 = arith.constant 2121 : index
    %c0_134 = arith.constant 0 : index
    %340 = vector.load %arg2[%c2121, %c0_134] : memref<2664x256xf32, #tpu.memory_space<vmem>>, vector<1x16xf32>
    %cst_135 = arith.constant dense<0.000000e+00> : vector<16x16xf32>
    %341 = tpu.matmul %297, %335, %cst_135 {dimension_numbers = #tpu.dot_dimension_numbers<[1], [0], [0], [1], [0, 0, 1, 1], [], []>} : vector<16x64xf32>, vector<64x16xf32>, vector<16x16xf32> -> vector<16x16xf32>
    %342 = vector.broadcast %338 : vector<1x16xf32> to vector<16x16xf32>
    %343 = arith.addf %341, %342 : vector<16x16xf32>
    %344 = vector.shape_cast %343 : vector<16x16xf32> to vector<2x8x16xf32>
    %cst_136 = arith.constant dense<0.000000e+00> : vector<16x16xf32>
    %345 = tpu.matmul %297, %336, %cst_136 {dimension_numbers = #tpu.dot_dimension_numbers<[1], [0], [0], [1], [0, 0, 1, 1], [], []>} : vector<16x64xf32>, vector<64x16xf32>, vector<16x16xf32> -> vector<16x16xf32>
    %346 = vector.broadcast %339 : vector<1x16xf32> to vector<16x16xf32>
    %347 = arith.addf %345, %346 : vector<16x16xf32>
    %348 = vector.shape_cast %347 : vector<16x16xf32> to vector<2x8x16xf32>
    %cst_137 = arith.constant dense<0.000000e+00> : vector<16x16xf32>
    %349 = tpu.matmul %297, %337, %cst_137 {dimension_numbers = #tpu.dot_dimension_numbers<[1], [0], [0], [1], [0, 0, 1, 1], [], []>} : vector<16x64xf32>, vector<64x16xf32>, vector<16x16xf32> -> vector<16x16xf32>
    %350 = vector.broadcast %340 : vector<1x16xf32> to vector<16x16xf32>
    %351 = arith.addf %349, %350 : vector<16x16xf32>
    %352 = vector.shape_cast %351 : vector<16x16xf32> to vector<2x8x16xf32>
    "tpu.trace_start"() <{level = 10 : i32, message = "btd,bsd->bts"}> : () -> ()
    %cst_138 = arith.constant dense<0.000000e+00> : vector<2x8x8xf32>
    %353 = tpu.matmul %344, %348, %cst_138 {dimension_numbers = #tpu.dot_dimension_numbers<[2], [2], [1], [1], [0, 0, 0, 1, 1, 1], [0], [0]>} : vector<2x8x16xf32>, vector<2x8x16xf32>, vector<2x8x8xf32> -> vector<2x8x8xf32>
    "tpu.trace_stop"() : () -> ()
    %cst_139 = arith.constant 2.500000e-01 : f32
    %354 = vector.broadcast %cst_139 : f32 to vector<2x8x8xf32>
    %355 = arith.mulf %353, %354 : vector<2x8x8xf32>
    %356 = vector.broadcast %6 : vector<1x8x8xf32> to vector<2x8x8xf32>
    %357 = arith.addf %355, %356 : vector<2x8x8xf32>
    %cst_140 = arith.constant dense<0xFF800000> : vector<2x8xf32>
    %358 = vector.multi_reduction <maximumf>, %357, %cst_140 [2] : vector<2x8x8xf32> to vector<2x8xf32>
    %359 = vector.shape_cast %358 : vector<2x8xf32> to vector<2x8x1xf32>
    %360 = vector.broadcast %359 : vector<2x8x1xf32> to vector<2x8x8xf32>
    %361 = arith.subf %357, %360 : vector<2x8x8xf32>
    %362 = math.exp %361 : vector<2x8x8xf32>
    %cst_141 = arith.constant dense<0.000000e+00> : vector<2x8xf32>
    %363 = vector.multi_reduction <add>, %362, %cst_141 [2] : vector<2x8x8xf32> to vector<2x8xf32>
    %364 = vector.shape_cast %363 : vector<2x8xf32> to vector<2x8x1xf32>
    %365 = tpu.reciprocal %364 {approx = true} : vector<2x8x1xf32> -> vector<2x8x1xf32>
    %366 = vector.broadcast %365 : vector<2x8x1xf32> to vector<2x8x8xf32>
    %367 = arith.mulf %362, %366 : vector<2x8x8xf32>
    "tpu.trace_start"() <{level = 10 : i32, message = "bts,bsd->btd"}> : () -> ()
    %cst_142 = arith.constant dense<0.000000e+00> : vector<2x8x16xf32>
    %368 = tpu.matmul %367, %352, %cst_142 {dimension_numbers = #tpu.dot_dimension_numbers<[2], [1], [1], [2], [0, 0, 0, 1, 1, 2], [0], [0]>} : vector<2x8x8xf32>, vector<2x8x16xf32>, vector<2x8x16xf32> -> vector<2x8x16xf32>
    "tpu.trace_stop"() : () -> ()
    %369 = vector.shape_cast %368 : vector<2x8x16xf32> to vector<16x16xf32>
    %c2144 = arith.constant 2144 : index
    %c0_143 = arith.constant 0 : index
    %370 = vector.load %arg2[%c2144, %c0_143] : memref<2664x256xf32, #tpu.memory_space<vmem>>, vector<16x64xf32>
    %cst_144 = arith.constant dense<0.000000e+00> : vector<16x64xf32>
    %371 = tpu.matmul %369, %370, %cst_144 {dimension_numbers = #tpu.dot_dimension_numbers<[1], [0], [0], [1], [0, 0, 1, 1], [], []>} : vector<16x16xf32>, vector<16x64xf32>, vector<16x64xf32> -> vector<16x64xf32>
    %372 = arith.addf %334, %371 : vector<16x64xf32>
    %c1464 = arith.constant 1464 : index
    %c0_145 = arith.constant 0 : index
    %373 = vector.load %arg2[%c1464, %c0_145] : memref<2664x256xf32, #tpu.memory_space<vmem>>, vector<64x16xf32>
    %c1728 = arith.constant 1728 : index
    %c0_146 = arith.constant 0 : index
    %374 = vector.load %arg2[%c1728, %c0_146] : memref<2664x256xf32, #tpu.memory_space<vmem>>, vector<64x16xf32>
    %c1992 = arith.constant 1992 : index
    %c0_147 = arith.constant 0 : index
    %375 = vector.load %arg2[%c1992, %c0_147] : memref<2664x256xf32, #tpu.memory_space<vmem>>, vector<64x16xf32>
    %c1594 = arith.constant 1594 : index
    %c0_148 = arith.constant 0 : index
    %376 = vector.load %arg2[%c1594, %c0_148] : memref<2664x256xf32, #tpu.memory_space<vmem>>, vector<1x16xf32>
    %c1858 = arith.constant 1858 : index
    %c0_149 = arith.constant 0 : index
    %377 = vector.load %arg2[%c1858, %c0_149] : memref<2664x256xf32, #tpu.memory_space<vmem>>, vector<1x16xf32>
    %c2122 = arith.constant 2122 : index
    %c0_150 = arith.constant 0 : index
    %378 = vector.load %arg2[%c2122, %c0_150] : memref<2664x256xf32, #tpu.memory_space<vmem>>, vector<1x16xf32>
    %cst_151 = arith.constant dense<0.000000e+00> : vector<16x16xf32>
    %379 = tpu.matmul %297, %373, %cst_151 {dimension_numbers = #tpu.dot_dimension_numbers<[1], [0], [0], [1], [0, 0, 1, 1], [], []>} : vector<16x64xf32>, vector<64x16xf32>, vector<16x16xf32> -> vector<16x16xf32>
    %380 = vector.broadcast %376 : vector<1x16xf32> to vector<16x16xf32>
    %381 = arith.addf %379, %380 : vector<16x16xf32>
    %382 = vector.shape_cast %381 : vector<16x16xf32> to vector<2x8x16xf32>
    %cst_152 = arith.constant dense<0.000000e+00> : vector<16x16xf32>
    %383 = tpu.matmul %297, %374, %cst_152 {dimension_numbers = #tpu.dot_dimension_numbers<[1], [0], [0], [1], [0, 0, 1, 1], [], []>} : vector<16x64xf32>, vector<64x16xf32>, vector<16x16xf32> -> vector<16x16xf32>
    %384 = vector.broadcast %377 : vector<1x16xf32> to vector<16x16xf32>
    %385 = arith.addf %383, %384 : vector<16x16xf32>
    %386 = vector.shape_cast %385 : vector<16x16xf32> to vector<2x8x16xf32>
    %cst_153 = arith.constant dense<0.000000e+00> : vector<16x16xf32>
    %387 = tpu.matmul %297, %375, %cst_153 {dimension_numbers = #tpu.dot_dimension_numbers<[1], [0], [0], [1], [0, 0, 1, 1], [], []>} : vector<16x64xf32>, vector<64x16xf32>, vector<16x16xf32> -> vector<16x16xf32>
    %388 = vector.broadcast %378 : vector<1x16xf32> to vector<16x16xf32>
    %389 = arith.addf %387, %388 : vector<16x16xf32>
    %390 = vector.shape_cast %389 : vector<16x16xf32> to vector<2x8x16xf32>
    "tpu.trace_start"() <{level = 10 : i32, message = "btd,bsd->bts"}> : () -> ()
    %cst_154 = arith.constant dense<0.000000e+00> : vector<2x8x8xf32>
    %391 = tpu.matmul %382, %386, %cst_154 {dimension_numbers = #tpu.dot_dimension_numbers<[2], [2], [1], [1], [0, 0, 0, 1, 1, 1], [0], [0]>} : vector<2x8x16xf32>, vector<2x8x16xf32>, vector<2x8x8xf32> -> vector<2x8x8xf32>
    "tpu.trace_stop"() : () -> ()
    %cst_155 = arith.constant 2.500000e-01 : f32
    %392 = vector.broadcast %cst_155 : f32 to vector<2x8x8xf32>
    %393 = arith.mulf %391, %392 : vector<2x8x8xf32>
    %394 = vector.broadcast %6 : vector<1x8x8xf32> to vector<2x8x8xf32>
    %395 = arith.addf %393, %394 : vector<2x8x8xf32>
    %cst_156 = arith.constant dense<0xFF800000> : vector<2x8xf32>
    %396 = vector.multi_reduction <maximumf>, %395, %cst_156 [2] : vector<2x8x8xf32> to vector<2x8xf32>
    %397 = vector.shape_cast %396 : vector<2x8xf32> to vector<2x8x1xf32>
    %398 = vector.broadcast %397 : vector<2x8x1xf32> to vector<2x8x8xf32>
    %399 = arith.subf %395, %398 : vector<2x8x8xf32>
    %400 = math.exp %399 : vector<2x8x8xf32>
    %cst_157 = arith.constant dense<0.000000e+00> : vector<2x8xf32>
    %401 = vector.multi_reduction <add>, %400, %cst_157 [2] : vector<2x8x8xf32> to vector<2x8xf32>
    %402 = vector.shape_cast %401 : vector<2x8xf32> to vector<2x8x1xf32>
    %403 = tpu.reciprocal %402 {approx = true} : vector<2x8x1xf32> -> vector<2x8x1xf32>
    %404 = vector.broadcast %403 : vector<2x8x1xf32> to vector<2x8x8xf32>
    %405 = arith.mulf %400, %404 : vector<2x8x8xf32>
    "tpu.trace_start"() <{level = 10 : i32, message = "bts,bsd->btd"}> : () -> ()
    %cst_158 = arith.constant dense<0.000000e+00> : vector<2x8x16xf32>
    %406 = tpu.matmul %405, %390, %cst_158 {dimension_numbers = #tpu.dot_dimension_numbers<[2], [1], [1], [2], [0, 0, 0, 1, 1, 2], [0], [0]>} : vector<2x8x8xf32>, vector<2x8x16xf32>, vector<2x8x16xf32> -> vector<2x8x16xf32>
    "tpu.trace_stop"() : () -> ()
    %407 = vector.shape_cast %406 : vector<2x8x16xf32> to vector<16x16xf32>
    %c2160 = arith.constant 2160 : index
    %c0_159 = arith.constant 0 : index
    %408 = vector.load %arg2[%c2160, %c0_159] : memref<2664x256xf32, #tpu.memory_space<vmem>>, vector<16x64xf32>
    %cst_160 = arith.constant dense<0.000000e+00> : vector<16x64xf32>
    %409 = tpu.matmul %407, %408, %cst_160 {dimension_numbers = #tpu.dot_dimension_numbers<[1], [0], [0], [1], [0, 0, 1, 1], [], []>} : vector<16x16xf32>, vector<16x64xf32>, vector<16x64xf32> -> vector<16x64xf32>
    %410 = arith.addf %372, %409 : vector<16x64xf32>
    %c1528 = arith.constant 1528 : index
    %c0_161 = arith.constant 0 : index
    %411 = vector.load %arg2[%c1528, %c0_161] : memref<2664x256xf32, #tpu.memory_space<vmem>>, vector<64x16xf32>
    %c1792 = arith.constant 1792 : index
    %c0_162 = arith.constant 0 : index
    %412 = vector.load %arg2[%c1792, %c0_162] : memref<2664x256xf32, #tpu.memory_space<vmem>>, vector<64x16xf32>
    %c2056 = arith.constant 2056 : index
    %c0_163 = arith.constant 0 : index
    %413 = vector.load %arg2[%c2056, %c0_163] : memref<2664x256xf32, #tpu.memory_space<vmem>>, vector<64x16xf32>
    %c1595 = arith.constant 1595 : index
    %c0_164 = arith.constant 0 : index
    %414 = vector.load %arg2[%c1595, %c0_164] : memref<2664x256xf32, #tpu.memory_space<vmem>>, vector<1x16xf32>
    %c1859 = arith.constant 1859 : index
    %c0_165 = arith.constant 0 : index
    %415 = vector.load %arg2[%c1859, %c0_165] : memref<2664x256xf32, #tpu.memory_space<vmem>>, vector<1x16xf32>
    %c2123 = arith.constant 2123 : index
    %c0_166 = arith.constant 0 : index
    %416 = vector.load %arg2[%c2123, %c0_166] : memref<2664x256xf32, #tpu.memory_space<vmem>>, vector<1x16xf32>
    %cst_167 = arith.constant dense<0.000000e+00> : vector<16x16xf32>
    %417 = tpu.matmul %297, %411, %cst_167 {dimension_numbers = #tpu.dot_dimension_numbers<[1], [0], [0], [1], [0, 0, 1, 1], [], []>} : vector<16x64xf32>, vector<64x16xf32>, vector<16x16xf32> -> vector<16x16xf32>
    %418 = vector.broadcast %414 : vector<1x16xf32> to vector<16x16xf32>
    %419 = arith.addf %417, %418 : vector<16x16xf32>
    %420 = vector.shape_cast %419 : vector<16x16xf32> to vector<2x8x16xf32>
    %cst_168 = arith.constant dense<0.000000e+00> : vector<16x16xf32>
    %421 = tpu.matmul %297, %412, %cst_168 {dimension_numbers = #tpu.dot_dimension_numbers<[1], [0], [0], [1], [0, 0, 1, 1], [], []>} : vector<16x64xf32>, vector<64x16xf32>, vector<16x16xf32> -> vector<16x16xf32>
    %422 = vector.broadcast %415 : vector<1x16xf32> to vector<16x16xf32>
    %423 = arith.addf %421, %422 : vector<16x16xf32>
    %424 = vector.shape_cast %423 : vector<16x16xf32> to vector<2x8x16xf32>
    %cst_169 = arith.constant dense<0.000000e+00> : vector<16x16xf32>
    %425 = tpu.matmul %297, %413, %cst_169 {dimension_numbers = #tpu.dot_dimension_numbers<[1], [0], [0], [1], [0, 0, 1, 1], [], []>} : vector<16x64xf32>, vector<64x16xf32>, vector<16x16xf32> -> vector<16x16xf32>
    %426 = vector.broadcast %416 : vector<1x16xf32> to vector<16x16xf32>
    %427 = arith.addf %425, %426 : vector<16x16xf32>
    %428 = vector.shape_cast %427 : vector<16x16xf32> to vector<2x8x16xf32>
    "tpu.trace_start"() <{level = 10 : i32, message = "btd,bsd->bts"}> : () -> ()
    %cst_170 = arith.constant dense<0.000000e+00> : vector<2x8x8xf32>
    %429 = tpu.matmul %420, %424, %cst_170 {dimension_numbers = #tpu.dot_dimension_numbers<[2], [2], [1], [1], [0, 0, 0, 1, 1, 1], [0], [0]>} : vector<2x8x16xf32>, vector<2x8x16xf32>, vector<2x8x8xf32> -> vector<2x8x8xf32>
    "tpu.trace_stop"() : () -> ()
    %cst_171 = arith.constant 2.500000e-01 : f32
    %430 = vector.broadcast %cst_171 : f32 to vector<2x8x8xf32>
    %431 = arith.mulf %429, %430 : vector<2x8x8xf32>
    %432 = vector.broadcast %6 : vector<1x8x8xf32> to vector<2x8x8xf32>
    %433 = arith.addf %431, %432 : vector<2x8x8xf32>
    %cst_172 = arith.constant dense<0xFF800000> : vector<2x8xf32>
    %434 = vector.multi_reduction <maximumf>, %433, %cst_172 [2] : vector<2x8x8xf32> to vector<2x8xf32>
    %435 = vector.shape_cast %434 : vector<2x8xf32> to vector<2x8x1xf32>
    %436 = vector.broadcast %435 : vector<2x8x1xf32> to vector<2x8x8xf32>
    %437 = arith.subf %433, %436 : vector<2x8x8xf32>
    %438 = math.exp %437 : vector<2x8x8xf32>
    %cst_173 = arith.constant dense<0.000000e+00> : vector<2x8xf32>
    %439 = vector.multi_reduction <add>, %438, %cst_173 [2] : vector<2x8x8xf32> to vector<2x8xf32>
    %440 = vector.shape_cast %439 : vector<2x8xf32> to vector<2x8x1xf32>
    %441 = tpu.reciprocal %440 {approx = true} : vector<2x8x1xf32> -> vector<2x8x1xf32>
    %442 = vector.broadcast %441 : vector<2x8x1xf32> to vector<2x8x8xf32>
    %443 = arith.mulf %438, %442 : vector<2x8x8xf32>
    "tpu.trace_start"() <{level = 10 : i32, message = "bts,bsd->btd"}> : () -> ()
    %cst_174 = arith.constant dense<0.000000e+00> : vector<2x8x16xf32>
    %444 = tpu.matmul %443, %428, %cst_174 {dimension_numbers = #tpu.dot_dimension_numbers<[2], [1], [1], [2], [0, 0, 0, 1, 1, 2], [0], [0]>} : vector<2x8x8xf32>, vector<2x8x16xf32>, vector<2x8x16xf32> -> vector<2x8x16xf32>
    "tpu.trace_stop"() : () -> ()
    %445 = vector.shape_cast %444 : vector<2x8x16xf32> to vector<16x16xf32>
    %c2176 = arith.constant 2176 : index
    %c0_175 = arith.constant 0 : index
    %446 = vector.load %arg2[%c2176, %c0_175] : memref<2664x256xf32, #tpu.memory_space<vmem>>, vector<16x64xf32>
    %cst_176 = arith.constant dense<0.000000e+00> : vector<16x64xf32>
    %447 = tpu.matmul %445, %446, %cst_176 {dimension_numbers = #tpu.dot_dimension_numbers<[1], [0], [0], [1], [0, 0, 1, 1], [], []>} : vector<16x16xf32>, vector<16x64xf32>, vector<16x64xf32> -> vector<16x64xf32>
    %448 = arith.addf %410, %447 : vector<16x64xf32>
    %449 = arith.addf %274, %448 : vector<16x64xf32>
    %c2192 = arith.constant 2192 : index
    %c0_177 = arith.constant 0 : index
    %450 = vector.load %arg2[%c2192, %c0_177] : memref<2664x256xf32, #tpu.memory_space<vmem>>, vector<1x64xf32>
    %451 = vector.broadcast %450 : vector<1x64xf32> to vector<16x64xf32>
    %452 = arith.addf %449, %451 : vector<16x64xf32>
    %c2200 = arith.constant 2200 : index
    %c0_178 = arith.constant 0 : index
    %453 = vector.load %arg2[%c2200, %c0_178] : memref<2664x256xf32, #tpu.memory_space<vmem>>, vector<2x64xf32>
    %cst_179 = arith.constant dense<0.000000e+00> : vector<16xf32>
    %454 = vector.multi_reduction <add>, %452, %cst_179 [1] : vector<16x64xf32> to vector<16xf32>
    %455 = vector.shape_cast %454 : vector<16xf32> to vector<16x1xf32>
    %cst_180 = arith.constant 6.400000e+01 : f32
    %456 = vector.broadcast %cst_180 : f32 to vector<16x1xf32>
    %457 = arith.divf %455, %456 : vector<16x1xf32>
    %458 = vector.broadcast %457 : vector<16x1xf32> to vector<16x64xf32>
    %459 = arith.subf %452, %458 : vector<16x64xf32>
    %460 = arith.mulf %459, %459 : vector<16x64xf32>
    %cst_181 = arith.constant dense<0.000000e+00> : vector<16xf32>
    %461 = vector.multi_reduction <add>, %460, %cst_181 [1] : vector<16x64xf32> to vector<16xf32>
    %462 = vector.shape_cast %461 : vector<16xf32> to vector<16x1xf32>
    %cst_182 = arith.constant 6.400000e+01 : f32
    %463 = vector.broadcast %cst_182 : f32 to vector<16x1xf32>
    %464 = arith.divf %462, %463 : vector<16x1xf32>
    %cst_183 = arith.constant 9.99999974E-6 : f32
    %465 = vector.broadcast %cst_183 : f32 to vector<16x1xf32>
    %466 = arith.addf %464, %465 : vector<16x1xf32>
    %467 = math.rsqrt %466 : vector<16x1xf32>
    %468 = vector.broadcast %467 : vector<16x1xf32> to vector<16x64xf32>
    %469 = arith.mulf %459, %468 : vector<16x64xf32>
    %470 = vector.extract_strided_slice %453 {offsets = [0, 0], sizes = [1, 64], strides = [1, 1]} : vector<2x64xf32> to vector<1x64xf32>
    %471 = vector.broadcast %470 : vector<1x64xf32> to vector<16x64xf32>
    %472 = arith.mulf %469, %471 : vector<16x64xf32>
    %473 = vector.extract_strided_slice %453 {offsets = [1, 0], sizes = [1, 64], strides = [1, 1]} : vector<2x64xf32> to vector<1x64xf32>
    %474 = vector.broadcast %473 : vector<1x64xf32> to vector<16x64xf32>
    %475 = arith.addf %472, %474 : vector<16x64xf32>
    %c2208 = arith.constant 2208 : index
    %c0_184 = arith.constant 0 : index
    %476 = vector.load %arg2[%c2208, %c0_184] : memref<2664x256xf32, #tpu.memory_space<vmem>>, vector<64x256xf32>
    %cst_185 = arith.constant dense<0.000000e+00> : vector<16x256xf32>
    %477 = tpu.matmul %475, %476, %cst_185 {dimension_numbers = #tpu.dot_dimension_numbers<[1], [0], [0], [1], [0, 0, 1, 1], [], []>} : vector<16x64xf32>, vector<64x256xf32>, vector<16x256xf32> -> vector<16x256xf32>
    %c2272 = arith.constant 2272 : index
    %c0_186 = arith.constant 0 : index
    %478 = vector.load %arg2[%c2272, %c0_186] : memref<2664x256xf32, #tpu.memory_space<vmem>>, vector<1x256xf32>
    %479 = vector.broadcast %478 : vector<1x256xf32> to vector<16x256xf32>
    %480 = arith.addf %477, %479 : vector<16x256xf32>
    %cst_187 = arith.constant 5.000000e-01 : f32
    %481 = vector.broadcast %cst_187 : f32 to vector<16x256xf32>
    %482 = arith.mulf %481, %480 : vector<16x256xf32>
    %483 = arith.mulf %480, %480 : vector<16x256xf32>
    %484 = arith.mulf %483, %480 : vector<16x256xf32>
    %cst_188 = arith.constant 4.471500e-02 : f32
    %485 = vector.broadcast %cst_188 : f32 to vector<16x256xf32>
    %486 = arith.mulf %485, %484 : vector<16x256xf32>
    %487 = arith.addf %480, %486 : vector<16x256xf32>
    %cst_189 = arith.constant 0.797884583 : f32
    %488 = vector.broadcast %cst_189 : f32 to vector<16x256xf32>
    %489 = arith.mulf %488, %487 : vector<16x256xf32>
    %490 = math.tanh %489 : vector<16x256xf32>
    %cst_190 = arith.constant 1.000000e+00 : f32
    %491 = vector.broadcast %cst_190 : f32 to vector<16x256xf32>
    %492 = arith.addf %491, %490 : vector<16x256xf32>
    %493 = arith.mulf %482, %492 : vector<16x256xf32>
    %c2280 = arith.constant 2280 : index
    %c0_191 = arith.constant 0 : index
    %494 = vector.load %arg2[%c2280, %c0_191] : memref<2664x256xf32, #tpu.memory_space<vmem>>, vector<256x64xf32>
    %cst_192 = arith.constant dense<0.000000e+00> : vector<16x64xf32>
    %495 = tpu.matmul %493, %494, %cst_192 {dimension_numbers = #tpu.dot_dimension_numbers<[1], [0], [0], [1], [0, 0, 1, 1], [], []>} : vector<16x256xf32>, vector<256x64xf32>, vector<16x64xf32> -> vector<16x64xf32>
    %c2536 = arith.constant 2536 : index
    %c0_193 = arith.constant 0 : index
    %496 = vector.load %arg2[%c2536, %c0_193] : memref<2664x256xf32, #tpu.memory_space<vmem>>, vector<1x64xf32>
    %497 = vector.broadcast %496 : vector<1x64xf32> to vector<16x64xf32>
    %498 = arith.addf %495, %497 : vector<16x64xf32>
    %499 = arith.addf %452, %498 : vector<16x64xf32>
    %c2544 = arith.constant 2544 : index
    %c0_194 = arith.constant 0 : index
    %500 = vector.load %arg2[%c2544, %c0_194] : memref<2664x256xf32, #tpu.memory_space<vmem>>, vector<2x64xf32>
    %cst_195 = arith.constant dense<0.000000e+00> : vector<16xf32>
    %501 = vector.multi_reduction <add>, %499, %cst_195 [1] : vector<16x64xf32> to vector<16xf32>
    %502 = vector.shape_cast %501 : vector<16xf32> to vector<16x1xf32>
    %cst_196 = arith.constant 6.400000e+01 : f32
    %503 = vector.broadcast %cst_196 : f32 to vector<16x1xf32>
    %504 = arith.divf %502, %503 : vector<16x1xf32>
    %505 = vector.broadcast %504 : vector<16x1xf32> to vector<16x64xf32>
    %506 = arith.subf %499, %505 : vector<16x64xf32>
    %507 = arith.mulf %506, %506 : vector<16x64xf32>
    %cst_197 = arith.constant dense<0.000000e+00> : vector<16xf32>
    %508 = vector.multi_reduction <add>, %507, %cst_197 [1] : vector<16x64xf32> to vector<16xf32>
    %509 = vector.shape_cast %508 : vector<16xf32> to vector<16x1xf32>
    %cst_198 = arith.constant 6.400000e+01 : f32
    %510 = vector.broadcast %cst_198 : f32 to vector<16x1xf32>
    %511 = arith.divf %509, %510 : vector<16x1xf32>
    %cst_199 = arith.constant 9.99999974E-6 : f32
    %512 = vector.broadcast %cst_199 : f32 to vector<16x1xf32>
    %513 = arith.addf %511, %512 : vector<16x1xf32>
    %514 = math.rsqrt %513 : vector<16x1xf32>
    %515 = vector.broadcast %514 : vector<16x1xf32> to vector<16x64xf32>
    %516 = arith.mulf %506, %515 : vector<16x64xf32>
    %517 = vector.extract_strided_slice %500 {offsets = [0, 0], sizes = [1, 64], strides = [1, 1]} : vector<2x64xf32> to vector<1x64xf32>
    %518 = vector.broadcast %517 : vector<1x64xf32> to vector<16x64xf32>
    %519 = arith.mulf %516, %518 : vector<16x64xf32>
    %520 = vector.extract_strided_slice %500 {offsets = [1, 0], sizes = [1, 64], strides = [1, 1]} : vector<2x64xf32> to vector<1x64xf32>
    %521 = vector.broadcast %520 : vector<1x64xf32> to vector<16x64xf32>
    %522 = arith.addf %519, %521 : vector<16x64xf32>
    %c2552 = arith.constant 2552 : index
    %c0_200 = arith.constant 0 : index
    %523 = vector.load %arg2[%c2552, %c0_200] : memref<2664x256xf32, #tpu.memory_space<vmem>>, vector<64x32xf32>
    %cst_201 = arith.constant dense<0.000000e+00> : vector<16x32xf32>
    %524 = tpu.matmul %522, %523, %cst_201 {dimension_numbers = #tpu.dot_dimension_numbers<[1], [0], [0], [1], [0, 0, 1, 1], [], []>} : vector<16x64xf32>, vector<64x32xf32>, vector<16x32xf32> -> vector<16x32xf32>
    %c2616 = arith.constant 2616 : index
    %c0_202 = arith.constant 0 : index
    %525 = vector.load %arg2[%c2616, %c0_202] : memref<2664x256xf32, #tpu.memory_space<vmem>>, vector<1x32xf32>
    %526 = vector.broadcast %525 : vector<1x32xf32> to vector<16x32xf32>
    %527 = arith.addf %524, %526 : vector<16x32xf32>
    %cst_203 = arith.constant 0.000000e+00 : f32
    %528 = vector.broadcast %cst_203 : f32 to vector<16x32xf32>
    %529 = arith.maximumf %527, %528 : vector<16x32xf32>
    %c2624 = arith.constant 2624 : index
    %c0_204 = arith.constant 0 : index
    %530 = vector.load %arg2[%c2624, %c0_204] : memref<2664x256xf32, #tpu.memory_space<vmem>>, vector<32x128xf32>
    %cst_205 = arith.constant dense<0.000000e+00> : vector<16x128xf32>
    %531 = tpu.matmul %529, %530, %cst_205 {dimension_numbers = #tpu.dot_dimension_numbers<[1], [0], [0], [1], [0, 0, 1, 1], [], []>} : vector<16x32xf32>, vector<32x128xf32>, vector<16x128xf32> -> vector<16x128xf32>
    %c2656 = arith.constant 2656 : index
    %c0_206 = arith.constant 0 : index
    %532 = vector.load %arg2[%c2656, %c0_206] : memref<2664x256xf32, #tpu.memory_space<vmem>>, vector<1x128xf32>
    %533 = vector.broadcast %532 : vector<1x128xf32> to vector<16x128xf32>
    %534 = arith.addf %531, %533 : vector<16x128xf32>
    %c0_207 = arith.constant 0 : index
    %c0_208 = arith.constant 0 : index
    %535 = vector.load %arg3[%c0_207, %c0_208] : memref<16x128xf32, #tpu.memory_space<vmem>>, vector<16x128xf32>
    tpu.vector_store %arg3[%c0_207, %c0_208], %534 {strides = array<i32>} : memref<16x128xf32, #tpu.memory_space<vmem>>, vector<16x128xf32>,
    return
  }
  func.func @transform_0(%arg0: i32) -> (i32, i32) {
    %c0_i32 = arith.constant 0 : i32
    %c0_i32_0 = arith.constant 0 : i32
    return %arg0, %c0_i32 : i32, i32
  }
  func.func @transform_1(%arg0: i32) -> (i32, i32) {
    %c0_i32 = arith.constant 0 : i32
    %c0_i32_0 = arith.constant 0 : i32
    %c0_i32_1 = arith.constant 0 : i32
    return %c0_i32, %c0_i32_0 : i32, i32
  }
  func.func @transform_2(%arg0: i32) -> (i32, i32) {
    %c0_i32 = arith.constant 0 : i32
    %c0_i32_0 = arith.constant 0 : i32
    return %arg0, %c0_i32 : i32, i32
  }
}

</mosaic_0001>

<llo_original>
// kernel: tpu_custom_call.1
$region0: #{tpu_custom_call.1}
  #allocation0 [shape = 'u32[]', space=smem, size = 0x4, offset = 0x4, fixed_abs, tag = 'smem constant byte address 0x4 - core index']
  #allocation1 [shape = 'u32[144,128]{1,0:T(1,128)}', space=vmem, size = 0x12000, scoped, tag = 'internal scratch']
  %s0 = inlined_call_operand.vmem [shape: f32[32,10], index: 0, kind: input, shape index: {}]
  %s1 = inlined_call_operand.hbm [shape: f32[2664,256], index: 1, kind: input, shape index: {}]
  %s2 = inlined_call_operand.hbm [shape: f32[32,128], index: 2, kind: output, shape index: {}]
  %s3 = sld [smem:[#allocation0]]
  $region45: #{tpu_custom_call.1} parent=0
    _
  %s5 = ssub.s32 1, %s3
  %s6 = scalar_select 0, %s5, %s3
  $region1: #{tpu_custom_call.1} parent=0
    #allocation2 [shape = 'u8[2727936]{0}', space=vmem, size = 0x29a000, scoped, tag = 'input window, operand 1, single buffered']
    #allocation3 [shape = 's32[2]{0}', space=sflag, size = 0x8, scoped, tag = 'scoped memory for tpu_custom_call.1']
    #allocation4 [shape = 's32[2]{0}', space=sflag, size = 0x8, scoped, tag = 'scoped memory for tpu_custom_call.1']
    #allocation5 [shape = 'u8[16384]{0}', space=vmem, size = 0x4000, scoped, tag = 'output window, operand 0']
    %7 = vsyncpa [#allocation3], 0
    %8 = vsyncpa [#allocation4], 0
    %s9 = scalar_lea.sflag [#allocation4], 1
    %10 = vsyncpa %s9, 0
    loop: start=0, step=1, limit=4
    $region2: #{tpu_custom_call.1} parent=1 // loop_pre_header
      _
    $region3: #{tpu_custom_call.1} parent=1 // loop_header
      %s12 = sphi 0, %s16
      %p13 = scmp.ge.s32.totalorder %s12, 4
      %s22 = sphi 0, %s24
      %s25 = sphi 0, %s22
      %s26 = sphi 0, %s25
      %s42 = sphi 0, %s26
      %s46 = sphi 0, %s46
      %s48 = sphi 0, %s46
      %s49 = sphi 0, %s48
      %s63 = sphi 0, %s49
      %s69 = sphi 0, %s71
      %s72 = sphi 0, %s69
      %s73 = sphi 0, %s72
      %s89 = sphi 0, %s73
    $region4: #{tpu_custom_call.1} parent=1 // loop_header_branch
      %15 = sbr.rel (%p13) target = $region8
    $region5: #{tpu_custom_call.1} parent=1 // loop_body
      %s17 = ssub.s32 %s12, 1
      %s18 = ssub.s32 %s12, 2
      %s19 = sadd.s32 %s12, 1
      %s20 = ssub.s32 %s12, %s19
      %p21 = scmp.eq.s32.totalorder %s20, 0
      %s23 = sadd.s32 %s22, 1
      %s24 = scalar_select %p21, %s22, %s23
      %p27 = pneg %p21
      %p28 = scmp.eq.s32.totalorder %s12, 1
      %p29 = por %p27, %p28
      %p30 = scmp.ne.s32.totalorder %s22, %s25
      %p31 = scmp.eq.s32.totalorder %s12, 0
      %p32 = por %p30, %p31
      %p33 = scmp.ne.s32.totalorder %s22, %s25
      %p34 = scmp.eq.s32.totalorder %s17, 1
      %p35 = por %p33, %p34
      %p36 = scmp.ne.s32.totalorder %s25, %s26
      %p37 = scmp.eq.s32.totalorder %s17, 0
      %p38 = por %p36, %p37
      %p39 = scmp.ne.s32.totalorder %s25, %s26
      %p40 = scmp.eq.s32.totalorder %s18, 1
      %p41 = por %p39, %p40
      %p43 = scmp.ne.s32.totalorder %s26, %s42
      %p44 = scmp.eq.s32.totalorder %s18, 0
      %p45 = por %p43, %p44
      %s47 = sadd.s32 %s46, 1
      %p50 = scmp.eq.s32.totalorder %s12, 1
      %p51 = scmp.ne.s32.totalorder %s46, %s48
      %p52 = scmp.eq.s32.totalorder %s12, 0
      %p53 = por %p51, %p52
      %p54 = scmp.ne.s32.totalorder %s46, %s48
      %p55 = scmp.eq.s32.totalorder %s17, 1
      %p56 = por %p54, %p55
      %p57 = scmp.ne.s32.totalorder %s48, %s49
      %p58 = scmp.eq.s32.totalorder %s17, 0
      %p59 = por %p57, %p58
      %p60 = scmp.ne.s32.totalorder %s48, %s49
      %p61 = scmp.eq.s32.totalorder %s18, 1
      %p62 = por %p60, %p61
      %p64 = scmp.ne.s32.totalorder %s49, %s63
      %p65 = scmp.eq.s32.totalorder %s18, 0
      %p66 = por %p64, %p65
      %s67 = ssub.s32 %s12, %s19
      %p68 = scmp.eq.s32.totalorder %s67, 0
      %s70 = sadd.s32 %s69, 1
      %s71 = scalar_select %p68, %s69, %s70
      %p74 = pneg %p68
      %p75 = scmp.eq.s32.totalorder %s12, 1
      %p76 = por %p74, %p75
      %p77 = scmp.ne.s32.totalorder %s69, %s72
      %p78 = scmp.eq.s32.totalorder %s12, 0
      %p79 = por %p77, %p78
      %p80 = scmp.ne.s32.totalorder %s69, %s72
      %p81 = scmp.eq.s32.totalorder %s17, 1
      %p82 = por %p80, %p81
      %p83 = scmp.ne.s32.totalorder %s72, %s73
      %p84 = scmp.eq.s32.totalorder %s17, 0
      %p85 = por %p83, %p84
      %p86 = scmp.ne.s32.totalorder %s72, %s73
      %p87 = scmp.eq.s32.totalorder %s18, 1
      %p88 = por %p86, %p87
      %p90 = scmp.ne.s32.totalorder %s73, %s89
      %p91 = scmp.eq.s32.totalorder %s18, 0
      %p92 = por %p90, %p91
      %p93 = scmp.le.s32.totalorder 1, %s12
      %p94 = scmp.lt.s32.totalorder %s12, 3
      %p95 = pnand %p93, %p94
      %p96 = pneg %p95
      // Predicated region
      $region9: #{tpu_custom_call.1} parent=5 // pred_check
        _
      $region10: #{tpu_custom_call.1} parent=5 // pred_check_branch
        %98 = sbr.rel (%p95) target = $region12
      $region11: #{tpu_custom_call.1} parent=5 // pred_region
        %s99 = ssub.s32 %s12, 1
        // Predicated region
        $region13: #{tpu_custom_call.1} parent=11 // pred_check
          %p100 = pneg %p59
        $region14: #{tpu_custom_call.1} parent=11 // pred_check_branch
          %102 = sbr.rel (%p100) target = $region16
        $region15: #{tpu_custom_call.1} parent=11 // pred_region
          %s104 = ssub.s32 85248, 85248
          %105 = vsyncadd [#allocation3], %s104
          %s106 = sshll.u32 [#allocation2], 4
          %s107 = int_to_ptr.vmem [resolvable:$true] %s106
          %112 = dma.hbm_to_vmem [thread:$0]  %s1, 85248, %s107, [#allocation3], 256, 256, 16
        $region16: #{tpu_custom_call.1} parent=11 // pred_fallthru
          _
      $region12: #{tpu_custom_call.1} parent=5 // pred_fallthru
        _
      %p113 = scmp.lt.s32.totalorder %s12, 2
      // Predicated region
      $region17: #{tpu_custom_call.1} parent=5 // pred_check
        %p114 = pneg %p113
      $region18: #{tpu_custom_call.1} parent=5 // pred_check_branch
        %116 = sbr.rel (%p114) target = $region20
      $region19: #{tpu_custom_call.1} parent=5 // pred_region
        // Predicated region
        $region21: #{tpu_custom_call.1} parent=19 // pred_check
          %p117 = pneg %p32
        $region22: #{tpu_custom_call.1} parent=19 // pred_check_branch
          %119 = sbr.rel (%p117) target = $region24
        $region23: #{tpu_custom_call.1} parent=19 // pred_region
          %s120 = smul.u32 2, %s12
          %p121 = scmp.lt.s32.totalorder %s120, 3
          %s122 = scalar_select %p121, %s120, 3
          %s123 = smul.addr %s122, 8
          %s124 = scalar_lea.vmem %s0, %s123
          %s125 = smul.u32 2, %s12
        $region24: #{tpu_custom_call.1} parent=19 // pred_fallthru
          _
      $region20: #{tpu_custom_call.1} parent=5 // pred_fallthru
        _
      %p126 = scmp.le.s32.totalorder 1, %s12
      %p127 = scmp.lt.s32.totalorder %s12, 3
      %p128 = pnand %p126, %p127
      %p129 = pneg %p128
      // Predicated region
      $region25: #{tpu_custom_call.1} parent=5 // pred_check
        _
      $region26: #{tpu_custom_call.1} parent=5 // pred_check_branch
        %131 = sbr.rel (%p128) target = $region28
      $region27: #{tpu_custom_call.1} parent=5 // pred_region
        %s132 = ssub.s32 %s12, 1
        // Predicated region
        $region29: #{tpu_custom_call.1} parent=27 // pred_check
          %p133 = pneg %p59
        $region30: #{tpu_custom_call.1} parent=27 // pred_check_branch
          %135 = sbr.rel (%p133) target = $region32
        $region31: #{tpu_custom_call.1} parent=27 // pred_region
          %136 = dma.done [#allocation3], 85248
        $region32: #{tpu_custom_call.1} parent=27 // pred_fallthru
          _
        %s137 = smul.u32 2, %s17
        %p138 = scmp.lt.s32.totalorder %s137, 3
        %s139 = scalar_select %p138, %s137, 3
        %s140 = smul.addr %s139, 8
        %s141 = scalar_lea.vmem %s0, %s140
        %p142 = pneg %p38
        %p143 = pneg %p35
        %p144 = pneg %p59
        %p145 = pneg %p56
        %p146 = pneg %p85
        %p147 = pneg %p82
        %s148 = sand.u32 %s72, 1
        %s149 = scalar_lea.sflag [#allocation4], %s148
        %s150 = sand.u32 %s72, 1
        %s151 = smul.addr %s150, 16
        %s152 = scalar_lea.vmem [#allocation5], %s151
        %s153 = smul.u32 2, %s17
        %p154 = scmp.lt.s32.totalorder %s153, 3
        %s155 = scalar_select %p154, %s153, 3
        %s156 = smul.addr %s155, 8
        %s157 = scalar_lea.vmem %s0, %s156
        %s158 = smul.u32 2, %s17
        %s159 = smul.u32 2, %s17
        %v160 = vlaneseq
        %v161 = vshrl.u32 %v160, 7
        %v162 = vlaneseq
        %v163 = vand.u32 %v162, 127
        %vm164 = vcmp.le.s32.totalorder %v163, %v161
        %v165 = vsel %vm164, 0.0, -1e+30
        %v166 = vld [vmem:[%s157] sm:$0xff]
        %v167 = vld [vmem:[%s157 + $0x8] sm:$0xff]
        %v168 = vld [vmem:[#allocation2] sm:$0xff]
        %v169 = vld [vmem:[#allocation2 + $0x10] sm:$0x3]
        %v170 = vld [vmem:[#allocation2 + $0x20] ss:$0 sm:$0xff]
        %vm171 = vcmask 80896
        %v173 = vsel %vm171, %v166, 0
        %v176 = vsel %vm171, %v167, 0
        %vm178 = vcmask 1041408
        %v180 = vsel %vm178, %v169, 0
        %182 = vmatprep.subr.mxu0 0.0
        %183 = vmatpush1.msra.mxu0 %v168
        %184 = vmatprep.subr.mxu0 0.0
        %185 = vmatpush1.msra.mxu0 %v180
        %186 = vmatprep.subr.mxu0 0.0
        %187 = vmatpush1.msra.mxu0 0.0
        %188 = vmatprep.subr.mxu0 0.0
        %189 = vmatpush1.msra.mxu0 0.0
        %190 = vmatprep.subr.mxu0 0.0
        %191 = vmatpush1.msra.mxu0 0.0
        %192 = vmatprep.subr.mxu0 0.0
        %193 = vmatpush1.msra.mxu0 0.0
        %194 = vmatprep.subr.mxu0 0.0
        %195 = vmatpush1.msra.mxu0 0.0
        %196 = vmatprep.subr.mxu0 0.0
        %197 = vmatpush1.msra.mxu0 0.0
        %198 = vmatprep.subr.mxu0 0.0
        %199 = vmatpush1.msra.mxu0 0.0
        %200 = vmatprep.subr.mxu0 0.0
        %201 = vmatpush1.msra.mxu0 0.0
        %202 = vmatprep.subr.mxu0 0.0
        %203 = vmatpush1.msra.mxu0 0.0
        %204 = vmatprep.subr.mxu0 0.0
        %205 = vmatpush1.msra.mxu0 0.0
        %206 = vmatprep.subr.mxu0 0.0
        %207 = vmatpush1.msra.mxu0 0.0
        %208 = vmatprep.subr.mxu0 0.0
        %209 = vmatpush1.msra.mxu0 0.0
        %210 = vmatprep.subr.mxu0 0.0
        %211 = vmatpush1.msra.mxu0 0.0
        %212 = vmatprep.subr.mxu0 0.0
        %213 = vmatpush1.msra.mxu0 0.0
        %214 = vmatprep.subr.mxu0 0.0
        %215 = vmatpush1.msra.mxu0 0.0
        %216 = vmatprep.subr.mxu0 0.0
        %217 = vmatpush1.msra.mxu0 0.0
        %218 = vmatprep.subr.mxu0 0.0
        %219 = vmatpush1.msra.mxu0 0.0
        %220 = vmatprep.subr.mxu0 0.0
        %221 = vmatpush1.msra.mxu0 0.0
        %222 = vmatprep.subr.mxu0 0.0
        %223 = vmatpush1.msra.mxu0 0.0
        %224 = vmatprep.subr.mxu0 0.0
        %225 = vmatpush1.msra.mxu0 0.0
        %226 = vmatprep.subr.mxu0 0.0
        %227 = vmatpush1.msra.mxu0 0.0
        %228 = vmatprep.subr.mxu0 0.0
        %229 = vmatpush1.msra.mxu0 0.0
        %230 = vmatprep.subr.mxu0 0.0
        %231 = vmatpush1.msra.mxu0 0.0
        %232 = vmatprep.subr.mxu0 0.0
        %233 = vmatpush1.msra.mxu0 0.0
        %234 = vmatprep.subr.mxu0 0.0
        %235 = vmatpush1.msra.mxu0 0.0
        %236 = vmatprep.subr.mxu0 0.0
        %237 = vmatpush1.msra.mxu0 0.0
        %238 = vmatprep.subr.mxu0 0.0
        %239 = vmatpush1.msra.mxu0 0.0
        %240 = vmatprep.subr.mxu0 0.0
        %241 = vmatpush1.msra.mxu0 0.0
        %242 = vmatprep.subr.mxu0 0.0
        %243 = vmatpush1.msra.mxu0 0.0
        %244 = vmatprep.subr.mxu0 0.0
        %245 = vmatpush1.msra.mxu0 0.0
        %246 = vmatprep.mubr.f32.mxu0 0.0
        %247 = vmatmul.mubr.f32.gmra.mrb[0].mxu0 %v173
        %v248 = vpop.f32.mrb[0].mxu0
        %v249 = vadd.f32 %v170, %v248
        %v250 = vpop.f32.mrb[0].mxu0
        %251 = vmatprep.mubr.f32.mxu0 0.0
        %252 = vmatmul.mubr.f32.gmra.mrb[0].mxu0 %v176
        %v253 = vpop.f32.mrb[0].mxu0
        %v254 = vadd.f32 %v170, %v253
        %v255 = vpop.f32.mrb[0].mxu0
        %256 = vdwg.mxu0
        %v257 = vmax.f32 %v249, 0.0
        %v258 = vmax.f32 %v254, 0.0
        %v259 = vld [vmem:[#allocation2 + $0x30] sm:$0xff]
        %v260 = vld [vmem:[#allocation2 + $0x40] sm:$0xff]
        %v261 = vld [vmem:[#allocation2 + $0x50] sm:$0xff]
        %v262 = vld [vmem:[#allocation2 + $0x60] sm:$0xff]
        %v263 = vld [vmem:[#allocation2 + $0x70] ss:$0 sm:$0xff]
        %vm264 = vcmask 261120
        %v266 = vsel %vm264, %v257, 0
        %v269 = vsel %vm264, %v258, 0
        %271 = vmatprep.subr.mxu0 0.0
        %272 = vmatpush1.msra.mxu0 %v259
        %273 = vmatprep.subr.mxu0 0.0
        %274 = vmatpush1.msra.mxu0 %v260
        %275 = vmatprep.subr.mxu0 0.0
        %276 = vmatpush1.msra.mxu0 %v261
        %277 = vmatprep.subr.mxu0 0.0
        %278 = vmatpush1.msra.mxu0 %v262
        %279 = vmatprep.subr.mxu0 0.0
        %280 = vmatpush1.msra.mxu0 0.0
        %281 = vmatprep.subr.mxu0 0.0
        %282 = vmatpush1.msra.mxu0 0.0
        %283 = vmatprep.subr.mxu0 0.0
        %284 = vmatpush1.msra.mxu0 0.0
        %285 = vmatprep.subr.mxu0 0.0
        %286 = vmatpush1.msra.mxu0 0.0
        %287 = vmatprep.subr.mxu0 0.0
        %288 = vmatpush1.msra.mxu0 0.0
        %289 = vmatprep.subr.mxu0 0.0
        %290 = vmatpush1.msra.mxu0 0.0
        %291 = vmatprep.subr.mxu0 0.0
        %292 = vmatpush1.msra.mxu0 0.0
        %293 = vmatprep.subr.mxu0 0.0
        %294 = vmatpush1.msra.mxu0 0.0
        %295 = vmatprep.subr.mxu0 0.0
        %296 = vmatpush1.msra.mxu0 0.0
        %297 = vmatprep.subr.mxu0 0.0
        %298 = vmatpush1.msra.mxu0 0.0
        %299 = vmatprep.subr.mxu0 0.0
        %300 = vmatpush1.msra.mxu0 0.0
        %301 = vmatprep.subr.mxu0 0.0
        %302 = vmatpush1.msra.mxu0 0.0
        %303 = vmatprep.subr.mxu0 0.0
        %304 = vmatpush1.msra.mxu0 0.0
        %305 = vmatprep.subr.mxu0 0.0
        %306 = vmatpush1.msra.mxu0 0.0
        %307 = vmatprep.subr.mxu0 0.0
        %308 = vmatpush1.msra.mxu0 0.0
        %309 = vmatprep.subr.mxu0 0.0
        %310 = vmatpush1.msra.mxu0 0.0
        %311 = vmatprep.subr.mxu0 0.0
        %312 = vmatpush1.msra.mxu0 0.0
        %313 = vmatprep.subr.mxu0 0.0
        %314 = vmatpush1.msra.mxu0 0.0
        %315 = vmatprep.subr.mxu0 0.0
        %316 = vmatpush1.msra.mxu0 0.0
        %317 = vmatprep.subr.mxu0 0.0
        %318 = vmatpush1.msra.mxu0 0.0
        %319 = vmatprep.subr.mxu0 0.0
        %320 = vmatpush1.msra.mxu0 0.0
        %321 = vmatprep.subr.mxu0 0.0
        %322 = vmatpush1.msra.mxu0 0.0
        %323 = vmatprep.subr.mxu0 0.0
        %324 = vmatpush1.msra.mxu0 0.0
        %325 = vmatprep.subr.mxu0 0.0
        %326 = vmatpush1.msra.mxu0 0.0
        %327 = vmatprep.subr.mxu0 0.0
        %328 = vmatpush1.msra.mxu0 0.0
        %329 = vmatprep.subr.mxu0 0.0
        %330 = vmatpush1.msra.mxu0 0.0
        %331 = vmatprep.subr.mxu0 0.0
        %332 = vmatpush1.msra.mxu0 0.0
        %333 = vmatprep.subr.mxu0 0.0
        %334 = vmatpush1.msra.mxu0 0.0
        %335 = vmatprep.mubr.f32.mxu0 0.0
        %336 = vmatmul.mubr.f32.gmra.mrb[0].mxu0 %v266
        %v337 = vpop.f32.mrb[0].mxu0
        %v338 = vadd.f32 %v263, %v337
        %v339 = vpop.f32.mrb[0].mxu0
        %340 = vmatprep.mubr.f32.mxu0 0.0
        %341 = vmatmul.mubr.f32.gmra.mrb[0].mxu0 %v269
        %v342 = vpop.f32.mrb[0].mxu0
        %v343 = vadd.f32 %v263, %v342
        %v344 = vpop.f32.mrb[0].mxu0
        %345 = vdwg.mxu0
        %v346 = vld [vmem:[#allocation2 + $0x80] sm:$0xff]
        %v347 = vld [vmem:[#allocation2 + $0x90] sm:$0xff]
        %v348 = vld [vmem:[#allocation2 + $0xa0] ss:$0 sm:$0xff]
        %vm349 = vcmask 130048
        %v351 = vsel %vm349, %v338, 0
        %v354 = vsel %vm349, %v343, 0
        %356 = vmatprep.subr.mxu0 0.0
        %357 = vmatpush1.msra.mxu0 %v346
        %358 = vmatprep.subr.mxu0 0.0
        %359 = vmatpush1.msra.mxu0 %v347
        %360 = vmatprep.subr.mxu0 0.0
        %361 = vmatpush1.msra.mxu0 0.0
        %362 = vmatprep.subr.mxu0 0.0
        %363 = vmatpush1.msra.mxu0 0.0
        %364 = vmatprep.subr.mxu0 0.0
        %365 = vmatpush1.msra.mxu0 0.0
        %366 = vmatprep.subr.mxu0 0.0
        %367 = vmatpush1.msra.mxu0 0.0
        %368 = vmatprep.subr.mxu0 0.0
        %369 = vmatpush1.msra.mxu0 0.0
        %370 = vmatprep.subr.mxu0 0.0
        %371 = vmatpush1.msra.mxu0 0.0
        %372 = vmatprep.subr.mxu0 0.0
        %373 = vmatpush1.msra.mxu0 0.0
        %374 = vmatprep.subr.mxu0 0.0
        %375 = vmatpush1.msra.mxu0 0.0
        %376 = vmatprep.subr.mxu0 0.0
        %377 = vmatpush1.msra.mxu0 0.0
        %378 = vmatprep.subr.mxu0 0.0
        %379 = vmatpush1.msra.mxu0 0.0
        %380 = vmatprep.subr.mxu0 0.0
        %381 = vmatpush1.msra.mxu0 0.0
        %382 = vmatprep.subr.mxu0 0.0
        %383 = vmatpush1.msra.mxu0 0.0
        %384 = vmatprep.subr.mxu0 0.0
        %385 = vmatpush1.msra.mxu0 0.0
        %386 = vmatprep.subr.mxu0 0.0
        %387 = vmatpush1.msra.mxu0 0.0
        %388 = vmatprep.subr.mxu0 0.0
        %389 = vmatpush1.msra.mxu0 0.0
        %390 = vmatprep.subr.mxu0 0.0
        %391 = vmatpush1.msra.mxu0 0.0
        %392 = vmatprep.subr.mxu0 0.0
        %393 = vmatpush1.msra.mxu0 0.0
        %394 = vmatprep.subr.mxu0 0.0
        %395 = vmatpush1.msra.mxu0 0.0
        %396 = vmatprep.subr.mxu0 0.0
        %397 = vmatpush1.msra.mxu0 0.0
        %398 = vmatprep.subr.mxu0 0.0
        %399 = vmatpush1.msra.mxu0 0.0
        %400 = vmatprep.subr.mxu0 0.0
        %401 = vmatpush1.msra.mxu0 0.0
        %402 = vmatprep.subr.mxu0 0.0
        %403 = vmatpush1.msra.mxu0 0.0
        %404 = vmatprep.subr.mxu0 0.0
        %405 = vmatpush1.msra.mxu0 0.0
        %406 = vmatprep.subr.mxu0 0.0
        %407 = vmatpush1.msra.mxu0 0.0
        %408 = vmatprep.subr.mxu0 0.0
        %409 = vmatpush1.msra.mxu0 0.0
        %410 = vmatprep.subr.mxu0 0.0
        %411 = vmatpush1.msra.mxu0 0.0
        %412 = vmatprep.subr.mxu0 0.0
        %413 = vmatpush1.msra.mxu0 0.0
        %414 = vmatprep.subr.mxu0 0.0
        %415 = vmatpush1.msra.mxu0 0.0
        %416 = vmatprep.subr.mxu0 0.0
        %417 = vmatpush1.msra.mxu0 0.0
        %418 = vmatprep.subr.mxu0 0.0
        %419 = vmatpush1.msra.mxu0 0.0
        %420 = vmatprep.mubr.f32.mxu0 0.0
        %421 = vmatmul.mubr.f32.gmra.mrb[0].mxu0 %v351
        %v422 = vpop.f32.mrb[0].mxu0
        %v423 = vadd.f32 %v348, %v422
        %v424 = vpop.f32.mrb[0].mxu0
        %425 = vmatprep.mubr.f32.mxu0 0.0
        %426 = vmatmul.mubr.f32.gmra.mrb[0].mxu0 %v354
        %v427 = vpop.f32.mrb[0].mxu0
        %v428 = vadd.f32 %v348, %v427
        %v429 = vpop.f32.mrb[0].mxu0
        %430 = vdwg.mxu0
        %v431 = vld [vmem:[#allocation2 + $0xb0] sm:$0xff]
        %v432 = vld [vmem:[#allocation2 + $0xc0] sm:$0xff]
        %v433 = vadd.f32 %v423, %v431
        %v434 = vadd.f32 %v428, %v432
        %v435 = vld [vmem:[#allocation2 + $0xd0] sm:$0x3]
        %vm436 = vcmask 523264
        %v437 = vsel %vm436, %v433, 0.0
        %438 = vadd.xlane.f32.xlu0 %v437
        %v439 = vpop.xlane.xlu0 %438
        %v440 = vsel %vm436, %v434, 0.0
        %441 = vadd.xlane.f32.xlu0 %v440
        %v442 = vpop.xlane.xlu0 %441
        %v443 = vrcp.pop 64.0
        %v444 = vmul.f32 %v439, %v443
        %v445 = vmul.f32 %v442, %v443
        %v446 = vsub.f32 %v433, %v444
        %v447 = vsub.f32 %v434, %v445
        %v448 = vmul.f32 %v446, %v446
        %v449 = vmul.f32 %v447, %v447
        %v450 = vsel %vm436, %v448, 0.0
        %451 = vadd.xlane.f32.xlu0 %v450
        %v452 = vpop.xlane.xlu0 %451
        %v453 = vsel %vm436, %v449, 0.0
        %454 = vadd.xlane.f32.xlu0 %v453
        %v455 = vpop.xlane.xlu0 %454
        %v456 = vmul.f32 %v452, %v443
        %v457 = vmul.f32 %v455, %v443
        %v458 = vadd.f32 %v456, 1e-05
        %v459 = vadd.f32 %v457, 1e-05
        %v460 = vrsqrt.pop %v458
        %v461 = vrsqrt.pop %v459
        %v462 = vmul.f32 %v446, %v460
        %v463 = vmul.f32 %v447, %v461
        %v464 = vlaneseq
        %v465 = vshrl.u32 %v464, 7
        %v466 = vsub.s32 0, %v465
        %v467 = vrot.slane %v435, %v466
        %v468 = vmul.f32 %v462, %v467
        %v469 = vmul.f32 %v463, %v467
        %v470 = vlaneseq
        %v471 = vshrl.u32 %v470, 7
        %v472 = vsub.s32 1, %v471
        %v473 = vrot.slane %v435, %v472
        %v474 = vadd.f32 %v468, %v473
        %v475 = vadd.f32 %v469, %v473
        %v476 = vld [vmem:[#allocation2 + $0xe0] sm:$0x3]
        %v477 = vsel %vm436, %v474, 0.0
        %478 = vadd.xlane.f32.xlu0 %v477
        %v479 = vpop.xlane.xlu0 %478
        %v480 = vsel %vm436, %v475, 0.0
        %481 = vadd.xlane.f32.xlu0 %v480
        %v482 = vpop.xlane.xlu0 %481
        %v483 = vmul.f32 %v479, %v443
        %v484 = vmul.f32 %v482, %v443
        %v485 = vsub.f32 %v474, %v483
        %v486 = vsub.f32 %v475, %v484
        %v487 = vmul.f32 %v485, %v485
        %v488 = vmul.f32 %v486, %v486
        %v489 = vsel %vm436, %v487, 0.0
        %490 = vadd.xlane.f32.xlu0 %v489
        %v491 = vpop.xlane.xlu0 %490
        %v492 = vsel %vm436, %v488, 0.0
        %493 = vadd.xlane.f32.xlu0 %v492
        %v494 = vpop.xlane.xlu0 %493
        %v495 = vmul.f32 %v491, %v443
        %v496 = vmul.f32 %v494, %v443
        %v497 = vadd.f32 %v495, 1e-05
        %v498 = vadd.f32 %v496, 1e-05
        %v499 = vrsqrt.pop %v497
        %v500 = vrsqrt.pop %v498
        %v501 = vmul.f32 %v485, %v499
        %v502 = vmul.f32 %v486, %v500
        %v503 = vlaneseq
        %v504 = vshrl.u32 %v503, 7
        %v505 = vsub.s32 0, %v504
        %v506 = vrot.slane %v476, %v505
        %v507 = vmul.f32 %v501, %v506
        %v508 = vmul.f32 %v502, %v506
        %v509 = vlaneseq
        %v510 = vshrl.u32 %v509, 7
        %v511 = vsub.s32 1, %v510
        %v512 = vrot.slane %v476, %v511
        %v513 = vadd.f32 %v507, %v512
        %v514 = vadd.f32 %v508, %v512
        %v515 = vld [vmem:[#allocation2 + $0xf0] sm:$0xff]
        %v516 = vld [vmem:[#allocation2 + $0x100] sm:$0xff]
        %v517 = vld [vmem:[#allocation2 + $0x110] sm:$0xff]
        %v518 = vld [vmem:[#allocation2 + $0x120] sm:$0xff]
        %v519 = vld [vmem:[#allocation2 + $0x130] sm:$0xff]
        %v520 = vld [vmem:[#allocation2 + $0x140] sm:$0xff]
        %v521 = vld [vmem:[#allocation2 + $0x150] sm:$0xff]
        %v522 = vld [vmem:[#allocation2 + $0x160] sm:$0xff]
        %v523 = vld [vmem:[#allocation2 + $0x300] sm:$0xff]
        %v524 = vld [vmem:[#allocation2 + $0x310] sm:$0xff]
        %v525 = vld [vmem:[#allocation2 + $0x320] sm:$0xff]
        %v526 = vld [vmem:[#allocation2 + $0x330] sm:$0xff]
        %v527 = vld [vmem:[#allocation2 + $0x340] sm:$0xff]
        %v528 = vld [vmem:[#allocation2 + $0x350] sm:$0xff]
        %v529 = vld [vmem:[#allocation2 + $0x360] sm:$0xff]
        %v530 = vld [vmem:[#allocation2 + $0x370] sm:$0xff]
        %v531 = vld [vmem:[#allocation2 + $0x510] sm:$0xff]
        %v532 = vld [vmem:[#allocation2 + $0x520] sm:$0xff]
        %v533 = vld [vmem:[#allocation2 + $0x530] sm:$0xff]
        %v534 = vld [vmem:[#allocation2 + $0x540] sm:$0xff]
        %v535 = vld [vmem:[#allocation2 + $0x550] sm:$0xff]
        %v536 = vld [vmem:[#allocation2 + $0x560] sm:$0xff]
        %v537 = vld [vmem:[#allocation2 + $0x570] sm:$0xff]
        %v538 = vld [vmem:[#allocation2 + $0x580] sm:$0xff]
        %v539 = vld [vmem:[#allocation2 + $0x2f0] ss:$0 sm:$0xff]
        %v540 = vld [vmem:[#allocation2 + $0x500] ss:$0 sm:$0xff]
        %v541 = vld [vmem:[#allocation2 + $0x710] ss:$0 sm:$0xff]
        %v543 = vsel %vm436, %v513, 0
        %v546 = vsel %vm436, %v514, 0
        %548 = vmatprep.subr.mxu0 0.0
        %549 = vmatpush1.msra.mxu0 %v515
        %550 = vmatprep.subr.mxu0 0.0
        %551 = vmatpush1.msra.mxu0 %v516
        %552 = vmatprep.subr.mxu0 0.0
        %553 = vmatpush1.msra.mxu0 %v517
        %554 = vmatprep.subr.mxu0 0.0
        %555 = vmatpush1.msra.mxu0 %v518
        %556 = vmatprep.subr.mxu0 0.0
        %557 = vmatpush1.msra.mxu0 %v519
        %558 = vmatprep.subr.mxu0 0.0
        %559 = vmatpush1.msra.mxu0 %v520
        %560 = vmatprep.subr.mxu0 0.0
        %561 = vmatpush1.msra.mxu0 %v521
        %562 = vmatprep.subr.mxu0 0.0
        %563 = vmatpush1.msra.mxu0 %v522
        %564 = vmatprep.subr.mxu0 0.0
        %565 = vmatpush1.msra.mxu0 0.0
        %566 = vmatprep.subr.mxu0 0.0
        %567 = vmatpush1.msra.mxu0 0.0
        %568 = vmatprep.subr.mxu0 0.0
        %569 = vmatpush1.msra.mxu0 0.0
        %570 = vmatprep.subr.mxu0 0.0
        %571 = vmatpush1.msra.mxu0 0.0
        %572 = vmatprep.subr.mxu0 0.0
        %573 = vmatpush1.msra.mxu0 0.0
        %574 = vmatprep.subr.mxu0 0.0
        %575 = vmatpush1.msra.mxu0 0.0
        %576 = vmatprep.subr.mxu0 0.0
        %577 = vmatpush1.msra.mxu0 0.0
        %578 = vmatprep.subr.mxu0 0.0
        %579 = vmatpush1.msra.mxu0 0.0
        %580 = vmatprep.subr.mxu0 0.0
        %581 = vmatpush1.msra.mxu0 0.0
        %582 = vmatprep.subr.mxu0 0.0
        %583 = vmatpush1.msra.mxu0 0.0
        %584 = vmatprep.subr.mxu0 0.0
        %585 = vmatpush1.msra.mxu0 0.0
        %586 = vmatprep.subr.mxu0 0.0
        %587 = vmatpush1.msra.mxu0 0.0
        %588 = vmatprep.subr.mxu0 0.0
        %589 = vmatpush1.msra.mxu0 0.0
        %590 = vmatprep.subr.mxu0 0.0
        %591 = vmatpush1.msra.mxu0 0.0
        %592 = vmatprep.subr.mxu0 0.0
        %593 = vmatpush1.msra.mxu0 0.0
        %594 = vmatprep.subr.mxu0 0.0
        %595 = vmatpush1.msra.mxu0 0.0
        %596 = vmatprep.subr.mxu0 0.0
        %597 = vmatpush1.msra.mxu0 0.0
        %598 = vmatprep.subr.mxu0 0.0
        %599 = vmatpush1.msra.mxu0 0.0
        %600 = vmatprep.subr.mxu0 0.0
        %601 = vmatpush1.msra.mxu0 0.0
        %602 = vmatprep.subr.mxu0 0.0
        %603 = vmatpush1.msra.mxu0 0.0
        %604 = vmatprep.subr.mxu0 0.0
        %605 = vmatpush1.msra.mxu0 0.0
        %606 = vmatprep.subr.mxu0 0.0
        %607 = vmatpush1.msra.mxu0 0.0
        %608 = vmatprep.subr.mxu0 0.0
        %609 = vmatpush1.msra.mxu0 0.0
        %610 = vmatprep.subr.mxu0 0.0
        %611 = vmatpush1.msra.mxu0 0.0
        %612 = vmatprep.mubr.f32.mxu0 0.0
        %613 = vmatmul.mubr.f32.gmra.mrb[0].mxu0 %v543
        %v614 = vpop.f32.mrb[0].mxu0
        %v615 = vadd.f32 %v539, %v614
        %v616 = vpop.f32.mrb[0].mxu0
        %617 = vmatprep.mubr.f32.mxu0 0.0
        %618 = vmatmul.mubr.f32.gmra.mrb[0].mxu0 %v546
        %v619 = vpop.f32.mrb[0].mxu0
        %v620 = vadd.f32 %v539, %v619
        %v621 = vpop.f32.mrb[0].mxu0
        %622 = vdwg.mxu0
        %623 = vmatprep.subr.mxu0 0.0
        %624 = vmatpush1.msra.mxu0 %v523
        %625 = vmatprep.subr.mxu0 0.0
        %626 = vmatpush1.msra.mxu0 %v524
        %627 = vmatprep.subr.mxu0 0.0
        %628 = vmatpush1.msra.mxu0 %v525
        %629 = vmatprep.subr.mxu0 0.0
        %630 = vmatpush1.msra.mxu0 %v526
        %631 = vmatprep.subr.mxu0 0.0
        %632 = vmatpush1.msra.mxu0 %v527
        %633 = vmatprep.subr.mxu0 0.0
        %634 = vmatpush1.msra.mxu0 %v528
        %635 = vmatprep.subr.mxu0 0.0
        %636 = vmatpush1.msra.mxu0 %v529
        %637 = vmatprep.subr.mxu0 0.0
        %638 = vmatpush1.msra.mxu0 %v530
        %639 = vmatprep.subr.mxu0 0.0
        %640 = vmatpush1.msra.mxu0 0.0
        %641 = vmatprep.subr.mxu0 0.0
        %642 = vmatpush1.msra.mxu0 0.0
        %643 = vmatprep.subr.mxu0 0.0
        %644 = vmatpush1.msra.mxu0 0.0
        %645 = vmatprep.subr.mxu0 0.0
        %646 = vmatpush1.msra.mxu0 0.0
        %647 = vmatprep.subr.mxu0 0.0
        %648 = vmatpush1.msra.mxu0 0.0
        %649 = vmatprep.subr.mxu0 0.0
        %650 = vmatpush1.msra.mxu0 0.0
        %651 = vmatprep.subr.mxu0 0.0
        %652 = vmatpush1.msra.mxu0 0.0
        %653 = vmatprep.subr.mxu0 0.0
        %654 = vmatpush1.msra.mxu0 0.0
        %655 = vmatprep.subr.mxu0 0.0
        %656 = vmatpush1.msra.mxu0 0.0
        %657 = vmatprep.subr.mxu0 0.0
        %658 = vmatpush1.msra.mxu0 0.0
        %659 = vmatprep.subr.mxu0 0.0
        %660 = vmatpush1.msra.mxu0 0.0
        %661 = vmatprep.subr.mxu0 0.0
        %662 = vmatpush1.msra.mxu0 0.0
        %663 = vmatprep.subr.mxu0 0.0
        %664 = vmatpush1.msra.mxu0 0.0
        %665 = vmatprep.subr.mxu0 0.0
        %666 = vmatpush1.msra.mxu0 0.0
        %667 = vmatprep.subr.mxu0 0.0
        %668 = vmatpush1.msra.mxu0 0.0
        %669 = vmatprep.subr.mxu0 0.0
        %670 = vmatpush1.msra.mxu0 0.0
        %671 = vmatprep.subr.mxu0 0.0
        %672 = vmatpush1.msra.mxu0 0.0
        %673 = vmatprep.subr.mxu0 0.0
        %674 = vmatpush1.msra.mxu0 0.0
        %675 = vmatprep.subr.mxu0 0.0
        %676 = vmatpush1.msra.mxu0 0.0
        %677 = vmatprep.subr.mxu0 0.0
        %678 = vmatpush1.msra.mxu0 0.0
        %679 = vmatprep.subr.mxu0 0.0
        %680 = vmatpush1.msra.mxu0 0.0
        %681 = vmatprep.subr.mxu0 0.0
        %682 = vmatpush1.msra.mxu0 0.0
        %683 = vmatprep.subr.mxu0 0.0
        %684 = vmatpush1.msra.mxu0 0.0
        %685 = vmatprep.subr.mxu0 0.0
        %686 = vmatpush1.msra.mxu0 0.0
        %687 = vmatprep.mubr.f32.mxu0 0.0
        %688 = vmatmul.mubr.f32.gmra.mrb[0].mxu0 %v543
        %v689 = vpop.f32.mrb[0].mxu0
        %v690 = vadd.f32 %v540, %v689
        %v691 = vpop.f32.mrb[0].mxu0
        %692 = vmatprep.mubr.f32.mxu0 0.0
        %693 = vmatmul.mubr.f32.gmra.mrb[0].mxu0 %v546
        %v694 = vpop.f32.mrb[0].mxu0
        %v695 = vadd.f32 %v540, %v694
        %v696 = vpop.f32.mrb[0].mxu0
        %697 = vdwg.mxu0
        %698 = vmatprep.subr.mxu0 0.0
        %699 = vmatpush1.msra.mxu0 %v531
        %700 = vmatprep.subr.mxu0 0.0
        %701 = vmatpush1.msra.mxu0 %v532
        %702 = vmatprep.subr.mxu0 0.0
        %703 = vmatpush1.msra.mxu0 %v533
        %704 = vmatprep.subr.mxu0 0.0
        %705 = vmatpush1.msra.mxu0 %v534
        %706 = vmatprep.subr.mxu0 0.0
        %707 = vmatpush1.msra.mxu0 %v535
        %708 = vmatprep.subr.mxu0 0.0
        %709 = vmatpush1.msra.mxu0 %v536
        %710 = vmatprep.subr.mxu0 0.0
        %711 = vmatpush1.msra.mxu0 %v537
        %712 = vmatprep.subr.mxu0 0.0
        %713 = vmatpush1.msra.mxu0 %v538
        %714 = vmatprep.subr.mxu0 0.0
        %715 = vmatpush1.msra.mxu0 0.0
        %716 = vmatprep.subr.mxu0 0.0
        %717 = vmatpush1.msra.mxu0 0.0
        %718 = vmatprep.subr.mxu0 0.0
        %719 = vmatpush1.msra.mxu0 0.0
        %720 = vmatprep.subr.mxu0 0.0
        %721 = vmatpush1.msra.mxu0 0.0
        %722 = vmatprep.subr.mxu0 0.0
        %723 = vmatpush1.msra.mxu0 0.0
        %724 = vmatprep.subr.mxu0 0.0
        %725 = vmatpush1.msra.mxu0 0.0
        %726 = vmatprep.subr.mxu0 0.0
        %727 = vmatpush1.msra.mxu0 0.0
        %728 = vmatprep.subr.mxu0 0.0
        %729 = vmatpush1.msra.mxu0 0.0
        %730 = vmatprep.subr.mxu0 0.0
        %731 = vmatpush1.msra.mxu0 0.0
        %732 = vmatprep.subr.mxu0 0.0
        %733 = vmatpush1.msra.mxu0 0.0
        %734 = vmatprep.subr.mxu0 0.0
        %735 = vmatpush1.msra.mxu0 0.0
        %736 = vmatprep.subr.mxu0 0.0
        %737 = vmatpush1.msra.mxu0 0.0
        %738 = vmatprep.subr.mxu0 0.0
        %739 = vmatpush1.msra.mxu0 0.0
        %740 = vmatprep.subr.mxu0 0.0
        %741 = vmatpush1.msra.mxu0 0.0
        %742 = vmatprep.subr.mxu0 0.0
        %743 = vmatpush1.msra.mxu0 0.0
        %744 = vmatprep.subr.mxu0 0.0
        %745 = vmatpush1.msra.mxu0 0.0
        %746 = vmatprep.subr.mxu0 0.0
        %747 = vmatpush1.msra.mxu0 0.0
        %748 = vmatprep.subr.mxu0 0.0
        %749 = vmatpush1.msra.mxu0 0.0
        %750 = vmatprep.subr.mxu0 0.0
        %751 = vmatpush1.msra.mxu0 0.0
        %752 = vmatprep.subr.mxu0 0.0
        %753 = vmatpush1.msra.mxu0 0.0
        %754 = vmatprep.subr.mxu0 0.0
        %755 = vmatpush1.msra.mxu0 0.0
        %756 = vmatprep.subr.mxu0 0.0
        %757 = vmatpush1.msra.mxu0 0.0
        %758 = vmatprep.subr.mxu0 0.0
        %759 = vmatpush1.msra.mxu0 0.0
        %760 = vmatprep.subr.mxu0 0.0
        %761 = vmatpush1.msra.mxu0 0.0
        %762 = vmatprep.mubr.f32.mxu0 0.0
        %763 = vmatmul.mubr.f32.gmra.mrb[0].mxu0 %v543
        %v764 = vpop.f32.mrb[0].mxu0
        %v765 = vadd.f32 %v541, %v764
        %v766 = vpop.f32.mrb[0].mxu0
        %767 = vmatprep.mubr.f32.mxu0 0.0
        %768 = vmatmul.mubr.f32.gmra.mrb[0].mxu0 %v546
        %v769 = vpop.f32.mrb[0].mxu0
        %v770 = vadd.f32 %v541, %v769
        %v771 = vpop.f32.mrb[0].mxu0
        %772 = vdwg.mxu0
        %v774 = vsel %vm349, %v615, 0
        %v777 = vsel %vm349, %v690, 0
        %779 = vmatprep.subr.mxu0 0.0
        %780 = vmatpush1.xpose.msra.mxu0 %v777
        %781 = vmatprep.subr.mxu0 0.0
        %782 = vmatpush1.xpose.msra.mxu0 0.0
        %783 = vmatprep.subr.mxu0 0.0
        %784 = vmatpush1.xpose.msra.mxu0 0.0
        %785 = vmatprep.subr.mxu0 0.0
        %786 = vmatpush1.xpose.msra.mxu0 0.0
        %787 = vmatprep.subr.mxu0 0.0
        %788 = vmatpush1.xpose.msra.mxu0 0.0
        %789 = vmatprep.subr.mxu0 0.0
        %790 = vmatpush1.xpose.msra.mxu0 0.0
        %791 = vmatprep.subr.mxu0 0.0
        %792 = vmatpush1.xpose.msra.mxu0 0.0
        %793 = vmatprep.subr.mxu0 0.0
        %794 = vmatpush1.xpose.msra.mxu0 0.0
        %795 = vmatprep.subr.mxu0 0.0
        %796 = vmatpush1.xpose.msra.mxu0 0.0
        %797 = vmatprep.subr.mxu0 0.0
        %798 = vmatpush1.xpose.msra.mxu0 0.0
        %799 = vmatprep.subr.mxu0 0.0
        %800 = vmatpush1.xpose.msra.mxu0 0.0
        %801 = vmatprep.subr.mxu0 0.0
        %802 = vmatpush1.xpose.msra.mxu0 0.0
        %803 = vmatprep.subr.mxu0 0.0
        %804 = vmatpush1.xpose.msra.mxu0 0.0
        %805 = vmatprep.subr.mxu0 0.0
        %806 = vmatpush1.xpose.msra.mxu0 0.0
        %807 = vmatprep.subr.mxu0 0.0
        %808 = vmatpush1.xpose.msra.mxu0 0.0
        %809 = vmatprep.subr.mxu0 0.0
        %810 = vmatpush1.xpose.msra.mxu0 0.0
        %811 = vmatprep.subr.mxu0 0.0
        %812 = vmatpush1.xpose.msra.mxu0 0.0
        %813 = vmatprep.subr.mxu0 0.0
        %814 = vmatpush1.xpose.msra.mxu0 0.0
        %815 = vmatprep.subr.mxu0 0.0
        %816 = vmatpush1.xpose.msra.mxu0 0.0
        %817 = vmatprep.subr.mxu0 0.0
        %818 = vmatpush1.xpose.msra.mxu0 0.0
        %819 = vmatprep.subr.mxu0 0.0
        %820 = vmatpush1.xpose.msra.mxu0 0.0
        %821 = vmatprep.subr.mxu0 0.0
        %822 = vmatpush1.xpose.msra.mxu0 0.0
        %823 = vmatprep.subr.mxu0 0.0
        %824 = vmatpush1.xpose.msra.mxu0 0.0
        %825 = vmatprep.subr.mxu0 0.0
        %826 = vmatpush1.xpose.msra.mxu0 0.0
        %827 = vmatprep.subr.mxu0 0.0
        %828 = vmatpush1.xpose.msra.mxu0 0.0
        %829 = vmatprep.subr.mxu0 0.0
        %830 = vmatpush1.xpose.msra.mxu0 0.0
        %831 = vmatprep.subr.mxu0 0.0
        %832 = vmatpush1.xpose.msra.mxu0 0.0
        %833 = vmatprep.subr.mxu0 0.0
        %834 = vmatpush1.xpose.msra.mxu0 0.0
        %835 = vmatprep.subr.mxu0 0.0
        %836 = vmatpush1.xpose.msra.mxu0 0.0
        %837 = vmatprep.subr.mxu0 0.0
        %838 = vmatpush1.xpose.msra.mxu0 0.0
        %839 = vmatprep.subr.mxu0 0.0
        %840 = vmatpush1.xpose.msra.mxu0 0.0
        %841 = vmatprep.subr.mxu0 0.0
        %842 = vmatpush1.xpose.msra.mxu0 0.0
        %843 = vmatprep.mubr.f32.mxu0 0.0
        %844 = vmatmul.mubr.f32.gmra.mrb[0].mxu0 %v774
        %v845 = vpop.f32.mrb[0].mxu0
        %v846 = vadd.f32 0.0, %v845
        %v847 = vpop.f32.mrb[0].mxu0
        %848 = vdwg.mxu0
        %v850 = vsel %vm349, %v620, 0
        %v853 = vsel %vm349, %v695, 0
        %855 = vmatprep.subr.mxu0 0.0
        %856 = vmatpush1.xpose.msra.mxu0 %v853
        %857 = vmatprep.subr.mxu0 0.0
        %858 = vmatpush1.xpose.msra.mxu0 0.0
        %859 = vmatprep.subr.mxu0 0.0
        %860 = vmatpush1.xpose.msra.mxu0 0.0
        %861 = vmatprep.subr.mxu0 0.0
        %862 = vmatpush1.xpose.msra.mxu0 0.0
        %863 = vmatprep.subr.mxu0 0.0
        %864 = vmatpush1.xpose.msra.mxu0 0.0
        %865 = vmatprep.subr.mxu0 0.0
        %866 = vmatpush1.xpose.msra.mxu0 0.0
        %867 = vmatprep.subr.mxu0 0.0
        %868 = vmatpush1.xpose.msra.mxu0 0.0
        %869 = vmatprep.subr.mxu0 0.0
        %870 = vmatpush1.xpose.msra.mxu0 0.0
        %871 = vmatprep.subr.mxu0 0.0
        %872 = vmatpush1.xpose.msra.mxu0 0.0
        %873 = vmatprep.subr.mxu0 0.0
        %874 = vmatpush1.xpose.msra.mxu0 0.0
        %875 = vmatprep.subr.mxu0 0.0
        %876 = vmatpush1.xpose.msra.mxu0 0.0
        %877 = vmatprep.subr.mxu0 0.0
        %878 = vmatpush1.xpose.msra.mxu0 0.0
        %879 = vmatprep.subr.mxu0 0.0
        %880 = vmatpush1.xpose.msra.mxu0 0.0
        %881 = vmatprep.subr.mxu0 0.0
        %882 = vmatpush1.xpose.msra.mxu0 0.0
        %883 = vmatprep.subr.mxu0 0.0
        %884 = vmatpush1.xpose.msra.mxu0 0.0
        %885 = vmatprep.subr.mxu0 0.0
        %886 = vmatpush1.xpose.msra.mxu0 0.0
        %887 = vmatprep.subr.mxu0 0.0
        %888 = vmatpush1.xpose.msra.mxu0 0.0
        %889 = vmatprep.subr.mxu0 0.0
        %890 = vmatpush1.xpose.msra.mxu0 0.0
        %891 = vmatprep.subr.mxu0 0.0
        %892 = vmatpush1.xpose.msra.mxu0 0.0
        %893 = vmatprep.subr.mxu0 0.0
        %894 = vmatpush1.xpose.msra.mxu0 0.0
        %895 = vmatprep.subr.mxu0 0.0
        %896 = vmatpush1.xpose.msra.mxu0 0.0
        %897 = vmatprep.subr.mxu0 0.0
        %898 = vmatpush1.xpose.msra.mxu0 0.0
        %899 = vmatprep.subr.mxu0 0.0
        %900 = vmatpush1.xpose.msra.mxu0 0.0
        %901 = vmatprep.subr.mxu0 0.0
        %902 = vmatpush1.xpose.msra.mxu0 0.0
        %903 = vmatprep.subr.mxu0 0.0
        %904 = vmatpush1.xpose.msra.mxu0 0.0
        %905 = vmatprep.subr.mxu0 0.0
        %906 = vmatpush1.xpose.msra.mxu0 0.0
        %907 = vmatprep.subr.mxu0 0.0
        %908 = vmatpush1.xpose.msra.mxu0 0.0
        %909 = vmatprep.subr.mxu0 0.0
        %910 = vmatpush1.xpose.msra.mxu0 0.0
        %911 = vmatprep.subr.mxu0 0.0
        %912 = vmatpush1.xpose.msra.mxu0 0.0
        %913 = vmatprep.subr.mxu0 0.0
        %914 = vmatpush1.xpose.msra.mxu0 0.0
        %915 = vmatprep.subr.mxu0 0.0
        %916 = vmatpush1.xpose.msra.mxu0 0.0
        %917 = vmatprep.subr.mxu0 0.0
        %918 = vmatpush1.xpose.msra.mxu0 0.0
        %919 = vmatprep.mubr.f32.mxu0 0.0
        %920 = vmatmul.mubr.f32.gmra.mrb[0].mxu0 %v850
        %v921 = vpop.f32.mrb[0].mxu0
        %v922 = vadd.f32 0.0, %v921
        %v923 = vpop.f32.mrb[0].mxu0
        %924 = vdwg.mxu0
        %v925 = vmul.f32 %v846, 0.25
        %v926 = vmul.f32 %v922, 0.25
        %v927 = vadd.f32 %v925, %v165
        %v928 = vadd.f32 %v926, %v165
        %vm929 = vcmask 64512
        %v930 = vsel %vm929, %v927, -inf
        %931 = vmax.xlane.f32.xlu0 %v930
        %v932 = vpop.xlane.xlu0 %931
        %v933 = vsel %vm929, %v928, -inf
        %934 = vmax.xlane.f32.xlu0 %v933
        %v935 = vpop.xlane.xlu0 %934
        %v936 = vsub.f32 %v927, %v932
        %v937 = vsub.f32 %v928, %v935
        %v938 = vmul.f32 %v936, 1.442695
        %v939 = vpow.pop %v938
        %v940 = vmul.f32 %v937, 1.442695
        %v941 = vpow.pop %v940
        %v942 = vsel %vm929, %v939, 0.0
        %943 = vadd.xlane.f32.xlu0 %v942
        %v944 = vpop.xlane.xlu0 %943
        %v945 = vsel %vm929, %v941, 0.0
        %946 = vadd.xlane.f32.xlu0 %v945
        %v947 = vpop.xlane.xlu0 %946
        %v948 = vrcp.pop %v944
        %v949 = vrcp.pop %v947
        %v950 = vmul.f32 %v939, %v948
        %v951 = vmul.f32 %v941, %v949
        %v953 = vsel %vm929, %v950, 0
        %955 = vmatprep.subr.mxu0 0.0
        %956 = vmatpush1.msra.mxu0 %v765
        %957 = vmatprep.subr.mxu0 0.0
        %958 = vmatpush1.msra.mxu0 0.0
        %959 = vmatprep.subr.mxu0 0.0
        %960 = vmatpush1.msra.mxu0 0.0
        %961 = vmatprep.subr.mxu0 0.0
        %962 = vmatpush1.msra.mxu0 0.0
        %963 = vmatprep.subr.mxu0 0.0
        %964 = vmatpush1.msra.mxu0 0.0
        %965 = vmatprep.subr.mxu0 0.0
        %966 = vmatpush1.msra.mxu0 0.0
        %967 = vmatprep.subr.mxu0 0.0
        %968 = vmatpush1.msra.mxu0 0.0
        %969 = vmatprep.subr.mxu0 0.0
        %970 = vmatpush1.msra.mxu0 0.0
        %971 = vmatprep.subr.mxu0 0.0
        %972 = vmatpush1.msra.mxu0 0.0
        %973 = vmatprep.subr.mxu0 0.0
        %974 = vmatpush1.msra.mxu0 0.0
        %975 = vmatprep.subr.mxu0 0.0
        %976 = vmatpush1.msra.mxu0 0.0
        %977 = vmatprep.subr.mxu0 0.0
        %978 = vmatpush1.msra.mxu0 0.0
        %979 = vmatprep.subr.mxu0 0.0
        %980 = vmatpush1.msra.mxu0 0.0
        %981 = vmatprep.subr.mxu0 0.0
        %982 = vmatpush1.msra.mxu0 0.0
        %983 = vmatprep.subr.mxu0 0.0
        %984 = vmatpush1.msra.mxu0 0.0
        %985 = vmatprep.subr.mxu0 0.0
        %986 = vmatpush1.msra.mxu0 0.0
        %987 = vmatprep.subr.mxu0 0.0
        %988 = vmatpush1.msra.mxu0 0.0
        %989 = vmatprep.subr.mxu0 0.0
        %990 = vmatpush1.msra.mxu0 0.0
        %991 = vmatprep.subr.mxu0 0.0
        %992 = vmatpush1.msra.mxu0 0.0
        %993 = vmatprep.subr.mxu0 0.0
        %994 = vmatpush1.msra.mxu0 0.0
        %995 = vmatprep.subr.mxu0 0.0
        %996 = vmatpush1.msra.mxu0 0.0
        %997 = vmatprep.subr.mxu0 0.0
        %998 = vmatpush1.msra.mxu0 0.0
        %999 = vmatprep.subr.mxu0 0.0
        %1000 = vmatpush1.msra.mxu0 0.0
        %1001 = vmatprep.subr.mxu0 0.0
        %1002 = vmatpush1.msra.mxu0 0.0
        %1003 = vmatprep.subr.mxu0 0.0
        %1004 = vmatpush1.msra.mxu0 0.0
        %1005 = vmatprep.subr.mxu0 0.0
        %1006 = vmatpush1.msra.mxu0 0.0
        %1007 = vmatprep.subr.mxu0 0.0
        %1008 = vmatpush1.msra.mxu0 0.0
        %1009 = vmatprep.subr.mxu0 0.0
        %1010 = vmatpush1.msra.mxu0 0.0
        %1011 = vmatprep.subr.mxu0 0.0
        %1012 = vmatpush1.msra.mxu0 0.0
        %1013 = vmatprep.subr.mxu0 0.0
        %1014 = vmatpush1.msra.mxu0 0.0
        %1015 = vmatprep.subr.mxu0 0.0
        %1016 = vmatpush1.msra.mxu0 0.0
        %1017 = vmatprep.subr.mxu0 0.0
        %1018 = vmatpush1.msra.mxu0 0.0
        %1019 = vmatprep.mubr.f32.mxu0 0.0
        %1020 = vmatmul.mubr.f32.gmra.mrb[0].mxu0 %v953
        %v1021 = vpop.f32.mrb[0].mxu0
        %v1022 = vadd.f32 0.0, %v1021
        %v1023 = vpop.f32.mrb[0].mxu0
        %1024 = vdwg.mxu0
        %v1026 = vsel %vm929, %v951, 0
        %1028 = vmatprep.subr.mxu0 0.0
        %1029 = vmatpush1.msra.mxu0 %v770
        %1030 = vmatprep.subr.mxu0 0.0
        %1031 = vmatpush1.msra.mxu0 0.0
        %1032 = vmatprep.subr.mxu0 0.0
        %1033 = vmatpush1.msra.mxu0 0.0
        %1034 = vmatprep.subr.mxu0 0.0
        %1035 = vmatpush1.msra.mxu0 0.0
        %1036 = vmatprep.subr.mxu0 0.0
        %1037 = vmatpush1.msra.mxu0 0.0
        %1038 = vmatprep.subr.mxu0 0.0
        %1039 = vmatpush1.msra.mxu0 0.0
        %1040 = vmatprep.subr.mxu0 0.0
        %1041 = vmatpush1.msra.mxu0 0.0
        %1042 = vmatprep.subr.mxu0 0.0
        %1043 = vmatpush1.msra.mxu0 0.0
        %1044 = vmatprep.subr.mxu0 0.0
        %1045 = vmatpush1.msra.mxu0 0.0
        %1046 = vmatprep.subr.mxu0 0.0
        %1047 = vmatpush1.msra.mxu0 0.0
        %1048 = vmatprep.subr.mxu0 0.0
        %1049 = vmatpush1.msra.mxu0 0.0
        %1050 = vmatprep.subr.mxu0 0.0
        %1051 = vmatpush1.msra.mxu0 0.0
        %1052 = vmatprep.subr.mxu0 0.0
        %1053 = vmatpush1.msra.mxu0 0.0
        %1054 = vmatprep.subr.mxu0 0.0
        %1055 = vmatpush1.msra.mxu0 0.0
        %1056 = vmatprep.subr.mxu0 0.0
        %1057 = vmatpush1.msra.mxu0 0.0
        %1058 = vmatprep.subr.mxu0 0.0
        %1059 = vmatpush1.msra.mxu0 0.0
        %1060 = vmatprep.subr.mxu0 0.0
        %1061 = vmatpush1.msra.mxu0 0.0
        %1062 = vmatprep.subr.mxu0 0.0
        %1063 = vmatpush1.msra.mxu0 0.0
        %1064 = vmatprep.subr.mxu0 0.0
        %1065 = vmatpush1.msra.mxu0 0.0
        %1066 = vmatprep.subr.mxu0 0.0
        %1067 = vmatpush1.msra.mxu0 0.0
        %1068 = vmatprep.subr.mxu0 0.0
        %1069 = vmatpush1.msra.mxu0 0.0
        %1070 = vmatprep.subr.mxu0 0.0
        %1071 = vmatpush1.msra.mxu0 0.0
        %1072 = vmatprep.subr.mxu0 0.0
        %1073 = vmatpush1.msra.mxu0 0.0
        %1074 = vmatprep.subr.mxu0 0.0
        %1075 = vmatpush1.msra.mxu0 0.0
        %1076 = vmatprep.subr.mxu0 0.0
        %1077 = vmatpush1.msra.mxu0 0.0
        %1078 = vmatprep.subr.mxu0 0.0
        %1079 = vmatpush1.msra.mxu0 0.0
        %1080 = vmatprep.subr.mxu0 0.0
        %1081 = vmatpush1.msra.mxu0 0.0
        %1082 = vmatprep.subr.mxu0 0.0
        %1083 = vmatpush1.msra.mxu0 0.0
        %1084 = vmatprep.subr.mxu0 0.0
        %1085 = vmatpush1.msra.mxu0 0.0
        %1086 = vmatprep.subr.mxu0 0.0
        %1087 = vmatpush1.msra.mxu0 0.0
        %1088 = vmatprep.subr.mxu0 0.0
        %1089 = vmatpush1.msra.mxu0 0.0
        %1090 = vmatprep.subr.mxu0 0.0
        %1091 = vmatpush1.msra.mxu0 0.0
        %1092 = vmatprep.mubr.f32.mxu0 0.0
        %1093 = vmatmul.mubr.f32.gmra.mrb[0].mxu0 %v1026
        %v1094 = vpop.f32.mrb[0].mxu0
        %v1095 = vadd.f32 0.0, %v1094
        %v1096 = vpop.f32.mrb[0].mxu0
        %1097 = vdwg.mxu0
        %v1098 = vld [vmem:[#allocation2 + $0x720] sm:$0xff]
        %v1099 = vld [vmem:[#allocation2 + $0x730] sm:$0xff]
        %v1100 = vld [vmem:[#allocation2 + $0x170] sm:$0xff]
        %v1101 = vld [vmem:[#allocation2 + $0x180] sm:$0xff]
        %v1102 = vld [vmem:[#allocation2 + $0x190] sm:$0xff]
        %v1103 = vld [vmem:[#allocation2 + $0x1a0] sm:$0xff]
        %v1104 = vld [vmem:[#allocation2 + $0x1b0] sm:$0xff]
        %v1105 = vld [vmem:[#allocation2 + $0x1c0] sm:$0xff]
        %v1106 = vld [vmem:[#allocation2 + $0x1d0] sm:$0xff]
        %v1107 = vld [vmem:[#allocation2 + $0x1e0] sm:$0xff]
        %v1108 = vld [vmem:[#allocation2 + $0x380] sm:$0xff]
        %v1109 = vld [vmem:[#allocation2 + $0x390] sm:$0xff]
        %v1110 = vld [vmem:[#allocation2 + $0x3a0] sm:$0xff]
        %v1111 = vld [vmem:[#allocation2 + $0x3b0] sm:$0xff]
        %v1112 = vld [vmem:[#allocation2 + $0x3c0] sm:$0xff]
        %v1113 = vld [vmem:[#allocation2 + $0x3d0] sm:$0xff]
        %v1114 = vld [vmem:[#allocation2 + $0x3e0] sm:$0xff]
        %v1115 = vld [vmem:[#allocation2 + $0x3f0] sm:$0xff]
        %v1116 = vld [vmem:[#allocation2 + $0x590] sm:$0xff]
        %v1117 = vld [vmem:[#allocation2 + $0x5a0] sm:$0xff]
        %v1118 = vld [vmem:[#allocation2 + $0x5b0] sm:$0xff]
        %v1119 = vld [vmem:[#allocation2 + $0x5c0] sm:$0xff]
        %v1120 = vld [vmem:[#allocation2 + $0x5d0] sm:$0xff]
        %v1121 = vld [vmem:[#allocation2 + $0x5e0] sm:$0xff]
        %v1122 = vld [vmem:[#allocation2 + $0x5f0] sm:$0xff]
        %v1123 = vld [vmem:[#allocation2 + $0x600] sm:$0xff]
        %v1124 = vld [vmem:[#allocation2 + $0x2f1] ss:$0 sm:$0xff]
        %v1125 = vld [vmem:[#allocation2 + $0x501] ss:$0 sm:$0xff]
        %v1126 = vld [vmem:[#allocation2 + $0x711] ss:$0 sm:$0xff]
        %1127 = vmatprep.subr.mxu0 0.0
        %1128 = vmatpush1.msra.mxu0 %v1100
        %1129 = vmatprep.subr.mxu0 0.0
        %1130 = vmatpush1.msra.mxu0 %v1101
        %1131 = vmatprep.subr.mxu0 0.0
        %1132 = vmatpush1.msra.mxu0 %v1102
        %1133 = vmatprep.subr.mxu0 0.0
        %1134 = vmatpush1.msra.mxu0 %v1103
        %1135 = vmatprep.subr.mxu0 0.0
        %1136 = vmatpush1.msra.mxu0 %v1104
        %1137 = vmatprep.subr.mxu0 0.0
        %1138 = vmatpush1.msra.mxu0 %v1105
        %1139 = vmatprep.subr.mxu0 0.0
        %1140 = vmatpush1.msra.mxu0 %v1106
        %1141 = vmatprep.subr.mxu0 0.0
        %1142 = vmatpush1.msra.mxu0 %v1107
        %1143 = vmatprep.subr.mxu0 0.0
        %1144 = vmatpush1.msra.mxu0 0.0
        %1145 = vmatprep.subr.mxu0 0.0
        %1146 = vmatpush1.msra.mxu0 0.0
        %1147 = vmatprep.subr.mxu0 0.0
        %1148 = vmatpush1.msra.mxu0 0.0
        %1149 = vmatprep.subr.mxu0 0.0
        %1150 = vmatpush1.msra.mxu0 0.0
        %1151 = vmatprep.subr.mxu0 0.0
        %1152 = vmatpush1.msra.mxu0 0.0
        %1153 = vmatprep.subr.mxu0 0.0
        %1154 = vmatpush1.msra.mxu0 0.0
        %1155 = vmatprep.subr.mxu0 0.0
        %1156 = vmatpush1.msra.mxu0 0.0
        %1157 = vmatprep.subr.mxu0 0.0
        %1158 = vmatpush1.msra.mxu0 0.0
        %1159 = vmatprep.subr.mxu0 0.0
        %1160 = vmatpush1.msra.mxu0 0.0
        %1161 = vmatprep.subr.mxu0 0.0
        %1162 = vmatpush1.msra.mxu0 0.0
        %1163 = vmatprep.subr.mxu0 0.0
        %1164 = vmatpush1.msra.mxu0 0.0
        %1165 = vmatprep.subr.mxu0 0.0
        %1166 = vmatpush1.msra.mxu0 0.0
        %1167 = vmatprep.subr.mxu0 0.0
        %1168 = vmatpush1.msra.mxu0 0.0
        %1169 = vmatprep.subr.mxu0 0.0
        %1170 = vmatpush1.msra.mxu0 0.0
        %1171 = vmatprep.subr.mxu0 0.0
        %1172 = vmatpush1.msra.mxu0 0.0
        %1173 = vmatprep.subr.mxu0 0.0
        %1174 = vmatpush1.msra.mxu0 0.0
        %1175 = vmatprep.subr.mxu0 0.0
        %1176 = vmatpush1.msra.mxu0 0.0
        %1177 = vmatprep.subr.mxu0 0.0
        %1178 = vmatpush1.msra.mxu0 0.0
        %1179 = vmatprep.subr.mxu0 0.0
        %1180 = vmatpush1.msra.mxu0 0.0
        %1181 = vmatprep.subr.mxu0 0.0
        %1182 = vmatpush1.msra.mxu0 0.0
        %1183 = vmatprep.subr.mxu0 0.0
        %1184 = vmatpush1.msra.mxu0 0.0
        %1185 = vmatprep.subr.mxu0 0.0
        %1186 = vmatpush1.msra.mxu0 0.0
        %1187 = vmatprep.subr.mxu0 0.0
        %1188 = vmatpush1.msra.mxu0 0.0
        %1189 = vmatprep.subr.mxu0 0.0
        %1190 = vmatpush1.msra.mxu0 0.0
        %1191 = vmatprep.mubr.f32.mxu0 0.0
        %1192 = vmatmul.mubr.f32.gmra.mrb[0].mxu0 %v543
        %v1193 = vpop.f32.mrb[0].mxu0
        %v1194 = vadd.f32 %v1124, %v1193
        %v1195 = vpop.f32.mrb[0].mxu0
        %1196 = vmatprep.mubr.f32.mxu0 0.0
        %1197 = vmatmul.mubr.f32.gmra.mrb[0].mxu0 %v546
        %v1198 = vpop.f32.mrb[0].mxu0
        %v1199 = vadd.f32 %v1124, %v1198
        %v1200 = vpop.f32.mrb[0].mxu0
        %1201 = vdwg.mxu0
        %1202 = vmatprep.subr.mxu0 0.0
        %1203 = vmatpush1.msra.mxu0 %v1108
        %1204 = vmatprep.subr.mxu0 0.0
        %1205 = vmatpush1.msra.mxu0 %v1109
        %1206 = vmatprep.subr.mxu0 0.0
        %1207 = vmatpush1.msra.mxu0 %v1110
        %1208 = vmatprep.subr.mxu0 0.0
        %1209 = vmatpush1.msra.mxu0 %v1111
        %1210 = vmatprep.subr.mxu0 0.0
        %1211 = vmatpush1.msra.mxu0 %v1112
        %1212 = vmatprep.subr.mxu0 0.0
        %1213 = vmatpush1.msra.mxu0 %v1113
        %1214 = vmatprep.subr.mxu0 0.0
        %1215 = vmatpush1.msra.mxu0 %v1114
        %1216 = vmatprep.subr.mxu0 0.0
        %1217 = vmatpush1.msra.mxu0 %v1115
        %1218 = vmatprep.subr.mxu0 0.0
        %1219 = vmatpush1.msra.mxu0 0.0
        %1220 = vmatprep.subr.mxu0 0.0
        %1221 = vmatpush1.msra.mxu0 0.0
        %1222 = vmatprep.subr.mxu0 0.0
        %1223 = vmatpush1.msra.mxu0 0.0
        %1224 = vmatprep.subr.mxu0 0.0
        %1225 = vmatpush1.msra.mxu0 0.0
        %1226 = vmatprep.subr.mxu0 0.0
        %1227 = vmatpush1.msra.mxu0 0.0
        %1228 = vmatprep.subr.mxu0 0.0
        %1229 = vmatpush1.msra.mxu0 0.0
        %1230 = vmatprep.subr.mxu0 0.0
        %1231 = vmatpush1.msra.mxu0 0.0
        %1232 = vmatprep.subr.mxu0 0.0
        %1233 = vmatpush1.msra.mxu0 0.0
        %1234 = vmatprep.subr.mxu0 0.0
        %1235 = vmatpush1.msra.mxu0 0.0
        %1236 = vmatprep.subr.mxu0 0.0
        %1237 = vmatpush1.msra.mxu0 0.0
        %1238 = vmatprep.subr.mxu0 0.0
        %1239 = vmatpush1.msra.mxu0 0.0
        %1240 = vmatprep.subr.mxu0 0.0
        %1241 = vmatpush1.msra.mxu0 0.0
        %1242 = vmatprep.subr.mxu0 0.0
        %1243 = vmatpush1.msra.mxu0 0.0
        %1244 = vmatprep.subr.mxu0 0.0
        %1245 = vmatpush1.msra.mxu0 0.0
        %1246 = vmatprep.subr.mxu0 0.0
        %1247 = vmatpush1.msra.mxu0 0.0
        %1248 = vmatprep.subr.mxu0 0.0
        %1249 = vmatpush1.msra.mxu0 0.0
        %1250 = vmatprep.subr.mxu0 0.0
        %1251 = vmatpush1.msra.mxu0 0.0
        %1252 = vmatprep.subr.mxu0 0.0
        %1253 = vmatpush1.msra.mxu0 0.0
        %1254 = vmatprep.subr.mxu0 0.0
        %1255 = vmatpush1.msra.mxu0 0.0
        %1256 = vmatprep.subr.mxu0 0.0
        %1257 = vmatpush1.msra.mxu0 0.0
        %1258 = vmatprep.subr.mxu0 0.0
        %1259 = vmatpush1.msra.mxu0 0.0
        %1260 = vmatprep.subr.mxu0 0.0
        %1261 = vmatpush1.msra.mxu0 0.0
        %1262 = vmatprep.subr.mxu0 0.0
        %1263 = vmatpush1.msra.mxu0 0.0
        %1264 = vmatprep.subr.mxu0 0.0
        %1265 = vmatpush1.msra.mxu0 0.0
        %1266 = vmatprep.mubr.f32.mxu0 0.0
        %1267 = vmatmul.mubr.f32.gmra.mrb[0].mxu0 %v543
        %v1268 = vpop.f32.mrb[0].mxu0
        %v1269 = vadd.f32 %v1125, %v1268
        %v1270 = vpop.f32.mrb[0].mxu0
        %1271 = vmatprep.mubr.f32.mxu0 0.0
        %1272 = vmatmul.mubr.f32.gmra.mrb[0].mxu0 %v546
        %v1273 = vpop.f32.mrb[0].mxu0
        %v1274 = vadd.f32 %v1125, %v1273
        %v1275 = vpop.f32.mrb[0].mxu0
        %1276 = vdwg.mxu0
        %1277 = vmatprep.subr.mxu0 0.0
        %1278 = vmatpush1.msra.mxu0 %v1116
        %1279 = vmatprep.subr.mxu0 0.0
        %1280 = vmatpush1.msra.mxu0 %v1117
        %1281 = vmatprep.subr.mxu0 0.0
        %1282 = vmatpush1.msra.mxu0 %v1118
        %1283 = vmatprep.subr.mxu0 0.0
        %1284 = vmatpush1.msra.mxu0 %v1119
        %1285 = vmatprep.subr.mxu0 0.0
        %1286 = vmatpush1.msra.mxu0 %v1120
        %1287 = vmatprep.subr.mxu0 0.0
        %1288 = vmatpush1.msra.mxu0 %v1121
        %1289 = vmatprep.subr.mxu0 0.0
        %1290 = vmatpush1.msra.mxu0 %v1122
        %1291 = vmatprep.subr.mxu0 0.0
        %1292 = vmatpush1.msra.mxu0 %v1123
        %1293 = vmatprep.subr.mxu0 0.0
        %1294 = vmatpush1.msra.mxu0 0.0
        %1295 = vmatprep.subr.mxu0 0.0
        %1296 = vmatpush1.msra.mxu0 0.0
        %1297 = vmatprep.subr.mxu0 0.0
        %1298 = vmatpush1.msra.mxu0 0.0
        %1299 = vmatprep.subr.mxu0 0.0
        %1300 = vmatpush1.msra.mxu0 0.0
        %1301 = vmatprep.subr.mxu0 0.0
        %1302 = vmatpush1.msra.mxu0 0.0
        %1303 = vmatprep.subr.mxu0 0.0
        %1304 = vmatpush1.msra.mxu0 0.0
        %1305 = vmatprep.subr.mxu0 0.0
        %1306 = vmatpush1.msra.mxu0 0.0
        %1307 = vmatprep.subr.mxu0 0.0
        %1308 = vmatpush1.msra.mxu0 0.0
        %1309 = vmatprep.subr.mxu0 0.0
        %1310 = vmatpush1.msra.mxu0 0.0
        %1311 = vmatprep.subr.mxu0 0.0
        %1312 = vmatpush1.msra.mxu0 0.0
        %1313 = vmatprep.subr.mxu0 0.0
        %1314 = vmatpush1.msra.mxu0 0.0
        %1315 = vmatprep.subr.mxu0 0.0
        %1316 = vmatpush1.msra.mxu0 0.0
        %1317 = vmatprep.subr.mxu0 0.0
        %1318 = vmatpush1.msra.mxu0 0.0
        %1319 = vmatprep.subr.mxu0 0.0
        %1320 = vmatpush1.msra.mxu0 0.0
        %1321 = vmatprep.subr.mxu0 0.0
        %1322 = vmatpush1.msra.mxu0 0.0
        %1323 = vmatprep.subr.mxu0 0.0
        %1324 = vmatpush1.msra.mxu0 0.0
        %1325 = vmatprep.subr.mxu0 0.0
        %1326 = vmatpush1.msra.mxu0 0.0
        %1327 = vmatprep.subr.mxu0 0.0
        %1328 = vmatpush1.msra.mxu0 0.0
        %1329 = vmatprep.subr.mxu0 0.0
        %1330 = vmatpush1.msra.mxu0 0.0
        %1331 = vmatprep.subr.mxu0 0.0
        %1332 = vmatpush1.msra.mxu0 0.0
        %1333 = vmatprep.subr.mxu0 0.0
        %1334 = vmatpush1.msra.mxu0 0.0
        %1335 = vmatprep.subr.mxu0 0.0
        %1336 = vmatpush1.msra.mxu0 0.0
        %1337 = vmatprep.subr.mxu0 0.0
        %1338 = vmatpush1.msra.mxu0 0.0
        %1339 = vmatprep.subr.mxu0 0.0
        %1340 = vmatpush1.msra.mxu0 0.0
        %1341 = vmatprep.mubr.f32.mxu0 0.0
        %1342 = vmatmul.mubr.f32.gmra.mrb[0].mxu0 %v543
        %v1343 = vpop.f32.mrb[0].mxu0
        %v1344 = vadd.f32 %v1126, %v1343
        %v1345 = vpop.f32.mrb[0].mxu0
        %1346 = vmatprep.mubr.f32.mxu0 0.0
        %1347 = vmatmul.mubr.f32.gmra.mrb[0].mxu0 %v546
        %v1348 = vpop.f32.mrb[0].mxu0
        %v1349 = vadd.f32 %v1126, %v1348
        %v1350 = vpop.f32.mrb[0].mxu0
        %1351 = vdwg.mxu0
        %v1353 = vsel %vm349, %v1194, 0
        %v1356 = vsel %vm349, %v1269, 0
        %1358 = vmatprep.subr.mxu0 0.0
        %1359 = vmatpush1.xpose.msra.mxu0 %v1356
        %1360 = vmatprep.subr.mxu0 0.0
        %1361 = vmatpush1.xpose.msra.mxu0 0.0
        %1362 = vmatprep.subr.mxu0 0.0
        %1363 = vmatpush1.xpose.msra.mxu0 0.0
        %1364 = vmatprep.subr.mxu0 0.0
        %1365 = vmatpush1.xpose.msra.mxu0 0.0
        %1366 = vmatprep.subr.mxu0 0.0
        %1367 = vmatpush1.xpose.msra.mxu0 0.0
        %1368 = vmatprep.subr.mxu0 0.0
        %1369 = vmatpush1.xpose.msra.mxu0 0.0
        %1370 = vmatprep.subr.mxu0 0.0
        %1371 = vmatpush1.xpose.msra.mxu0 0.0
        %1372 = vmatprep.subr.mxu0 0.0
        %1373 = vmatpush1.xpose.msra.mxu0 0.0
        %1374 = vmatprep.subr.mxu0 0.0
        %1375 = vmatpush1.xpose.msra.mxu0 0.0
        %1376 = vmatprep.subr.mxu0 0.0
        %1377 = vmatpush1.xpose.msra.mxu0 0.0
        %1378 = vmatprep.subr.mxu0 0.0
        %1379 = vmatpush1.xpose.msra.mxu0 0.0
        %1380 = vmatprep.subr.mxu0 0.0
        %1381 = vmatpush1.xpose.msra.mxu0 0.0
        %1382 = vmatprep.subr.mxu0 0.0
        %1383 = vmatpush1.xpose.msra.mxu0 0.0
        %1384 = vmatprep.subr.mxu0 0.0
        %1385 = vmatpush1.xpose.msra.mxu0 0.0
        %1386 = vmatprep.subr.mxu0 0.0
        %1387 = vmatpush1.xpose.msra.mxu0 0.0
        %1388 = vmatprep.subr.mxu0 0.0
        %1389 = vmatpush1.xpose.msra.mxu0 0.0
        %1390 = vmatprep.subr.mxu0 0.0
        %1391 = vmatpush1.xpose.msra.mxu0 0.0
        %1392 = vmatprep.subr.mxu0 0.0
        %1393 = vmatpush1.xpose.msra.mxu0 0.0
        %1394 = vmatprep.subr.mxu0 0.0
        %1395 = vmatpush1.xpose.msra.mxu0 0.0
        %1396 = vmatprep.subr.mxu0 0.0
        %1397 = vmatpush1.xpose.msra.mxu0 0.0
        %1398 = vmatprep.subr.mxu0 0.0
        %1399 = vmatpush1.xpose.msra.mxu0 0.0
        %1400 = vmatprep.subr.mxu0 0.0
        %1401 = vmatpush1.xpose.msra.mxu0 0.0
        %1402 = vmatprep.subr.mxu0 0.0
        %1403 = vmatpush1.xpose.msra.mxu0 0.0
        %1404 = vmatprep.subr.mxu0 0.0
        %1405 = vmatpush1.xpose.msra.mxu0 0.0
        %1406 = vmatprep.subr.mxu0 0.0
        %1407 = vmatpush1.xpose.msra.mxu0 0.0
        %1408 = vmatprep.subr.mxu0 0.0
        %1409 = vmatpush1.xpose.msra.mxu0 0.0
        %1410 = vmatprep.subr.mxu0 0.0
        %1411 = vmatpush1.xpose.msra.mxu0 0.0
        %1412 = vmatprep.subr.mxu0 0.0
        %1413 = vmatpush1.xpose.msra.mxu0 0.0
        %1414 = vmatprep.subr.mxu0 0.0
        %1415 = vmatpush1.xpose.msra.mxu0 0.0
        %1416 = vmatprep.subr.mxu0 0.0
        %1417 = vmatpush1.xpose.msra.mxu0 0.0
        %1418 = vmatprep.subr.mxu0 0.0
        %1419 = vmatpush1.xpose.msra.mxu0 0.0
        %1420 = vmatprep.subr.mxu0 0.0
        %1421 = vmatpush1.xpose.msra.mxu0 0.0
        %1422 = vmatprep.mubr.f32.mxu0 0.0
        %1423 = vmatmul.mubr.f32.gmra.mrb[0].mxu0 %v1353
        %v1424 = vpop.f32.mrb[0].mxu0
        %v1425 = vadd.f32 0.0, %v1424
        %v1426 = vpop.f32.mrb[0].mxu0
        %1427 = vdwg.mxu0
        %v1429 = vsel %vm349, %v1199, 0
        %v1432 = vsel %vm349, %v1274, 0
        %1434 = vmatprep.subr.mxu0 0.0
        %1435 = vmatpush1.xpose.msra.mxu0 %v1432
        %1436 = vmatprep.subr.mxu0 0.0
        %1437 = vmatpush1.xpose.msra.mxu0 0.0
        %1438 = vmatprep.subr.mxu0 0.0
        %1439 = vmatpush1.xpose.msra.mxu0 0.0
        %1440 = vmatprep.subr.mxu0 0.0
        %1441 = vmatpush1.xpose.msra.mxu0 0.0
        %1442 = vmatprep.subr.mxu0 0.0
        %1443 = vmatpush1.xpose.msra.mxu0 0.0
        %1444 = vmatprep.subr.mxu0 0.0
        %1445 = vmatpush1.xpose.msra.mxu0 0.0
        %1446 = vmatprep.subr.mxu0 0.0
        %1447 = vmatpush1.xpose.msra.mxu0 0.0
        %1448 = vmatprep.subr.mxu0 0.0
        %1449 = vmatpush1.xpose.msra.mxu0 0.0
        %1450 = vmatprep.subr.mxu0 0.0
        %1451 = vmatpush1.xpose.msra.mxu0 0.0
        %1452 = vmatprep.subr.mxu0 0.0
        %1453 = vmatpush1.xpose.msra.mxu0 0.0
        %1454 = vmatprep.subr.mxu0 0.0
        %1455 = vmatpush1.xpose.msra.mxu0 0.0
        %1456 = vmatprep.subr.mxu0 0.0
        %1457 = vmatpush1.xpose.msra.mxu0 0.0
        %1458 = vmatprep.subr.mxu0 0.0
        %1459 = vmatpush1.xpose.msra.mxu0 0.0
        %1460 = vmatprep.subr.mxu0 0.0
        %1461 = vmatpush1.xpose.msra.mxu0 0.0
        %1462 = vmatprep.subr.mxu0 0.0
        %1463 = vmatpush1.xpose.msra.mxu0 0.0
        %1464 = vmatprep.subr.mxu0 0.0
        %1465 = vmatpush1.xpose.msra.mxu0 0.0
        %1466 = vmatprep.subr.mxu0 0.0
        %1467 = vmatpush1.xpose.msra.mxu0 0.0
        %1468 = vmatprep.subr.mxu0 0.0
        %1469 = vmatpush1.xpose.msra.mxu0 0.0
        %1470 = vmatprep.subr.mxu0 0.0
        %1471 = vmatpush1.xpose.msra.mxu0 0.0
        %1472 = vmatprep.subr.mxu0 0.0
        %1473 = vmatpush1.xpose.msra.mxu0 0.0
        %1474 = vmatprep.subr.mxu0 0.0
        %1475 = vmatpush1.xpose.msra.mxu0 0.0
        %1476 = vmatprep.subr.mxu0 0.0
        %1477 = vmatpush1.xpose.msra.mxu0 0.0
        %1478 = vmatprep.subr.mxu0 0.0
        %1479 = vmatpush1.xpose.msra.mxu0 0.0
        %1480 = vmatprep.subr.mxu0 0.0
        %1481 = vmatpush1.xpose.msra.mxu0 0.0
        %1482 = vmatprep.subr.mxu0 0.0
        %1483 = vmatpush1.xpose.msra.mxu0 0.0
        %1484 = vmatprep.subr.mxu0 0.0
        %1485 = vmatpush1.xpose.msra.mxu0 0.0
        %1486 = vmatprep.subr.mxu0 0.0
        %1487 = vmatpush1.xpose.msra.mxu0 0.0
        %1488 = vmatprep.subr.mxu0 0.0
        %1489 = vmatpush1.xpose.msra.mxu0 0.0
        %1490 = vmatprep.subr.mxu0 0.0
        %1491 = vmatpush1.xpose.msra.mxu0 0.0
        %1492 = vmatprep.subr.mxu0 0.0
        %1493 = vmatpush1.xpose.msra.mxu0 0.0
        %1494 = vmatprep.subr.mxu0 0.0
        %1495 = vmatpush1.xpose.msra.mxu0 0.0
        %1496 = vmatprep.subr.mxu0 0.0
        %1497 = vmatpush1.xpose.msra.mxu0 0.0
        %1498 = vmatprep.mubr.f32.mxu0 0.0
        %1499 = vmatmul.mubr.f32.gmra.mrb[0].mxu0 %v1429
        %v1500 = vpop.f32.mrb[0].mxu0
        %v1501 = vadd.f32 0.0, %v1500
        %v1502 = vpop.f32.mrb[0].mxu0
        %1503 = vdwg.mxu0
        %v1504 = vmul.f32 %v1425, 0.25
        %v1505 = vmul.f32 %v1501, 0.25
        %v1506 = vadd.f32 %v1504, %v165
        %v1507 = vadd.f32 %v1505, %v165
        %v1508 = vsel %vm929, %v1506, -inf
        %1509 = vmax.xlane.f32.xlu0 %v1508
        %v1510 = vpop.xlane.xlu0 %1509
        %v1511 = vsel %vm929, %v1507, -inf
        %1512 = vmax.xlane.f32.xlu0 %v1511
        %v1513 = vpop.xlane.xlu0 %1512
        %v1514 = vsub.f32 %v1506, %v1510
        %v1515 = vsub.f32 %v1507, %v1513
        %v1516 = vmul.f32 %v1514, 1.442695
        %v1517 = vpow.pop %v1516
        %v1518 = vmul.f32 %v1515, 1.442695
        %v1519 = vpow.pop %v1518
        %v1520 = vsel %vm929, %v1517, 0.0
        %1521 = vadd.xlane.f32.xlu0 %v1520
        %v1522 = vpop.xlane.xlu0 %1521
        %v1523 = vsel %vm929, %v1519, 0.0
        %1524 = vadd.xlane.f32.xlu0 %v1523
        %v1525 = vpop.xlane.xlu0 %1524
        %v1526 = vrcp.pop %v1522
        %v1527 = vrcp.pop %v1525
        %v1528 = vmul.f32 %v1517, %v1526
        %v1529 = vmul.f32 %v1519, %v1527
        %v1531 = vsel %vm929, %v1528, 0
        %1533 = vmatprep.subr.mxu0 0.0
        %1534 = vmatpush1.msra.mxu0 %v1344
        %1535 = vmatprep.subr.mxu0 0.0
        %1536 = vmatpush1.msra.mxu0 0.0
        %1537 = vmatprep.subr.mxu0 0.0
        %1538 = vmatpush1.msra.mxu0 0.0
        %1539 = vmatprep.subr.mxu0 0.0
        %1540 = vmatpush1.msra.mxu0 0.0
        %1541 = vmatprep.subr.mxu0 0.0
        %1542 = vmatpush1.msra.mxu0 0.0
        %1543 = vmatprep.subr.mxu0 0.0
        %1544 = vmatpush1.msra.mxu0 0.0
        %1545 = vmatprep.subr.mxu0 0.0
        %1546 = vmatpush1.msra.mxu0 0.0
        %1547 = vmatprep.subr.mxu0 0.0
        %1548 = vmatpush1.msra.mxu0 0.0
        %1549 = vmatprep.subr.mxu0 0.0
        %1550 = vmatpush1.msra.mxu0 0.0
        %1551 = vmatprep.subr.mxu0 0.0
        %1552 = vmatpush1.msra.mxu0 0.0
        %1553 = vmatprep.subr.mxu0 0.0
        %1554 = vmatpush1.msra.mxu0 0.0
        %1555 = vmatprep.subr.mxu0 0.0
        %1556 = vmatpush1.msra.mxu0 0.0
        %1557 = vmatprep.subr.mxu0 0.0
        %1558 = vmatpush1.msra.mxu0 0.0
        %1559 = vmatprep.subr.mxu0 0.0
        %1560 = vmatpush1.msra.mxu0 0.0
        %1561 = vmatprep.subr.mxu0 0.0
        %1562 = vmatpush1.msra.mxu0 0.0
        %1563 = vmatprep.subr.mxu0 0.0
        %1564 = vmatpush1.msra.mxu0 0.0
        %1565 = vmatprep.subr.mxu0 0.0
        %1566 = vmatpush1.msra.mxu0 0.0
        %1567 = vmatprep.subr.mxu0 0.0
        %1568 = vmatpush1.msra.mxu0 0.0
        %1569 = vmatprep.subr.mxu0 0.0
        %1570 = vmatpush1.msra.mxu0 0.0
        %1571 = vmatprep.subr.mxu0 0.0
        %1572 = vmatpush1.msra.mxu0 0.0
        %1573 = vmatprep.subr.mxu0 0.0
        %1574 = vmatpush1.msra.mxu0 0.0
        %1575 = vmatprep.subr.mxu0 0.0
        %1576 = vmatpush1.msra.mxu0 0.0
        %1577 = vmatprep.subr.mxu0 0.0
        %1578 = vmatpush1.msra.mxu0 0.0
        %1579 = vmatprep.subr.mxu0 0.0
        %1580 = vmatpush1.msra.mxu0 0.0
        %1581 = vmatprep.subr.mxu0 0.0
        %1582 = vmatpush1.msra.mxu0 0.0
        %1583 = vmatprep.subr.mxu0 0.0
        %1584 = vmatpush1.msra.mxu0 0.0
        %1585 = vmatprep.subr.mxu0 0.0
        %1586 = vmatpush1.msra.mxu0 0.0
        %1587 = vmatprep.subr.mxu0 0.0
        %1588 = vmatpush1.msra.mxu0 0.0
        %1589 = vmatprep.subr.mxu0 0.0
        %1590 = vmatpush1.msra.mxu0 0.0
        %1591 = vmatprep.subr.mxu0 0.0
        %1592 = vmatpush1.msra.mxu0 0.0
        %1593 = vmatprep.subr.mxu0 0.0
        %1594 = vmatpush1.msra.mxu0 0.0
        %1595 = vmatprep.subr.mxu0 0.0
        %1596 = vmatpush1.msra.mxu0 0.0
        %1597 = vmatprep.mubr.f32.mxu0 0.0
        %1598 = vmatmul.mubr.f32.gmra.mrb[0].mxu0 %v1531
        %v1599 = vpop.f32.mrb[0].mxu0
        %v1600 = vadd.f32 0.0, %v1599
        %v1601 = vpop.f32.mrb[0].mxu0
        %1602 = vdwg.mxu0
        %v1604 = vsel %vm929, %v1529, 0
        %1606 = vmatprep.subr.mxu0 0.0
        %1607 = vmatpush1.msra.mxu0 %v1349
        %1608 = vmatprep.subr.mxu0 0.0
        %1609 = vmatpush1.msra.mxu0 0.0
        %1610 = vmatprep.subr.mxu0 0.0
        %1611 = vmatpush1.msra.mxu0 0.0
        %1612 = vmatprep.subr.mxu0 0.0
        %1613 = vmatpush1.msra.mxu0 0.0
        %1614 = vmatprep.subr.mxu0 0.0
        %1615 = vmatpush1.msra.mxu0 0.0
        %1616 = vmatprep.subr.mxu0 0.0
        %1617 = vmatpush1.msra.mxu0 0.0
        %1618 = vmatprep.subr.mxu0 0.0
        %1619 = vmatpush1.msra.mxu0 0.0
        %1620 = vmatprep.subr.mxu0 0.0
        %1621 = vmatpush1.msra.mxu0 0.0
        %1622 = vmatprep.subr.mxu0 0.0
        %1623 = vmatpush1.msra.mxu0 0.0
        %1624 = vmatprep.subr.mxu0 0.0
        %1625 = vmatpush1.msra.mxu0 0.0
        %1626 = vmatprep.subr.mxu0 0.0
        %1627 = vmatpush1.msra.mxu0 0.0
        %1628 = vmatprep.subr.mxu0 0.0
        %1629 = vmatpush1.msra.mxu0 0.0
        %1630 = vmatprep.subr.mxu0 0.0
        %1631 = vmatpush1.msra.mxu0 0.0
        %1632 = vmatprep.subr.mxu0 0.0
        %1633 = vmatpush1.msra.mxu0 0.0
        %1634 = vmatprep.subr.mxu0 0.0
        %1635 = vmatpush1.msra.mxu0 0.0
        %1636 = vmatprep.subr.mxu0 0.0
        %1637 = vmatpush1.msra.mxu0 0.0
        %1638 = vmatprep.subr.mxu0 0.0
        %1639 = vmatpush1.msra.mxu0 0.0
        %1640 = vmatprep.subr.mxu0 0.0
        %1641 = vmatpush1.msra.mxu0 0.0
        %1642 = vmatprep.subr.mxu0 0.0
        %1643 = vmatpush1.msra.mxu0 0.0
        %1644 = vmatprep.subr.mxu0 0.0
        %1645 = vmatpush1.msra.mxu0 0.0
        %1646 = vmatprep.subr.mxu0 0.0
        %1647 = vmatpush1.msra.mxu0 0.0
        %1648 = vmatprep.subr.mxu0 0.0
        %1649 = vmatpush1.msra.mxu0 0.0
        %1650 = vmatprep.subr.mxu0 0.0
        %1651 = vmatpush1.msra.mxu0 0.0
        %1652 = vmatprep.subr.mxu0 0.0
        %1653 = vmatpush1.msra.mxu0 0.0
        %1654 = vmatprep.subr.mxu0 0.0
        %1655 = vmatpush1.msra.mxu0 0.0
        %1656 = vmatprep.subr.mxu0 0.0
        %1657 = vmatpush1.msra.mxu0 0.0
        %1658 = vmatprep.subr.mxu0 0.0
        %1659 = vmatpush1.msra.mxu0 0.0
        %1660 = vmatprep.subr.mxu0 0.0
        %1661 = vmatpush1.msra.mxu0 0.0
        %1662 = vmatprep.subr.mxu0 0.0
        %1663 = vmatpush1.msra.mxu0 0.0
        %1664 = vmatprep.subr.mxu0 0.0
        %1665 = vmatpush1.msra.mxu0 0.0
        %1666 = vmatprep.subr.mxu0 0.0
        %1667 = vmatpush1.msra.mxu0 0.0
        %1668 = vmatprep.subr.mxu0 0.0
        %1669 = vmatpush1.msra.mxu0 0.0
        %1670 = vmatprep.mubr.f32.mxu0 0.0
        %1671 = vmatmul.mubr.f32.gmra.mrb[0].mxu0 %v1604
        %v1672 = vpop.f32.mrb[0].mxu0
        %v1673 = vadd.f32 0.0, %v1672
        %v1674 = vpop.f32.mrb[0].mxu0
        %1675 = vdwg.mxu0
        %v1676 = vld [vmem:[#allocation2 + $0x740] sm:$0xff]
        %v1677 = vld [vmem:[#allocation2 + $0x750] sm:$0xff]
        %v1679 = vsel %vm349, %v1600, 0
        %v1682 = vsel %vm349, %v1673, 0
        %1684 = vmatprep.subr.mxu0 0.0
        %1685 = vmatpush1.msra.mxu0 %v1676
        %1686 = vmatprep.subr.mxu0 0.0
        %1687 = vmatpush1.msra.mxu0 %v1677
        %1688 = vmatprep.subr.mxu0 0.0
        %1689 = vmatpush1.msra.mxu0 0.0
        %1690 = vmatprep.subr.mxu0 0.0
        %1691 = vmatpush1.msra.mxu0 0.0
        %1692 = vmatprep.subr.mxu0 0.0
        %1693 = vmatpush1.msra.mxu0 0.0
        %1694 = vmatprep.subr.mxu0 0.0
        %1695 = vmatpush1.msra.mxu0 0.0
        %1696 = vmatprep.subr.mxu0 0.0
        %1697 = vmatpush1.msra.mxu0 0.0
        %1698 = vmatprep.subr.mxu0 0.0
        %1699 = vmatpush1.msra.mxu0 0.0
        %1700 = vmatprep.subr.mxu0 0.0
        %1701 = vmatpush1.msra.mxu0 0.0
        %1702 = vmatprep.subr.mxu0 0.0
        %1703 = vmatpush1.msra.mxu0 0.0
        %1704 = vmatprep.subr.mxu0 0.0
        %1705 = vmatpush1.msra.mxu0 0.0
        %1706 = vmatprep.subr.mxu0 0.0
        %1707 = vmatpush1.msra.mxu0 0.0
        %1708 = vmatprep.subr.mxu0 0.0
        %1709 = vmatpush1.msra.mxu0 0.0
        %1710 = vmatprep.subr.mxu0 0.0
        %1711 = vmatpush1.msra.mxu0 0.0
        %1712 = vmatprep.subr.mxu0 0.0
        %1713 = vmatpush1.msra.mxu0 0.0
        %1714 = vmatprep.subr.mxu0 0.0
        %1715 = vmatpush1.msra.mxu0 0.0
        %1716 = vmatprep.subr.mxu0 0.0
        %1717 = vmatpush1.msra.mxu0 0.0
        %1718 = vmatprep.subr.mxu0 0.0
        %1719 = vmatpush1.msra.mxu0 0.0
        %1720 = vmatprep.subr.mxu0 0.0
        %1721 = vmatpush1.msra.mxu0 0.0
        %1722 = vmatprep.subr.mxu0 0.0
        %1723 = vmatpush1.msra.mxu0 0.0
        %1724 = vmatprep.subr.mxu0 0.0
        %1725 = vmatpush1.msra.mxu0 0.0
        %1726 = vmatprep.subr.mxu0 0.0
        %1727 = vmatpush1.msra.mxu0 0.0
        %1728 = vmatprep.subr.mxu0 0.0
        %1729 = vmatpush1.msra.mxu0 0.0
        %1730 = vmatprep.subr.mxu0 0.0
        %1731 = vmatpush1.msra.mxu0 0.0
        %1732 = vmatprep.subr.mxu0 0.0
        %1733 = vmatpush1.msra.mxu0 0.0
        %1734 = vmatprep.subr.mxu0 0.0
        %1735 = vmatpush1.msra.mxu0 0.0
        %1736 = vmatprep.subr.mxu0 0.0
        %1737 = vmatpush1.msra.mxu0 0.0
        %1738 = vmatprep.subr.mxu0 0.0
        %1739 = vmatpush1.msra.mxu0 0.0
        %1740 = vmatprep.subr.mxu0 0.0
        %1741 = vmatpush1.msra.mxu0 0.0
        %1742 = vmatprep.subr.mxu0 0.0
        %1743 = vmatpush1.msra.mxu0 0.0
        %1744 = vmatprep.subr.mxu0 0.0
        %1745 = vmatpush1.msra.mxu0 0.0
        %1746 = vmatprep.subr.mxu0 0.0
        %1747 = vmatpush1.msra.mxu0 0.0
        %1748 = vmatprep.mubr.f32.mxu0 0.0
        %1749 = vmatmul.mubr.f32.gmra.mrb[0].mxu0 %v1679
        %v1750 = vpop.f32.mrb[0].mxu0
        %v1751 = vadd.f32 0.0, %v1750
        %v1752 = vpop.f32.mrb[0].mxu0
        %1753 = vmatprep.mubr.f32.mxu0 0.0
        %1754 = vmatmul.mubr.f32.gmra.mrb[0].mxu0 %v1682
        %v1755 = vpop.f32.mrb[0].mxu0
        %v1756 = vadd.f32 0.0, %v1755
        %v1757 = vpop.f32.mrb[0].mxu0
        %1758 = vdwg.mxu0
        %v1760 = vsel %vm349, %v1022, 0
        %v1763 = vsel %vm349, %v1095, 0
        %1765 = vmatprep.subr.mxu0 0.0
        %1766 = vmatpush1.msra.mxu0 %v1098
        %1767 = vmatprep.subr.mxu0 0.0
        %1768 = vmatpush1.msra.mxu0 %v1099
        %1769 = vmatprep.subr.mxu0 0.0
        %1770 = vmatpush1.msra.mxu0 0.0
        %1771 = vmatprep.subr.mxu0 0.0
        %1772 = vmatpush1.msra.mxu0 0.0
        %1773 = vmatprep.subr.mxu0 0.0
        %1774 = vmatpush1.msra.mxu0 0.0
        %1775 = vmatprep.subr.mxu0 0.0
        %1776 = vmatpush1.msra.mxu0 0.0
        %1777 = vmatprep.subr.mxu0 0.0
        %1778 = vmatpush1.msra.mxu0 0.0
        %1779 = vmatprep.subr.mxu0 0.0
        %1780 = vmatpush1.msra.mxu0 0.0
        %1781 = vmatprep.subr.mxu0 0.0
        %1782 = vmatpush1.msra.mxu0 0.0
        %1783 = vmatprep.subr.mxu0 0.0
        %1784 = vmatpush1.msra.mxu0 0.0
        %1785 = vmatprep.subr.mxu0 0.0
        %1786 = vmatpush1.msra.mxu0 0.0
        %1787 = vmatprep.subr.mxu0 0.0
        %1788 = vmatpush1.msra.mxu0 0.0
        %1789 = vmatprep.subr.mxu0 0.0
        %1790 = vmatpush1.msra.mxu0 0.0
        %1791 = vmatprep.subr.mxu0 0.0
        %1792 = vmatpush1.msra.mxu0 0.0
        %1793 = vmatprep.subr.mxu0 0.0
        %1794 = vmatpush1.msra.mxu0 0.0
        %1795 = vmatprep.subr.mxu0 0.0
        %1796 = vmatpush1.msra.mxu0 0.0
        %1797 = vmatprep.subr.mxu0 0.0
        %1798 = vmatpush1.msra.mxu0 0.0
        %1799 = vmatprep.subr.mxu0 0.0
        %1800 = vmatpush1.msra.mxu0 0.0
        %1801 = vmatprep.subr.mxu0 0.0
        %1802 = vmatpush1.msra.mxu0 0.0
        %1803 = vmatprep.subr.mxu0 0.0
        %1804 = vmatpush1.msra.mxu0 0.0
        %1805 = vmatprep.subr.mxu0 0.0
        %1806 = vmatpush1.msra.mxu0 0.0
        %1807 = vmatprep.subr.mxu0 0.0
        %1808 = vmatpush1.msra.mxu0 0.0
        %1809 = vmatprep.subr.mxu0 0.0
        %1810 = vmatpush1.msra.mxu0 0.0
        %1811 = vmatprep.subr.mxu0 0.0
        %1812 = vmatpush1.msra.mxu0 0.0
        %1813 = vmatprep.subr.mxu0 0.0
        %1814 = vmatpush1.msra.mxu0 0.0
        %1815 = vmatprep.subr.mxu0 0.0
        %1816 = vmatpush1.msra.mxu0 0.0
        %1817 = vmatprep.subr.mxu0 0.0
        %1818 = vmatpush1.msra.mxu0 0.0
        %1819 = vmatprep.subr.mxu0 0.0
        %1820 = vmatpush1.msra.mxu0 0.0
        %1821 = vmatprep.subr.mxu0 0.0
        %1822 = vmatpush1.msra.mxu0 0.0
        %1823 = vmatprep.subr.mxu0 0.0
        %1824 = vmatpush1.msra.mxu0 0.0
        %1825 = vmatprep.subr.mxu0 0.0
        %1826 = vmatpush1.msra.mxu0 0.0
        %1827 = vmatprep.subr.mxu0 0.0
        %1828 = vmatpush1.msra.mxu0 0.0
        %1829 = vmatprep.mubr.f32.mxu0 0.0
        %1830 = vmatmul.mubr.f32.gmra.mrb[0].mxu0 %v1760
        %v1831 = vpop.f32.mrb[0].mxu0
        %v1832 = vadd.f32 %v1751, %v1831
        %v1833 = vpop.f32.mrb[0].mxu0
        %1834 = vmatprep.mubr.f32.mxu0 0.0
        %1835 = vmatmul.mubr.f32.gmra.mrb[0].mxu0 %v1763
        %v1836 = vpop.f32.mrb[0].mxu0
        %v1837 = vadd.f32 %v1756, %v1836
        %v1838 = vpop.f32.mrb[0].mxu0
        %1839 = vdwg.mxu0
        %v1840 = vld [vmem:[#allocation2 + $0x1f0] sm:$0xff]
        %v1841 = vld [vmem:[#allocation2 + $0x200] sm:$0xff]
        %v1842 = vld [vmem:[#allocation2 + $0x210] sm:$0xff]
        %v1843 = vld [vmem:[#allocation2 + $0x220] sm:$0xff]
        %v1844 = vld [vmem:[#allocation2 + $0x230] sm:$0xff]
        %v1845 = vld [vmem:[#allocation2 + $0x240] sm:$0xff]
        %v1846 = vld [vmem:[#allocation2 + $0x250] sm:$0xff]
        %v1847 = vld [vmem:[#allocation2 + $0x260] sm:$0xff]
        %v1848 = vld [vmem:[#allocation2 + $0x400] sm:$0xff]
        %v1849 = vld [vmem:[#allocation2 + $0x410] sm:$0xff]
        %v1850 = vld [vmem:[#allocation2 + $0x420] sm:$0xff]
        %v1851 = vld [vmem:[#allocation2 + $0x430] sm:$0xff]
        %v1852 = vld [vmem:[#allocation2 + $0x440] sm:$0xff]
        %v1853 = vld [vmem:[#allocation2 + $0x450] sm:$0xff]
        %v1854 = vld [vmem:[#allocation2 + $0x460] sm:$0xff]
        %v1855 = vld [vmem:[#allocation2 + $0x470] sm:$0xff]
        %v1856 = vld [vmem:[#allocation2 + $0x610] sm:$0xff]
        %v1857 = vld [vmem:[#allocation2 + $0x620] sm:$0xff]
        %v1858 = vld [vmem:[#allocation2 + $0x630] sm:$0xff]
        %v1859 = vld [vmem:[#allocation2 + $0x640] sm:$0xff]
        %v1860 = vld [vmem:[#allocation2 + $0x650] sm:$0xff]
        %v1861 = vld [vmem:[#allocation2 + $0x660] sm:$0xff]
        %v1862 = vld [vmem:[#allocation2 + $0x670] sm:$0xff]
        %v1863 = vld [vmem:[#allocation2 + $0x680] sm:$0xff]
        %v1864 = vld [vmem:[#allocation2 + $0x2f2] ss:$0 sm:$0xff]
        %v1865 = vld [vmem:[#allocation2 + $0x502] ss:$0 sm:$0xff]
        %v1866 = vld [vmem:[#allocation2 + $0x712] ss:$0 sm:$0xff]
        %1867 = vmatprep.subr.mxu0 0.0
        %1868 = vmatpush1.msra.mxu0 %v1840
        %1869 = vmatprep.subr.mxu0 0.0
        %1870 = vmatpush1.msra.mxu0 %v1841
        %1871 = vmatprep.subr.mxu0 0.0
        %1872 = vmatpush1.msra.mxu0 %v1842
        %1873 = vmatprep.subr.mxu0 0.0
        %1874 = vmatpush1.msra.mxu0 %v1843
        %1875 = vmatprep.subr.mxu0 0.0
        %1876 = vmatpush1.msra.mxu0 %v1844
        %1877 = vmatprep.subr.mxu0 0.0
        %1878 = vmatpush1.msra.mxu0 %v1845
        %1879 = vmatprep.subr.mxu0 0.0
        %1880 = vmatpush1.msra.mxu0 %v1846
        %1881 = vmatprep.subr.mxu0 0.0
        %1882 = vmatpush1.msra.mxu0 %v1847
        %1883 = vmatprep.subr.mxu0 0.0
        %1884 = vmatpush1.msra.mxu0 0.0
        %1885 = vmatprep.subr.mxu0 0.0
        %1886 = vmatpush1.msra.mxu0 0.0
        %1887 = vmatprep.subr.mxu0 0.0
        %1888 = vmatpush1.msra.mxu0 0.0
        %1889 = vmatprep.subr.mxu0 0.0
        %1890 = vmatpush1.msra.mxu0 0.0
        %1891 = vmatprep.subr.mxu0 0.0
        %1892 = vmatpush1.msra.mxu0 0.0
        %1893 = vmatprep.subr.mxu0 0.0
        %1894 = vmatpush1.msra.mxu0 0.0
        %1895 = vmatprep.subr.mxu0 0.0
        %1896 = vmatpush1.msra.mxu0 0.0
        %1897 = vmatprep.subr.mxu0 0.0
        %1898 = vmatpush1.msra.mxu0 0.0
        %1899 = vmatprep.subr.mxu0 0.0
        %1900 = vmatpush1.msra.mxu0 0.0
        %1901 = vmatprep.subr.mxu0 0.0
        %1902 = vmatpush1.msra.mxu0 0.0
        %1903 = vmatprep.subr.mxu0 0.0
        %1904 = vmatpush1.msra.mxu0 0.0
        %1905 = vmatprep.subr.mxu0 0.0
        %1906 = vmatpush1.msra.mxu0 0.0
        %1907 = vmatprep.subr.mxu0 0.0
        %1908 = vmatpush1.msra.mxu0 0.0
        %1909 = vmatprep.subr.mxu0 0.0
        %1910 = vmatpush1.msra.mxu0 0.0
        %1911 = vmatprep.subr.mxu0 0.0
        %1912 = vmatpush1.msra.mxu0 0.0
        %1913 = vmatprep.subr.mxu0 0.0
        %1914 = vmatpush1.msra.mxu0 0.0
        %1915 = vmatprep.subr.mxu0 0.0
        %1916 = vmatpush1.msra.mxu0 0.0
        %1917 = vmatprep.subr.mxu0 0.0
        %1918 = vmatpush1.msra.mxu0 0.0
        %1919 = vmatprep.subr.mxu0 0.0
        %1920 = vmatpush1.msra.mxu0 0.0
        %1921 = vmatprep.subr.mxu0 0.0
        %1922 = vmatpush1.msra.mxu0 0.0
        %1923 = vmatprep.subr.mxu0 0.0
        %1924 = vmatpush1.msra.mxu0 0.0
        %1925 = vmatprep.subr.mxu0 0.0
        %1926 = vmatpush1.msra.mxu0 0.0
        %1927 = vmatprep.subr.mxu0 0.0
        %1928 = vmatpush1.msra.mxu0 0.0
        %1929 = vmatprep.subr.mxu0 0.0
        %1930 = vmatpush1.msra.mxu0 0.0
        %1931 = vmatprep.mubr.f32.mxu0 0.0
        %1932 = vmatmul.mubr.f32.gmra.mrb[0].mxu0 %v543
        %v1933 = vpop.f32.mrb[0].mxu0
        %v1934 = vadd.f32 %v1864, %v1933
        %v1935 = vpop.f32.mrb[0].mxu0
        %1936 = vmatprep.mubr.f32.mxu0 0.0
        %1937 = vmatmul.mubr.f32.gmra.mrb[0].mxu0 %v546
        %v1938 = vpop.f32.mrb[0].mxu0
        %v1939 = vadd.f32 %v1864, %v1938
        %v1940 = vpop.f32.mrb[0].mxu0
        %1941 = vdwg.mxu0
        %1942 = vmatprep.subr.mxu0 0.0
        %1943 = vmatpush1.msra.mxu0 %v1848
        %1944 = vmatprep.subr.mxu0 0.0
        %1945 = vmatpush1.msra.mxu0 %v1849
        %1946 = vmatprep.subr.mxu0 0.0
        %1947 = vmatpush1.msra.mxu0 %v1850
        %1948 = vmatprep.subr.mxu0 0.0
        %1949 = vmatpush1.msra.mxu0 %v1851
        %1950 = vmatprep.subr.mxu0 0.0
        %1951 = vmatpush1.msra.mxu0 %v1852
        %1952 = vmatprep.subr.mxu0 0.0
        %1953 = vmatpush1.msra.mxu0 %v1853
        %1954 = vmatprep.subr.mxu0 0.0
        %1955 = vmatpush1.msra.mxu0 %v1854
        %1956 = vmatprep.subr.mxu0 0.0
        %1957 = vmatpush1.msra.mxu0 %v1855
        %1958 = vmatprep.subr.mxu0 0.0
        %1959 = vmatpush1.msra.mxu0 0.0
        %1960 = vmatprep.subr.mxu0 0.0
        %1961 = vmatpush1.msra.mxu0 0.0
        %1962 = vmatprep.subr.mxu0 0.0
        %1963 = vmatpush1.msra.mxu0 0.0
        %1964 = vmatprep.subr.mxu0 0.0
        %1965 = vmatpush1.msra.mxu0 0.0
        %1966 = vmatprep.subr.mxu0 0.0
        %1967 = vmatpush1.msra.mxu0 0.0
        %1968 = vmatprep.subr.mxu0 0.0
        %1969 = vmatpush1.msra.mxu0 0.0
        %1970 = vmatprep.subr.mxu0 0.0
        %1971 = vmatpush1.msra.mxu0 0.0
        %1972 = vmatprep.subr.mxu0 0.0
        %1973 = vmatpush1.msra.mxu0 0.0
        %1974 = vmatprep.subr.mxu0 0.0
        %1975 = vmatpush1.msra.mxu0 0.0
        %1976 = vmatprep.subr.mxu0 0.0
        %1977 = vmatpush1.msra.mxu0 0.0
        %1978 = vmatprep.subr.mxu0 0.0
        %1979 = vmatpush1.msra.mxu0 0.0
        %1980 = vmatprep.subr.mxu0 0.0
        %1981 = vmatpush1.msra.mxu0 0.0
        %1982 = vmatprep.subr.mxu0 0.0
        %1983 = vmatpush1.msra.mxu0 0.0
        %1984 = vmatprep.subr.mxu0 0.0
        %1985 = vmatpush1.msra.mxu0 0.0
        %1986 = vmatprep.subr.mxu0 0.0
        %1987 = vmatpush1.msra.mxu0 0.0
        %1988 = vmatprep.subr.mxu0 0.0
        %1989 = vmatpush1.msra.mxu0 0.0
        %1990 = vmatprep.subr.mxu0 0.0
        %1991 = vmatpush1.msra.mxu0 0.0
        %1992 = vmatprep.subr.mxu0 0.0
        %1993 = vmatpush1.msra.mxu0 0.0
        %1994 = vmatprep.subr.mxu0 0.0
        %1995 = vmatpush1.msra.mxu0 0.0
        %1996 = vmatprep.subr.mxu0 0.0
        %1997 = vmatpush1.msra.mxu0 0.0
        %1998 = vmatprep.subr.mxu0 0.0
        %1999 = vmatpush1.msra.mxu0 0.0
        %2000 = vmatprep.subr.mxu0 0.0
        %2001 = vmatpush1.msra.mxu0 0.0
        %2002 = vmatprep.subr.mxu0 0.0
        %2003 = vmatpush1.msra.mxu0 0.0
        %2004 = vmatprep.subr.mxu0 0.0
        %2005 = vmatpush1.msra.mxu0 0.0
        %2006 = vmatprep.mubr.f32.mxu0 0.0
        %2007 = vmatmul.mubr.f32.gmra.mrb[0].mxu0 %v543
        %v2008 = vpop.f32.mrb[0].mxu0
        %v2009 = vadd.f32 %v1865, %v2008
        %v2010 = vpop.f32.mrb[0].mxu0
        %2011 = vmatprep.mubr.f32.mxu0 0.0
        %2012 = vmatmul.mubr.f32.gmra.mrb[0].mxu0 %v546
        %v2013 = vpop.f32.mrb[0].mxu0
        %v2014 = vadd.f32 %v1865, %v2013
        %v2015 = vpop.f32.mrb[0].mxu0
        %2016 = vdwg.mxu0
        %2017 = vmatprep.subr.mxu0 0.0
        %2018 = vmatpush1.msra.mxu0 %v1856
        %2019 = vmatprep.subr.mxu0 0.0
        %2020 = vmatpush1.msra.mxu0 %v1857
        %2021 = vmatprep.subr.mxu0 0.0
        %2022 = vmatpush1.msra.mxu0 %v1858
        %2023 = vmatprep.subr.mxu0 0.0
        %2024 = vmatpush1.msra.mxu0 %v1859
        %2025 = vmatprep.subr.mxu0 0.0
        %2026 = vmatpush1.msra.mxu0 %v1860
        %2027 = vmatprep.subr.mxu0 0.0
        %2028 = vmatpush1.msra.mxu0 %v1861
        %2029 = vmatprep.subr.mxu0 0.0
        %2030 = vmatpush1.msra.mxu0 %v1862
        %2031 = vmatprep.subr.mxu0 0.0
        %2032 = vmatpush1.msra.mxu0 %v1863
        %2033 = vmatprep.subr.mxu0 0.0
        %2034 = vmatpush1.msra.mxu0 0.0
        %2035 = vmatprep.subr.mxu0 0.0
        %2036 = vmatpush1.msra.mxu0 0.0
        %2037 = vmatprep.subr.mxu0 0.0
        %2038 = vmatpush1.msra.mxu0 0.0
        %2039 = vmatprep.subr.mxu0 0.0
        %2040 = vmatpush1.msra.mxu0 0.0
        %2041 = vmatprep.subr.mxu0 0.0
        %2042 = vmatpush1.msra.mxu0 0.0
        %2043 = vmatprep.subr.mxu0 0.0
        %2044 = vmatpush1.msra.mxu0 0.0
        %2045 = vmatprep.subr.mxu0 0.0
        %2046 = vmatpush1.msra.mxu0 0.0
        %2047 = vmatprep.subr.mxu0 0.0
        %2048 = vmatpush1.msra.mxu0 0.0
        %2049 = vmatprep.subr.mxu0 0.0
        %2050 = vmatpush1.msra.mxu0 0.0
        %2051 = vmatprep.subr.mxu0 0.0
        %2052 = vmatpush1.msra.mxu0 0.0
        %2053 = vmatprep.subr.mxu0 0.0
        %2054 = vmatpush1.msra.mxu0 0.0
        %2055 = vmatprep.subr.mxu0 0.0
        %2056 = vmatpush1.msra.mxu0 0.0
        %2057 = vmatprep.subr.mxu0 0.0
        %2058 = vmatpush1.msra.mxu0 0.0
        %2059 = vmatprep.subr.mxu0 0.0
        %2060 = vmatpush1.msra.mxu0 0.0
        %2061 = vmatprep.subr.mxu0 0.0
        %2062 = vmatpush1.msra.mxu0 0.0
        %2063 = vmatprep.subr.mxu0 0.0
        %2064 = vmatpush1.msra.mxu0 0.0
        %2065 = vmatprep.subr.mxu0 0.0
        %2066 = vmatpush1.msra.mxu0 0.0
        %2067 = vmatprep.subr.mxu0 0.0
        %2068 = vmatpush1.msra.mxu0 0.0
        %2069 = vmatprep.subr.mxu0 0.0
        %2070 = vmatpush1.msra.mxu0 0.0
        %2071 = vmatprep.subr.mxu0 0.0
        %2072 = vmatpush1.msra.mxu0 0.0
        %2073 = vmatprep.subr.mxu0 0.0
        %2074 = vmatpush1.msra.mxu0 0.0
        %2075 = vmatprep.subr.mxu0 0.0
        %2076 = vmatpush1.msra.mxu0 0.0
        %2077 = vmatprep.subr.mxu0 0.0
        %2078 = vmatpush1.msra.mxu0 0.0
        %2079 = vmatprep.subr.mxu0 0.0
        %2080 = vmatpush1.msra.mxu0 0.0
        %2081 = vmatprep.mubr.f32.mxu0 0.0
        %2082 = vmatmul.mubr.f32.gmra.mrb[0].mxu0 %v543
        %v2083 = vpop.f32.mrb[0].mxu0
        %v2084 = vadd.f32 %v1866, %v2083
        %v2085 = vpop.f32.mrb[0].mxu0
        %2086 = vmatprep.mubr.f32.mxu0 0.0
        %2087 = vmatmul.mubr.f32.gmra.mrb[0].mxu0 %v546
        %v2088 = vpop.f32.mrb[0].mxu0
        %v2089 = vadd.f32 %v1866, %v2088
        %v2090 = vpop.f32.mrb[0].mxu0
        %2091 = vdwg.mxu0
        %v2093 = vsel %vm349, %v1934, 0
        %v2096 = vsel %vm349, %v2009, 0
        %2098 = vmatprep.subr.mxu0 0.0
        %2099 = vmatpush1.xpose.msra.mxu0 %v2096
        %2100 = vmatprep.subr.mxu0 0.0
        %2101 = vmatpush1.xpose.msra.mxu0 0.0
        %2102 = vmatprep.subr.mxu0 0.0
        %2103 = vmatpush1.xpose.msra.mxu0 0.0
        %2104 = vmatprep.subr.mxu0 0.0
        %2105 = vmatpush1.xpose.msra.mxu0 0.0
        %2106 = vmatprep.subr.mxu0 0.0
        %2107 = vmatpush1.xpose.msra.mxu0 0.0
        %2108 = vmatprep.subr.mxu0 0.0
        %2109 = vmatpush1.xpose.msra.mxu0 0.0
        %2110 = vmatprep.subr.mxu0 0.0
        %2111 = vmatpush1.xpose.msra.mxu0 0.0
        %2112 = vmatprep.subr.mxu0 0.0
        %2113 = vmatpush1.xpose.msra.mxu0 0.0
        %2114 = vmatprep.subr.mxu0 0.0
        %2115 = vmatpush1.xpose.msra.mxu0 0.0
        %2116 = vmatprep.subr.mxu0 0.0
        %2117 = vmatpush1.xpose.msra.mxu0 0.0
        %2118 = vmatprep.subr.mxu0 0.0
        %2119 = vmatpush1.xpose.msra.mxu0 0.0
        %2120 = vmatprep.subr.mxu0 0.0
        %2121 = vmatpush1.xpose.msra.mxu0 0.0
        %2122 = vmatprep.subr.mxu0 0.0
        %2123 = vmatpush1.xpose.msra.mxu0 0.0
        %2124 = vmatprep.subr.mxu0 0.0
        %2125 = vmatpush1.xpose.msra.mxu0 0.0
        %2126 = vmatprep.subr.mxu0 0.0
        %2127 = vmatpush1.xpose.msra.mxu0 0.0
        %2128 = vmatprep.subr.mxu0 0.0
        %2129 = vmatpush1.xpose.msra.mxu0 0.0
        %2130 = vmatprep.subr.mxu0 0.0
        %2131 = vmatpush1.xpose.msra.mxu0 0.0
        %2132 = vmatprep.subr.mxu0 0.0
        %2133 = vmatpush1.xpose.msra.mxu0 0.0
        %2134 = vmatprep.subr.mxu0 0.0
        %2135 = vmatpush1.xpose.msra.mxu0 0.0
        %2136 = vmatprep.subr.mxu0 0.0
        %2137 = vmatpush1.xpose.msra.mxu0 0.0
        %2138 = vmatprep.subr.mxu0 0.0
        %2139 = vmatpush1.xpose.msra.mxu0 0.0
        %2140 = vmatprep.subr.mxu0 0.0
        %2141 = vmatpush1.xpose.msra.mxu0 0.0
        %2142 = vmatprep.subr.mxu0 0.0
        %2143 = vmatpush1.xpose.msra.mxu0 0.0
        %2144 = vmatprep.subr.mxu0 0.0
        %2145 = vmatpush1.xpose.msra.mxu0 0.0
        %2146 = vmatprep.subr.mxu0 0.0
        %2147 = vmatpush1.xpose.msra.mxu0 0.0
        %2148 = vmatprep.subr.mxu0 0.0
        %2149 = vmatpush1.xpose.msra.mxu0 0.0
        %2150 = vmatprep.subr.mxu0 0.0
        %2151 = vmatpush1.xpose.msra.mxu0 0.0
        %2152 = vmatprep.subr.mxu0 0.0
        %2153 = vmatpush1.xpose.msra.mxu0 0.0
        %2154 = vmatprep.subr.mxu0 0.0
        %2155 = vmatpush1.xpose.msra.mxu0 0.0
        %2156 = vmatprep.subr.mxu0 0.0
        %2157 = vmatpush1.xpose.msra.mxu0 0.0
        %2158 = vmatprep.subr.mxu0 0.0
        %2159 = vmatpush1.xpose.msra.mxu0 0.0
        %2160 = vmatprep.subr.mxu0 0.0
        %2161 = vmatpush1.xpose.msra.mxu0 0.0
        %2162 = vmatprep.mubr.f32.mxu0 0.0
        %2163 = vmatmul.mubr.f32.gmra.mrb[0].mxu0 %v2093
        %v2164 = vpop.f32.mrb[0].mxu0
        %v2165 = vadd.f32 0.0, %v2164
        %v2166 = vpop.f32.mrb[0].mxu0
        %2167 = vdwg.mxu0
        %v2169 = vsel %vm349, %v1939, 0
        %v2172 = vsel %vm349, %v2014, 0
        %2174 = vmatprep.subr.mxu0 0.0
        %2175 = vmatpush1.xpose.msra.mxu0 %v2172
        %2176 = vmatprep.subr.mxu0 0.0
        %2177 = vmatpush1.xpose.msra.mxu0 0.0
        %2178 = vmatprep.subr.mxu0 0.0
        %2179 = vmatpush1.xpose.msra.mxu0 0.0
        %2180 = vmatprep.subr.mxu0 0.0
        %2181 = vmatpush1.xpose.msra.mxu0 0.0
        %2182 = vmatprep.subr.mxu0 0.0
        %2183 = vmatpush1.xpose.msra.mxu0 0.0
        %2184 = vmatprep.subr.mxu0 0.0
        %2185 = vmatpush1.xpose.msra.mxu0 0.0
        %2186 = vmatprep.subr.mxu0 0.0
        %2187 = vmatpush1.xpose.msra.mxu0 0.0
        %2188 = vmatprep.subr.mxu0 0.0
        %2189 = vmatpush1.xpose.msra.mxu0 0.0
        %2190 = vmatprep.subr.mxu0 0.0
        %2191 = vmatpush1.xpose.msra.mxu0 0.0
        %2192 = vmatprep.subr.mxu0 0.0
        %2193 = vmatpush1.xpose.msra.mxu0 0.0
        %2194 = vmatprep.subr.mxu0 0.0
        %2195 = vmatpush1.xpose.msra.mxu0 0.0
        %2196 = vmatprep.subr.mxu0 0.0
        %2197 = vmatpush1.xpose.msra.mxu0 0.0
        %2198 = vmatprep.subr.mxu0 0.0
        %2199 = vmatpush1.xpose.msra.mxu0 0.0
        %2200 = vmatprep.subr.mxu0 0.0
        %2201 = vmatpush1.xpose.msra.mxu0 0.0
        %2202 = vmatprep.subr.mxu0 0.0
        %2203 = vmatpush1.xpose.msra.mxu0 0.0
        %2204 = vmatprep.subr.mxu0 0.0
        %2205 = vmatpush1.xpose.msra.mxu0 0.0
        %2206 = vmatprep.subr.mxu0 0.0
        %2207 = vmatpush1.xpose.msra.mxu0 0.0
        %2208 = vmatprep.subr.mxu0 0.0
        %2209 = vmatpush1.xpose.msra.mxu0 0.0
        %2210 = vmatprep.subr.mxu0 0.0
        %2211 = vmatpush1.xpose.msra.mxu0 0.0
        %2212 = vmatprep.subr.mxu0 0.0
        %2213 = vmatpush1.xpose.msra.mxu0 0.0
        %2214 = vmatprep.subr.mxu0 0.0
        %2215 = vmatpush1.xpose.msra.mxu0 0.0
        %2216 = vmatprep.subr.mxu0 0.0
        %2217 = vmatpush1.xpose.msra.mxu0 0.0
        %2218 = vmatprep.subr.mxu0 0.0
        %2219 = vmatpush1.xpose.msra.mxu0 0.0
        %2220 = vmatprep.subr.mxu0 0.0
        %2221 = vmatpush1.xpose.msra.mxu0 0.0
        %2222 = vmatprep.subr.mxu0 0.0
        %2223 = vmatpush1.xpose.msra.mxu0 0.0
        %2224 = vmatprep.subr.mxu0 0.0
        %2225 = vmatpush1.xpose.msra.mxu0 0.0
        %2226 = vmatprep.subr.mxu0 0.0
        %2227 = vmatpush1.xpose.msra.mxu0 0.0
        %2228 = vmatprep.subr.mxu0 0.0
        %2229 = vmatpush1.xpose.msra.mxu0 0.0
        %2230 = vmatprep.subr.mxu0 0.0
        %2231 = vmatpush1.xpose.msra.mxu0 0.0
        %2232 = vmatprep.subr.mxu0 0.0
        %2233 = vmatpush1.xpose.msra.mxu0 0.0
        %2234 = vmatprep.subr.mxu0 0.0
        %2235 = vmatpush1.xpose.msra.mxu0 0.0
        %2236 = vmatprep.subr.mxu0 0.0
        %2237 = vmatpush1.xpose.msra.mxu0 0.0
        %2238 = vmatprep.mubr.f32.mxu0 0.0
        %2239 = vmatmul.mubr.f32.gmra.mrb[0].mxu0 %v2169
        %v2240 = vpop.f32.mrb[0].mxu0
        %v2241 = vadd.f32 0.0, %v2240
        %v2242 = vpop.f32.mrb[0].mxu0
        %2243 = vdwg.mxu0
        %v2244 = vmul.f32 %v2165, 0.25
        %v2245 = vmul.f32 %v2241, 0.25
        %v2246 = vadd.f32 %v2244, %v165
        %v2247 = vadd.f32 %v2245, %v165
        %v2248 = vsel %vm929, %v2246, -inf
        %2249 = vmax.xlane.f32.xlu0 %v2248
        %v2250 = vpop.xlane.xlu0 %2249
        %v2251 = vsel %vm929, %v2247, -inf
        %2252 = vmax.xlane.f32.xlu0 %v2251
        %v2253 = vpop.xlane.xlu0 %2252
        %v2254 = vsub.f32 %v2246, %v2250
        %v2255 = vsub.f32 %v2247, %v2253
        %v2256 = vmul.f32 %v2254, 1.442695
        %v2257 = vpow.pop %v2256
        %v2258 = vmul.f32 %v2255, 1.442695
        %v2259 = vpow.pop %v2258
        %v2260 = vsel %vm929, %v2257, 0.0
        %2261 = vadd.xlane.f32.xlu0 %v2260
        %v2262 = vpop.xlane.xlu0 %2261
        %v2263 = vsel %vm929, %v2259, 0.0
        %2264 = vadd.xlane.f32.xlu0 %v2263
        %v2265 = vpop.xlane.xlu0 %2264
        %v2266 = vrcp.pop %v2262
        %v2267 = vrcp.pop %v2265
        %v2268 = vmul.f32 %v2257, %v2266
        %v2269 = vmul.f32 %v2259, %v2267
        %v2271 = vsel %vm929, %v2268, 0
        %2273 = vmatprep.subr.mxu0 0.0
        %2274 = vmatpush1.msra.mxu0 %v2084
        %2275 = vmatprep.subr.mxu0 0.0
        %2276 = vmatpush1.msra.mxu0 0.0
        %2277 = vmatprep.subr.mxu0 0.0
        %2278 = vmatpush1.msra.mxu0 0.0
        %2279 = vmatprep.subr.mxu0 0.0
        %2280 = vmatpush1.msra.mxu0 0.0
        %2281 = vmatprep.subr.mxu0 0.0
        %2282 = vmatpush1.msra.mxu0 0.0
        %2283 = vmatprep.subr.mxu0 0.0
        %2284 = vmatpush1.msra.mxu0 0.0
        %2285 = vmatprep.subr.mxu0 0.0
        %2286 = vmatpush1.msra.mxu0 0.0
        %2287 = vmatprep.subr.mxu0 0.0
        %2288 = vmatpush1.msra.mxu0 0.0
        %2289 = vmatprep.subr.mxu0 0.0
        %2290 = vmatpush1.msra.mxu0 0.0
        %2291 = vmatprep.subr.mxu0 0.0
        %2292 = vmatpush1.msra.mxu0 0.0
        %2293 = vmatprep.subr.mxu0 0.0
        %2294 = vmatpush1.msra.mxu0 0.0
        %2295 = vmatprep.subr.mxu0 0.0
        %2296 = vmatpush1.msra.mxu0 0.0
        %2297 = vmatprep.subr.mxu0 0.0
        %2298 = vmatpush1.msra.mxu0 0.0
        %2299 = vmatprep.subr.mxu0 0.0
        %2300 = vmatpush1.msra.mxu0 0.0
        %2301 = vmatprep.subr.mxu0 0.0
        %2302 = vmatpush1.msra.mxu0 0.0
        %2303 = vmatprep.subr.mxu0 0.0
        %2304 = vmatpush1.msra.mxu0 0.0
        %2305 = vmatprep.subr.mxu0 0.0
        %2306 = vmatpush1.msra.mxu0 0.0
        %2307 = vmatprep.subr.mxu0 0.0
        %2308 = vmatpush1.msra.mxu0 0.0
        %2309 = vmatprep.subr.mxu0 0.0
        %2310 = vmatpush1.msra.mxu0 0.0
        %2311 = vmatprep.subr.mxu0 0.0
        %2312 = vmatpush1.msra.mxu0 0.0
        %2313 = vmatprep.subr.mxu0 0.0
        %2314 = vmatpush1.msra.mxu0 0.0
        %2315 = vmatprep.subr.mxu0 0.0
        %2316 = vmatpush1.msra.mxu0 0.0
        %2317 = vmatprep.subr.mxu0 0.0
        %2318 = vmatpush1.msra.mxu0 0.0
        %2319 = vmatprep.subr.mxu0 0.0
        %2320 = vmatpush1.msra.mxu0 0.0
        %2321 = vmatprep.subr.mxu0 0.0
        %2322 = vmatpush1.msra.mxu0 0.0
        %2323 = vmatprep.subr.mxu0 0.0
        %2324 = vmatpush1.msra.mxu0 0.0
        %2325 = vmatprep.subr.mxu0 0.0
        %2326 = vmatpush1.msra.mxu0 0.0
        %2327 = vmatprep.subr.mxu0 0.0
        %2328 = vmatpush1.msra.mxu0 0.0
        %2329 = vmatprep.subr.mxu0 0.0
        %2330 = vmatpush1.msra.mxu0 0.0
        %2331 = vmatprep.subr.mxu0 0.0
        %2332 = vmatpush1.msra.mxu0 0.0
        %2333 = vmatprep.subr.mxu0 0.0
        %2334 = vmatpush1.msra.mxu0 0.0
        %2335 = vmatprep.subr.mxu0 0.0
        %2336 = vmatpush1.msra.mxu0 0.0
        %2337 = vmatprep.mubr.f32.mxu0 0.0
        %2338 = vmatmul.mubr.f32.gmra.mrb[0].mxu0 %v2271
        %v2339 = vpop.f32.mrb[0].mxu0
        %v2340 = vadd.f32 0.0, %v2339
        %v2341 = vpop.f32.mrb[0].mxu0
        %2342 = vdwg.mxu0
        %v2344 = vsel %vm929, %v2269, 0
        %2346 = vmatprep.subr.mxu0 0.0
        %2347 = vmatpush1.msra.mxu0 %v2089
        %2348 = vmatprep.subr.mxu0 0.0
        %2349 = vmatpush1.msra.mxu0 0.0
        %2350 = vmatprep.subr.mxu0 0.0
        %2351 = vmatpush1.msra.mxu0 0.0
        %2352 = vmatprep.subr.mxu0 0.0
        %2353 = vmatpush1.msra.mxu0 0.0
        %2354 = vmatprep.subr.mxu0 0.0
        %2355 = vmatpush1.msra.mxu0 0.0
        %2356 = vmatprep.subr.mxu0 0.0
        %2357 = vmatpush1.msra.mxu0 0.0
        %2358 = vmatprep.subr.mxu0 0.0
        %2359 = vmatpush1.msra.mxu0 0.0
        %2360 = vmatprep.subr.mxu0 0.0
        %2361 = vmatpush1.msra.mxu0 0.0
        %2362 = vmatprep.subr.mxu0 0.0
        %2363 = vmatpush1.msra.mxu0 0.0
        %2364 = vmatprep.subr.mxu0 0.0
        %2365 = vmatpush1.msra.mxu0 0.0
        %2366 = vmatprep.subr.mxu0 0.0
        %2367 = vmatpush1.msra.mxu0 0.0
        %2368 = vmatprep.subr.mxu0 0.0
        %2369 = vmatpush1.msra.mxu0 0.0
        %2370 = vmatprep.subr.mxu0 0.0
        %2371 = vmatpush1.msra.mxu0 0.0
        %2372 = vmatprep.subr.mxu0 0.0
        %2373 = vmatpush1.msra.mxu0 0.0
        %2374 = vmatprep.subr.mxu0 0.0
        %2375 = vmatpush1.msra.mxu0 0.0
        %2376 = vmatprep.subr.mxu0 0.0
        %2377 = vmatpush1.msra.mxu0 0.0
        %2378 = vmatprep.subr.mxu0 0.0
        %2379 = vmatpush1.msra.mxu0 0.0
        %2380 = vmatprep.subr.mxu0 0.0
        %2381 = vmatpush1.msra.mxu0 0.0
        %2382 = vmatprep.subr.mxu0 0.0
        %2383 = vmatpush1.msra.mxu0 0.0
        %2384 = vmatprep.subr.mxu0 0.0
        %2385 = vmatpush1.msra.mxu0 0.0
        %2386 = vmatprep.subr.mxu0 0.0
        %2387 = vmatpush1.msra.mxu0 0.0
        %2388 = vmatprep.subr.mxu0 0.0
        %2389 = vmatpush1.msra.mxu0 0.0
        %2390 = vmatprep.subr.mxu0 0.0
        %2391 = vmatpush1.msra.mxu0 0.0
        %2392 = vmatprep.subr.mxu0 0.0
        %2393 = vmatpush1.msra.mxu0 0.0
        %2394 = vmatprep.subr.mxu0 0.0
        %2395 = vmatpush1.msra.mxu0 0.0
        %2396 = vmatprep.subr.mxu0 0.0
        %2397 = vmatpush1.msra.mxu0 0.0
        %2398 = vmatprep.subr.mxu0 0.0
        %2399 = vmatpush1.msra.mxu0 0.0
        %2400 = vmatprep.subr.mxu0 0.0
        %2401 = vmatpush1.msra.mxu0 0.0
        %2402 = vmatprep.subr.mxu0 0.0
        %2403 = vmatpush1.msra.mxu0 0.0
        %2404 = vmatprep.subr.mxu0 0.0
        %2405 = vmatpush1.msra.mxu0 0.0
        %2406 = vmatprep.subr.mxu0 0.0
        %2407 = vmatpush1.msra.mxu0 0.0
        %2408 = vmatprep.subr.mxu0 0.0
        %2409 = vmatpush1.msra.mxu0 0.0
        %2410 = vmatprep.mubr.f32.mxu0 0.0
        %2411 = vmatmul.mubr.f32.gmra.mrb[0].mxu0 %v2344
        %v2412 = vpop.f32.mrb[0].mxu0
        %v2413 = vadd.f32 0.0, %v2412
        %v2414 = vpop.f32.mrb[0].mxu0
        %2415 = vdwg.mxu0
        %v2416 = vld [vmem:[#allocation2 + $0x760] sm:$0xff]
        %v2417 = vld [vmem:[#allocation2 + $0x770] sm:$0xff]
        %v2419 = vsel %vm349, %v2340, 0
        %v2422 = vsel %vm349, %v2413, 0
        %2424 = vmatprep.subr.mxu0 0.0
        %2425 = vmatpush1.msra.mxu0 %v2416
        %2426 = vmatprep.subr.mxu0 0.0
        %2427 = vmatpush1.msra.mxu0 %v2417
        %2428 = vmatprep.subr.mxu0 0.0
        %2429 = vmatpush1.msra.mxu0 0.0
        %2430 = vmatprep.subr.mxu0 0.0
        %2431 = vmatpush1.msra.mxu0 0.0
        %2432 = vmatprep.subr.mxu0 0.0
        %2433 = vmatpush1.msra.mxu0 0.0
        %2434 = vmatprep.subr.mxu0 0.0
        %2435 = vmatpush1.msra.mxu0 0.0
        %2436 = vmatprep.subr.mxu0 0.0
        %2437 = vmatpush1.msra.mxu0 0.0
        %2438 = vmatprep.subr.mxu0 0.0
        %2439 = vmatpush1.msra.mxu0 0.0
        %2440 = vmatprep.subr.mxu0 0.0
        %2441 = vmatpush1.msra.mxu0 0.0
        %2442 = vmatprep.subr.mxu0 0.0
        %2443 = vmatpush1.msra.mxu0 0.0
        %2444 = vmatprep.subr.mxu0 0.0
        %2445 = vmatpush1.msra.mxu0 0.0
        %2446 = vmatprep.subr.mxu0 0.0
        %2447 = vmatpush1.msra.mxu0 0.0
        %2448 = vmatprep.subr.mxu0 0.0
        %2449 = vmatpush1.msra.mxu0 0.0
        %2450 = vmatprep.subr.mxu0 0.0
        %2451 = vmatpush1.msra.mxu0 0.0
        %2452 = vmatprep.subr.mxu0 0.0
        %2453 = vmatpush1.msra.mxu0 0.0
        %2454 = vmatprep.subr.mxu0 0.0
        %2455 = vmatpush1.msra.mxu0 0.0
        %2456 = vmatprep.subr.mxu0 0.0
        %2457 = vmatpush1.msra.mxu0 0.0
        %2458 = vmatprep.subr.mxu0 0.0
        %2459 = vmatpush1.msra.mxu0 0.0
        %2460 = vmatprep.subr.mxu0 0.0
        %2461 = vmatpush1.msra.mxu0 0.0
        %2462 = vmatprep.subr.mxu0 0.0
        %2463 = vmatpush1.msra.mxu0 0.0
        %2464 = vmatprep.subr.mxu0 0.0
        %2465 = vmatpush1.msra.mxu0 0.0
        %2466 = vmatprep.subr.mxu0 0.0
        %2467 = vmatpush1.msra.mxu0 0.0
        %2468 = vmatprep.subr.mxu0 0.0
        %2469 = vmatpush1.msra.mxu0 0.0
        %2470 = vmatprep.subr.mxu0 0.0
        %2471 = vmatpush1.msra.mxu0 0.0
        %2472 = vmatprep.subr.mxu0 0.0
        %2473 = vmatpush1.msra.mxu0 0.0
        %2474 = vmatprep.subr.mxu0 0.0
        %2475 = vmatpush1.msra.mxu0 0.0
        %2476 = vmatprep.subr.mxu0 0.0
        %2477 = vmatpush1.msra.mxu0 0.0
        %2478 = vmatprep.subr.mxu0 0.0
        %2479 = vmatpush1.msra.mxu0 0.0
        %2480 = vmatprep.subr.mxu0 0.0
        %2481 = vmatpush1.msra.mxu0 0.0
        %2482 = vmatprep.subr.mxu0 0.0
        %2483 = vmatpush1.msra.mxu0 0.0
        %2484 = vmatprep.subr.mxu0 0.0
        %2485 = vmatpush1.msra.mxu0 0.0
        %2486 = vmatprep.subr.mxu0 0.0
        %2487 = vmatpush1.msra.mxu0 0.0
        %2488 = vmatprep.mubr.f32.mxu0 0.0
        %2489 = vmatmul.mubr.f32.gmra.mrb[0].mxu0 %v2419
        %v2490 = vpop.f32.mrb[0].mxu0
        %v2491 = vadd.f32 0.0, %v2490
        %v2492 = vpop.f32.mrb[0].mxu0
        %2493 = vmatprep.mubr.f32.mxu0 0.0
        %2494 = vmatmul.mubr.f32.gmra.mrb[0].mxu0 %v2422
        %v2495 = vpop.f32.mrb[0].mxu0
        %v2496 = vadd.f32 0.0, %v2495
        %v2497 = vpop.f32.mrb[0].mxu0
        %2498 = vdwg.mxu0
        %v2499 = vadd.f32 %v1832, %v2491
        %v2500 = vadd.f32 %v1837, %v2496
        %v2501 = vld [vmem:[#allocation2 + $0x270] sm:$0xff]
        %v2502 = vld [vmem:[#allocation2 + $0x280] sm:$0xff]
        %v2503 = vld [vmem:[#allocation2 + $0x290] sm:$0xff]
        %v2504 = vld [vmem:[#allocation2 + $0x2a0] sm:$0xff]
        %v2505 = vld [vmem:[#allocation2 + $0x2b0] sm:$0xff]
        %v2506 = vld [vmem:[#allocation2 + $0x2c0] sm:$0xff]
        %v2507 = vld [vmem:[#allocation2 + $0x2d0] sm:$0xff]
        %v2508 = vld [vmem:[#allocation2 + $0x2e0] sm:$0xff]
        %v2509 = vld [vmem:[#allocation2 + $0x480] sm:$0xff]
        %v2510 = vld [vmem:[#allocation2 + $0x490] sm:$0xff]
        %v2511 = vld [vmem:[#allocation2 + $0x4a0] sm:$0xff]
        %v2512 = vld [vmem:[#allocation2 + $0x4b0] sm:$0xff]
        %v2513 = vld [vmem:[#allocation2 + $0x4c0] sm:$0xff]
        %v2514 = vld [vmem:[#allocation2 + $0x4d0] sm:$0xff]
        %v2515 = vld [vmem:[#allocation2 + $0x4e0] sm:$0xff]
        %v2516 = vld [vmem:[#allocation2 + $0x4f0] sm:$0xff]
        %v2517 = vld [vmem:[#allocation2 + $0x690] sm:$0xff]
        %v2518 = vld [vmem:[#allocation2 + $0x6a0] sm:$0xff]
        %v2519 = vld [vmem:[#allocation2 + $0x6b0] sm:$0xff]
        %v2520 = vld [vmem:[#allocation2 + $0x6c0] sm:$0xff]
        %v2521 = vld [vmem:[#allocation2 + $0x6d0] sm:$0xff]
        %v2522 = vld [vmem:[#allocation2 + $0x6e0] sm:$0xff]
        %v2523 = vld [vmem:[#allocation2 + $0x6f0] sm:$0xff]
        %v2524 = vld [vmem:[#allocation2 + $0x700] sm:$0xff]
        %v2525 = vld [vmem:[#allocation2 + $0x2f3] ss:$0 sm:$0xff]
        %v2526 = vld [vmem:[#allocation2 + $0x503] ss:$0 sm:$0xff]
        %v2527 = vld [vmem:[#allocation2 + $0x713] ss:$0 sm:$0xff]
        %2528 = vmatprep.subr.mxu0 0.0
        %2529 = vmatpush1.msra.mxu0 %v2501
        %2530 = vmatprep.subr.mxu0 0.0
        %2531 = vmatpush1.msra.mxu0 %v2502
        %2532 = vmatprep.subr.mxu0 0.0
        %2533 = vmatpush1.msra.mxu0 %v2503
        %2534 = vmatprep.subr.mxu0 0.0
        %2535 = vmatpush1.msra.mxu0 %v2504
        %2536 = vmatprep.subr.mxu0 0.0
        %2537 = vmatpush1.msra.mxu0 %v2505
        %2538 = vmatprep.subr.mxu0 0.0
        %2539 = vmatpush1.msra.mxu0 %v2506
        %2540 = vmatprep.subr.mxu0 0.0
        %2541 = vmatpush1.msra.mxu0 %v2507
        %2542 = vmatprep.subr.mxu0 0.0
        %2543 = vmatpush1.msra.mxu0 %v2508
        %2544 = vmatprep.subr.mxu0 0.0
        %2545 = vmatpush1.msra.mxu0 0.0
        %2546 = vmatprep.subr.mxu0 0.0
        %2547 = vmatpush1.msra.mxu0 0.0
        %2548 = vmatprep.subr.mxu0 0.0
        %2549 = vmatpush1.msra.mxu0 0.0
        %2550 = vmatprep.subr.mxu0 0.0
        %2551 = vmatpush1.msra.mxu0 0.0
        %2552 = vmatprep.subr.mxu0 0.0
        %2553 = vmatpush1.msra.mxu0 0.0
        %2554 = vmatprep.subr.mxu0 0.0
        %2555 = vmatpush1.msra.mxu0 0.0
        %2556 = vmatprep.subr.mxu0 0.0
        %2557 = vmatpush1.msra.mxu0 0.0
        %2558 = vmatprep.subr.mxu0 0.0
        %2559 = vmatpush1.msra.mxu0 0.0
        %2560 = vmatprep.subr.mxu0 0.0
        %2561 = vmatpush1.msra.mxu0 0.0
        %2562 = vmatprep.subr.mxu0 0.0
        %2563 = vmatpush1.msra.mxu0 0.0
        %2564 = vmatprep.subr.mxu0 0.0
        %2565 = vmatpush1.msra.mxu0 0.0
        %2566 = vmatprep.subr.mxu0 0.0
        %2567 = vmatpush1.msra.mxu0 0.0
        %2568 = vmatprep.subr.mxu0 0.0
        %2569 = vmatpush1.msra.mxu0 0.0
        %2570 = vmatprep.subr.mxu0 0.0
        %2571 = vmatpush1.msra.mxu0 0.0
        %2572 = vmatprep.subr.mxu0 0.0
        %2573 = vmatpush1.msra.mxu0 0.0
        %2574 = vmatprep.subr.mxu0 0.0
        %2575 = vmatpush1.msra.mxu0 0.0
        %2576 = vmatprep.subr.mxu0 0.0
        %2577 = vmatpush1.msra.mxu0 0.0
        %2578 = vmatprep.subr.mxu0 0.0
        %2579 = vmatpush1.msra.mxu0 0.0
        %2580 = vmatprep.subr.mxu0 0.0
        %2581 = vmatpush1.msra.mxu0 0.0
        %2582 = vmatprep.subr.mxu0 0.0
        %2583 = vmatpush1.msra.mxu0 0.0
        %2584 = vmatprep.subr.mxu0 0.0
        %2585 = vmatpush1.msra.mxu0 0.0
        %2586 = vmatprep.subr.mxu0 0.0
        %2587 = vmatpush1.msra.mxu0 0.0
        %2588 = vmatprep.subr.mxu0 0.0
        %2589 = vmatpush1.msra.mxu0 0.0
        %2590 = vmatprep.subr.mxu0 0.0
        %2591 = vmatpush1.msra.mxu0 0.0
        %2592 = vmatprep.mubr.f32.mxu0 0.0
        %2593 = vmatmul.mubr.f32.gmra.mrb[0].mxu0 %v543
        %v2594 = vpop.f32.mrb[0].mxu0
        %v2595 = vadd.f32 %v2525, %v2594
        %v2596 = vpop.f32.mrb[0].mxu0
        %2597 = vmatprep.mubr.f32.mxu0 0.0
        %2598 = vmatmul.mubr.f32.gmra.mrb[0].mxu0 %v546
        %v2599 = vpop.f32.mrb[0].mxu0
        %v2600 = vadd.f32 %v2525, %v2599
        %v2601 = vpop.f32.mrb[0].mxu0
        %2602 = vdwg.mxu0
        %2603 = vmatprep.subr.mxu0 0.0
        %2604 = vmatpush1.msra.mxu0 %v2509
        %2605 = vmatprep.subr.mxu0 0.0
        %2606 = vmatpush1.msra.mxu0 %v2510
        %2607 = vmatprep.subr.mxu0 0.0
        %2608 = vmatpush1.msra.mxu0 %v2511
        %2609 = vmatprep.subr.mxu0 0.0
        %2610 = vmatpush1.msra.mxu0 %v2512
        %2611 = vmatprep.subr.mxu0 0.0
        %2612 = vmatpush1.msra.mxu0 %v2513
        %2613 = vmatprep.subr.mxu0 0.0
        %2614 = vmatpush1.msra.mxu0 %v2514
        %2615 = vmatprep.subr.mxu0 0.0
        %2616 = vmatpush1.msra.mxu0 %v2515
        %2617 = vmatprep.subr.mxu0 0.0
        %2618 = vmatpush1.msra.mxu0 %v2516
        %2619 = vmatprep.subr.mxu0 0.0
        %2620 = vmatpush1.msra.mxu0 0.0
        %2621 = vmatprep.subr.mxu0 0.0
        %2622 = vmatpush1.msra.mxu0 0.0
        %2623 = vmatprep.subr.mxu0 0.0
        %2624 = vmatpush1.msra.mxu0 0.0
        %2625 = vmatprep.subr.mxu0 0.0
        %2626 = vmatpush1.msra.mxu0 0.0
        %2627 = vmatprep.subr.mxu0 0.0
        %2628 = vmatpush1.msra.mxu0 0.0
        %2629 = vmatprep.subr.mxu0 0.0
        %2630 = vmatpush1.msra.mxu0 0.0
        %2631 = vmatprep.subr.mxu0 0.0
        %2632 = vmatpush1.msra.mxu0 0.0
        %2633 = vmatprep.subr.mxu0 0.0
        %2634 = vmatpush1.msra.mxu0 0.0
        %2635 = vmatprep.subr.mxu0 0.0
        %2636 = vmatpush1.msra.mxu0 0.0
        %2637 = vmatprep.subr.mxu0 0.0
        %2638 = vmatpush1.msra.mxu0 0.0
        %2639 = vmatprep.subr.mxu0 0.0
        %2640 = vmatpush1.msra.mxu0 0.0
        %2641 = vmatprep.subr.mxu0 0.0
        %2642 = vmatpush1.msra.mxu0 0.0
        %2643 = vmatprep.subr.mxu0 0.0
        %2644 = vmatpush1.msra.mxu0 0.0
        %2645 = vmatprep.subr.mxu0 0.0
        %2646 = vmatpush1.msra.mxu0 0.0
        %2647 = vmatprep.subr.mxu0 0.0
        %2648 = vmatpush1.msra.mxu0 0.0
        %2649 = vmatprep.subr.mxu0 0.0
        %2650 = vmatpush1.msra.mxu0 0.0
        %2651 = vmatprep.subr.mxu0 0.0
        %2652 = vmatpush1.msra.mxu0 0.0
        %2653 = vmatprep.subr.mxu0 0.0
        %2654 = vmatpush1.msra.mxu0 0.0
        %2655 = vmatprep.subr.mxu0 0.0
        %2656 = vmatpush1.msra.mxu0 0.0
        %2657 = vmatprep.subr.mxu0 0.0
        %2658 = vmatpush1.msra.mxu0 0.0
        %2659 = vmatprep.subr.mxu0 0.0
        %2660 = vmatpush1.msra.mxu0 0.0
        %2661 = vmatprep.subr.mxu0 0.0
        %2662 = vmatpush1.msra.mxu0 0.0
        %2663 = vmatprep.subr.mxu0 0.0
        %2664 = vmatpush1.msra.mxu0 0.0
        %2665 = vmatprep.subr.mxu0 0.0
        %2666 = vmatpush1.msra.mxu0 0.0
        %2667 = vmatprep.mubr.f32.mxu0 0.0
        %2668 = vmatmul.mubr.f32.gmra.mrb[0].mxu0 %v543
        %v2669 = vpop.f32.mrb[0].mxu0
        %v2670 = vadd.f32 %v2526, %v2669
        %v2671 = vpop.f32.mrb[0].mxu0
        %2672 = vmatprep.mubr.f32.mxu0 0.0
        %2673 = vmatmul.mubr.f32.gmra.mrb[0].mxu0 %v546
        %v2674 = vpop.f32.mrb[0].mxu0
        %v2675 = vadd.f32 %v2526, %v2674
        %v2676 = vpop.f32.mrb[0].mxu0
        %2677 = vdwg.mxu0
        %2678 = vmatprep.subr.mxu0 0.0
        %2679 = vmatpush1.msra.mxu0 %v2517
        %2680 = vmatprep.subr.mxu0 0.0
        %2681 = vmatpush1.msra.mxu0 %v2518
        %2682 = vmatprep.subr.mxu0 0.0
        %2683 = vmatpush1.msra.mxu0 %v2519
        %2684 = vmatprep.subr.mxu0 0.0
        %2685 = vmatpush1.msra.mxu0 %v2520
        %2686 = vmatprep.subr.mxu0 0.0
        %2687 = vmatpush1.msra.mxu0 %v2521
        %2688 = vmatprep.subr.mxu0 0.0
        %2689 = vmatpush1.msra.mxu0 %v2522
        %2690 = vmatprep.subr.mxu0 0.0
        %2691 = vmatpush1.msra.mxu0 %v2523
        %2692 = vmatprep.subr.mxu0 0.0
        %2693 = vmatpush1.msra.mxu0 %v2524
        %2694 = vmatprep.subr.mxu0 0.0
        %2695 = vmatpush1.msra.mxu0 0.0
        %2696 = vmatprep.subr.mxu0 0.0
        %2697 = vmatpush1.msra.mxu0 0.0
        %2698 = vmatprep.subr.mxu0 0.0
        %2699 = vmatpush1.msra.mxu0 0.0
        %2700 = vmatprep.subr.mxu0 0.0
        %2701 = vmatpush1.msra.mxu0 0.0
        %2702 = vmatprep.subr.mxu0 0.0
        %2703 = vmatpush1.msra.mxu0 0.0
        %2704 = vmatprep.subr.mxu0 0.0
        %2705 = vmatpush1.msra.mxu0 0.0
        %2706 = vmatprep.subr.mxu0 0.0
        %2707 = vmatpush1.msra.mxu0 0.0
        %2708 = vmatprep.subr.mxu0 0.0
        %2709 = vmatpush1.msra.mxu0 0.0
        %2710 = vmatprep.subr.mxu0 0.0
        %2711 = vmatpush1.msra.mxu0 0.0
        %2712 = vmatprep.subr.mxu0 0.0
        %2713 = vmatpush1.msra.mxu0 0.0
        %2714 = vmatprep.subr.mxu0 0.0
        %2715 = vmatpush1.msra.mxu0 0.0
        %2716 = vmatprep.subr.mxu0 0.0
        %2717 = vmatpush1.msra.mxu0 0.0
        %2718 = vmatprep.subr.mxu0 0.0
        %2719 = vmatpush1.msra.mxu0 0.0
        %2720 = vmatprep.subr.mxu0 0.0
        %2721 = vmatpush1.msra.mxu0 0.0
        %2722 = vmatprep.subr.mxu0 0.0
        %2723 = vmatpush1.msra.mxu0 0.0
        %2724 = vmatprep.subr.mxu0 0.0
        %2725 = vmatpush1.msra.mxu0 0.0
        %2726 = vmatprep.subr.mxu0 0.0
        %2727 = vmatpush1.msra.mxu0 0.0
        %2728 = vmatprep.subr.mxu0 0.0
        %2729 = vmatpush1.msra.mxu0 0.0
        %2730 = vmatprep.subr.mxu0 0.0
        %2731 = vmatpush1.msra.mxu0 0.0
        %2732 = vmatprep.subr.mxu0 0.0
        %2733 = vmatpush1.msra.mxu0 0.0
        %2734 = vmatprep.subr.mxu0 0.0
        %2735 = vmatpush1.msra.mxu0 0.0
        %2736 = vmatprep.subr.mxu0 0.0
        %2737 = vmatpush1.msra.mxu0 0.0
        %2738 = vmatprep.subr.mxu0 0.0
        %2739 = vmatpush1.msra.mxu0 0.0
        %2740 = vmatprep.subr.mxu0 0.0
        %2741 = vmatpush1.msra.mxu0 0.0
        %2742 = vmatprep.mubr.f32.mxu0 0.0
        %2743 = vmatmul.mubr.f32.gmra.mrb[0].mxu0 %v543
        %v2744 = vpop.f32.mrb[0].mxu0
        %v2745 = vadd.f32 %v2527, %v2744
        %v2746 = vpop.f32.mrb[0].mxu0
        %2747 = vmatprep.mubr.f32.mxu0 0.0
        %2748 = vmatmul.mubr.f32.gmra.mrb[0].mxu0 %v546
        %v2749 = vpop.f32.mrb[0].mxu0
        %v2750 = vadd.f32 %v2527, %v2749
        %v2751 = vpop.f32.mrb[0].mxu0
        %2752 = vdwg.mxu0
        %v2754 = vsel %vm349, %v2595, 0
        %v2757 = vsel %vm349, %v2670, 0
        %2759 = vmatprep.subr.mxu0 0.0
        %2760 = vmatpush1.xpose.msra.mxu0 %v2757
        %2761 = vmatprep.subr.mxu0 0.0
        %2762 = vmatpush1.xpose.msra.mxu0 0.0
        %2763 = vmatprep.subr.mxu0 0.0
        %2764 = vmatpush1.xpose.msra.mxu0 0.0
        %2765 = vmatprep.subr.mxu0 0.0
        %2766 = vmatpush1.xpose.msra.mxu0 0.0
        %2767 = vmatprep.subr.mxu0 0.0
        %2768 = vmatpush1.xpose.msra.mxu0 0.0
        %2769 = vmatprep.subr.mxu0 0.0
        %2770 = vmatpush1.xpose.msra.mxu0 0.0
        %2771 = vmatprep.subr.mxu0 0.0
        %2772 = vmatpush1.xpose.msra.mxu0 0.0
        %2773 = vmatprep.subr.mxu0 0.0
        %2774 = vmatpush1.xpose.msra.mxu0 0.0
        %2775 = vmatprep.subr.mxu0 0.0
        %2776 = vmatpush1.xpose.msra.mxu0 0.0
        %2777 = vmatprep.subr.mxu0 0.0
        %2778 = vmatpush1.xpose.msra.mxu0 0.0
        %2779 = vmatprep.subr.mxu0 0.0
        %2780 = vmatpush1.xpose.msra.mxu0 0.0
        %2781 = vmatprep.subr.mxu0 0.0
        %2782 = vmatpush1.xpose.msra.mxu0 0.0
        %2783 = vmatprep.subr.mxu0 0.0
        %2784 = vmatpush1.xpose.msra.mxu0 0.0
        %2785 = vmatprep.subr.mxu0 0.0
        %2786 = vmatpush1.xpose.msra.mxu0 0.0
        %2787 = vmatprep.subr.mxu0 0.0
        %2788 = vmatpush1.xpose.msra.mxu0 0.0
        %2789 = vmatprep.subr.mxu0 0.0
        %2790 = vmatpush1.xpose.msra.mxu0 0.0
        %2791 = vmatprep.subr.mxu0 0.0
        %2792 = vmatpush1.xpose.msra.mxu0 0.0
        %2793 = vmatprep.subr.mxu0 0.0
        %2794 = vmatpush1.xpose.msra.mxu0 0.0
        %2795 = vmatprep.subr.mxu0 0.0
        %2796 = vmatpush1.xpose.msra.mxu0 0.0
        %2797 = vmatprep.subr.mxu0 0.0
        %2798 = vmatpush1.xpose.msra.mxu0 0.0
        %2799 = vmatprep.subr.mxu0 0.0
        %2800 = vmatpush1.xpose.msra.mxu0 0.0
        %2801 = vmatprep.subr.mxu0 0.0
        %2802 = vmatpush1.xpose.msra.mxu0 0.0
        %2803 = vmatprep.subr.mxu0 0.0
        %2804 = vmatpush1.xpose.msra.mxu0 0.0
        %2805 = vmatprep.subr.mxu0 0.0
        %2806 = vmatpush1.xpose.msra.mxu0 0.0
        %2807 = vmatprep.subr.mxu0 0.0
        %2808 = vmatpush1.xpose.msra.mxu0 0.0
        %2809 = vmatprep.subr.mxu0 0.0
        %2810 = vmatpush1.xpose.msra.mxu0 0.0
        %2811 = vmatprep.subr.mxu0 0.0
        %2812 = vmatpush1.xpose.msra.mxu0 0.0
        %2813 = vmatprep.subr.mxu0 0.0
        %2814 = vmatpush1.xpose.msra.mxu0 0.0
        %2815 = vmatprep.subr.mxu0 0.0
        %2816 = vmatpush1.xpose.msra.mxu0 0.0
        %2817 = vmatprep.subr.mxu0 0.0
        %2818 = vmatpush1.xpose.msra.mxu0 0.0
        %2819 = vmatprep.subr.mxu0 0.0
        %2820 = vmatpush1.xpose.msra.mxu0 0.0
        %2821 = vmatprep.subr.mxu0 0.0
        %2822 = vmatpush1.xpose.msra.mxu0 0.0
        %2823 = vmatprep.mubr.f32.mxu0 0.0
        %2824 = vmatmul.mubr.f32.gmra.mrb[0].mxu0 %v2754
        %v2825 = vpop.f32.mrb[0].mxu0
        %v2826 = vadd.f32 0.0, %v2825
        %v2827 = vpop.f32.mrb[0].mxu0
        %2828 = vdwg.mxu0
        %v2830 = vsel %vm349, %v2600, 0
        %v2833 = vsel %vm349, %v2675, 0
        %2835 = vmatprep.subr.mxu0 0.0
        %2836 = vmatpush1.xpose.msra.mxu0 %v2833
        %2837 = vmatprep.subr.mxu0 0.0
        %2838 = vmatpush1.xpose.msra.mxu0 0.0
        %2839 = vmatprep.subr.mxu0 0.0
        %2840 = vmatpush1.xpose.msra.mxu0 0.0
        %2841 = vmatprep.subr.mxu0 0.0
        %2842 = vmatpush1.xpose.msra.mxu0 0.0
        %2843 = vmatprep.subr.mxu0 0.0
        %2844 = vmatpush1.xpose.msra.mxu0 0.0
        %2845 = vmatprep.subr.mxu0 0.0
        %2846 = vmatpush1.xpose.msra.mxu0 0.0
        %2847 = vmatprep.subr.mxu0 0.0
        %2848 = vmatpush1.xpose.msra.mxu0 0.0
        %2849 = vmatprep.subr.mxu0 0.0
        %2850 = vmatpush1.xpose.msra.mxu0 0.0
        %2851 = vmatprep.subr.mxu0 0.0
        %2852 = vmatpush1.xpose.msra.mxu0 0.0
        %2853 = vmatprep.subr.mxu0 0.0
        %2854 = vmatpush1.xpose.msra.mxu0 0.0
        %2855 = vmatprep.subr.mxu0 0.0
        %2856 = vmatpush1.xpose.msra.mxu0 0.0
        %2857 = vmatprep.subr.mxu0 0.0
        %2858 = vmatpush1.xpose.msra.mxu0 0.0
        %2859 = vmatprep.subr.mxu0 0.0
        %2860 = vmatpush1.xpose.msra.mxu0 0.0
        %2861 = vmatprep.subr.mxu0 0.0
        %2862 = vmatpush1.xpose.msra.mxu0 0.0
        %2863 = vmatprep.subr.mxu0 0.0
        %2864 = vmatpush1.xpose.msra.mxu0 0.0
        %2865 = vmatprep.subr.mxu0 0.0
        %2866 = vmatpush1.xpose.msra.mxu0 0.0
        %2867 = vmatprep.subr.mxu0 0.0
        %2868 = vmatpush1.xpose.msra.mxu0 0.0
        %2869 = vmatprep.subr.mxu0 0.0
        %2870 = vmatpush1.xpose.msra.mxu0 0.0
        %2871 = vmatprep.subr.mxu0 0.0
        %2872 = vmatpush1.xpose.msra.mxu0 0.0
        %2873 = vmatprep.subr.mxu0 0.0
        %2874 = vmatpush1.xpose.msra.mxu0 0.0
        %2875 = vmatprep.subr.mxu0 0.0
        %2876 = vmatpush1.xpose.msra.mxu0 0.0
        %2877 = vmatprep.subr.mxu0 0.0
        %2878 = vmatpush1.xpose.msra.mxu0 0.0
        %2879 = vmatprep.subr.mxu0 0.0
        %2880 = vmatpush1.xpose.msra.mxu0 0.0
        %2881 = vmatprep.subr.mxu0 0.0
        %2882 = vmatpush1.xpose.msra.mxu0 0.0
        %2883 = vmatprep.subr.mxu0 0.0
        %2884 = vmatpush1.xpose.msra.mxu0 0.0
        %2885 = vmatprep.subr.mxu0 0.0
        %2886 = vmatpush1.xpose.msra.mxu0 0.0
        %2887 = vmatprep.subr.mxu0 0.0
        %2888 = vmatpush1.xpose.msra.mxu0 0.0
        %2889 = vmatprep.subr.mxu0 0.0
        %2890 = vmatpush1.xpose.msra.mxu0 0.0
        %2891 = vmatprep.subr.mxu0 0.0
        %2892 = vmatpush1.xpose.msra.mxu0 0.0
        %2893 = vmatprep.subr.mxu0 0.0
        %2894 = vmatpush1.xpose.msra.mxu0 0.0
        %2895 = vmatprep.subr.mxu0 0.0
        %2896 = vmatpush1.xpose.msra.mxu0 0.0
        %2897 = vmatprep.subr.mxu0 0.0
        %2898 = vmatpush1.xpose.msra.mxu0 0.0
        %2899 = vmatprep.mubr.f32.mxu0 0.0
        %2900 = vmatmul.mubr.f32.gmra.mrb[0].mxu0 %v2830
        %v2901 = vpop.f32.mrb[0].mxu0
        %v2902 = vadd.f32 0.0, %v2901
        %v2903 = vpop.f32.mrb[0].mxu0
        %2904 = vdwg.mxu0
        %v2905 = vmul.f32 %v2826, 0.25
        %v2906 = vmul.f32 %v2902, 0.25
        %v2907 = vadd.f32 %v2905, %v165
        %v2908 = vadd.f32 %v2906, %v165
        %v2909 = vsel %vm929, %v2907, -inf
        %2910 = vmax.xlane.f32.xlu0 %v2909
        %v2911 = vpop.xlane.xlu0 %2910
        %v2912 = vsel %vm929, %v2908, -inf
        %2913 = vmax.xlane.f32.xlu0 %v2912
        %v2914 = vpop.xlane.xlu0 %2913
        %v2915 = vsub.f32 %v2907, %v2911
        %v2916 = vsub.f32 %v2908, %v2914
        %v2917 = vmul.f32 %v2915, 1.442695
        %v2918 = vpow.pop %v2917
        %v2919 = vmul.f32 %v2916, 1.442695
        %v2920 = vpow.pop %v2919
        %v2921 = vsel %vm929, %v2918, 0.0
        %2922 = vadd.xlane.f32.xlu0 %v2921
        %v2923 = vpop.xlane.xlu0 %2922
        %v2924 = vsel %vm929, %v2920, 0.0
        %2925 = vadd.xlane.f32.xlu0 %v2924
        %v2926 = vpop.xlane.xlu0 %2925
        %v2927 = vrcp.pop %v2923
        %v2928 = vrcp.pop %v2926
        %v2929 = vmul.f32 %v2918, %v2927
        %v2930 = vmul.f32 %v2920, %v2928
        %v2932 = vsel %vm929, %v2929, 0
        %2934 = vmatprep.subr.mxu0 0.0
        %2935 = vmatpush1.msra.mxu0 %v2745
        %2936 = vmatprep.subr.mxu0 0.0
        %2937 = vmatpush1.msra.mxu0 0.0
        %2938 = vmatprep.subr.mxu0 0.0
        %2939 = vmatpush1.msra.mxu0 0.0
        %2940 = vmatprep.subr.mxu0 0.0
        %2941 = vmatpush1.msra.mxu0 0.0
        %2942 = vmatprep.subr.mxu0 0.0
        %2943 = vmatpush1.msra.mxu0 0.0
        %2944 = vmatprep.subr.mxu0 0.0
        %2945 = vmatpush1.msra.mxu0 0.0
        %2946 = vmatprep.subr.mxu0 0.0
        %2947 = vmatpush1.msra.mxu0 0.0
        %2948 = vmatprep.subr.mxu0 0.0
        %2949 = vmatpush1.msra.mxu0 0.0
        %2950 = vmatprep.subr.mxu0 0.0
        %2951 = vmatpush1.msra.mxu0 0.0
        %2952 = vmatprep.subr.mxu0 0.0
        %2953 = vmatpush1.msra.mxu0 0.0
        %2954 = vmatprep.subr.mxu0 0.0
        %2955 = vmatpush1.msra.mxu0 0.0
        %2956 = vmatprep.subr.mxu0 0.0
        %2957 = vmatpush1.msra.mxu0 0.0
        %2958 = vmatprep.subr.mxu0 0.0
        %2959 = vmatpush1.msra.mxu0 0.0
        %2960 = vmatprep.subr.mxu0 0.0
        %2961 = vmatpush1.msra.mxu0 0.0
        %2962 = vmatprep.subr.mxu0 0.0
        %2963 = vmatpush1.msra.mxu0 0.0
        %2964 = vmatprep.subr.mxu0 0.0
        %2965 = vmatpush1.msra.mxu0 0.0
        %2966 = vmatprep.subr.mxu0 0.0
        %2967 = vmatpush1.msra.mxu0 0.0
        %2968 = vmatprep.subr.mxu0 0.0
        %2969 = vmatpush1.msra.mxu0 0.0
        %2970 = vmatprep.subr.mxu0 0.0
        %2971 = vmatpush1.msra.mxu0 0.0
        %2972 = vmatprep.subr.mxu0 0.0
        %2973 = vmatpush1.msra.mxu0 0.0
        %2974 = vmatprep.subr.mxu0 0.0
        %2975 = vmatpush1.msra.mxu0 0.0
        %2976 = vmatprep.subr.mxu0 0.0
        %2977 = vmatpush1.msra.mxu0 0.0
        %2978 = vmatprep.subr.mxu0 0.0
        %2979 = vmatpush1.msra.mxu0 0.0
        %2980 = vmatprep.subr.mxu0 0.0
        %2981 = vmatpush1.msra.mxu0 0.0
        %2982 = vmatprep.subr.mxu0 0.0
        %2983 = vmatpush1.msra.mxu0 0.0
        %2984 = vmatprep.subr.mxu0 0.0
        %2985 = vmatpush1.msra.mxu0 0.0
        %2986 = vmatprep.subr.mxu0 0.0
        %2987 = vmatpush1.msra.mxu0 0.0
        %2988 = vmatprep.subr.mxu0 0.0
        %2989 = vmatpush1.msra.mxu0 0.0
        %2990 = vmatprep.subr.mxu0 0.0
        %2991 = vmatpush1.msra.mxu0 0.0
        %2992 = vmatprep.subr.mxu0 0.0
        %2993 = vmatpush1.msra.mxu0 0.0
        %2994 = vmatprep.subr.mxu0 0.0
        %2995 = vmatpush1.msra.mxu0 0.0
        %2996 = vmatprep.subr.mxu0 0.0
        %2997 = vmatpush1.msra.mxu0 0.0
        %2998 = vmatprep.mubr.f32.mxu0 0.0
        %2999 = vmatmul.mubr.f32.gmra.mrb[0].mxu0 %v2932
        %v3000 = vpop.f32.mrb[0].mxu0
        %v3001 = vadd.f32 0.0, %v3000
        %v3002 = vpop.f32.mrb[0].mxu0
        %3003 = vdwg.mxu0
        %v3005 = vsel %vm929, %v2930, 0
        %3007 = vmatprep.subr.mxu0 0.0
        %3008 = vmatpush1.msra.mxu0 %v2750
        %3009 = vmatprep.subr.mxu0 0.0
        %3010 = vmatpush1.msra.mxu0 0.0
        %3011 = vmatprep.subr.mxu0 0.0
        %3012 = vmatpush1.msra.mxu0 0.0
        %3013 = vmatprep.subr.mxu0 0.0
        %3014 = vmatpush1.msra.mxu0 0.0
        %3015 = vmatprep.subr.mxu0 0.0
        %3016 = vmatpush1.msra.mxu0 0.0
        %3017 = vmatprep.subr.mxu0 0.0
        %3018 = vmatpush1.msra.mxu0 0.0
        %3019 = vmatprep.subr.mxu0 0.0
        %3020 = vmatpush1.msra.mxu0 0.0
        %3021 = vmatprep.subr.mxu0 0.0
        %3022 = vmatpush1.msra.mxu0 0.0
        %3023 = vmatprep.subr.mxu0 0.0
        %3024 = vmatpush1.msra.mxu0 0.0
        %3025 = vmatprep.subr.mxu0 0.0
        %3026 = vmatpush1.msra.mxu0 0.0
        %3027 = vmatprep.subr.mxu0 0.0
        %3028 = vmatpush1.msra.mxu0 0.0
        %3029 = vmatprep.subr.mxu0 0.0
        %3030 = vmatpush1.msra.mxu0 0.0
        %3031 = vmatprep.subr.mxu0 0.0
        %3032 = vmatpush1.msra.mxu0 0.0
        %3033 = vmatprep.subr.mxu0 0.0
        %3034 = vmatpush1.msra.mxu0 0.0
        %3035 = vmatprep.subr.mxu0 0.0
        %3036 = vmatpush1.msra.mxu0 0.0
        %3037 = vmatprep.subr.mxu0 0.0
        %3038 = vmatpush1.msra.mxu0 0.0
        %3039 = vmatprep.subr.mxu0 0.0
        %3040 = vmatpush1.msra.mxu0 0.0
        %3041 = vmatprep.subr.mxu0 0.0
        %3042 = vmatpush1.msra.mxu0 0.0
        %3043 = vmatprep.subr.mxu0 0.0
        %3044 = vmatpush1.msra.mxu0 0.0
        %3045 = vmatprep.subr.mxu0 0.0
        %3046 = vmatpush1.msra.mxu0 0.0
        %3047 = vmatprep.subr.mxu0 0.0
        %3048 = vmatpush1.msra.mxu0 0.0
        %3049 = vmatprep.subr.mxu0 0.0
        %3050 = vmatpush1.msra.mxu0 0.0
        %3051 = vmatprep.subr.mxu0 0.0
        %3052 = vmatpush1.msra.mxu0 0.0
        %3053 = vmatprep.subr.mxu0 0.0
        %3054 = vmatpush1.msra.mxu0 0.0
        %3055 = vmatprep.subr.mxu0 0.0
        %3056 = vmatpush1.msra.mxu0 0.0
        %3057 = vmatprep.subr.mxu0 0.0
        %3058 = vmatpush1.msra.mxu0 0.0
        %3059 = vmatprep.subr.mxu0 0.0
        %3060 = vmatpush1.msra.mxu0 0.0
        %3061 = vmatprep.subr.mxu0 0.0
        %3062 = vmatpush1.msra.mxu0 0.0
        %3063 = vmatprep.subr.mxu0 0.0
        %3064 = vmatpush1.msra.mxu0 0.0
        %3065 = vmatprep.subr.mxu0 0.0
        %3066 = vmatpush1.msra.mxu0 0.0
        %3067 = vmatprep.subr.mxu0 0.0
        %3068 = vmatpush1.msra.mxu0 0.0
        %3069 = vmatprep.subr.mxu0 0.0
        %3070 = vmatpush1.msra.mxu0 0.0
        %3071 = vmatprep.mubr.f32.mxu0 0.0
        %3072 = vmatmul.mubr.f32.gmra.mrb[0].mxu0 %v3005
        %v3073 = vpop.f32.mrb[0].mxu0
        %v3074 = vadd.f32 0.0, %v3073
        %v3075 = vpop.f32.mrb[0].mxu0
        %3076 = vdwg.mxu0
        %v3077 = vld [vmem:[#allocation2 + $0x780] sm:$0xff]
        %v3078 = vld [vmem:[#allocation2 + $0x790] sm:$0xff]
        %v3080 = vsel %vm349, %v3001, 0
        %v3083 = vsel %vm349, %v3074, 0
        %3085 = vmatprep.subr.mxu0 0.0
        %3086 = vmatpush1.msra.mxu0 %v3077
        %3087 = vmatprep.subr.mxu0 0.0
        %3088 = vmatpush1.msra.mxu0 %v3078
        %3089 = vmatprep.subr.mxu0 0.0
        %3090 = vmatpush1.msra.mxu0 0.0
        %3091 = vmatprep.subr.mxu0 0.0
        %3092 = vmatpush1.msra.mxu0 0.0
        %3093 = vmatprep.subr.mxu0 0.0
        %3094 = vmatpush1.msra.mxu0 0.0
        %3095 = vmatprep.subr.mxu0 0.0
        %3096 = vmatpush1.msra.mxu0 0.0
        %3097 = vmatprep.subr.mxu0 0.0
        %3098 = vmatpush1.msra.mxu0 0.0
        %3099 = vmatprep.subr.mxu0 0.0
        %3100 = vmatpush1.msra.mxu0 0.0
        %3101 = vmatprep.subr.mxu0 0.0
        %3102 = vmatpush1.msra.mxu0 0.0
        %3103 = vmatprep.subr.mxu0 0.0
        %3104 = vmatpush1.msra.mxu0 0.0
        %3105 = vmatprep.subr.mxu0 0.0
        %3106 = vmatpush1.msra.mxu0 0.0
        %3107 = vmatprep.subr.mxu0 0.0
        %3108 = vmatpush1.msra.mxu0 0.0
        %3109 = vmatprep.subr.mxu0 0.0
        %3110 = vmatpush1.msra.mxu0 0.0
        %3111 = vmatprep.subr.mxu0 0.0
        %3112 = vmatpush1.msra.mxu0 0.0
        %3113 = vmatprep.subr.mxu0 0.0
        %3114 = vmatpush1.msra.mxu0 0.0
        %3115 = vmatprep.subr.mxu0 0.0
        %3116 = vmatpush1.msra.mxu0 0.0
        %3117 = vmatprep.subr.mxu0 0.0
        %3118 = vmatpush1.msra.mxu0 0.0
        %3119 = vmatprep.subr.mxu0 0.0
        %3120 = vmatpush1.msra.mxu0 0.0
        %3121 = vmatprep.subr.mxu0 0.0
        %3122 = vmatpush1.msra.mxu0 0.0
        %3123 = vmatprep.subr.mxu0 0.0
        %3124 = vmatpush1.msra.mxu0 0.0
        %3125 = vmatprep.subr.mxu0 0.0
        %3126 = vmatpush1.msra.mxu0 0.0
        %3127 = vmatprep.subr.mxu0 0.0
        %3128 = vmatpush1.msra.mxu0 0.0
        %3129 = vmatprep.subr.mxu0 0.0
        %3130 = vmatpush1.msra.mxu0 0.0
        %3131 = vmatprep.subr.mxu0 0.0
        %3132 = vmatpush1.msra.mxu0 0.0
        %3133 = vmatprep.subr.mxu0 0.0
        %3134 = vmatpush1.msra.mxu0 0.0
        %3135 = vmatprep.subr.mxu0 0.0
        %3136 = vmatpush1.msra.mxu0 0.0
        %3137 = vmatprep.subr.mxu0 0.0
        %3138 = vmatpush1.msra.mxu0 0.0
        %3139 = vmatprep.subr.mxu0 0.0
        %3140 = vmatpush1.msra.mxu0 0.0
        %3141 = vmatprep.subr.mxu0 0.0
        %3142 = vmatpush1.msra.mxu0 0.0
        %3143 = vmatprep.subr.mxu0 0.0
        %3144 = vmatpush1.msra.mxu0 0.0
        %3145 = vmatprep.subr.mxu0 0.0
        %3146 = vmatpush1.msra.mxu0 0.0
        %3147 = vmatprep.subr.mxu0 0.0
        %3148 = vmatpush1.msra.mxu0 0.0
        %3149 = vmatprep.mubr.f32.mxu0 0.0
        %3150 = vmatmul.mubr.f32.gmra.mrb[0].mxu0 %v3080
        %v3151 = vpop.f32.mrb[0].mxu0
        %v3152 = vadd.f32 0.0, %v3151
        %v3153 = vpop.f32.mrb[0].mxu0
        %3154 = vmatprep.mubr.f32.mxu0 0.0
        %3155 = vmatmul.mubr.f32.gmra.mrb[0].mxu0 %v3083
        %v3156 = vpop.f32.mrb[0].mxu0
        %v3157 = vadd.f32 0.0, %v3156
        %v3158 = vpop.f32.mrb[0].mxu0
        %3159 = vdwg.mxu0
        %v3160 = vadd.f32 %v2499, %v3152
        %v3161 = vadd.f32 %v2500, %v3157
        %v3162 = vadd.f32 %v474, %v3160
        %v3163 = vadd.f32 %v475, %v3161
        %v3164 = vld [vmem:[#allocation2 + $0x7a0] ss:$0 sm:$0xff]
        %v3165 = vadd.f32 %v3162, %v3164
        %v3166 = vadd.f32 %v3163, %v3164
        %v3167 = vld [vmem:[#allocation2 + $0x7b0] sm:$0x3]
        %v3168 = vsel %vm436, %v3165, 0.0
        %3169 = vadd.xlane.f32.xlu0 %v3168
        %v3170 = vpop.xlane.xlu0 %3169
        %v3171 = vsel %vm436, %v3166, 0.0
        %3172 = vadd.xlane.f32.xlu0 %v3171
        %v3173 = vpop.xlane.xlu0 %3172
        %v3174 = vmul.f32 %v3170, %v443
        %v3175 = vmul.f32 %v3173, %v443
        %v3176 = vsub.f32 %v3165, %v3174
        %v3177 = vsub.f32 %v3166, %v3175
        %v3178 = vmul.f32 %v3176, %v3176
        %v3179 = vmul.f32 %v3177, %v3177
        %v3180 = vsel %vm436, %v3178, 0.0
        %3181 = vadd.xlane.f32.xlu0 %v3180
        %v3182 = vpop.xlane.xlu0 %3181
        %v3183 = vsel %vm436, %v3179, 0.0
        %3184 = vadd.xlane.f32.xlu0 %v3183
        %v3185 = vpop.xlane.xlu0 %3184
        %v3186 = vmul.f32 %v3182, %v443
        %v3187 = vmul.f32 %v3185, %v443
        %v3188 = vadd.f32 %v3186, 1e-05
        %v3189 = vadd.f32 %v3187, 1e-05
        %v3190 = vrsqrt.pop %v3188
        %v3191 = vrsqrt.pop %v3189
        %v3192 = vmul.f32 %v3176, %v3190
        %v3193 = vmul.f32 %v3177, %v3191
        %v3194 = vlaneseq
        %v3195 = vshrl.u32 %v3194, 7
        %v3196 = vsub.s32 0, %v3195
        %v3197 = vrot.slane %v3167, %v3196
        %v3198 = vmul.f32 %v3192, %v3197
        %v3199 = vmul.f32 %v3193, %v3197
        %v3200 = vlaneseq
        %v3201 = vshrl.u32 %v3200, 7
        %v3202 = vsub.s32 1, %v3201
        %v3203 = vrot.slane %v3167, %v3202
        %v3204 = vadd.f32 %v3198, %v3203
        %v3205 = vadd.f32 %v3199, %v3203
        %v3206 = vld [vmem:[#allocation2 + $0x7c0] sm:$0xff]
        %v3207 = vld [vmem:[#allocation2 + $0x7c8] sm:$0xff]
        %v3208 = vld [vmem:[#allocation2 + $0x7d0] sm:$0xff]
        %v3209 = vld [vmem:[#allocation2 + $0x7d8] sm:$0xff]
        %v3210 = vld [vmem:[#allocation2 + $0x7e0] sm:$0xff]
        %v3211 = vld [vmem:[#allocation2 + $0x7e8] sm:$0xff]
        %v3212 = vld [vmem:[#allocation2 + $0x7f0] sm:$0xff]
        %v3213 = vld [vmem:[#allocation2 + $0x7f8] sm:$0xff]
        %v3214 = vld [vmem:[#allocation2 + $0x800] sm:$0xff]
        %v3215 = vld [vmem:[#allocation2 + $0x808] sm:$0xff]
        %v3216 = vld [vmem:[#allocation2 + $0x810] sm:$0xff]
        %v3217 = vld [vmem:[#allocation2 + $0x818] sm:$0xff]
        %v3218 = vld [vmem:[#allocation2 + $0x820] sm:$0xff]
        %v3219 = vld [vmem:[#allocation2 + $0x828] sm:$0xff]
        %v3220 = vld [vmem:[#allocation2 + $0x830] sm:$0xff]
        %v3221 = vld [vmem:[#allocation2 + $0x838] sm:$0xff]
        %s3222 = scalar_lea.vmem [#allocation2], 2112
        %v3223 = vld [vmem:[%s3222] ss:$8 sm:$0x3]
        %v3225 = vlaneseq
        %v3226 = vshrl.u32 %v3225, 7
        %v3227 = vsub.s32 0, %v3226
        %v3228 = vrot.slane %v3223, %v3227
        %v3229 = vlaneseq
        %v3230 = vshrl.u32 %v3229, 7
        %v3231 = vsub.s32 1, %v3230
        %v3232 = vrot.slane %v3223, %v3231
        %v3236 = vsel %vm436, %v3204, 0
        %v3239 = vsel %vm436, %v3205, 0
        %3241 = vmatprep.subr.mxu0 %v3207
        %3242 = vmatpush1.msra.mxu0 %v3206
        %3243 = vmatprep.subr.mxu0 %v3209
        %3244 = vmatpush1.msra.mxu0 %v3208
        %3245 = vmatprep.subr.mxu0 %v3211
        %3246 = vmatpush1.msra.mxu0 %v3210
        %3247 = vmatprep.subr.mxu0 %v3213
        %3248 = vmatpush1.msra.mxu0 %v3212
        %3249 = vmatprep.subr.mxu0 %v3215
        %3250 = vmatpush1.msra.mxu0 %v3214
        %3251 = vmatprep.subr.mxu0 %v3217
        %3252 = vmatpush1.msra.mxu0 %v3216
        %3253 = vmatprep.subr.mxu0 %v3219
        %3254 = vmatpush1.msra.mxu0 %v3218
        %3255 = vmatprep.subr.mxu0 %v3221
        %3256 = vmatpush1.msra.mxu0 %v3220
        %3257 = vmatprep.subr.mxu0 0.0
        %3258 = vmatpush1.msra.mxu0 0.0
        %3259 = vmatprep.subr.mxu0 0.0
        %3260 = vmatpush1.msra.mxu0 0.0
        %3261 = vmatprep.subr.mxu0 0.0
        %3262 = vmatpush1.msra.mxu0 0.0
        %3263 = vmatprep.subr.mxu0 0.0
        %3264 = vmatpush1.msra.mxu0 0.0
        %3265 = vmatprep.subr.mxu0 0.0
        %3266 = vmatpush1.msra.mxu0 0.0
        %3267 = vmatprep.subr.mxu0 0.0
        %3268 = vmatpush1.msra.mxu0 0.0
        %3269 = vmatprep.subr.mxu0 0.0
        %3270 = vmatpush1.msra.mxu0 0.0
        %3271 = vmatprep.subr.mxu0 0.0
        %3272 = vmatpush1.msra.mxu0 0.0
        %3273 = vmatprep.subr.mxu0 0.0
        %3274 = vmatpush1.msra.mxu0 0.0
        %3275 = vmatprep.subr.mxu0 0.0
        %3276 = vmatpush1.msra.mxu0 0.0
        %3277 = vmatprep.subr.mxu0 0.0
        %3278 = vmatpush1.msra.mxu0 0.0
        %3279 = vmatprep.subr.mxu0 0.0
        %3280 = vmatpush1.msra.mxu0 0.0
        %3281 = vmatprep.subr.mxu0 0.0
        %3282 = vmatpush1.msra.mxu0 0.0
        %3283 = vmatprep.subr.mxu0 0.0
        %3284 = vmatpush1.msra.mxu0 0.0
        %3285 = vmatprep.subr.mxu0 0.0
        %3286 = vmatpush1.msra.mxu0 0.0
        %3287 = vmatprep.subr.mxu0 0.0
        %3288 = vmatpush1.msra.mxu0 0.0
        %3289 = vmatprep.subr.mxu0 0.0
        %3290 = vmatpush1.msra.mxu0 0.0
        %3291 = vmatprep.subr.mxu0 0.0
        %3292 = vmatpush1.msra.mxu0 0.0
        %3293 = vmatprep.subr.mxu0 0.0
        %3294 = vmatpush1.msra.mxu0 0.0
        %3295 = vmatprep.subr.mxu0 0.0
        %3296 = vmatpush1.msra.mxu0 0.0
        %3297 = vmatprep.subr.mxu0 0.0
        %3298 = vmatpush1.msra.mxu0 0.0
        %3299 = vmatprep.subr.mxu0 0.0
        %3300 = vmatpush1.msra.mxu0 0.0
        %3301 = vmatprep.subr.mxu0 0.0
        %3302 = vmatpush1.msra.mxu0 0.0
        %3303 = vmatprep.subr.mxu0 0.0
        %3304 = vmatpush1.msra.mxu0 0.0
        %3305 = vmatprep.mubr.f32.mxu0 0.0
        %3306 = vmatmul.mubr.f32.gmra.mrb[0].mxu0 %v3236
        %v3307 = vpop.f32.mrb[0].mxu0
        %v3308 = vadd.f32 %v3228, %v3307
        %v3309 = vpop.f32.mrb[0].mxu0
        %v3310 = vadd.f32 %v3232, %v3309
        %3311 = vmatprep.mubr.f32.mxu0 0.0
        %3312 = vmatmul.mubr.f32.gmra.mrb[0].mxu0 %v3239
        %v3313 = vpop.f32.mrb[0].mxu0
        %v3314 = vadd.f32 %v3228, %v3313
        %v3315 = vpop.f32.mrb[0].mxu0
        %v3316 = vadd.f32 %v3232, %v3315
        %3317 = vdwg.mxu0
        %v3318 = vmul.f32 %v3308, 0.5
        %v3319 = vmul.f32 %v3310, 0.5
        %v3320 = vmul.f32 %v3314, 0.5
        %v3321 = vmul.f32 %v3316, 0.5
        %v3322 = vmul.f32 %v3308, %v3308
        %v3323 = vmul.f32 %v3310, %v3310
        %v3324 = vmul.f32 %v3314, %v3314
        %v3325 = vmul.f32 %v3316, %v3316
        %v3326 = vmul.f32 %v3322, %v3308
        %v3327 = vmul.f32 %v3323, %v3310
        %v3328 = vmul.f32 %v3324, %v3314
        %v3329 = vmul.f32 %v3325, %v3316
        %v3330 = vmul.f32 %v3326, 0.044715
        %v3331 = vmul.f32 %v3327, 0.044715
        %v3332 = vmul.f32 %v3328, 0.044715
        %v3333 = vmul.f32 %v3329, 0.044715
        %v3334 = vadd.f32 %v3308, %v3330
        %v3335 = vadd.f32 %v3310, %v3331
        %v3336 = vadd.f32 %v3314, %v3332
        %v3337 = vadd.f32 %v3316, %v3333
        %v3338 = vmul.f32 %v3334, 0.7978846
        %v3339 = vmul.f32 %v3335, 0.7978846
        %v3340 = vmul.f32 %v3336, 0.7978846
        %v3341 = vmul.f32 %v3337, 0.7978846
        %v3342 = vtanh.pop %v3338
        %v3343 = vtanh.pop %v3339
        %v3344 = vtanh.pop %v3340
        %v3345 = vtanh.pop %v3341
        %v3346 = vadd.f32 %v3342, 1.0
        %v3347 = vadd.f32 %v3343, 1.0
        %v3348 = vadd.f32 %v3344, 1.0
        %v3349 = vadd.f32 %v3345, 1.0
        %v3350 = vmul.f32 %v3318, %v3346
        %v3351 = vmul.f32 %v3319, %v3347
        %v3352 = vmul.f32 %v3320, %v3348
        %v3353 = vmul.f32 %v3321, %v3349
        %v3354 = vld [vmem:[#allocation2 + $0x850] sm:$0xff]
        %v3355 = vld [vmem:[#allocation2 + $0x860] sm:$0xff]
        %v3356 = vld [vmem:[#allocation2 + $0x870] sm:$0xff]
        %v3357 = vld [vmem:[#allocation2 + $0x880] sm:$0xff]
        %v3358 = vld [vmem:[#allocation2 + $0x890] sm:$0xff]
        %v3359 = vld [vmem:[#allocation2 + $0x8a0] sm:$0xff]
        %v3360 = vld [vmem:[#allocation2 + $0x8b0] sm:$0xff]
        %v3361 = vld [vmem:[#allocation2 + $0x8c0] sm:$0xff]
        %v3362 = vld [vmem:[#allocation2 + $0x8d0] sm:$0xff]
        %v3363 = vld [vmem:[#allocation2 + $0x8e0] sm:$0xff]
        %v3364 = vld [vmem:[#allocation2 + $0x8f0] sm:$0xff]
        %v3365 = vld [vmem:[#allocation2 + $0x900] sm:$0xff]
        %v3366 = vld [vmem:[#allocation2 + $0x910] sm:$0xff]
        %v3367 = vld [vmem:[#allocation2 + $0x920] sm:$0xff]
        %v3368 = vld [vmem:[#allocation2 + $0x930] sm:$0xff]
        %v3369 = vld [vmem:[#allocation2 + $0x940] sm:$0xff]
        %v3370 = vld [vmem:[#allocation2 + $0x950] sm:$0xff]
        %v3371 = vld [vmem:[#allocation2 + $0x960] sm:$0xff]
        %v3372 = vld [vmem:[#allocation2 + $0x970] sm:$0xff]
        %v3373 = vld [vmem:[#allocation2 + $0x980] sm:$0xff]
        %v3374 = vld [vmem:[#allocation2 + $0x990] sm:$0xff]
        %v3375 = vld [vmem:[#allocation2 + $0x9a0] sm:$0xff]
        %v3376 = vld [vmem:[#allocation2 + $0x9b0] sm:$0xff]
        %v3377 = vld [vmem:[#allocation2 + $0x9c0] sm:$0xff]
        %v3378 = vld [vmem:[#allocation2 + $0x9d0] sm:$0xff]
        %v3379 = vld [vmem:[#allocation2 + $0x9e0] sm:$0xff]
        %v3380 = vld [vmem:[#allocation2 + $0x9f0] sm:$0xff]
        %v3381 = vld [vmem:[#allocation2 + $0xa00] sm:$0xff]
        %v3382 = vld [vmem:[#allocation2 + $0xa10] sm:$0xff]
        %v3383 = vld [vmem:[#allocation2 + $0xa20] sm:$0xff]
        %v3384 = vld [vmem:[#allocation2 + $0xa30] sm:$0xff]
        %v3385 = vld [vmem:[#allocation2 + $0xa40] sm:$0xff]
        %v3386 = vld [vmem:[#allocation2 + $0xa50] ss:$0 sm:$0xff]
        %3387 = vmatprep.subr.mxu0 0.0
        %3388 = vmatpush1.msra.mxu0 %v3354
        %3389 = vmatprep.subr.mxu0 0.0
        %3390 = vmatpush1.msra.mxu0 %v3355
        %3391 = vmatprep.subr.mxu0 0.0
        %3392 = vmatpush1.msra.mxu0 %v3356
        %3393 = vmatprep.subr.mxu0 0.0
        %3394 = vmatpush1.msra.mxu0 %v3357
        %3395 = vmatprep.subr.mxu0 0.0
        %3396 = vmatpush1.msra.mxu0 %v3358
        %3397 = vmatprep.subr.mxu0 0.0
        %3398 = vmatpush1.msra.mxu0 %v3359
        %3399 = vmatprep.subr.mxu0 0.0
        %3400 = vmatpush1.msra.mxu0 %v3360
        %3401 = vmatprep.subr.mxu0 0.0
        %3402 = vmatpush1.msra.mxu0 %v3361
        %3403 = vmatprep.subr.mxu0 0.0
        %3404 = vmatpush1.msra.mxu0 %v3362
        %3405 = vmatprep.subr.mxu0 0.0
        %3406 = vmatpush1.msra.mxu0 %v3363
        %3407 = vmatprep.subr.mxu0 0.0
        %3408 = vmatpush1.msra.mxu0 %v3364
        %3409 = vmatprep.subr.mxu0 0.0
        %3410 = vmatpush1.msra.mxu0 %v3365
        %3411 = vmatprep.subr.mxu0 0.0
        %3412 = vmatpush1.msra.mxu0 %v3366
        %3413 = vmatprep.subr.mxu0 0.0
        %3414 = vmatpush1.msra.mxu0 %v3367
        %3415 = vmatprep.subr.mxu0 0.0
        %3416 = vmatpush1.msra.mxu0 %v3368
        %3417 = vmatprep.subr.mxu0 0.0
        %3418 = vmatpush1.msra.mxu0 %v3369
        %3419 = vmatprep.subr.mxu0 0.0
        %3420 = vmatpush1.msra.mxu0 %v3370
        %3421 = vmatprep.subr.mxu0 0.0
        %3422 = vmatpush1.msra.mxu0 %v3371
        %3423 = vmatprep.subr.mxu0 0.0
        %3424 = vmatpush1.msra.mxu0 %v3372
        %3425 = vmatprep.subr.mxu0 0.0
        %3426 = vmatpush1.msra.mxu0 %v3373
        %3427 = vmatprep.subr.mxu0 0.0
        %3428 = vmatpush1.msra.mxu0 %v3374
        %3429 = vmatprep.subr.mxu0 0.0
        %3430 = vmatpush1.msra.mxu0 %v3375
        %3431 = vmatprep.subr.mxu0 0.0
        %3432 = vmatpush1.msra.mxu0 %v3376
        %3433 = vmatprep.subr.mxu0 0.0
        %3434 = vmatpush1.msra.mxu0 %v3377
        %3435 = vmatprep.subr.mxu0 0.0
        %3436 = vmatpush1.msra.mxu0 %v3378
        %3437 = vmatprep.subr.mxu0 0.0
        %3438 = vmatpush1.msra.mxu0 %v3379
        %3439 = vmatprep.subr.mxu0 0.0
        %3440 = vmatpush1.msra.mxu0 %v3380
        %3441 = vmatprep.subr.mxu0 0.0
        %3442 = vmatpush1.msra.mxu0 %v3381
        %3443 = vmatprep.subr.mxu0 0.0
        %3444 = vmatpush1.msra.mxu0 %v3382
        %3445 = vmatprep.subr.mxu0 0.0
        %3446 = vmatpush1.msra.mxu0 %v3383
        %3447 = vmatprep.subr.mxu0 0.0
        %3448 = vmatpush1.msra.mxu0 %v3384
        %3449 = vmatprep.subr.mxu0 0.0
        %3450 = vmatpush1.msra.mxu0 %v3385
        %3451 = vmatprep.mubr.f32.mxu0 %v3351
        %3452 = vmatmul.mubr.f32.gmra.mrb[0].mxu0 %v3350
        %v3453 = vpop.f32.mrb[0].mxu0
        %v3454 = vadd.f32 %v3386, %v3453
        %v3455 = vpop.f32.mrb[0].mxu0
        %3456 = vmatprep.mubr.f32.mxu0 %v3353
        %3457 = vmatmul.mubr.f32.gmra.mrb[0].mxu0 %v3352
        %v3458 = vpop.f32.mrb[0].mxu0
        %v3459 = vadd.f32 %v3386, %v3458
        %v3460 = vpop.f32.mrb[0].mxu0
        %3461 = vdwg.mxu0
        %v3462 = vadd.f32 %v3165, %v3454
        %v3463 = vadd.f32 %v3166, %v3459
        %v3464 = vld [vmem:[#allocation2 + $0xa60] sm:$0x3]
        %v3465 = vsel %vm436, %v3462, 0.0
        %3466 = vadd.xlane.f32.xlu0 %v3465
        %v3467 = vpop.xlane.xlu0 %3466
        %v3468 = vsel %vm436, %v3463, 0.0
        %3469 = vadd.xlane.f32.xlu0 %v3468
        %v3470 = vpop.xlane.xlu0 %3469
        %v3471 = vmul.f32 %v3467, %v443
        %v3472 = vmul.f32 %v3470, %v443
        %v3473 = vsub.f32 %v3462, %v3471
        %v3474 = vsub.f32 %v3463, %v3472
        %v3475 = vmul.f32 %v3473, %v3473
        %v3476 = vmul.f32 %v3474, %v3474
        %v3477 = vsel %vm436, %v3475, 0.0
        %3478 = vadd.xlane.f32.xlu0 %v3477
        %v3479 = vpop.xlane.xlu0 %3478
        %v3480 = vsel %vm436, %v3476, 0.0
        %3481 = vadd.xlane.f32.xlu0 %v3480
        %v3482 = vpop.xlane.xlu0 %3481
        %v3483 = vmul.f32 %v3479, %v443
        %v3484 = vmul.f32 %v3482, %v443
        %v3485 = vadd.f32 %v3483, 1e-05
        %v3486 = vadd.f32 %v3484, 1e-05
        %v3487 = vrsqrt.pop %v3485
        %v3488 = vrsqrt.pop %v3486
        %v3489 = vmul.f32 %v3473, %v3487
        %v3490 = vmul.f32 %v3474, %v3488
        %v3491 = vlaneseq
        %v3492 = vshrl.u32 %v3491, 7
        %v3493 = vsub.s32 0, %v3492
        %v3494 = vrot.slane %v3464, %v3493
        %v3495 = vmul.f32 %v3489, %v3494
        %v3496 = vmul.f32 %v3490, %v3494
        %v3497 = vlaneseq
        %v3498 = vshrl.u32 %v3497, 7
        %v3499 = vsub.s32 1, %v3498
        %v3500 = vrot.slane %v3464, %v3499
        %v3501 = vadd.f32 %v3495, %v3500
        %v3502 = vadd.f32 %v3496, %v3500
        %v3503 = vld [vmem:[#allocation2 + $0xa70] sm:$0xff]
        %v3504 = vld [vmem:[#allocation2 + $0xa80] sm:$0xff]
        %v3505 = vld [vmem:[#allocation2 + $0xa90] sm:$0xff]
        %v3506 = vld [vmem:[#allocation2 + $0xaa0] sm:$0xff]
        %v3507 = vld [vmem:[#allocation2 + $0xab0] sm:$0xff]
        %v3508 = vld [vmem:[#allocation2 + $0xac0] sm:$0xff]
        %v3509 = vld [vmem:[#allocation2 + $0xad0] sm:$0xff]
        %v3510 = vld [vmem:[#allocation2 + $0xae0] sm:$0xff]
        %v3511 = vld [vmem:[#allocation2 + $0xc80] sm:$0xff]
        %v3512 = vld [vmem:[#allocation2 + $0xc90] sm:$0xff]
        %v3513 = vld [vmem:[#allocation2 + $0xca0] sm:$0xff]
        %v3514 = vld [vmem:[#allocation2 + $0xcb0] sm:$0xff]
        %v3515 = vld [vmem:[#allocation2 + $0xcc0] sm:$0xff]
        %v3516 = vld [vmem:[#allocation2 + $0xcd0] sm:$0xff]
        %v3517 = vld [vmem:[#allocation2 + $0xce0] sm:$0xff]
        %v3518 = vld [vmem:[#allocation2 + $0xcf0] sm:$0xff]
        %v3519 = vld [vmem:[#allocation2 + $0xe90] sm:$0xff]
        %v3520 = vld [vmem:[#allocation2 + $0xea0] sm:$0xff]
        %v3521 = vld [vmem:[#allocation2 + $0xeb0] sm:$0xff]
        %v3522 = vld [vmem:[#allocation2 + $0xec0] sm:$0xff]
        %v3523 = vld [vmem:[#allocation2 + $0xed0] sm:$0xff]
        %v3524 = vld [vmem:[#allocation2 + $0xee0] sm:$0xff]
        %v3525 = vld [vmem:[#allocation2 + $0xef0] sm:$0xff]
        %v3526 = vld [vmem:[#allocation2 + $0xf00] sm:$0xff]
        %v3527 = vld [vmem:[#allocation2 + $0xc70] ss:$0 sm:$0xff]
        %v3528 = vld [vmem:[#allocation2 + $0xe80] ss:$0 sm:$0xff]
        %v3529 = vld [vmem:[#allocation2 + $0x1090] ss:$0 sm:$0xff]
        %v3531 = vsel %vm436, %v3501, 0
        %v3534 = vsel %vm436, %v3502, 0
        %3536 = vmatprep.subr.mxu0 0.0
        %3537 = vmatpush1.msra.mxu0 %v3503
        %3538 = vmatprep.subr.mxu0 0.0
        %3539 = vmatpush1.msra.mxu0 %v3504
        %3540 = vmatprep.subr.mxu0 0.0
        %3541 = vmatpush1.msra.mxu0 %v3505
        %3542 = vmatprep.subr.mxu0 0.0
        %3543 = vmatpush1.msra.mxu0 %v3506
        %3544 = vmatprep.subr.mxu0 0.0
        %3545 = vmatpush1.msra.mxu0 %v3507
        %3546 = vmatprep.subr.mxu0 0.0
        %3547 = vmatpush1.msra.mxu0 %v3508
        %3548 = vmatprep.subr.mxu0 0.0
        %3549 = vmatpush1.msra.mxu0 %v3509
        %3550 = vmatprep.subr.mxu0 0.0
        %3551 = vmatpush1.msra.mxu0 %v3510
        %3552 = vmatprep.subr.mxu0 0.0
        %3553 = vmatpush1.msra.mxu0 0.0
        %3554 = vmatprep.subr.mxu0 0.0
        %3555 = vmatpush1.msra.mxu0 0.0
        %3556 = vmatprep.subr.mxu0 0.0
        %3557 = vmatpush1.msra.mxu0 0.0
        %3558 = vmatprep.subr.mxu0 0.0
        %3559 = vmatpush1.msra.mxu0 0.0
        %3560 = vmatprep.subr.mxu0 0.0
        %3561 = vmatpush1.msra.mxu0 0.0
        %3562 = vmatprep.subr.mxu0 0.0
        %3563 = vmatpush1.msra.mxu0 0.0
        %3564 = vmatprep.subr.mxu0 0.0
        %3565 = vmatpush1.msra.mxu0 0.0
        %3566 = vmatprep.subr.mxu0 0.0
        %3567 = vmatpush1.msra.mxu0 0.0
        %3568 = vmatprep.subr.mxu0 0.0
        %3569 = vmatpush1.msra.mxu0 0.0
        %3570 = vmatprep.subr.mxu0 0.0
        %3571 = vmatpush1.msra.mxu0 0.0
        %3572 = vmatprep.subr.mxu0 0.0
        %3573 = vmatpush1.msra.mxu0 0.0
        %3574 = vmatprep.subr.mxu0 0.0
        %3575 = vmatpush1.msra.mxu0 0.0
        %3576 = vmatprep.subr.mxu0 0.0
        %3577 = vmatpush1.msra.mxu0 0.0
        %3578 = vmatprep.subr.mxu0 0.0
        %3579 = vmatpush1.msra.mxu0 0.0
        %3580 = vmatprep.subr.mxu0 0.0
        %3581 = vmatpush1.msra.mxu0 0.0
        %3582 = vmatprep.subr.mxu0 0.0
        %3583 = vmatpush1.msra.mxu0 0.0
        %3584 = vmatprep.subr.mxu0 0.0
        %3585 = vmatpush1.msra.mxu0 0.0
        %3586 = vmatprep.subr.mxu0 0.0
        %3587 = vmatpush1.msra.mxu0 0.0
        %3588 = vmatprep.subr.mxu0 0.0
        %3589 = vmatpush1.msra.mxu0 0.0
        %3590 = vmatprep.subr.mxu0 0.0
        %3591 = vmatpush1.msra.mxu0 0.0
        %3592 = vmatprep.subr.mxu0 0.0
        %3593 = vmatpush1.msra.mxu0 0.0
        %3594 = vmatprep.subr.mxu0 0.0
        %3595 = vmatpush1.msra.mxu0 0.0
        %3596 = vmatprep.subr.mxu0 0.0
        %3597 = vmatpush1.msra.mxu0 0.0
        %3598 = vmatprep.subr.mxu0 0.0
        %3599 = vmatpush1.msra.mxu0 0.0
        %3600 = vmatprep.mubr.f32.mxu0 0.0
        %3601 = vmatmul.mubr.f32.gmra.mrb[0].mxu0 %v3531
        %v3602 = vpop.f32.mrb[0].mxu0
        %v3603 = vadd.f32 %v3527, %v3602
        %v3604 = vpop.f32.mrb[0].mxu0
        %3605 = vmatprep.mubr.f32.mxu0 0.0
        %3606 = vmatmul.mubr.f32.gmra.mrb[0].mxu0 %v3534
        %v3607 = vpop.f32.mrb[0].mxu0
        %v3608 = vadd.f32 %v3527, %v3607
        %v3609 = vpop.f32.mrb[0].mxu0
        %3610 = vdwg.mxu0
        %3611 = vmatprep.subr.mxu0 0.0
        %3612 = vmatpush1.msra.mxu0 %v3511
        %3613 = vmatprep.subr.mxu0 0.0
        %3614 = vmatpush1.msra.mxu0 %v3512
        %3615 = vmatprep.subr.mxu0 0.0
        %3616 = vmatpush1.msra.mxu0 %v3513
        %3617 = vmatprep.subr.mxu0 0.0
        %3618 = vmatpush1.msra.mxu0 %v3514
        %3619 = vmatprep.subr.mxu0 0.0
        %3620 = vmatpush1.msra.mxu0 %v3515
        %3621 = vmatprep.subr.mxu0 0.0
        %3622 = vmatpush1.msra.mxu0 %v3516
        %3623 = vmatprep.subr.mxu0 0.0
        %3624 = vmatpush1.msra.mxu0 %v3517
        %3625 = vmatprep.subr.mxu0 0.0
        %3626 = vmatpush1.msra.mxu0 %v3518
        %3627 = vmatprep.subr.mxu0 0.0
        %3628 = vmatpush1.msra.mxu0 0.0
        %3629 = vmatprep.subr.mxu0 0.0
        %3630 = vmatpush1.msra.mxu0 0.0
        %3631 = vmatprep.subr.mxu0 0.0
        %3632 = vmatpush1.msra.mxu0 0.0
        %3633 = vmatprep.subr.mxu0 0.0
        %3634 = vmatpush1.msra.mxu0 0.0
        %3635 = vmatprep.subr.mxu0 0.0
        %3636 = vmatpush1.msra.mxu0 0.0
        %3637 = vmatprep.subr.mxu0 0.0
        %3638 = vmatpush1.msra.mxu0 0.0
        %3639 = vmatprep.subr.mxu0 0.0
        %3640 = vmatpush1.msra.mxu0 0.0
        %3641 = vmatprep.subr.mxu0 0.0
        %3642 = vmatpush1.msra.mxu0 0.0
        %3643 = vmatprep.subr.mxu0 0.0
        %3644 = vmatpush1.msra.mxu0 0.0
        %3645 = vmatprep.subr.mxu0 0.0
        %3646 = vmatpush1.msra.mxu0 0.0
        %3647 = vmatprep.subr.mxu0 0.0
        %3648 = vmatpush1.msra.mxu0 0.0
        %3649 = vmatprep.subr.mxu0 0.0
        %3650 = vmatpush1.msra.mxu0 0.0
        %3651 = vmatprep.subr.mxu0 0.0
        %3652 = vmatpush1.msra.mxu0 0.0
        %3653 = vmatprep.subr.mxu0 0.0
        %3654 = vmatpush1.msra.mxu0 0.0
        %3655 = vmatprep.subr.mxu0 0.0
        %3656 = vmatpush1.msra.mxu0 0.0
        %3657 = vmatprep.subr.mxu0 0.0
        %3658 = vmatpush1.msra.mxu0 0.0
        %3659 = vmatprep.subr.mxu0 0.0
        %3660 = vmatpush1.msra.mxu0 0.0
        %3661 = vmatprep.subr.mxu0 0.0
        %3662 = vmatpush1.msra.mxu0 0.0
        %3663 = vmatprep.subr.mxu0 0.0
        %3664 = vmatpush1.msra.mxu0 0.0
        %3665 = vmatprep.subr.mxu0 0.0
        %3666 = vmatpush1.msra.mxu0 0.0
        %3667 = vmatprep.subr.mxu0 0.0
        %3668 = vmatpush1.msra.mxu0 0.0
        %3669 = vmatprep.subr.mxu0 0.0
        %3670 = vmatpush1.msra.mxu0 0.0
        %3671 = vmatprep.subr.mxu0 0.0
        %3672 = vmatpush1.msra.mxu0 0.0
        %3673 = vmatprep.subr.mxu0 0.0
        %3674 = vmatpush1.msra.mxu0 0.0
        %3675 = vmatprep.mubr.f32.mxu0 0.0
        %3676 = vmatmul.mubr.f32.gmra.mrb[0].mxu0 %v3531
        %v3677 = vpop.f32.mrb[0].mxu0
        %v3678 = vadd.f32 %v3528, %v3677
        %v3679 = vpop.f32.mrb[0].mxu0
        %3680 = vmatprep.mubr.f32.mxu0 0.0
        %3681 = vmatmul.mubr.f32.gmra.mrb[0].mxu0 %v3534
        %v3682 = vpop.f32.mrb[0].mxu0
        %v3683 = vadd.f32 %v3528, %v3682
        %v3684 = vpop.f32.mrb[0].mxu0
        %3685 = vdwg.mxu0
        %3686 = vmatprep.subr.mxu0 0.0
        %3687 = vmatpush1.msra.mxu0 %v3519
        %3688 = vmatprep.subr.mxu0 0.0
        %3689 = vmatpush1.msra.mxu0 %v3520
        %3690 = vmatprep.subr.mxu0 0.0
        %3691 = vmatpush1.msra.mxu0 %v3521
        %3692 = vmatprep.subr.mxu0 0.0
        %3693 = vmatpush1.msra.mxu0 %v3522
        %3694 = vmatprep.subr.mxu0 0.0
        %3695 = vmatpush1.msra.mxu0 %v3523
        %3696 = vmatprep.subr.mxu0 0.0
        %3697 = vmatpush1.msra.mxu0 %v3524
        %3698 = vmatprep.subr.mxu0 0.0
        %3699 = vmatpush1.msra.mxu0 %v3525
        %3700 = vmatprep.subr.mxu0 0.0
        %3701 = vmatpush1.msra.mxu0 %v3526
        %3702 = vmatprep.subr.mxu0 0.0
        %3703 = vmatpush1.msra.mxu0 0.0
        %3704 = vmatprep.subr.mxu0 0.0
        %3705 = vmatpush1.msra.mxu0 0.0
        %3706 = vmatprep.subr.mxu0 0.0
        %3707 = vmatpush1.msra.mxu0 0.0
        %3708 = vmatprep.subr.mxu0 0.0
        %3709 = vmatpush1.msra.mxu0 0.0
        %3710 = vmatprep.subr.mxu0 0.0
        %3711 = vmatpush1.msra.mxu0 0.0
        %3712 = vmatprep.subr.mxu0 0.0
        %3713 = vmatpush1.msra.mxu0 0.0
        %3714 = vmatprep.subr.mxu0 0.0
        %3715 = vmatpush1.msra.mxu0 0.0
        %3716 = vmatprep.subr.mxu0 0.0
        %3717 = vmatpush1.msra.mxu0 0.0
        %3718 = vmatprep.subr.mxu0 0.0
        %3719 = vmatpush1.msra.mxu0 0.0
        %3720 = vmatprep.subr.mxu0 0.0
        %3721 = vmatpush1.msra.mxu0 0.0
        %3722 = vmatprep.subr.mxu0 0.0
        %3723 = vmatpush1.msra.mxu0 0.0
        %3724 = vmatprep.subr.mxu0 0.0
        %3725 = vmatpush1.msra.mxu0 0.0
        %3726 = vmatprep.subr.mxu0 0.0
        %3727 = vmatpush1.msra.mxu0 0.0
        %3728 = vmatprep.subr.mxu0 0.0
        %3729 = vmatpush1.msra.mxu0 0.0
        %3730 = vmatprep.subr.mxu0 0.0
        %3731 = vmatpush1.msra.mxu0 0.0
        %3732 = vmatprep.subr.mxu0 0.0
        %3733 = vmatpush1.msra.mxu0 0.0
        %3734 = vmatprep.subr.mxu0 0.0
        %3735 = vmatpush1.msra.mxu0 0.0
        %3736 = vmatprep.subr.mxu0 0.0
        %3737 = vmatpush1.msra.mxu0 0.0
        %3738 = vmatprep.subr.mxu0 0.0
        %3739 = vmatpush1.msra.mxu0 0.0
        %3740 = vmatprep.subr.mxu0 0.0
        %3741 = vmatpush1.msra.mxu0 0.0
        %3742 = vmatprep.subr.mxu0 0.0
        %3743 = vmatpush1.msra.mxu0 0.0
        %3744 = vmatprep.subr.mxu0 0.0
        %3745 = vmatpush1.msra.mxu0 0.0
        %3746 = vmatprep.subr.mxu0 0.0
        %3747 = vmatpush1.msra.mxu0 0.0
        %3748 = vmatprep.subr.mxu0 0.0
        %3749 = vmatpush1.msra.mxu0 0.0
        %3750 = vmatprep.mubr.f32.mxu0 0.0
        %3751 = vmatmul.mubr.f32.gmra.mrb[0].mxu0 %v3531
        %v3752 = vpop.f32.mrb[0].mxu0
        %v3753 = vadd.f32 %v3529, %v3752
        %v3754 = vpop.f32.mrb[0].mxu0
        %3755 = vmatprep.mubr.f32.mxu0 0.0
        %3756 = vmatmul.mubr.f32.gmra.mrb[0].mxu0 %v3534
        %v3757 = vpop.f32.mrb[0].mxu0
        %v3758 = vadd.f32 %v3529, %v3757
        %v3759 = vpop.f32.mrb[0].mxu0
        %3760 = vdwg.mxu0
        %v3762 = vsel %vm349, %v3603, 0
        %v3765 = vsel %vm349, %v3678, 0
        %3767 = vmatprep.subr.mxu0 0.0
        %3768 = vmatpush1.xpose.msra.mxu0 %v3765
        %3769 = vmatprep.subr.mxu0 0.0
        %3770 = vmatpush1.xpose.msra.mxu0 0.0
        %3771 = vmatprep.subr.mxu0 0.0
        %3772 = vmatpush1.xpose.msra.mxu0 0.0
        %3773 = vmatprep.subr.mxu0 0.0
        %3774 = vmatpush1.xpose.msra.mxu0 0.0
        %3775 = vmatprep.subr.mxu0 0.0
        %3776 = vmatpush1.xpose.msra.mxu0 0.0
        %3777 = vmatprep.subr.mxu0 0.0
        %3778 = vmatpush1.xpose.msra.mxu0 0.0
        %3779 = vmatprep.subr.mxu0 0.0
        %3780 = vmatpush1.xpose.msra.mxu0 0.0
        %3781 = vmatprep.subr.mxu0 0.0
        %3782 = vmatpush1.xpose.msra.mxu0 0.0
        %3783 = vmatprep.subr.mxu0 0.0
        %3784 = vmatpush1.xpose.msra.mxu0 0.0
        %3785 = vmatprep.subr.mxu0 0.0
        %3786 = vmatpush1.xpose.msra.mxu0 0.0
        %3787 = vmatprep.subr.mxu0 0.0
        %3788 = vmatpush1.xpose.msra.mxu0 0.0
        %3789 = vmatprep.subr.mxu0 0.0
        %3790 = vmatpush1.xpose.msra.mxu0 0.0
        %3791 = vmatprep.subr.mxu0 0.0
        %3792 = vmatpush1.xpose.msra.mxu0 0.0
        %3793 = vmatprep.subr.mxu0 0.0
        %3794 = vmatpush1.xpose.msra.mxu0 0.0
        %3795 = vmatprep.subr.mxu0 0.0
        %3796 = vmatpush1.xpose.msra.mxu0 0.0
        %3797 = vmatprep.subr.mxu0 0.0
        %3798 = vmatpush1.xpose.msra.mxu0 0.0
        %3799 = vmatprep.subr.mxu0 0.0
        %3800 = vmatpush1.xpose.msra.mxu0 0.0
        %3801 = vmatprep.subr.mxu0 0.0
        %3802 = vmatpush1.xpose.msra.mxu0 0.0
        %3803 = vmatprep.subr.mxu0 0.0
        %3804 = vmatpush1.xpose.msra.mxu0 0.0
        %3805 = vmatprep.subr.mxu0 0.0
        %3806 = vmatpush1.xpose.msra.mxu0 0.0
        %3807 = vmatprep.subr.mxu0 0.0
        %3808 = vmatpush1.xpose.msra.mxu0 0.0
        %3809 = vmatprep.subr.mxu0 0.0
        %3810 = vmatpush1.xpose.msra.mxu0 0.0
        %3811 = vmatprep.subr.mxu0 0.0
        %3812 = vmatpush1.xpose.msra.mxu0 0.0
        %3813 = vmatprep.subr.mxu0 0.0
        %3814 = vmatpush1.xpose.msra.mxu0 0.0
        %3815 = vmatprep.subr.mxu0 0.0
        %3816 = vmatpush1.xpose.msra.mxu0 0.0
        %3817 = vmatprep.subr.mxu0 0.0
        %3818 = vmatpush1.xpose.msra.mxu0 0.0
        %3819 = vmatprep.subr.mxu0 0.0
        %3820 = vmatpush1.xpose.msra.mxu0 0.0
        %3821 = vmatprep.subr.mxu0 0.0
        %3822 = vmatpush1.xpose.msra.mxu0 0.0
        %3823 = vmatprep.subr.mxu0 0.0
        %3824 = vmatpush1.xpose.msra.mxu0 0.0
        %3825 = vmatprep.subr.mxu0 0.0
        %3826 = vmatpush1.xpose.msra.mxu0 0.0
        %3827 = vmatprep.subr.mxu0 0.0
        %3828 = vmatpush1.xpose.msra.mxu0 0.0
        %3829 = vmatprep.subr.mxu0 0.0
        %3830 = vmatpush1.xpose.msra.mxu0 0.0
        %3831 = vmatprep.mubr.f32.mxu0 0.0
        %3832 = vmatmul.mubr.f32.gmra.mrb[0].mxu0 %v3762
        %v3833 = vpop.f32.mrb[0].mxu0
        %v3834 = vadd.f32 0.0, %v3833
        %v3835 = vpop.f32.mrb[0].mxu0
        %3836 = vdwg.mxu0
        %v3838 = vsel %vm349, %v3608, 0
        %v3841 = vsel %vm349, %v3683, 0
        %3843 = vmatprep.subr.mxu0 0.0
        %3844 = vmatpush1.xpose.msra.mxu0 %v3841
        %3845 = vmatprep.subr.mxu0 0.0
        %3846 = vmatpush1.xpose.msra.mxu0 0.0
        %3847 = vmatprep.subr.mxu0 0.0
        %3848 = vmatpush1.xpose.msra.mxu0 0.0
        %3849 = vmatprep.subr.mxu0 0.0
        %3850 = vmatpush1.xpose.msra.mxu0 0.0
        %3851 = vmatprep.subr.mxu0 0.0
        %3852 = vmatpush1.xpose.msra.mxu0 0.0
        %3853 = vmatprep.subr.mxu0 0.0
        %3854 = vmatpush1.xpose.msra.mxu0 0.0
        %3855 = vmatprep.subr.mxu0 0.0
        %3856 = vmatpush1.xpose.msra.mxu0 0.0
        %3857 = vmatprep.subr.mxu0 0.0
        %3858 = vmatpush1.xpose.msra.mxu0 0.0
        %3859 = vmatprep.subr.mxu0 0.0
        %3860 = vmatpush1.xpose.msra.mxu0 0.0
        %3861 = vmatprep.subr.mxu0 0.0
        %3862 = vmatpush1.xpose.msra.mxu0 0.0
        %3863 = vmatprep.subr.mxu0 0.0
        %3864 = vmatpush1.xpose.msra.mxu0 0.0
        %3865 = vmatprep.subr.mxu0 0.0
        %3866 = vmatpush1.xpose.msra.mxu0 0.0
        %3867 = vmatprep.subr.mxu0 0.0
        %3868 = vmatpush1.xpose.msra.mxu0 0.0
        %3869 = vmatprep.subr.mxu0 0.0
        %3870 = vmatpush1.xpose.msra.mxu0 0.0
        %3871 = vmatprep.subr.mxu0 0.0
        %3872 = vmatpush1.xpose.msra.mxu0 0.0
        %3873 = vmatprep.subr.mxu0 0.0
        %3874 = vmatpush1.xpose.msra.mxu0 0.0
        %3875 = vmatprep.subr.mxu0 0.0
        %3876 = vmatpush1.xpose.msra.mxu0 0.0
        %3877 = vmatprep.subr.mxu0 0.0
        %3878 = vmatpush1.xpose.msra.mxu0 0.0
        %3879 = vmatprep.subr.mxu0 0.0
        %3880 = vmatpush1.xpose.msra.mxu0 0.0
        %3881 = vmatprep.subr.mxu0 0.0
        %3882 = vmatpush1.xpose.msra.mxu0 0.0
        %3883 = vmatprep.subr.mxu0 0.0
        %3884 = vmatpush1.xpose.msra.mxu0 0.0
        %3885 = vmatprep.subr.mxu0 0.0
        %3886 = vmatpush1.xpose.msra.mxu0 0.0
        %3887 = vmatprep.subr.mxu0 0.0
        %3888 = vmatpush1.xpose.msra.mxu0 0.0
        %3889 = vmatprep.subr.mxu0 0.0
        %3890 = vmatpush1.xpose.msra.mxu0 0.0
        %3891 = vmatprep.subr.mxu0 0.0
        %3892 = vmatpush1.xpose.msra.mxu0 0.0
        %3893 = vmatprep.subr.mxu0 0.0
        %3894 = vmatpush1.xpose.msra.mxu0 0.0
        %3895 = vmatprep.subr.mxu0 0.0
        %3896 = vmatpush1.xpose.msra.mxu0 0.0
        %3897 = vmatprep.subr.mxu0 0.0
        %3898 = vmatpush1.xpose.msra.mxu0 0.0
        %3899 = vmatprep.subr.mxu0 0.0
        %3900 = vmatpush1.xpose.msra.mxu0 0.0
        %3901 = vmatprep.subr.mxu0 0.0
        %3902 = vmatpush1.xpose.msra.mxu0 0.0
        %3903 = vmatprep.subr.mxu0 0.0
        %3904 = vmatpush1.xpose.msra.mxu0 0.0
        %3905 = vmatprep.subr.mxu0 0.0
        %3906 = vmatpush1.xpose.msra.mxu0 0.0
        %3907 = vmatprep.mubr.f32.mxu0 0.0
        %3908 = vmatmul.mubr.f32.gmra.mrb[0].mxu0 %v3838
        %v3909 = vpop.f32.mrb[0].mxu0
        %v3910 = vadd.f32 0.0, %v3909
        %v3911 = vpop.f32.mrb[0].mxu0
        %3912 = vdwg.mxu0
        %v3913 = vmul.f32 %v3834, 0.25
        %v3914 = vmul.f32 %v3910, 0.25
        %v3915 = vadd.f32 %v3913, %v165
        %v3916 = vadd.f32 %v3914, %v165
        %v3917 = vsel %vm929, %v3915, -inf
        %3918 = vmax.xlane.f32.xlu0 %v3917
        %v3919 = vpop.xlane.xlu0 %3918
        %v3920 = vsel %vm929, %v3916, -inf
        %3921 = vmax.xlane.f32.xlu0 %v3920
        %v3922 = vpop.xlane.xlu0 %3921
        %v3923 = vsub.f32 %v3915, %v3919
        %v3924 = vsub.f32 %v3916, %v3922
        %v3925 = vmul.f32 %v3923, 1.442695
        %v3926 = vpow.pop %v3925
        %v3927 = vmul.f32 %v3924, 1.442695
        %v3928 = vpow.pop %v3927
        %v3929 = vsel %vm929, %v3926, 0.0
        %3930 = vadd.xlane.f32.xlu0 %v3929
        %v3931 = vpop.xlane.xlu0 %3930
        %v3932 = vsel %vm929, %v3928, 0.0
        %3933 = vadd.xlane.f32.xlu0 %v3932
        %v3934 = vpop.xlane.xlu0 %3933
        %v3935 = vrcp.pop %v3931
        %v3936 = vrcp.pop %v3934
        %v3937 = vmul.f32 %v3926, %v3935
        %v3938 = vmul.f32 %v3928, %v3936
        %v3940 = vsel %vm929, %v3937, 0
        %3942 = vmatprep.subr.mxu0 0.0
        %3943 = vmatpush1.msra.mxu0 %v3753
        %3944 = vmatprep.subr.mxu0 0.0
        %3945 = vmatpush1.msra.mxu0 0.0
        %3946 = vmatprep.subr.mxu0 0.0
        %3947 = vmatpush1.msra.mxu0 0.0
        %3948 = vmatprep.subr.mxu0 0.0
        %3949 = vmatpush1.msra.mxu0 0.0
        %3950 = vmatprep.subr.mxu0 0.0
        %3951 = vmatpush1.msra.mxu0 0.0
        %3952 = vmatprep.subr.mxu0 0.0
        %3953 = vmatpush1.msra.mxu0 0.0
        %3954 = vmatprep.subr.mxu0 0.0
        %3955 = vmatpush1.msra.mxu0 0.0
        %3956 = vmatprep.subr.mxu0 0.0
        %3957 = vmatpush1.msra.mxu0 0.0
        %3958 = vmatprep.subr.mxu0 0.0
        %3959 = vmatpush1.msra.mxu0 0.0
        %3960 = vmatprep.subr.mxu0 0.0
        %3961 = vmatpush1.msra.mxu0 0.0
        %3962 = vmatprep.subr.mxu0 0.0
        %3963 = vmatpush1.msra.mxu0 0.0
        %3964 = vmatprep.subr.mxu0 0.0
        %3965 = vmatpush1.msra.mxu0 0.0
        %3966 = vmatprep.subr.mxu0 0.0
        %3967 = vmatpush1.msra.mxu0 0.0
        %3968 = vmatprep.subr.mxu0 0.0
        %3969 = vmatpush1.msra.mxu0 0.0
        %3970 = vmatprep.subr.mxu0 0.0
        %3971 = vmatpush1.msra.mxu0 0.0
        %3972 = vmatprep.subr.mxu0 0.0
        %3973 = vmatpush1.msra.mxu0 0.0
        %3974 = vmatprep.subr.mxu0 0.0
        %3975 = vmatpush1.msra.mxu0 0.0
        %3976 = vmatprep.subr.mxu0 0.0
        %3977 = vmatpush1.msra.mxu0 0.0
        %3978 = vmatprep.subr.mxu0 0.0
        %3979 = vmatpush1.msra.mxu0 0.0
        %3980 = vmatprep.subr.mxu0 0.0
        %3981 = vmatpush1.msra.mxu0 0.0
        %3982 = vmatprep.subr.mxu0 0.0
        %3983 = vmatpush1.msra.mxu0 0.0
        %3984 = vmatprep.subr.mxu0 0.0
        %3985 = vmatpush1.msra.mxu0 0.0
        %3986 = vmatprep.subr.mxu0 0.0
        %3987 = vmatpush1.msra.mxu0 0.0
        %3988 = vmatprep.subr.mxu0 0.0
        %3989 = vmatpush1.msra.mxu0 0.0
        %3990 = vmatprep.subr.mxu0 0.0
        %3991 = vmatpush1.msra.mxu0 0.0
        %3992 = vmatprep.subr.mxu0 0.0
        %3993 = vmatpush1.msra.mxu0 0.0
        %3994 = vmatprep.subr.mxu0 0.0
        %3995 = vmatpush1.msra.mxu0 0.0
        %3996 = vmatprep.subr.mxu0 0.0
        %3997 = vmatpush1.msra.mxu0 0.0
        %3998 = vmatprep.subr.mxu0 0.0
        %3999 = vmatpush1.msra.mxu0 0.0
        %4000 = vmatprep.subr.mxu0 0.0
        %4001 = vmatpush1.msra.mxu0 0.0
        %4002 = vmatprep.subr.mxu0 0.0
        %4003 = vmatpush1.msra.mxu0 0.0
        %4004 = vmatprep.subr.mxu0 0.0
        %4005 = vmatpush1.msra.mxu0 0.0
        %4006 = vmatprep.mubr.f32.mxu0 0.0
        %4007 = vmatmul.mubr.f32.gmra.mrb[0].mxu0 %v3940
        %v4008 = vpop.f32.mrb[0].mxu0
        %v4009 = vadd.f32 0.0, %v4008
        %v4010 = vpop.f32.mrb[0].mxu0
        %4011 = vdwg.mxu0
        %v4013 = vsel %vm929, %v3938, 0
        %4015 = vmatprep.subr.mxu0 0.0
        %4016 = vmatpush1.msra.mxu0 %v3758
        %4017 = vmatprep.subr.mxu0 0.0
        %4018 = vmatpush1.msra.mxu0 0.0
        %4019 = vmatprep.subr.mxu0 0.0
        %4020 = vmatpush1.msra.mxu0 0.0
        %4021 = vmatprep.subr.mxu0 0.0
        %4022 = vmatpush1.msra.mxu0 0.0
        %4023 = vmatprep.subr.mxu0 0.0
        %4024 = vmatpush1.msra.mxu0 0.0
        %4025 = vmatprep.subr.mxu0 0.0
        %4026 = vmatpush1.msra.mxu0 0.0
        %4027 = vmatprep.subr.mxu0 0.0
        %4028 = vmatpush1.msra.mxu0 0.0
        %4029 = vmatprep.subr.mxu0 0.0
        %4030 = vmatpush1.msra.mxu0 0.0
        %4031 = vmatprep.subr.mxu0 0.0
        %4032 = vmatpush1.msra.mxu0 0.0
        %4033 = vmatprep.subr.mxu0 0.0
        %4034 = vmatpush1.msra.mxu0 0.0
        %4035 = vmatprep.subr.mxu0 0.0
        %4036 = vmatpush1.msra.mxu0 0.0
        %4037 = vmatprep.subr.mxu0 0.0
        %4038 = vmatpush1.msra.mxu0 0.0
        %4039 = vmatprep.subr.mxu0 0.0
        %4040 = vmatpush1.msra.mxu0 0.0
        %4041 = vmatprep.subr.mxu0 0.0
        %4042 = vmatpush1.msra.mxu0 0.0
        %4043 = vmatprep.subr.mxu0 0.0
        %4044 = vmatpush1.msra.mxu0 0.0
        %4045 = vmatprep.subr.mxu0 0.0
        %4046 = vmatpush1.msra.mxu0 0.0
        %4047 = vmatprep.subr.mxu0 0.0
        %4048 = vmatpush1.msra.mxu0 0.0
        %4049 = vmatprep.subr.mxu0 0.0
        %4050 = vmatpush1.msra.mxu0 0.0
        %4051 = vmatprep.subr.mxu0 0.0
        %4052 = vmatpush1.msra.mxu0 0.0
        %4053 = vmatprep.subr.mxu0 0.0
        %4054 = vmatpush1.msra.mxu0 0.0
        %4055 = vmatprep.subr.mxu0 0.0
        %4056 = vmatpush1.msra.mxu0 0.0
        %4057 = vmatprep.subr.mxu0 0.0
        %4058 = vmatpush1.msra.mxu0 0.0
        %4059 = vmatprep.subr.mxu0 0.0
        %4060 = vmatpush1.msra.mxu0 0.0
        %4061 = vmatprep.subr.mxu0 0.0
        %4062 = vmatpush1.msra.mxu0 0.0
        %4063 = vmatprep.subr.mxu0 0.0
        %4064 = vmatpush1.msra.mxu0 0.0
        %4065 = vmatprep.subr.mxu0 0.0
        %4066 = vmatpush1.msra.mxu0 0.0
        %4067 = vmatprep.subr.mxu0 0.0
        %4068 = vmatpush1.msra.mxu0 0.0
        %4069 = vmatprep.subr.mxu0 0.0
        %4070 = vmatpush1.msra.mxu0 0.0
        %4071 = vmatprep.subr.mxu0 0.0
        %4072 = vmatpush1.msra.mxu0 0.0
        %4073 = vmatprep.subr.mxu0 0.0
        %4074 = vmatpush1.msra.mxu0 0.0
        %4075 = vmatprep.subr.mxu0 0.0
        %4076 = vmatpush1.msra.mxu0 0.0
        %4077 = vmatprep.subr.mxu0 0.0
        %4078 = vmatpush1.msra.mxu0 0.0
        %4079 = vmatprep.mubr.f32.mxu0 0.0
        %4080 = vmatmul.mubr.f32.gmra.mrb[0].mxu0 %v4013
        %v4081 = vpop.f32.mrb[0].mxu0
        %v4082 = vadd.f32 0.0, %v4081
        %v4083 = vpop.f32.mrb[0].mxu0
        %4084 = vdwg.mxu0
        %v4085 = vld [vmem:[#allocation2 + $0x10a0] sm:$0xff]
        %v4086 = vld [vmem:[#allocation2 + $0x10b0] sm:$0xff]
        %v4087 = vld [vmem:[#allocation2 + $0xaf0] sm:$0xff]
        %v4088 = vld [vmem:[#allocation2 + $0xb00] sm:$0xff]
        %v4089 = vld [vmem:[#allocation2 + $0xb10] sm:$0xff]
        %v4090 = vld [vmem:[#allocation2 + $0xb20] sm:$0xff]
        %v4091 = vld [vmem:[#allocation2 + $0xb30] sm:$0xff]
        %v4092 = vld [vmem:[#allocation2 + $0xb40] sm:$0xff]
        %v4093 = vld [vmem:[#allocation2 + $0xb50] sm:$0xff]
        %v4094 = vld [vmem:[#allocation2 + $0xb60] sm:$0xff]
        %v4095 = vld [vmem:[#allocation2 + $0xd00] sm:$0xff]
        %v4096 = vld [vmem:[#allocation2 + $0xd10] sm:$0xff]
        %v4097 = vld [vmem:[#allocation2 + $0xd20] sm:$0xff]
        %v4098 = vld [vmem:[#allocation2 + $0xd30] sm:$0xff]
        %v4099 = vld [vmem:[#allocation2 + $0xd40] sm:$0xff]
        %v4100 = vld [vmem:[#allocation2 + $0xd50] sm:$0xff]
        %v4101 = vld [vmem:[#allocation2 + $0xd60] sm:$0xff]
        %v4102 = vld [vmem:[#allocation2 + $0xd70] sm:$0xff]
        %v4103 = vld [vmem:[#allocation2 + $0xf10] sm:$0xff]
        %v4104 = vld [vmem:[#allocation2 + $0xf20] sm:$0xff]
        %v4105 = vld [vmem:[#allocation2 + $0xf30] sm:$0xff]
        %v4106 = vld [vmem:[#allocation2 + $0xf40] sm:$0xff]
        %v4107 = vld [vmem:[#allocation2 + $0xf50] sm:$0xff]
        %v4108 = vld [vmem:[#allocation2 + $0xf60] sm:$0xff]
        %v4109 = vld [vmem:[#allocation2 + $0xf70] sm:$0xff]
        %v4110 = vld [vmem:[#allocation2 + $0xf80] sm:$0xff]
        %v4111 = vld [vmem:[#allocation2 + $0xc71] ss:$0 sm:$0xff]
        %v4112 = vld [vmem:[#allocation2 + $0xe81] ss:$0 sm:$0xff]
        %v4113 = vld [vmem:[#allocation2 + $0x1091] ss:$0 sm:$0xff]
        %4114 = vmatprep.subr.mxu0 0.0
        %4115 = vmatpush1.msra.mxu0 %v4087
        %4116 = vmatprep.subr.mxu0 0.0
        %4117 = vmatpush1.msra.mxu0 %v4088
        %4118 = vmatprep.subr.mxu0 0.0
        %4119 = vmatpush1.msra.mxu0 %v4089
        %4120 = vmatprep.subr.mxu0 0.0
        %4121 = vmatpush1.msra.mxu0 %v4090
        %4122 = vmatprep.subr.mxu0 0.0
        %4123 = vmatpush1.msra.mxu0 %v4091
        %4124 = vmatprep.subr.mxu0 0.0
        %4125 = vmatpush1.msra.mxu0 %v4092
        %4126 = vmatprep.subr.mxu0 0.0
        %4127 = vmatpush1.msra.mxu0 %v4093
        %4128 = vmatprep.subr.mxu0 0.0
        %4129 = vmatpush1.msra.mxu0 %v4094
        %4130 = vmatprep.subr.mxu0 0.0
        %4131 = vmatpush1.msra.mxu0 0.0
        %4132 = vmatprep.subr.mxu0 0.0
        %4133 = vmatpush1.msra.mxu0 0.0
        %4134 = vmatprep.subr.mxu0 0.0
        %4135 = vmatpush1.msra.mxu0 0.0
        %4136 = vmatprep.subr.mxu0 0.0
        %4137 = vmatpush1.msra.mxu0 0.0
        %4138 = vmatprep.subr.mxu0 0.0
        %4139 = vmatpush1.msra.mxu0 0.0
        %4140 = vmatprep.subr.mxu0 0.0
        %4141 = vmatpush1.msra.mxu0 0.0
        %4142 = vmatprep.subr.mxu0 0.0
        %4143 = vmatpush1.msra.mxu0 0.0
        %4144 = vmatprep.subr.mxu0 0.0
        %4145 = vmatpush1.msra.mxu0 0.0
        %4146 = vmatprep.subr.mxu0 0.0
        %4147 = vmatpush1.msra.mxu0 0.0
        %4148 = vmatprep.subr.mxu0 0.0
        %4149 = vmatpush1.msra.mxu0 0.0
        %4150 = vmatprep.subr.mxu0 0.0
        %4151 = vmatpush1.msra.mxu0 0.0
        %4152 = vmatprep.subr.mxu0 0.0
        %4153 = vmatpush1.msra.mxu0 0.0
        %4154 = vmatprep.subr.mxu0 0.0
        %4155 = vmatpush1.msra.mxu0 0.0
        %4156 = vmatprep.subr.mxu0 0.0
        %4157 = vmatpush1.msra.mxu0 0.0
        %4158 = vmatprep.subr.mxu0 0.0
        %4159 = vmatpush1.msra.mxu0 0.0
        %4160 = vmatprep.subr.mxu0 0.0
        %4161 = vmatpush1.msra.mxu0 0.0
        %4162 = vmatprep.subr.mxu0 0.0
        %4163 = vmatpush1.msra.mxu0 0.0
        %4164 = vmatprep.subr.mxu0 0.0
        %4165 = vmatpush1.msra.mxu0 0.0
        %4166 = vmatprep.subr.mxu0 0.0
        %4167 = vmatpush1.msra.mxu0 0.0
        %4168 = vmatprep.subr.mxu0 0.0
        %4169 = vmatpush1.msra.mxu0 0.0
        %4170 = vmatprep.subr.mxu0 0.0
        %4171 = vmatpush1.msra.mxu0 0.0
        %4172 = vmatprep.subr.mxu0 0.0
        %4173 = vmatpush1.msra.mxu0 0.0
        %4174 = vmatprep.subr.mxu0 0.0
        %4175 = vmatpush1.msra.mxu0 0.0
        %4176 = vmatprep.subr.mxu0 0.0
        %4177 = vmatpush1.msra.mxu0 0.0
        %4178 = vmatprep.mubr.f32.mxu0 0.0
        %4179 = vmatmul.mubr.f32.gmra.mrb[0].mxu0 %v3531
        %v4180 = vpop.f32.mrb[0].mxu0
        %v4181 = vadd.f32 %v4111, %v4180
        %v4182 = vpop.f32.mrb[0].mxu0
        %4183 = vmatprep.mubr.f32.mxu0 0.0
        %4184 = vmatmul.mubr.f32.gmra.mrb[0].mxu0 %v3534
        %v4185 = vpop.f32.mrb[0].mxu0
        %v4186 = vadd.f32 %v4111, %v4185
        %v4187 = vpop.f32.mrb[0].mxu0
        %4188 = vdwg.mxu0
        %4189 = vmatprep.subr.mxu0 0.0
        %4190 = vmatpush1.msra.mxu0 %v4095
        %4191 = vmatprep.subr.mxu0 0.0
        %4192 = vmatpush1.msra.mxu0 %v4096
        %4193 = vmatprep.subr.mxu0 0.0
        %4194 = vmatpush1.msra.mxu0 %v4097
        %4195 = vmatprep.subr.mxu0 0.0
        %4196 = vmatpush1.msra.mxu0 %v4098
        %4197 = vmatprep.subr.mxu0 0.0
        %4198 = vmatpush1.msra.mxu0 %v4099
        %4199 = vmatprep.subr.mxu0 0.0
        %4200 = vmatpush1.msra.mxu0 %v4100
        %4201 = vmatprep.subr.mxu0 0.0
        %4202 = vmatpush1.msra.mxu0 %v4101
        %4203 = vmatprep.subr.mxu0 0.0
        %4204 = vmatpush1.msra.mxu0 %v4102
        %4205 = vmatprep.subr.mxu0 0.0
        %4206 = vmatpush1.msra.mxu0 0.0
        %4207 = vmatprep.subr.mxu0 0.0
        %4208 = vmatpush1.msra.mxu0 0.0
        %4209 = vmatprep.subr.mxu0 0.0
        %4210 = vmatpush1.msra.mxu0 0.0
        %4211 = vmatprep.subr.mxu0 0.0
        %4212 = vmatpush1.msra.mxu0 0.0
        %4213 = vmatprep.subr.mxu0 0.0
        %4214 = vmatpush1.msra.mxu0 0.0
        %4215 = vmatprep.subr.mxu0 0.0
        %4216 = vmatpush1.msra.mxu0 0.0
        %4217 = vmatprep.subr.mxu0 0.0
        %4218 = vmatpush1.msra.mxu0 0.0
        %4219 = vmatprep.subr.mxu0 0.0
        %4220 = vmatpush1.msra.mxu0 0.0
        %4221 = vmatprep.subr.mxu0 0.0
        %4222 = vmatpush1.msra.mxu0 0.0
        %4223 = vmatprep.subr.mxu0 0.0
        %4224 = vmatpush1.msra.mxu0 0.0
        %4225 = vmatprep.subr.mxu0 0.0
        %4226 = vmatpush1.msra.mxu0 0.0
        %4227 = vmatprep.subr.mxu0 0.0
        %4228 = vmatpush1.msra.mxu0 0.0
        %4229 = vmatprep.subr.mxu0 0.0
        %4230 = vmatpush1.msra.mxu0 0.0
        %4231 = vmatprep.subr.mxu0 0.0
        %4232 = vmatpush1.msra.mxu0 0.0
        %4233 = vmatprep.subr.mxu0 0.0
        %4234 = vmatpush1.msra.mxu0 0.0
        %4235 = vmatprep.subr.mxu0 0.0
        %4236 = vmatpush1.msra.mxu0 0.0
        %4237 = vmatprep.subr.mxu0 0.0
        %4238 = vmatpush1.msra.mxu0 0.0
        %4239 = vmatprep.subr.mxu0 0.0
        %4240 = vmatpush1.msra.mxu0 0.0
        %4241 = vmatprep.subr.mxu0 0.0
        %4242 = vmatpush1.msra.mxu0 0.0
        %4243 = vmatprep.subr.mxu0 0.0
        %4244 = vmatpush1.msra.mxu0 0.0
        %4245 = vmatprep.subr.mxu0 0.0
        %4246 = vmatpush1.msra.mxu0 0.0
        %4247 = vmatprep.subr.mxu0 0.0
        %4248 = vmatpush1.msra.mxu0 0.0
        %4249 = vmatprep.subr.mxu0 0.0
        %4250 = vmatpush1.msra.mxu0 0.0
        %4251 = vmatprep.subr.mxu0 0.0
        %4252 = vmatpush1.msra.mxu0 0.0
        %4253 = vmatprep.mubr.f32.mxu0 0.0
        %4254 = vmatmul.mubr.f32.gmra.mrb[0].mxu0 %v3531
        %v4255 = vpop.f32.mrb[0].mxu0
        %v4256 = vadd.f32 %v4112, %v4255
        %v4257 = vpop.f32.mrb[0].mxu0
        %4258 = vmatprep.mubr.f32.mxu0 0.0
        %4259 = vmatmul.mubr.f32.gmra.mrb[0].mxu0 %v3534
        %v4260 = vpop.f32.mrb[0].mxu0
        %v4261 = vadd.f32 %v4112, %v4260
        %v4262 = vpop.f32.mrb[0].mxu0
        %4263 = vdwg.mxu0
        %4264 = vmatprep.subr.mxu0 0.0
        %4265 = vmatpush1.msra.mxu0 %v4103
        %4266 = vmatprep.subr.mxu0 0.0
        %4267 = vmatpush1.msra.mxu0 %v4104
        %4268 = vmatprep.subr.mxu0 0.0
        %4269 = vmatpush1.msra.mxu0 %v4105
        %4270 = vmatprep.subr.mxu0 0.0
        %4271 = vmatpush1.msra.mxu0 %v4106
        %4272 = vmatprep.subr.mxu0 0.0
        %4273 = vmatpush1.msra.mxu0 %v4107
        %4274 = vmatprep.subr.mxu0 0.0
        %4275 = vmatpush1.msra.mxu0 %v4108
        %4276 = vmatprep.subr.mxu0 0.0
        %4277 = vmatpush1.msra.mxu0 %v4109
        %4278 = vmatprep.subr.mxu0 0.0
        %4279 = vmatpush1.msra.mxu0 %v4110
        %4280 = vmatprep.subr.mxu0 0.0
        %4281 = vmatpush1.msra.mxu0 0.0
        %4282 = vmatprep.subr.mxu0 0.0
        %4283 = vmatpush1.msra.mxu0 0.0
        %4284 = vmatprep.subr.mxu0 0.0
        %4285 = vmatpush1.msra.mxu0 0.0
        %4286 = vmatprep.subr.mxu0 0.0
        %4287 = vmatpush1.msra.mxu0 0.0
        %4288 = vmatprep.subr.mxu0 0.0
        %4289 = vmatpush1.msra.mxu0 0.0
        %4290 = vmatprep.subr.mxu0 0.0
        %4291 = vmatpush1.msra.mxu0 0.0
        %4292 = vmatprep.subr.mxu0 0.0
        %4293 = vmatpush1.msra.mxu0 0.0
        %4294 = vmatprep.subr.mxu0 0.0
        %4295 = vmatpush1.msra.mxu0 0.0
        %4296 = vmatprep.subr.mxu0 0.0
        %4297 = vmatpush1.msra.mxu0 0.0
        %4298 = vmatprep.subr.mxu0 0.0
        %4299 = vmatpush1.msra.mxu0 0.0
        %4300 = vmatprep.subr.mxu0 0.0
        %4301 = vmatpush1.msra.mxu0 0.0
        %4302 = vmatprep.subr.mxu0 0.0
        %4303 = vmatpush1.msra.mxu0 0.0
        %4304 = vmatprep.subr.mxu0 0.0
        %4305 = vmatpush1.msra.mxu0 0.0
        %4306 = vmatprep.subr.mxu0 0.0
        %4307 = vmatpush1.msra.mxu0 0.0
        %4308 = vmatprep.subr.mxu0 0.0
        %4309 = vmatpush1.msra.mxu0 0.0
        %4310 = vmatprep.subr.mxu0 0.0
        %4311 = vmatpush1.msra.mxu0 0.0
        %4312 = vmatprep.subr.mxu0 0.0
        %4313 = vmatpush1.msra.mxu0 0.0
        %4314 = vmatprep.subr.mxu0 0.0
        %4315 = vmatpush1.msra.mxu0 0.0
        %4316 = vmatprep.subr.mxu0 0.0
        %4317 = vmatpush1.msra.mxu0 0.0
        %4318 = vmatprep.subr.mxu0 0.0
        %4319 = vmatpush1.msra.mxu0 0.0
        %4320 = vmatprep.subr.mxu0 0.0
        %4321 = vmatpush1.msra.mxu0 0.0
        %4322 = vmatprep.subr.mxu0 0.0
        %4323 = vmatpush1.msra.mxu0 0.0
        %4324 = vmatprep.subr.mxu0 0.0
        %4325 = vmatpush1.msra.mxu0 0.0
        %4326 = vmatprep.subr.mxu0 0.0
        %4327 = vmatpush1.msra.mxu0 0.0
        %4328 = vmatprep.mubr.f32.mxu0 0.0
        %4329 = vmatmul.mubr.f32.gmra.mrb[0].mxu0 %v3531
        %v4330 = vpop.f32.mrb[0].mxu0
        %v4331 = vadd.f32 %v4113, %v4330
        %v4332 = vpop.f32.mrb[0].mxu0
        %4333 = vmatprep.mubr.f32.mxu0 0.0
        %4334 = vmatmul.mubr.f32.gmra.mrb[0].mxu0 %v3534
        %v4335 = vpop.f32.mrb[0].mxu0
        %v4336 = vadd.f32 %v4113, %v4335
        %v4337 = vpop.f32.mrb[0].mxu0
        %4338 = vdwg.mxu0
        %v4340 = vsel %vm349, %v4181, 0
        %v4343 = vsel %vm349, %v4256, 0
        %4345 = vmatprep.subr.mxu0 0.0
        %4346 = vmatpush1.xpose.msra.mxu0 %v4343
        %4347 = vmatprep.subr.mxu0 0.0
        %4348 = vmatpush1.xpose.msra.mxu0 0.0
        %4349 = vmatprep.subr.mxu0 0.0
        %4350 = vmatpush1.xpose.msra.mxu0 0.0
        %4351 = vmatprep.subr.mxu0 0.0
        %4352 = vmatpush1.xpose.msra.mxu0 0.0
        %4353 = vmatprep.subr.mxu0 0.0
        %4354 = vmatpush1.xpose.msra.mxu0 0.0
        %4355 = vmatprep.subr.mxu0 0.0
        %4356 = vmatpush1.xpose.msra.mxu0 0.0
        %4357 = vmatprep.subr.mxu0 0.0
        %4358 = vmatpush1.xpose.msra.mxu0 0.0
        %4359 = vmatprep.subr.mxu0 0.0
        %4360 = vmatpush1.xpose.msra.mxu0 0.0
        %4361 = vmatprep.subr.mxu0 0.0
        %4362 = vmatpush1.xpose.msra.mxu0 0.0
        %4363 = vmatprep.subr.mxu0 0.0
        %4364 = vmatpush1.xpose.msra.mxu0 0.0
        %4365 = vmatprep.subr.mxu0 0.0
        %4366 = vmatpush1.xpose.msra.mxu0 0.0
        %4367 = vmatprep.subr.mxu0 0.0
        %4368 = vmatpush1.xpose.msra.mxu0 0.0
        %4369 = vmatprep.subr.mxu0 0.0
        %4370 = vmatpush1.xpose.msra.mxu0 0.0
        %4371 = vmatprep.subr.mxu0 0.0
        %4372 = vmatpush1.xpose.msra.mxu0 0.0
        %4373 = vmatprep.subr.mxu0 0.0
        %4374 = vmatpush1.xpose.msra.mxu0 0.0
        %4375 = vmatprep.subr.mxu0 0.0
        %4376 = vmatpush1.xpose.msra.mxu0 0.0
        %4377 = vmatprep.subr.mxu0 0.0
        %4378 = vmatpush1.xpose.msra.mxu0 0.0
        %4379 = vmatprep.subr.mxu0 0.0
        %4380 = vmatpush1.xpose.msra.mxu0 0.0
        %4381 = vmatprep.subr.mxu0 0.0
        %4382 = vmatpush1.xpose.msra.mxu0 0.0
        %4383 = vmatprep.subr.mxu0 0.0
        %4384 = vmatpush1.xpose.msra.mxu0 0.0
        %4385 = vmatprep.subr.mxu0 0.0
        %4386 = vmatpush1.xpose.msra.mxu0 0.0
        %4387 = vmatprep.subr.mxu0 0.0
        %4388 = vmatpush1.xpose.msra.mxu0 0.0
        %4389 = vmatprep.subr.mxu0 0.0
        %4390 = vmatpush1.xpose.msra.mxu0 0.0
        %4391 = vmatprep.subr.mxu0 0.0
        %4392 = vmatpush1.xpose.msra.mxu0 0.0
        %4393 = vmatprep.subr.mxu0 0.0
        %4394 = vmatpush1.xpose.msra.mxu0 0.0
        %4395 = vmatprep.subr.mxu0 0.0
        %4396 = vmatpush1.xpose.msra.mxu0 0.0
        %4397 = vmatprep.subr.mxu0 0.0
        %4398 = vmatpush1.xpose.msra.mxu0 0.0
        %4399 = vmatprep.subr.mxu0 0.0
        %4400 = vmatpush1.xpose.msra.mxu0 0.0
        %4401 = vmatprep.subr.mxu0 0.0
        %4402 = vmatpush1.xpose.msra.mxu0 0.0
        %4403 = vmatprep.subr.mxu0 0.0
        %4404 = vmatpush1.xpose.msra.mxu0 0.0
        %4405 = vmatprep.subr.mxu0 0.0
        %4406 = vmatpush1.xpose.msra.mxu0 0.0
        %4407 = vmatprep.subr.mxu0 0.0
        %4408 = vmatpush1.xpose.msra.mxu0 0.0
        %4409 = vmatprep.mubr.f32.mxu0 0.0
        %4410 = vmatmul.mubr.f32.gmra.mrb[0].mxu0 %v4340
        %v4411 = vpop.f32.mrb[0].mxu0
        %v4412 = vadd.f32 0.0, %v4411
        %v4413 = vpop.f32.mrb[0].mxu0
        %4414 = vdwg.mxu0
        %v4416 = vsel %vm349, %v4186, 0
        %v4419 = vsel %vm349, %v4261, 0
        %4421 = vmatprep.subr.mxu0 0.0
        %4422 = vmatpush1.xpose.msra.mxu0 %v4419
        %4423 = vmatprep.subr.mxu0 0.0
        %4424 = vmatpush1.xpose.msra.mxu0 0.0
        %4425 = vmatprep.subr.mxu0 0.0
        %4426 = vmatpush1.xpose.msra.mxu0 0.0
        %4427 = vmatprep.subr.mxu0 0.0
        %4428 = vmatpush1.xpose.msra.mxu0 0.0
        %4429 = vmatprep.subr.mxu0 0.0
        %4430 = vmatpush1.xpose.msra.mxu0 0.0
        %4431 = vmatprep.subr.mxu0 0.0
        %4432 = vmatpush1.xpose.msra.mxu0 0.0
        %4433 = vmatprep.subr.mxu0 0.0
        %4434 = vmatpush1.xpose.msra.mxu0 0.0
        %4435 = vmatprep.subr.mxu0 0.0
        %4436 = vmatpush1.xpose.msra.mxu0 0.0
        %4437 = vmatprep.subr.mxu0 0.0
        %4438 = vmatpush1.xpose.msra.mxu0 0.0
        %4439 = vmatprep.subr.mxu0 0.0
        %4440 = vmatpush1.xpose.msra.mxu0 0.0
        %4441 = vmatprep.subr.mxu0 0.0
        %4442 = vmatpush1.xpose.msra.mxu0 0.0
        %4443 = vmatprep.subr.mxu0 0.0
        %4444 = vmatpush1.xpose.msra.mxu0 0.0
        %4445 = vmatprep.subr.mxu0 0.0
        %4446 = vmatpush1.xpose.msra.mxu0 0.0
        %4447 = vmatprep.subr.mxu0 0.0
        %4448 = vmatpush1.xpose.msra.mxu0 0.0
        %4449 = vmatprep.subr.mxu0 0.0
        %4450 = vmatpush1.xpose.msra.mxu0 0.0
        %4451 = vmatprep.subr.mxu0 0.0
        %4452 = vmatpush1.xpose.msra.mxu0 0.0
        %4453 = vmatprep.subr.mxu0 0.0
        %4454 = vmatpush1.xpose.msra.mxu0 0.0
        %4455 = vmatprep.subr.mxu0 0.0
        %4456 = vmatpush1.xpose.msra.mxu0 0.0
        %4457 = vmatprep.subr.mxu0 0.0
        %4458 = vmatpush1.xpose.msra.mxu0 0.0
        %4459 = vmatprep.subr.mxu0 0.0
        %4460 = vmatpush1.xpose.msra.mxu0 0.0
        %4461 = vmatprep.subr.mxu0 0.0
        %4462 = vmatpush1.xpose.msra.mxu0 0.0
        %4463 = vmatprep.subr.mxu0 0.0
        %4464 = vmatpush1.xpose.msra.mxu0 0.0
        %4465 = vmatprep.subr.mxu0 0.0
        %4466 = vmatpush1.xpose.msra.mxu0 0.0
        %4467 = vmatprep.subr.mxu0 0.0
        %4468 = vmatpush1.xpose.msra.mxu0 0.0
        %4469 = vmatprep.subr.mxu0 0.0
        %4470 = vmatpush1.xpose.msra.mxu0 0.0
        %4471 = vmatprep.subr.mxu0 0.0
        %4472 = vmatpush1.xpose.msra.mxu0 0.0
        %4473 = vmatprep.subr.mxu0 0.0
        %4474 = vmatpush1.xpose.msra.mxu0 0.0
        %4475 = vmatprep.subr.mxu0 0.0
        %4476 = vmatpush1.xpose.msra.mxu0 0.0
        %4477 = vmatprep.subr.mxu0 0.0
        %4478 = vmatpush1.xpose.msra.mxu0 0.0
        %4479 = vmatprep.subr.mxu0 0.0
        %4480 = vmatpush1.xpose.msra.mxu0 0.0
        %4481 = vmatprep.subr.mxu0 0.0
        %4482 = vmatpush1.xpose.msra.mxu0 0.0
        %4483 = vmatprep.subr.mxu0 0.0
        %4484 = vmatpush1.xpose.msra.mxu0 0.0
        %4485 = vmatprep.mubr.f32.mxu0 0.0
        %4486 = vmatmul.mubr.f32.gmra.mrb[0].mxu0 %v4416
        %v4487 = vpop.f32.mrb[0].mxu0
        %v4488 = vadd.f32 0.0, %v4487
        %v4489 = vpop.f32.mrb[0].mxu0
        %4490 = vdwg.mxu0
        %v4491 = vmul.f32 %v4412, 0.25
        %v4492 = vmul.f32 %v4488, 0.25
        %v4493 = vadd.f32 %v4491, %v165
        %v4494 = vadd.f32 %v4492, %v165
        %v4495 = vsel %vm929, %v4493, -inf
        %4496 = vmax.xlane.f32.xlu0 %v4495
        %v4497 = vpop.xlane.xlu0 %4496
        %v4498 = vsel %vm929, %v4494, -inf
        %4499 = vmax.xlane.f32.xlu0 %v4498
        %v4500 = vpop.xlane.xlu0 %4499
        %v4501 = vsub.f32 %v4493, %v4497
        %v4502 = vsub.f32 %v4494, %v4500
        %v4503 = vmul.f32 %v4501, 1.442695
        %v4504 = vpow.pop %v4503
        %v4505 = vmul.f32 %v4502, 1.442695
        %v4506 = vpow.pop %v4505
        %v4507 = vsel %vm929, %v4504, 0.0
        %4508 = vadd.xlane.f32.xlu0 %v4507
        %v4509 = vpop.xlane.xlu0 %4508
        %v4510 = vsel %vm929, %v4506, 0.0
        %4511 = vadd.xlane.f32.xlu0 %v4510
        %v4512 = vpop.xlane.xlu0 %4511
        %v4513 = vrcp.pop %v4509
        %v4514 = vrcp.pop %v4512
        %v4515 = vmul.f32 %v4504, %v4513
        %v4516 = vmul.f32 %v4506, %v4514
        %v4518 = vsel %vm929, %v4515, 0
        %4520 = vmatprep.subr.mxu0 0.0
        %4521 = vmatpush1.msra.mxu0 %v4331
        %4522 = vmatprep.subr.mxu0 0.0
        %4523 = vmatpush1.msra.mxu0 0.0
        %4524 = vmatprep.subr.mxu0 0.0
        %4525 = vmatpush1.msra.mxu0 0.0
        %4526 = vmatprep.subr.mxu0 0.0
        %4527 = vmatpush1.msra.mxu0 0.0
        %4528 = vmatprep.subr.mxu0 0.0
        %4529 = vmatpush1.msra.mxu0 0.0
        %4530 = vmatprep.subr.mxu0 0.0
        %4531 = vmatpush1.msra.mxu0 0.0
        %4532 = vmatprep.subr.mxu0 0.0
        %4533 = vmatpush1.msra.mxu0 0.0
        %4534 = vmatprep.subr.mxu0 0.0
        %4535 = vmatpush1.msra.mxu0 0.0
        %4536 = vmatprep.subr.mxu0 0.0
        %4537 = vmatpush1.msra.mxu0 0.0
        %4538 = vmatprep.subr.mxu0 0.0
        %4539 = vmatpush1.msra.mxu0 0.0
        %4540 = vmatprep.subr.mxu0 0.0
        %4541 = vmatpush1.msra.mxu0 0.0
        %4542 = vmatprep.subr.mxu0 0.0
        %4543 = vmatpush1.msra.mxu0 0.0
        %4544 = vmatprep.subr.mxu0 0.0
        %4545 = vmatpush1.msra.mxu0 0.0
        %4546 = vmatprep.subr.mxu0 0.0
        %4547 = vmatpush1.msra.mxu0 0.0
        %4548 = vmatprep.subr.mxu0 0.0
        %4549 = vmatpush1.msra.mxu0 0.0
        %4550 = vmatprep.subr.mxu0 0.0
        %4551 = vmatpush1.msra.mxu0 0.0
        %4552 = vmatprep.subr.mxu0 0.0
        %4553 = vmatpush1.msra.mxu0 0.0
        %4554 = vmatprep.subr.mxu0 0.0
        %4555 = vmatpush1.msra.mxu0 0.0
        %4556 = vmatprep.subr.mxu0 0.0
        %4557 = vmatpush1.msra.mxu0 0.0
        %4558 = vmatprep.subr.mxu0 0.0
        %4559 = vmatpush1.msra.mxu0 0.0
        %4560 = vmatprep.subr.mxu0 0.0
        %4561 = vmatpush1.msra.mxu0 0.0
        %4562 = vmatprep.subr.mxu0 0.0
        %4563 = vmatpush1.msra.mxu0 0.0
        %4564 = vmatprep.subr.mxu0 0.0
        %4565 = vmatpush1.msra.mxu0 0.0
        %4566 = vmatprep.subr.mxu0 0.0
        %4567 = vmatpush1.msra.mxu0 0.0
        %4568 = vmatprep.subr.mxu0 0.0
        %4569 = vmatpush1.msra.mxu0 0.0
        %4570 = vmatprep.subr.mxu0 0.0
        %4571 = vmatpush1.msra.mxu0 0.0
        %4572 = vmatprep.subr.mxu0 0.0
        %4573 = vmatpush1.msra.mxu0 0.0
        %4574 = vmatprep.subr.mxu0 0.0
        %4575 = vmatpush1.msra.mxu0 0.0
        %4576 = vmatprep.subr.mxu0 0.0
        %4577 = vmatpush1.msra.mxu0 0.0
        %4578 = vmatprep.subr.mxu0 0.0
        %4579 = vmatpush1.msra.mxu0 0.0
        %4580 = vmatprep.subr.mxu0 0.0
        %4581 = vmatpush1.msra.mxu0 0.0
        %4582 = vmatprep.subr.mxu0 0.0
        %4583 = vmatpush1.msra.mxu0 0.0
        %4584 = vmatprep.mubr.f32.mxu0 0.0
        %4585 = vmatmul.mubr.f32.gmra.mrb[0].mxu0 %v4518
        %v4586 = vpop.f32.mrb[0].mxu0
        %v4587 = vadd.f32 0.0, %v4586
        %v4588 = vpop.f32.mrb[0].mxu0
        %4589 = vdwg.mxu0
        %v4591 = vsel %vm929, %v4516, 0
        %4593 = vmatprep.subr.mxu0 0.0
        %4594 = vmatpush1.msra.mxu0 %v4336
        %4595 = vmatprep.subr.mxu0 0.0
        %4596 = vmatpush1.msra.mxu0 0.0
        %4597 = vmatprep.subr.mxu0 0.0
        %4598 = vmatpush1.msra.mxu0 0.0
        %4599 = vmatprep.subr.mxu0 0.0
        %4600 = vmatpush1.msra.mxu0 0.0
        %4601 = vmatprep.subr.mxu0 0.0
        %4602 = vmatpush1.msra.mxu0 0.0
        %4603 = vmatprep.subr.mxu0 0.0
        %4604 = vmatpush1.msra.mxu0 0.0
        %4605 = vmatprep.subr.mxu0 0.0
        %4606 = vmatpush1.msra.mxu0 0.0
        %4607 = vmatprep.subr.mxu0 0.0
        %4608 = vmatpush1.msra.mxu0 0.0
        %4609 = vmatprep.subr.mxu0 0.0
        %4610 = vmatpush1.msra.mxu0 0.0
        %4611 = vmatprep.subr.mxu0 0.0
        %4612 = vmatpush1.msra.mxu0 0.0
        %4613 = vmatprep.subr.mxu0 0.0
        %4614 = vmatpush1.msra.mxu0 0.0
        %4615 = vmatprep.subr.mxu0 0.0
        %4616 = vmatpush1.msra.mxu0 0.0
        %4617 = vmatprep.subr.mxu0 0.0
        %4618 = vmatpush1.msra.mxu0 0.0
        %4619 = vmatprep.subr.mxu0 0.0
        %4620 = vmatpush1.msra.mxu0 0.0
        %4621 = vmatprep.subr.mxu0 0.0
        %4622 = vmatpush1.msra.mxu0 0.0
        %4623 = vmatprep.subr.mxu0 0.0
        %4624 = vmatpush1.msra.mxu0 0.0
        %4625 = vmatprep.subr.mxu0 0.0
        %4626 = vmatpush1.msra.mxu0 0.0
        %4627 = vmatprep.subr.mxu0 0.0
        %4628 = vmatpush1.msra.mxu0 0.0
        %4629 = vmatprep.subr.mxu0 0.0
        %4630 = vmatpush1.msra.mxu0 0.0
        %4631 = vmatprep.subr.mxu0 0.0
        %4632 = vmatpush1.msra.mxu0 0.0
        %4633 = vmatprep.subr.mxu0 0.0
        %4634 = vmatpush1.msra.mxu0 0.0
        %4635 = vmatprep.subr.mxu0 0.0
        %4636 = vmatpush1.msra.mxu0 0.0
        %4637 = vmatprep.subr.mxu0 0.0
        %4638 = vmatpush1.msra.mxu0 0.0
        %4639 = vmatprep.subr.mxu0 0.0
        %4640 = vmatpush1.msra.mxu0 0.0
        %4641 = vmatprep.subr.mxu0 0.0
        %4642 = vmatpush1.msra.mxu0 0.0
        %4643 = vmatprep.subr.mxu0 0.0
        %4644 = vmatpush1.msra.mxu0 0.0
        %4645 = vmatprep.subr.mxu0 0.0
        %4646 = vmatpush1.msra.mxu0 0.0
        %4647 = vmatprep.subr.mxu0 0.0
        %4648 = vmatpush1.msra.mxu0 0.0
        %4649 = vmatprep.subr.mxu0 0.0
        %4650 = vmatpush1.msra.mxu0 0.0
        %4651 = vmatprep.subr.mxu0 0.0
        %4652 = vmatpush1.msra.mxu0 0.0
        %4653 = vmatprep.subr.mxu0 0.0
        %4654 = vmatpush1.msra.mxu0 0.0
        %4655 = vmatprep.subr.mxu0 0.0
        %4656 = vmatpush1.msra.mxu0 0.0
        %4657 = vmatprep.mubr.f32.mxu0 0.0
        %4658 = vmatmul.mubr.f32.gmra.mrb[0].mxu0 %v4591
        %v4659 = vpop.f32.mrb[0].mxu0
        %v4660 = vadd.f32 0.0, %v4659
        %v4661 = vpop.f32.mrb[0].mxu0
        %4662 = vdwg.mxu0
        %v4663 = vld [vmem:[#allocation2 + $0x10c0] sm:$0xff]
        %v4664 = vld [vmem:[#allocation2 + $0x10d0] sm:$0xff]
        %v4666 = vsel %vm349, %v4587, 0
        %v4669 = vsel %vm349, %v4660, 0
        %4671 = vmatprep.subr.mxu0 0.0
        %4672 = vmatpush1.msra.mxu0 %v4663
        %4673 = vmatprep.subr.mxu0 0.0
        %4674 = vmatpush1.msra.mxu0 %v4664
        %4675 = vmatprep.subr.mxu0 0.0
        %4676 = vmatpush1.msra.mxu0 0.0
        %4677 = vmatprep.subr.mxu0 0.0
        %4678 = vmatpush1.msra.mxu0 0.0
        %4679 = vmatprep.subr.mxu0 0.0
        %4680 = vmatpush1.msra.mxu0 0.0
        %4681 = vmatprep.subr.mxu0 0.0
        %4682 = vmatpush1.msra.mxu0 0.0
        %4683 = vmatprep.subr.mxu0 0.0
        %4684 = vmatpush1.msra.mxu0 0.0
        %4685 = vmatprep.subr.mxu0 0.0
        %4686 = vmatpush1.msra.mxu0 0.0
        %4687 = vmatprep.subr.mxu0 0.0
        %4688 = vmatpush1.msra.mxu0 0.0
        %4689 = vmatprep.subr.mxu0 0.0
        %4690 = vmatpush1.msra.mxu0 0.0
        %4691 = vmatprep.subr.mxu0 0.0
        %4692 = vmatpush1.msra.mxu0 0.0
        %4693 = vmatprep.subr.mxu0 0.0
        %4694 = vmatpush1.msra.mxu0 0.0
        %4695 = vmatprep.subr.mxu0 0.0
        %4696 = vmatpush1.msra.mxu0 0.0
        %4697 = vmatprep.subr.mxu0 0.0
        %4698 = vmatpush1.msra.mxu0 0.0
        %4699 = vmatprep.subr.mxu0 0.0
        %4700 = vmatpush1.msra.mxu0 0.0
        %4701 = vmatprep.subr.mxu0 0.0
        %4702 = vmatpush1.msra.mxu0 0.0
        %4703 = vmatprep.subr.mxu0 0.0
        %4704 = vmatpush1.msra.mxu0 0.0
        %4705 = vmatprep.subr.mxu0 0.0
        %4706 = vmatpush1.msra.mxu0 0.0
        %4707 = vmatprep.subr.mxu0 0.0
        %4708 = vmatpush1.msra.mxu0 0.0
        %4709 = vmatprep.subr.mxu0 0.0
        %4710 = vmatpush1.msra.mxu0 0.0
        %4711 = vmatprep.subr.mxu0 0.0
        %4712 = vmatpush1.msra.mxu0 0.0
        %4713 = vmatprep.subr.mxu0 0.0
        %4714 = vmatpush1.msra.mxu0 0.0
        %4715 = vmatprep.subr.mxu0 0.0
        %4716 = vmatpush1.msra.mxu0 0.0
        %4717 = vmatprep.subr.mxu0 0.0
        %4718 = vmatpush1.msra.mxu0 0.0
        %4719 = vmatprep.subr.mxu0 0.0
        %4720 = vmatpush1.msra.mxu0 0.0
        %4721 = vmatprep.subr.mxu0 0.0
        %4722 = vmatpush1.msra.mxu0 0.0
        %4723 = vmatprep.subr.mxu0 0.0
        %4724 = vmatpush1.msra.mxu0 0.0
        %4725 = vmatprep.subr.mxu0 0.0
        %4726 = vmatpush1.msra.mxu0 0.0
        %4727 = vmatprep.subr.mxu0 0.0
        %4728 = vmatpush1.msra.mxu0 0.0
        %4729 = vmatprep.subr.mxu0 0.0
        %4730 = vmatpush1.msra.mxu0 0.0
        %4731 = vmatprep.subr.mxu0 0.0
        %4732 = vmatpush1.msra.mxu0 0.0
        %4733 = vmatprep.subr.mxu0 0.0
        %4734 = vmatpush1.msra.mxu0 0.0
        %4735 = vmatprep.mubr.f32.mxu0 0.0
        %4736 = vmatmul.mubr.f32.gmra.mrb[0].mxu0 %v4666
        %v4737 = vpop.f32.mrb[0].mxu0
        %v4738 = vadd.f32 0.0, %v4737
        %v4739 = vpop.f32.mrb[0].mxu0
        %4740 = vmatprep.mubr.f32.mxu0 0.0
        %4741 = vmatmul.mubr.f32.gmra.mrb[0].mxu0 %v4669
        %v4742 = vpop.f32.mrb[0].mxu0
        %v4743 = vadd.f32 0.0, %v4742
        %v4744 = vpop.f32.mrb[0].mxu0
        %4745 = vdwg.mxu0
        %v4747 = vsel %vm349, %v4009, 0
        %v4750 = vsel %vm349, %v4082, 0
        %4752 = vmatprep.subr.mxu0 0.0
        %4753 = vmatpush1.msra.mxu0 %v4085
        %4754 = vmatprep.subr.mxu0 0.0
        %4755 = vmatpush1.msra.mxu0 %v4086
        %4756 = vmatprep.subr.mxu0 0.0
        %4757 = vmatpush1.msra.mxu0 0.0
        %4758 = vmatprep.subr.mxu0 0.0
        %4759 = vmatpush1.msra.mxu0 0.0
        %4760 = vmatprep.subr.mxu0 0.0
        %4761 = vmatpush1.msra.mxu0 0.0
        %4762 = vmatprep.subr.mxu0 0.0
        %4763 = vmatpush1.msra.mxu0 0.0
        %4764 = vmatprep.subr.mxu0 0.0
        %4765 = vmatpush1.msra.mxu0 0.0
        %4766 = vmatprep.subr.mxu0 0.0
        %4767 = vmatpush1.msra.mxu0 0.0
        %4768 = vmatprep.subr.mxu0 0.0
        %4769 = vmatpush1.msra.mxu0 0.0
        %4770 = vmatprep.subr.mxu0 0.0
        %4771 = vmatpush1.msra.mxu0 0.0
        %4772 = vmatprep.subr.mxu0 0.0
        %4773 = vmatpush1.msra.mxu0 0.0
        %4774 = vmatprep.subr.mxu0 0.0
        %4775 = vmatpush1.msra.mxu0 0.0
        %4776 = vmatprep.subr.mxu0 0.0
        %4777 = vmatpush1.msra.mxu0 0.0
        %4778 = vmatprep.subr.mxu0 0.0
        %4779 = vmatpush1.msra.mxu0 0.0
        %4780 = vmatprep.subr.mxu0 0.0
        %4781 = vmatpush1.msra.mxu0 0.0
        %4782 = vmatprep.subr.mxu0 0.0
        %4783 = vmatpush1.msra.mxu0 0.0
        %4784 = vmatprep.subr.mxu0 0.0
        %4785 = vmatpush1.msra.mxu0 0.0
        %4786 = vmatprep.subr.mxu0 0.0
        %4787 = vmatpush1.msra.mxu0 0.0
        %4788 = vmatprep.subr.mxu0 0.0
        %4789 = vmatpush1.msra.mxu0 0.0
        %4790 = vmatprep.subr.mxu0 0.0
        %4791 = vmatpush1.msra.mxu0 0.0
        %4792 = vmatprep.subr.mxu0 0.0
        %4793 = vmatpush1.msra.mxu0 0.0
        %4794 = vmatprep.subr.mxu0 0.0
        %4795 = vmatpush1.msra.mxu0 0.0
        %4796 = vmatprep.subr.mxu0 0.0
        %4797 = vmatpush1.msra.mxu0 0.0
        %4798 = vmatprep.subr.mxu0 0.0
        %4799 = vmatpush1.msra.mxu0 0.0
        %4800 = vmatprep.subr.mxu0 0.0
        %4801 = vmatpush1.msra.mxu0 0.0
        %4802 = vmatprep.subr.mxu0 0.0
        %4803 = vmatpush1.msra.mxu0 0.0
        %4804 = vmatprep.subr.mxu0 0.0
        %4805 = vmatpush1.msra.mxu0 0.0
        %4806 = vmatprep.subr.mxu0 0.0
        %4807 = vmatpush1.msra.mxu0 0.0
        %4808 = vmatprep.subr.mxu0 0.0
        %4809 = vmatpush1.msra.mxu0 0.0
        %4810 = vmatprep.subr.mxu0 0.0
        %4811 = vmatpush1.msra.mxu0 0.0
        %4812 = vmatprep.subr.mxu0 0.0
        %4813 = vmatpush1.msra.mxu0 0.0
        %4814 = vmatprep.subr.mxu0 0.0
        %4815 = vmatpush1.msra.mxu0 0.0
        %4816 = vmatprep.mubr.f32.mxu0 0.0
        %4817 = vmatmul.mubr.f32.gmra.mrb[0].mxu0 %v4747
        %v4818 = vpop.f32.mrb[0].mxu0
        %v4819 = vadd.f32 %v4738, %v4818
        %v4820 = vpop.f32.mrb[0].mxu0
        %4821 = vmatprep.mubr.f32.mxu0 0.0
        %4822 = vmatmul.mubr.f32.gmra.mrb[0].mxu0 %v4750
        %v4823 = vpop.f32.mrb[0].mxu0
        %v4824 = vadd.f32 %v4743, %v4823
        %v4825 = vpop.f32.mrb[0].mxu0
        %4826 = vdwg.mxu0
        %v4827 = vld [vmem:[#allocation2 + $0xb70] sm:$0xff]
        %v4828 = vld [vmem:[#allocation2 + $0xb80] sm:$0xff]
        %v4829 = vld [vmem:[#allocation2 + $0xb90] sm:$0xff]
        %v4830 = vld [vmem:[#allocation2 + $0xba0] sm:$0xff]
        %v4831 = vld [vmem:[#allocation2 + $0xbb0] sm:$0xff]
        %v4832 = vld [vmem:[#allocation2 + $0xbc0] sm:$0xff]
        %v4833 = vld [vmem:[#allocation2 + $0xbd0] sm:$0xff]
        %v4834 = vld [vmem:[#allocation2 + $0xbe0] sm:$0xff]
        %v4835 = vld [vmem:[#allocation2 + $0xd80] sm:$0xff]
        %v4836 = vld [vmem:[#allocation2 + $0xd90] sm:$0xff]
        %v4837 = vld [vmem:[#allocation2 + $0xda0] sm:$0xff]
        %v4838 = vld [vmem:[#allocation2 + $0xdb0] sm:$0xff]
        %v4839 = vld [vmem:[#allocation2 + $0xdc0] sm:$0xff]
        %v4840 = vld [vmem:[#allocation2 + $0xdd0] sm:$0xff]
        %v4841 = vld [vmem:[#allocation2 + $0xde0] sm:$0xff]
        %v4842 = vld [vmem:[#allocation2 + $0xdf0] sm:$0xff]
        %v4843 = vld [vmem:[#allocation2 + $0xf90] sm:$0xff]
        %v4844 = vld [vmem:[#allocation2 + $0xfa0] sm:$0xff]
        %v4845 = vld [vmem:[#allocation2 + $0xfb0] sm:$0xff]
        %v4846 = vld [vmem:[#allocation2 + $0xfc0] sm:$0xff]
        %v4847 = vld [vmem:[#allocation2 + $0xfd0] sm:$0xff]
        %v4848 = vld [vmem:[#allocation2 + $0xfe0] sm:$0xff]
        %v4849 = vld [vmem:[#allocation2 + $0xff0] sm:$0xff]
        %v4850 = vld [vmem:[#allocation2 + $0x1000] sm:$0xff]
        %v4851 = vld [vmem:[#allocation2 + $0xc72] ss:$0 sm:$0xff]
        %v4852 = vld [vmem:[#allocation2 + $0xe82] ss:$0 sm:$0xff]
        %v4853 = vld [vmem:[#allocation2 + $0x1092] ss:$0 sm:$0xff]
        %4854 = vmatprep.subr.mxu0 0.0
        %4855 = vmatpush1.msra.mxu0 %v4827
        %4856 = vmatprep.subr.mxu0 0.0
        %4857 = vmatpush1.msra.mxu0 %v4828
        %4858 = vmatprep.subr.mxu0 0.0
        %4859 = vmatpush1.msra.mxu0 %v4829
        %4860 = vmatprep.subr.mxu0 0.0
        %4861 = vmatpush1.msra.mxu0 %v4830
        %4862 = vmatprep.subr.mxu0 0.0
        %4863 = vmatpush1.msra.mxu0 %v4831
        %4864 = vmatprep.subr.mxu0 0.0
        %4865 = vmatpush1.msra.mxu0 %v4832
        %4866 = vmatprep.subr.mxu0 0.0
        %4867 = vmatpush1.msra.mxu0 %v4833
        %4868 = vmatprep.subr.mxu0 0.0
        %4869 = vmatpush1.msra.mxu0 %v4834
        %4870 = vmatprep.subr.mxu0 0.0
        %4871 = vmatpush1.msra.mxu0 0.0
        %4872 = vmatprep.subr.mxu0 0.0
        %4873 = vmatpush1.msra.mxu0 0.0
        %4874 = vmatprep.subr.mxu0 0.0
        %4875 = vmatpush1.msra.mxu0 0.0
        %4876 = vmatprep.subr.mxu0 0.0
        %4877 = vmatpush1.msra.mxu0 0.0
        %4878 = vmatprep.subr.mxu0 0.0
        %4879 = vmatpush1.msra.mxu0 0.0
        %4880 = vmatprep.subr.mxu0 0.0
        %4881 = vmatpush1.msra.mxu0 0.0
        %4882 = vmatprep.subr.mxu0 0.0
        %4883 = vmatpush1.msra.mxu0 0.0
        %4884 = vmatprep.subr.mxu0 0.0
        %4885 = vmatpush1.msra.mxu0 0.0
        %4886 = vmatprep.subr.mxu0 0.0
        %4887 = vmatpush1.msra.mxu0 0.0
        %4888 = vmatprep.subr.mxu0 0.0
        %4889 = vmatpush1.msra.mxu0 0.0
        %4890 = vmatprep.subr.mxu0 0.0
        %4891 = vmatpush1.msra.mxu0 0.0
        %4892 = vmatprep.subr.mxu0 0.0
        %4893 = vmatpush1.msra.mxu0 0.0
        %4894 = vmatprep.subr.mxu0 0.0
        %4895 = vmatpush1.msra.mxu0 0.0
        %4896 = vmatprep.subr.mxu0 0.0
        %4897 = vmatpush1.msra.mxu0 0.0
        %4898 = vmatprep.subr.mxu0 0.0
        %4899 = vmatpush1.msra.mxu0 0.0
        %4900 = vmatprep.subr.mxu0 0.0
        %4901 = vmatpush1.msra.mxu0 0.0
        %4902 = vmatprep.subr.mxu0 0.0
        %4903 = vmatpush1.msra.mxu0 0.0
        %4904 = vmatprep.subr.mxu0 0.0
        %4905 = vmatpush1.msra.mxu0 0.0
        %4906 = vmatprep.subr.mxu0 0.0
        %4907 = vmatpush1.msra.mxu0 0.0
        %4908 = vmatprep.subr.mxu0 0.0
        %4909 = vmatpush1.msra.mxu0 0.0
        %4910 = vmatprep.subr.mxu0 0.0
        %4911 = vmatpush1.msra.mxu0 0.0
        %4912 = vmatprep.subr.mxu0 0.0
        %4913 = vmatpush1.msra.mxu0 0.0
        %4914 = vmatprep.subr.mxu0 0.0
        %4915 = vmatpush1.msra.mxu0 0.0
        %4916 = vmatprep.subr.mxu0 0.0
        %4917 = vmatpush1.msra.mxu0 0.0
        %4918 = vmatprep.mubr.f32.mxu0 0.0
        %4919 = vmatmul.mubr.f32.gmra.mrb[0].mxu0 %v3531
        %v4920 = vpop.f32.mrb[0].mxu0
        %v4921 = vadd.f32 %v4851, %v4920
        %v4922 = vpop.f32.mrb[0].mxu0
        %4923 = vmatprep.mubr.f32.mxu0 0.0
        %4924 = vmatmul.mubr.f32.gmra.mrb[0].mxu0 %v3534
        %v4925 = vpop.f32.mrb[0].mxu0
        %v4926 = vadd.f32 %v4851, %v4925
        %v4927 = vpop.f32.mrb[0].mxu0
        %4928 = vdwg.mxu0
        %4929 = vmatprep.subr.mxu0 0.0
        %4930 = vmatpush1.msra.mxu0 %v4835
        %4931 = vmatprep.subr.mxu0 0.0
        %4932 = vmatpush1.msra.mxu0 %v4836
        %4933 = vmatprep.subr.mxu0 0.0
        %4934 = vmatpush1.msra.mxu0 %v4837
        %4935 = vmatprep.subr.mxu0 0.0
        %4936 = vmatpush1.msra.mxu0 %v4838
        %4937 = vmatprep.subr.mxu0 0.0
        %4938 = vmatpush1.msra.mxu0 %v4839
        %4939 = vmatprep.subr.mxu0 0.0
        %4940 = vmatpush1.msra.mxu0 %v4840
        %4941 = vmatprep.subr.mxu0 0.0
        %4942 = vmatpush1.msra.mxu0 %v4841
        %4943 = vmatprep.subr.mxu0 0.0
        %4944 = vmatpush1.msra.mxu0 %v4842
        %4945 = vmatprep.subr.mxu0 0.0
        %4946 = vmatpush1.msra.mxu0 0.0
        %4947 = vmatprep.subr.mxu0 0.0
        %4948 = vmatpush1.msra.mxu0 0.0
        %4949 = vmatprep.subr.mxu0 0.0
        %4950 = vmatpush1.msra.mxu0 0.0
        %4951 = vmatprep.subr.mxu0 0.0
        %4952 = vmatpush1.msra.mxu0 0.0
        %4953 = vmatprep.subr.mxu0 0.0
        %4954 = vmatpush1.msra.mxu0 0.0
        %4955 = vmatprep.subr.mxu0 0.0
        %4956 = vmatpush1.msra.mxu0 0.0
        %4957 = vmatprep.subr.mxu0 0.0
        %4958 = vmatpush1.msra.mxu0 0.0
        %4959 = vmatprep.subr.mxu0 0.0
        %4960 = vmatpush1.msra.mxu0 0.0
        %4961 = vmatprep.subr.mxu0 0.0
        %4962 = vmatpush1.msra.mxu0 0.0
        %4963 = vmatprep.subr.mxu0 0.0
        %4964 = vmatpush1.msra.mxu0 0.0
        %4965 = vmatprep.subr.mxu0 0.0
        %4966 = vmatpush1.msra.mxu0 0.0
        %4967 = vmatprep.subr.mxu0 0.0
        %4968 = vmatpush1.msra.mxu0 0.0
        %4969 = vmatprep.subr.mxu0 0.0
        %4970 = vmatpush1.msra.mxu0 0.0
        %4971 = vmatprep.subr.mxu0 0.0
        %4972 = vmatpush1.msra.mxu0 0.0
        %4973 = vmatprep.subr.mxu0 0.0
        %4974 = vmatpush1.msra.mxu0 0.0
        %4975 = vmatprep.subr.mxu0 0.0
        %4976 = vmatpush1.msra.mxu0 0.0
        %4977 = vmatprep.subr.mxu0 0.0
        %4978 = vmatpush1.msra.mxu0 0.0
        %4979 = vmatprep.subr.mxu0 0.0
        %4980 = vmatpush1.msra.mxu0 0.0
        %4981 = vmatprep.subr.mxu0 0.0
        %4982 = vmatpush1.msra.mxu0 0.0
        %4983 = vmatprep.subr.mxu0 0.0
        %4984 = vmatpush1.msra.mxu0 0.0
        %4985 = vmatprep.subr.mxu0 0.0
        %4986 = vmatpush1.msra.mxu0 0.0
        %4987 = vmatprep.subr.mxu0 0.0
        %4988 = vmatpush1.msra.mxu0 0.0
        %4989 = vmatprep.subr.mxu0 0.0
        %4990 = vmatpush1.msra.mxu0 0.0
        %4991 = vmatprep.subr.mxu0 0.0
        %4992 = vmatpush1.msra.mxu0 0.0
        %4993 = vmatprep.mubr.f32.mxu0 0.0
        %4994 = vmatmul.mubr.f32.gmra.mrb[0].mxu0 %v3531
        %v4995 = vpop.f32.mrb[0].mxu0
        %v4996 = vadd.f32 %v4852, %v4995
        %v4997 = vpop.f32.mrb[0].mxu0
        %4998 = vmatprep.mubr.f32.mxu0 0.0
        %4999 = vmatmul.mubr.f32.gmra.mrb[0].mxu0 %v3534
        %v5000 = vpop.f32.mrb[0].mxu0
        %v5001 = vadd.f32 %v4852, %v5000
        %v5002 = vpop.f32.mrb[0].mxu0
        %5003 = vdwg.mxu0
        %5004 = vmatprep.subr.mxu0 0.0
        %5005 = vmatpush1.msra.mxu0 %v4843
        %5006 = vmatprep.subr.mxu0 0.0
        %5007 = vmatpush1.msra.mxu0 %v4844
        %5008 = vmatprep.subr.mxu0 0.0
        %5009 = vmatpush1.msra.mxu0 %v4845
        %5010 = vmatprep.subr.mxu0 0.0
        %5011 = vmatpush1.msra.mxu0 %v4846
        %5012 = vmatprep.subr.mxu0 0.0
        %5013 = vmatpush1.msra.mxu0 %v4847
        %5014 = vmatprep.subr.mxu0 0.0
        %5015 = vmatpush1.msra.mxu0 %v4848
        %5016 = vmatprep.subr.mxu0 0.0
        %5017 = vmatpush1.msra.mxu0 %v4849
        %5018 = vmatprep.subr.mxu0 0.0
        %5019 = vmatpush1.msra.mxu0 %v4850
        %5020 = vmatprep.subr.mxu0 0.0
        %5021 = vmatpush1.msra.mxu0 0.0
        %5022 = vmatprep.subr.mxu0 0.0
        %5023 = vmatpush1.msra.mxu0 0.0
        %5024 = vmatprep.subr.mxu0 0.0
        %5025 = vmatpush1.msra.mxu0 0.0
        %5026 = vmatprep.subr.mxu0 0.0
        %5027 = vmatpush1.msra.mxu0 0.0
        %5028 = vmatprep.subr.mxu0 0.0
        %5029 = vmatpush1.msra.mxu0 0.0
        %5030 = vmatprep.subr.mxu0 0.0
        %5031 = vmatpush1.msra.mxu0 0.0
        %5032 = vmatprep.subr.mxu0 0.0
        %5033 = vmatpush1.msra.mxu0 0.0
        %5034 = vmatprep.subr.mxu0 0.0
        %5035 = vmatpush1.msra.mxu0 0.0
        %5036 = vmatprep.subr.mxu0 0.0
        %5037 = vmatpush1.msra.mxu0 0.0
        %5038 = vmatprep.subr.mxu0 0.0
        %5039 = vmatpush1.msra.mxu0 0.0
        %5040 = vmatprep.subr.mxu0 0.0
        %5041 = vmatpush1.msra.mxu0 0.0
        %5042 = vmatprep.subr.mxu0 0.0
        %5043 = vmatpush1.msra.mxu0 0.0
        %5044 = vmatprep.subr.mxu0 0.0
        %5045 = vmatpush1.msra.mxu0 0.0
        %5046 = vmatprep.subr.mxu0 0.0
        %5047 = vmatpush1.msra.mxu0 0.0
        %5048 = vmatprep.subr.mxu0 0.0
        %5049 = vmatpush1.msra.mxu0 0.0
        %5050 = vmatprep.subr.mxu0 0.0
        %5051 = vmatpush1.msra.mxu0 0.0
        %5052 = vmatprep.subr.mxu0 0.0
        %5053 = vmatpush1.msra.mxu0 0.0
        %5054 = vmatprep.subr.mxu0 0.0
        %5055 = vmatpush1.msra.mxu0 0.0
        %5056 = vmatprep.subr.mxu0 0.0
        %5057 = vmatpush1.msra.mxu0 0.0
        %5058 = vmatprep.subr.mxu0 0.0
        %5059 = vmatpush1.msra.mxu0 0.0
        %5060 = vmatprep.subr.mxu0 0.0
        %5061 = vmatpush1.msra.mxu0 0.0
        %5062 = vmatprep.subr.mxu0 0.0
        %5063 = vmatpush1.msra.mxu0 0.0
        %5064 = vmatprep.subr.mxu0 0.0
        %5065 = vmatpush1.msra.mxu0 0.0
        %5066 = vmatprep.subr.mxu0 0.0
        %5067 = vmatpush1.msra.mxu0 0.0
        %5068 = vmatprep.mubr.f32.mxu0 0.0
        %5069 = vmatmul.mubr.f32.gmra.mrb[0].mxu0 %v3531
        %v5070 = vpop.f32.mrb[0].mxu0
        %v5071 = vadd.f32 %v4853, %v5070
        %v5072 = vpop.f32.mrb[0].mxu0
        %5073 = vmatprep.mubr.f32.mxu0 0.0
        %5074 = vmatmul.mubr.f32.gmra.mrb[0].mxu0 %v3534
        %v5075 = vpop.f32.mrb[0].mxu0
        %v5076 = vadd.f32 %v4853, %v5075
        %v5077 = vpop.f32.mrb[0].mxu0
        %5078 = vdwg.mxu0
        %v5080 = vsel %vm349, %v4921, 0
        %v5083 = vsel %vm349, %v4996, 0
        %5085 = vmatprep.subr.mxu0 0.0
        %5086 = vmatpush1.xpose.msra.mxu0 %v5083
        %5087 = vmatprep.subr.mxu0 0.0
        %5088 = vmatpush1.xpose.msra.mxu0 0.0
        %5089 = vmatprep.subr.mxu0 0.0
        %5090 = vmatpush1.xpose.msra.mxu0 0.0
        %5091 = vmatprep.subr.mxu0 0.0
        %5092 = vmatpush1.xpose.msra.mxu0 0.0
        %5093 = vmatprep.subr.mxu0 0.0
        %5094 = vmatpush1.xpose.msra.mxu0 0.0
        %5095 = vmatprep.subr.mxu0 0.0
        %5096 = vmatpush1.xpose.msra.mxu0 0.0
        %5097 = vmatprep.subr.mxu0 0.0
        %5098 = vmatpush1.xpose.msra.mxu0 0.0
        %5099 = vmatprep.subr.mxu0 0.0
        %5100 = vmatpush1.xpose.msra.mxu0 0.0
        %5101 = vmatprep.subr.mxu0 0.0
        %5102 = vmatpush1.xpose.msra.mxu0 0.0
        %5103 = vmatprep.subr.mxu0 0.0
        %5104 = vmatpush1.xpose.msra.mxu0 0.0
        %5105 = vmatprep.subr.mxu0 0.0
        %5106 = vmatpush1.xpose.msra.mxu0 0.0
        %5107 = vmatprep.subr.mxu0 0.0
        %5108 = vmatpush1.xpose.msra.mxu0 0.0
        %5109 = vmatprep.subr.mxu0 0.0
        %5110 = vmatpush1.xpose.msra.mxu0 0.0
        %5111 = vmatprep.subr.mxu0 0.0
        %5112 = vmatpush1.xpose.msra.mxu0 0.0
        %5113 = vmatprep.subr.mxu0 0.0
        %5114 = vmatpush1.xpose.msra.mxu0 0.0
        %5115 = vmatprep.subr.mxu0 0.0
        %5116 = vmatpush1.xpose.msra.mxu0 0.0
        %5117 = vmatprep.subr.mxu0 0.0
        %5118 = vmatpush1.xpose.msra.mxu0 0.0
        %5119 = vmatprep.subr.mxu0 0.0
        %5120 = vmatpush1.xpose.msra.mxu0 0.0
        %5121 = vmatprep.subr.mxu0 0.0
        %5122 = vmatpush1.xpose.msra.mxu0 0.0
        %5123 = vmatprep.subr.mxu0 0.0
        %5124 = vmatpush1.xpose.msra.mxu0 0.0
        %5125 = vmatprep.subr.mxu0 0.0
        %5126 = vmatpush1.xpose.msra.mxu0 0.0
        %5127 = vmatprep.subr.mxu0 0.0
        %5128 = vmatpush1.xpose.msra.mxu0 0.0
        %5129 = vmatprep.subr.mxu0 0.0
        %5130 = vmatpush1.xpose.msra.mxu0 0.0
        %5131 = vmatprep.subr.mxu0 0.0
        %5132 = vmatpush1.xpose.msra.mxu0 0.0
        %5133 = vmatprep.subr.mxu0 0.0
        %5134 = vmatpush1.xpose.msra.mxu0 0.0
        %5135 = vmatprep.subr.mxu0 0.0
        %5136 = vmatpush1.xpose.msra.mxu0 0.0
        %5137 = vmatprep.subr.mxu0 0.0
        %5138 = vmatpush1.xpose.msra.mxu0 0.0
        %5139 = vmatprep.subr.mxu0 0.0
        %5140 = vmatpush1.xpose.msra.mxu0 0.0
        %5141 = vmatprep.subr.mxu0 0.0
        %5142 = vmatpush1.xpose.msra.mxu0 0.0
        %5143 = vmatprep.subr.mxu0 0.0
        %5144 = vmatpush1.xpose.msra.mxu0 0.0
        %5145 = vmatprep.subr.mxu0 0.0
        %5146 = vmatpush1.xpose.msra.mxu0 0.0
        %5147 = vmatprep.subr.mxu0 0.0
        %5148 = vmatpush1.xpose.msra.mxu0 0.0
        %5149 = vmatprep.mubr.f32.mxu0 0.0
        %5150 = vmatmul.mubr.f32.gmra.mrb[0].mxu0 %v5080
        %v5151 = vpop.f32.mrb[0].mxu0
        %v5152 = vadd.f32 0.0, %v5151
        %v5153 = vpop.f32.mrb[0].mxu0
        %5154 = vdwg.mxu0
        %v5156 = vsel %vm349, %v4926, 0
        %v5159 = vsel %vm349, %v5001, 0
        %5161 = vmatprep.subr.mxu0 0.0
        %5162 = vmatpush1.xpose.msra.mxu0 %v5159
        %5163 = vmatprep.subr.mxu0 0.0
        %5164 = vmatpush1.xpose.msra.mxu0 0.0
        %5165 = vmatprep.subr.mxu0 0.0
        %5166 = vmatpush1.xpose.msra.mxu0 0.0
        %5167 = vmatprep.subr.mxu0 0.0
        %5168 = vmatpush1.xpose.msra.mxu0 0.0
        %5169 = vmatprep.subr.mxu0 0.0
        %5170 = vmatpush1.xpose.msra.mxu0 0.0
        %5171 = vmatprep.subr.mxu0 0.0
        %5172 = vmatpush1.xpose.msra.mxu0 0.0
        %5173 = vmatprep.subr.mxu0 0.0
        %5174 = vmatpush1.xpose.msra.mxu0 0.0
        %5175 = vmatprep.subr.mxu0 0.0
        %5176 = vmatpush1.xpose.msra.mxu0 0.0
        %5177 = vmatprep.subr.mxu0 0.0
        %5178 = vmatpush1.xpose.msra.mxu0 0.0
        %5179 = vmatprep.subr.mxu0 0.0
        %5180 = vmatpush1.xpose.msra.mxu0 0.0
        %5181 = vmatprep.subr.mxu0 0.0
        %5182 = vmatpush1.xpose.msra.mxu0 0.0
        %5183 = vmatprep.subr.mxu0 0.0
        %5184 = vmatpush1.xpose.msra.mxu0 0.0
        %5185 = vmatprep.subr.mxu0 0.0
        %5186 = vmatpush1.xpose.msra.mxu0 0.0
        %5187 = vmatprep.subr.mxu0 0.0
        %5188 = vmatpush1.xpose.msra.mxu0 0.0
        %5189 = vmatprep.subr.mxu0 0.0
        %5190 = vmatpush1.xpose.msra.mxu0 0.0
        %5191 = vmatprep.subr.mxu0 0.0
        %5192 = vmatpush1.xpose.msra.mxu0 0.0
        %5193 = vmatprep.subr.mxu0 0.0
        %5194 = vmatpush1.xpose.msra.mxu0 0.0
        %5195 = vmatprep.subr.mxu0 0.0
        %5196 = vmatpush1.xpose.msra.mxu0 0.0
        %5197 = vmatprep.subr.mxu0 0.0
        %5198 = vmatpush1.xpose.msra.mxu0 0.0
        %5199 = vmatprep.subr.mxu0 0.0
        %5200 = vmatpush1.xpose.msra.mxu0 0.0
        %5201 = vmatprep.subr.mxu0 0.0
        %5202 = vmatpush1.xpose.msra.mxu0 0.0
        %5203 = vmatprep.subr.mxu0 0.0
        %5204 = vmatpush1.xpose.msra.mxu0 0.0
        %5205 = vmatprep.subr.mxu0 0.0
        %5206 = vmatpush1.xpose.msra.mxu0 0.0
        %5207 = vmatprep.subr.mxu0 0.0
        %5208 = vmatpush1.xpose.msra.mxu0 0.0
        %5209 = vmatprep.subr.mxu0 0.0
        %5210 = vmatpush1.xpose.msra.mxu0 0.0
        %5211 = vmatprep.subr.mxu0 0.0
        %5212 = vmatpush1.xpose.msra.mxu0 0.0
        %5213 = vmatprep.subr.mxu0 0.0
        %5214 = vmatpush1.xpose.msra.mxu0 0.0
        %5215 = vmatprep.subr.mxu0 0.0
        %5216 = vmatpush1.xpose.msra.mxu0 0.0
        %5217 = vmatprep.subr.mxu0 0.0
        %5218 = vmatpush1.xpose.msra.mxu0 0.0
        %5219 = vmatprep.subr.mxu0 0.0
        %5220 = vmatpush1.xpose.msra.mxu0 0.0
        %5221 = vmatprep.subr.mxu0 0.0
        %5222 = vmatpush1.xpose.msra.mxu0 0.0
        %5223 = vmatprep.subr.mxu0 0.0
        %5224 = vmatpush1.xpose.msra.mxu0 0.0
        %5225 = vmatprep.mubr.f32.mxu0 0.0
        %5226 = vmatmul.mubr.f32.gmra.mrb[0].mxu0 %v5156
        %v5227 = vpop.f32.mrb[0].mxu0
        %v5228 = vadd.f32 0.0, %v5227
        %v5229 = vpop.f32.mrb[0].mxu0
        %5230 = vdwg.mxu0
        %v5231 = vmul.f32 %v5152, 0.25
        %v5232 = vmul.f32 %v5228, 0.25
        %v5233 = vadd.f32 %v5231, %v165
        %v5234 = vadd.f32 %v5232, %v165
        %v5235 = vsel %vm929, %v5233, -inf
        %5236 = vmax.xlane.f32.xlu0 %v5235
        %v5237 = vpop.xlane.xlu0 %5236
        %v5238 = vsel %vm929, %v5234, -inf
        %5239 = vmax.xlane.f32.xlu0 %v5238
        %v5240 = vpop.xlane.xlu0 %5239
        %v5241 = vsub.f32 %v5233, %v5237
        %v5242 = vsub.f32 %v5234, %v5240
        %v5243 = vmul.f32 %v5241, 1.442695
        %v5244 = vpow.pop %v5243
        %v5245 = vmul.f32 %v5242, 1.442695
        %v5246 = vpow.pop %v5245
        %v5247 = vsel %vm929, %v5244, 0.0
        %5248 = vadd.xlane.f32.xlu0 %v5247
        %v5249 = vpop.xlane.xlu0 %5248
        %v5250 = vsel %vm929, %v5246, 0.0
        %5251 = vadd.xlane.f32.xlu0 %v5250
        %v5252 = vpop.xlane.xlu0 %5251
        %v5253 = vrcp.pop %v5249
        %v5254 = vrcp.pop %v5252
        %v5255 = vmul.f32 %v5244, %v5253
        %v5256 = vmul.f32 %v5246, %v5254
        %v5258 = vsel %vm929, %v5255, 0
        %5260 = vmatprep.subr.mxu0 0.0
        %5261 = vmatpush1.msra.mxu0 %v5071
        %5262 = vmatprep.subr.mxu0 0.0
        %5263 = vmatpush1.msra.mxu0 0.0
        %5264 = vmatprep.subr.mxu0 0.0
        %5265 = vmatpush1.msra.mxu0 0.0
        %5266 = vmatprep.subr.mxu0 0.0
        %5267 = vmatpush1.msra.mxu0 0.0
        %5268 = vmatprep.subr.mxu0 0.0
        %5269 = vmatpush1.msra.mxu0 0.0
        %5270 = vmatprep.subr.mxu0 0.0
        %5271 = vmatpush1.msra.mxu0 0.0
        %5272 = vmatprep.subr.mxu0 0.0
        %5273 = vmatpush1.msra.mxu0 0.0
        %5274 = vmatprep.subr.mxu0 0.0
        %5275 = vmatpush1.msra.mxu0 0.0
        %5276 = vmatprep.subr.mxu0 0.0
        %5277 = vmatpush1.msra.mxu0 0.0
        %5278 = vmatprep.subr.mxu0 0.0
        %5279 = vmatpush1.msra.mxu0 0.0
        %5280 = vmatprep.subr.mxu0 0.0
        %5281 = vmatpush1.msra.mxu0 0.0
        %5282 = vmatprep.subr.mxu0 0.0
        %5283 = vmatpush1.msra.mxu0 0.0
        %5284 = vmatprep.subr.mxu0 0.0
        %5285 = vmatpush1.msra.mxu0 0.0
        %5286 = vmatprep.subr.mxu0 0.0
        %5287 = vmatpush1.msra.mxu0 0.0
        %5288 = vmatprep.subr.mxu0 0.0
        %5289 = vmatpush1.msra.mxu0 0.0
        %5290 = vmatprep.subr.mxu0 0.0
        %5291 = vmatpush1.msra.mxu0 0.0
        %5292 = vmatprep.subr.mxu0 0.0
        %5293 = vmatpush1.msra.mxu0 0.0
        %5294 = vmatprep.subr.mxu0 0.0
        %5295 = vmatpush1.msra.mxu0 0.0
        %5296 = vmatprep.subr.mxu0 0.0
        %5297 = vmatpush1.msra.mxu0 0.0
        %5298 = vmatprep.subr.mxu0 0.0
        %5299 = vmatpush1.msra.mxu0 0.0
        %5300 = vmatprep.subr.mxu0 0.0
        %5301 = vmatpush1.msra.mxu0 0.0
        %5302 = vmatprep.subr.mxu0 0.0
        %5303 = vmatpush1.msra.mxu0 0.0
        %5304 = vmatprep.subr.mxu0 0.0
        %5305 = vmatpush1.msra.mxu0 0.0
        %5306 = vmatprep.subr.mxu0 0.0
        %5307 = vmatpush1.msra.mxu0 0.0
        %5308 = vmatprep.subr.mxu0 0.0
        %5309 = vmatpush1.msra.mxu0 0.0
        %5310 = vmatprep.subr.mxu0 0.0
        %5311 = vmatpush1.msra.mxu0 0.0
        %5312 = vmatprep.subr.mxu0 0.0
        %5313 = vmatpush1.msra.mxu0 0.0
        %5314 = vmatprep.subr.mxu0 0.0
        %5315 = vmatpush1.msra.mxu0 0.0
        %5316 = vmatprep.subr.mxu0 0.0
        %5317 = vmatpush1.msra.mxu0 0.0
        %5318 = vmatprep.subr.mxu0 0.0
        %5319 = vmatpush1.msra.mxu0 0.0
        %5320 = vmatprep.subr.mxu0 0.0
        %5321 = vmatpush1.msra.mxu0 0.0
        %5322 = vmatprep.subr.mxu0 0.0
        %5323 = vmatpush1.msra.mxu0 0.0
        %5324 = vmatprep.mubr.f32.mxu0 0.0
        %5325 = vmatmul.mubr.f32.gmra.mrb[0].mxu0 %v5258
        %v5326 = vpop.f32.mrb[0].mxu0
        %v5327 = vadd.f32 0.0, %v5326
        %v5328 = vpop.f32.mrb[0].mxu0
        %5329 = vdwg.mxu0
        %v5331 = vsel %vm929, %v5256, 0
        %5333 = vmatprep.subr.mxu0 0.0
        %5334 = vmatpush1.msra.mxu0 %v5076
        %5335 = vmatprep.subr.mxu0 0.0
        %5336 = vmatpush1.msra.mxu0 0.0
        %5337 = vmatprep.subr.mxu0 0.0
        %5338 = vmatpush1.msra.mxu0 0.0
        %5339 = vmatprep.subr.mxu0 0.0
        %5340 = vmatpush1.msra.mxu0 0.0
        %5341 = vmatprep.subr.mxu0 0.0
        %5342 = vmatpush1.msra.mxu0 0.0
        %5343 = vmatprep.subr.mxu0 0.0
        %5344 = vmatpush1.msra.mxu0 0.0
        %5345 = vmatprep.subr.mxu0 0.0
        %5346 = vmatpush1.msra.mxu0 0.0
        %5347 = vmatprep.subr.mxu0 0.0
        %5348 = vmatpush1.msra.mxu0 0.0
        %5349 = vmatprep.subr.mxu0 0.0
        %5350 = vmatpush1.msra.mxu0 0.0
        %5351 = vmatprep.subr.mxu0 0.0
        %5352 = vmatpush1.msra.mxu0 0.0
        %5353 = vmatprep.subr.mxu0 0.0
        %5354 = vmatpush1.msra.mxu0 0.0
        %5355 = vmatprep.subr.mxu0 0.0
        %5356 = vmatpush1.msra.mxu0 0.0
        %5357 = vmatprep.subr.mxu0 0.0
        %5358 = vmatpush1.msra.mxu0 0.0
        %5359 = vmatprep.subr.mxu0 0.0
        %5360 = vmatpush1.msra.mxu0 0.0
        %5361 = vmatprep.subr.mxu0 0.0
        %5362 = vmatpush1.msra.mxu0 0.0
        %5363 = vmatprep.subr.mxu0 0.0
        %5364 = vmatpush1.msra.mxu0 0.0
        %5365 = vmatprep.subr.mxu0 0.0
        %5366 = vmatpush1.msra.mxu0 0.0
        %5367 = vmatprep.subr.mxu0 0.0
        %5368 = vmatpush1.msra.mxu0 0.0
        %5369 = vmatprep.subr.mxu0 0.0
        %5370 = vmatpush1.msra.mxu0 0.0
        %5371 = vmatprep.subr.mxu0 0.0
        %5372 = vmatpush1.msra.mxu0 0.0
        %5373 = vmatprep.subr.mxu0 0.0
        %5374 = vmatpush1.msra.mxu0 0.0
        %5375 = vmatprep.subr.mxu0 0.0
        %5376 = vmatpush1.msra.mxu0 0.0
        %5377 = vmatprep.subr.mxu0 0.0
        %5378 = vmatpush1.msra.mxu0 0.0
        %5379 = vmatprep.subr.mxu0 0.0
        %5380 = vmatpush1.msra.mxu0 0.0
        %5381 = vmatprep.subr.mxu0 0.0
        %5382 = vmatpush1.msra.mxu0 0.0
        %5383 = vmatprep.subr.mxu0 0.0
        %5384 = vmatpush1.msra.mxu0 0.0
        %5385 = vmatprep.subr.mxu0 0.0
        %5386 = vmatpush1.msra.mxu0 0.0
        %5387 = vmatprep.subr.mxu0 0.0
        %5388 = vmatpush1.msra.mxu0 0.0
        %5389 = vmatprep.subr.mxu0 0.0
        %5390 = vmatpush1.msra.mxu0 0.0
        %5391 = vmatprep.subr.mxu0 0.0
        %5392 = vmatpush1.msra.mxu0 0.0
        %5393 = vmatprep.subr.mxu0 0.0
        %5394 = vmatpush1.msra.mxu0 0.0
        %5395 = vmatprep.subr.mxu0 0.0
        %5396 = vmatpush1.msra.mxu0 0.0
        %5397 = vmatprep.mubr.f32.mxu0 0.0
        %5398 = vmatmul.mubr.f32.gmra.mrb[0].mxu0 %v5331
        %v5399 = vpop.f32.mrb[0].mxu0
        %v5400 = vadd.f32 0.0, %v5399
        %v5401 = vpop.f32.mrb[0].mxu0
        %5402 = vdwg.mxu0
        %v5403 = vld [vmem:[#allocation2 + $0x10e0] sm:$0xff]
        %v5404 = vld [vmem:[#allocation2 + $0x10f0] sm:$0xff]
        %v5406 = vsel %vm349, %v5327, 0
        %v5409 = vsel %vm349, %v5400, 0
        %5411 = vmatprep.subr.mxu0 0.0
        %5412 = vmatpush1.msra.mxu0 %v5403
        %5413 = vmatprep.subr.mxu0 0.0
        %5414 = vmatpush1.msra.mxu0 %v5404
        %5415 = vmatprep.subr.mxu0 0.0
        %5416 = vmatpush1.msra.mxu0 0.0
        %5417 = vmatprep.subr.mxu0 0.0
        %5418 = vmatpush1.msra.mxu0 0.0
        %5419 = vmatprep.subr.mxu0 0.0
        %5420 = vmatpush1.msra.mxu0 0.0
        %5421 = vmatprep.subr.mxu0 0.0
        %5422 = vmatpush1.msra.mxu0 0.0
        %5423 = vmatprep.subr.mxu0 0.0
        %5424 = vmatpush1.msra.mxu0 0.0
        %5425 = vmatprep.subr.mxu0 0.0
        %5426 = vmatpush1.msra.mxu0 0.0
        %5427 = vmatprep.subr.mxu0 0.0
        %5428 = vmatpush1.msra.mxu0 0.0
        %5429 = vmatprep.subr.mxu0 0.0
        %5430 = vmatpush1.msra.mxu0 0.0
        %5431 = vmatprep.subr.mxu0 0.0
        %5432 = vmatpush1.msra.mxu0 0.0
        %5433 = vmatprep.subr.mxu0 0.0
        %5434 = vmatpush1.msra.mxu0 0.0
        %5435 = vmatprep.subr.mxu0 0.0
        %5436 = vmatpush1.msra.mxu0 0.0
        %5437 = vmatprep.subr.mxu0 0.0
        %5438 = vmatpush1.msra.mxu0 0.0
        %5439 = vmatprep.subr.mxu0 0.0
        %5440 = vmatpush1.msra.mxu0 0.0
        %5441 = vmatprep.subr.mxu0 0.0
        %5442 = vmatpush1.msra.mxu0 0.0
        %5443 = vmatprep.subr.mxu0 0.0
        %5444 = vmatpush1.msra.mxu0 0.0
        %5445 = vmatprep.subr.mxu0 0.0
        %5446 = vmatpush1.msra.mxu0 0.0
        %5447 = vmatprep.subr.mxu0 0.0
        %5448 = vmatpush1.msra.mxu0 0.0
        %5449 = vmatprep.subr.mxu0 0.0
        %5450 = vmatpush1.msra.mxu0 0.0
        %5451 = vmatprep.subr.mxu0 0.0
        %5452 = vmatpush1.msra.mxu0 0.0
        %5453 = vmatprep.subr.mxu0 0.0
        %5454 = vmatpush1.msra.mxu0 0.0
        %5455 = vmatprep.subr.mxu0 0.0
        %5456 = vmatpush1.msra.mxu0 0.0
        %5457 = vmatprep.subr.mxu0 0.0
        %5458 = vmatpush1.msra.mxu0 0.0
        %5459 = vmatprep.subr.mxu0 0.0
        %5460 = vmatpush1.msra.mxu0 0.0
        %5461 = vmatprep.subr.mxu0 0.0
        %5462 = vmatpush1.msra.mxu0 0.0
        %5463 = vmatprep.subr.mxu0 0.0
        %5464 = vmatpush1.msra.mxu0 0.0
        %5465 = vmatprep.subr.mxu0 0.0
        %5466 = vmatpush1.msra.mxu0 0.0
        %5467 = vmatprep.subr.mxu0 0.0
        %5468 = vmatpush1.msra.mxu0 0.0
        %5469 = vmatprep.subr.mxu0 0.0
        %5470 = vmatpush1.msra.mxu0 0.0
        %5471 = vmatprep.subr.mxu0 0.0
        %5472 = vmatpush1.msra.mxu0 0.0
        %5473 = vmatprep.subr.mxu0 0.0
        %5474 = vmatpush1.msra.mxu0 0.0
        %5475 = vmatprep.mubr.f32.mxu0 0.0
        %5476 = vmatmul.mubr.f32.gmra.mrb[0].mxu0 %v5406
        %v5477 = vpop.f32.mrb[0].mxu0
        %v5478 = vadd.f32 0.0, %v5477
        %v5479 = vpop.f32.mrb[0].mxu0
        %5480 = vmatprep.mubr.f32.mxu0 0.0
        %5481 = vmatmul.mubr.f32.gmra.mrb[0].mxu0 %v5409
        %v5482 = vpop.f32.mrb[0].mxu0
        %v5483 = vadd.f32 0.0, %v5482
        %v5484 = vpop.f32.mrb[0].mxu0
        %5485 = vdwg.mxu0
        %v5486 = vadd.f32 %v4819, %v5478
        %v5487 = vadd.f32 %v4824, %v5483
        %v5488 = vld [vmem:[#allocation2 + $0xbf0] sm:$0xff]
        %v5489 = vld [vmem:[#allocation2 + $0xc00] sm:$0xff]
        %v5490 = vld [vmem:[#allocation2 + $0xc10] sm:$0xff]
        %v5491 = vld [vmem:[#allocation2 + $0xc20] sm:$0xff]
        %v5492 = vld [vmem:[#allocation2 + $0xc30] sm:$0xff]
        %v5493 = vld [vmem:[#allocation2 + $0xc40] sm:$0xff]
        %v5494 = vld [vmem:[#allocation2 + $0xc50] sm:$0xff]
        %v5495 = vld [vmem:[#allocation2 + $0xc60] sm:$0xff]
        %v5496 = vld [vmem:[#allocation2 + $0xe00] sm:$0xff]
        %v5497 = vld [vmem:[#allocation2 + $0xe10] sm:$0xff]
        %v5498 = vld [vmem:[#allocation2 + $0xe20] sm:$0xff]
        %v5499 = vld [vmem:[#allocation2 + $0xe30] sm:$0xff]
        %v5500 = vld [vmem:[#allocation2 + $0xe40] sm:$0xff]
        %v5501 = vld [vmem:[#allocation2 + $0xe50] sm:$0xff]
        %v5502 = vld [vmem:[#allocation2 + $0xe60] sm:$0xff]
        %v5503 = vld [vmem:[#allocation2 + $0xe70] sm:$0xff]
        %v5504 = vld [vmem:[#allocation2 + $0x1010] sm:$0xff]
        %v5505 = vld [vmem:[#allocation2 + $0x1020] sm:$0xff]
        %v5506 = vld [vmem:[#allocation2 + $0x1030] sm:$0xff]
        %v5507 = vld [vmem:[#allocation2 + $0x1040] sm:$0xff]
        %v5508 = vld [vmem:[#allocation2 + $0x1050] sm:$0xff]
        %v5509 = vld [vmem:[#allocation2 + $0x1060] sm:$0xff]
        %v5510 = vld [vmem:[#allocation2 + $0x1070] sm:$0xff]
        %v5511 = vld [vmem:[#allocation2 + $0x1080] sm:$0xff]
        %v5512 = vld [vmem:[#allocation2 + $0xc73] ss:$0 sm:$0xff]
        %v5513 = vld [vmem:[#allocation2 + $0xe83] ss:$0 sm:$0xff]
        %v5514 = vld [vmem:[#allocation2 + $0x1093] ss:$0 sm:$0xff]
        %5515 = vmatprep.subr.mxu0 0.0
        %5516 = vmatpush1.msra.mxu0 %v5488
        %5517 = vmatprep.subr.mxu0 0.0
        %5518 = vmatpush1.msra.mxu0 %v5489
        %5519 = vmatprep.subr.mxu0 0.0
        %5520 = vmatpush1.msra.mxu0 %v5490
        %5521 = vmatprep.subr.mxu0 0.0
        %5522 = vmatpush1.msra.mxu0 %v5491
        %5523 = vmatprep.subr.mxu0 0.0
        %5524 = vmatpush1.msra.mxu0 %v5492
        %5525 = vmatprep.subr.mxu0 0.0
        %5526 = vmatpush1.msra.mxu0 %v5493
        %5527 = vmatprep.subr.mxu0 0.0
        %5528 = vmatpush1.msra.mxu0 %v5494
        %5529 = vmatprep.subr.mxu0 0.0
        %5530 = vmatpush1.msra.mxu0 %v5495
        %5531 = vmatprep.subr.mxu0 0.0
        %5532 = vmatpush1.msra.mxu0 0.0
        %5533 = vmatprep.subr.mxu0 0.0
        %5534 = vmatpush1.msra.mxu0 0.0
        %5535 = vmatprep.subr.mxu0 0.0
        %5536 = vmatpush1.msra.mxu0 0.0
        %5537 = vmatprep.subr.mxu0 0.0
        %5538 = vmatpush1.msra.mxu0 0.0
        %5539 = vmatprep.subr.mxu0 0.0
        %5540 = vmatpush1.msra.mxu0 0.0
        %5541 = vmatprep.subr.mxu0 0.0
        %5542 = vmatpush1.msra.mxu0 0.0
        %5543 = vmatprep.subr.mxu0 0.0
        %5544 = vmatpush1.msra.mxu0 0.0
        %5545 = vmatprep.subr.mxu0 0.0
        %5546 = vmatpush1.msra.mxu0 0.0
        %5547 = vmatprep.subr.mxu0 0.0
        %5548 = vmatpush1.msra.mxu0 0.0
        %5549 = vmatprep.subr.mxu0 0.0
        %5550 = vmatpush1.msra.mxu0 0.0
        %5551 = vmatprep.subr.mxu0 0.0
        %5552 = vmatpush1.msra.mxu0 0.0
        %5553 = vmatprep.subr.mxu0 0.0
        %5554 = vmatpush1.msra.mxu0 0.0
        %5555 = vmatprep.subr.mxu0 0.0
        %5556 = vmatpush1.msra.mxu0 0.0
        %5557 = vmatprep.subr.mxu0 0.0
        %5558 = vmatpush1.msra.mxu0 0.0
        %5559 = vmatprep.subr.mxu0 0.0
        %5560 = vmatpush1.msra.mxu0 0.0
        %5561 = vmatprep.subr.mxu0 0.0
        %5562 = vmatpush1.msra.mxu0 0.0
        %5563 = vmatprep.subr.mxu0 0.0
        %5564 = vmatpush1.msra.mxu0 0.0
        %5565 = vmatprep.subr.mxu0 0.0
        %5566 = vmatpush1.msra.mxu0 0.0
        %5567 = vmatprep.subr.mxu0 0.0
        %5568 = vmatpush1.msra.mxu0 0.0
        %5569 = vmatprep.subr.mxu0 0.0
        %5570 = vmatpush1.msra.mxu0 0.0
        %5571 = vmatprep.subr.mxu0 0.0
        %5572 = vmatpush1.msra.mxu0 0.0
        %5573 = vmatprep.subr.mxu0 0.0
        %5574 = vmatpush1.msra.mxu0 0.0
        %5575 = vmatprep.subr.mxu0 0.0
        %5576 = vmatpush1.msra.mxu0 0.0
        %5577 = vmatprep.subr.mxu0 0.0
        %5578 = vmatpush1.msra.mxu0 0.0
        %5579 = vmatprep.mubr.f32.mxu0 0.0
        %5580 = vmatmul.mubr.f32.gmra.mrb[0].mxu0 %v3531
        %v5581 = vpop.f32.mrb[0].mxu0
        %v5582 = vadd.f32 %v5512, %v5581
        %v5583 = vpop.f32.mrb[0].mxu0
        %5584 = vmatprep.mubr.f32.mxu0 0.0
        %5585 = vmatmul.mubr.f32.gmra.mrb[0].mxu0 %v3534
        %v5586 = vpop.f32.mrb[0].mxu0
        %v5587 = vadd.f32 %v5512, %v5586
        %v5588 = vpop.f32.mrb[0].mxu0
        %5589 = vdwg.mxu0
        %5590 = vmatprep.subr.mxu0 0.0
        %5591 = vmatpush1.msra.mxu0 %v5496
        %5592 = vmatprep.subr.mxu0 0.0
        %5593 = vmatpush1.msra.mxu0 %v5497
        %5594 = vmatprep.subr.mxu0 0.0
        %5595 = vmatpush1.msra.mxu0 %v5498
        %5596 = vmatprep.subr.mxu0 0.0
        %5597 = vmatpush1.msra.mxu0 %v5499
        %5598 = vmatprep.subr.mxu0 0.0
        %5599 = vmatpush1.msra.mxu0 %v5500
        %5600 = vmatprep.subr.mxu0 0.0
        %5601 = vmatpush1.msra.mxu0 %v5501
        %5602 = vmatprep.subr.mxu0 0.0
        %5603 = vmatpush1.msra.mxu0 %v5502
        %5604 = vmatprep.subr.mxu0 0.0
        %5605 = vmatpush1.msra.mxu0 %v5503
        %5606 = vmatprep.subr.mxu0 0.0
        %5607 = vmatpush1.msra.mxu0 0.0
        %5608 = vmatprep.subr.mxu0 0.0
        %5609 = vmatpush1.msra.mxu0 0.0
        %5610 = vmatprep.subr.mxu0 0.0
        %5611 = vmatpush1.msra.mxu0 0.0
        %5612 = vmatprep.subr.mxu0 0.0
        %5613 = vmatpush1.msra.mxu0 0.0
        %5614 = vmatprep.subr.mxu0 0.0
        %5615 = vmatpush1.msra.mxu0 0.0
        %5616 = vmatprep.subr.mxu0 0.0
        %5617 = vmatpush1.msra.mxu0 0.0
        %5618 = vmatprep.subr.mxu0 0.0
        %5619 = vmatpush1.msra.mxu0 0.0
        %5620 = vmatprep.subr.mxu0 0.0
        %5621 = vmatpush1.msra.mxu0 0.0
        %5622 = vmatprep.subr.mxu0 0.0
        %5623 = vmatpush1.msra.mxu0 0.0
        %5624 = vmatprep.subr.mxu0 0.0
        %5625 = vmatpush1.msra.mxu0 0.0
        %5626 = vmatprep.subr.mxu0 0.0
        %5627 = vmatpush1.msra.mxu0 0.0
        %5628 = vmatprep.subr.mxu0 0.0
        %5629 = vmatpush1.msra.mxu0 0.0
        %5630 = vmatprep.subr.mxu0 0.0
        %5631 = vmatpush1.msra.mxu0 0.0
        %5632 = vmatprep.subr.mxu0 0.0
        %5633 = vmatpush1.msra.mxu0 0.0
        %5634 = vmatprep.subr.mxu0 0.0
        %5635 = vmatpush1.msra.mxu0 0.0
        %5636 = vmatprep.subr.mxu0 0.0
        %5637 = vmatpush1.msra.mxu0 0.0
        %5638 = vmatprep.subr.mxu0 0.0
        %5639 = vmatpush1.msra.mxu0 0.0
        %5640 = vmatprep.subr.mxu0 0.0
        %5641 = vmatpush1.msra.mxu0 0.0
        %5642 = vmatprep.subr.mxu0 0.0
        %5643 = vmatpush1.msra.mxu0 0.0
        %5644 = vmatprep.subr.mxu0 0.0
        %5645 = vmatpush1.msra.mxu0 0.0
        %5646 = vmatprep.subr.mxu0 0.0
        %5647 = vmatpush1.msra.mxu0 0.0
        %5648 = vmatprep.subr.mxu0 0.0
        %5649 = vmatpush1.msra.mxu0 0.0
        %5650 = vmatprep.subr.mxu0 0.0
        %5651 = vmatpush1.msra.mxu0 0.0
        %5652 = vmatprep.subr.mxu0 0.0
        %5653 = vmatpush1.msra.mxu0 0.0
        %5654 = vmatprep.mubr.f32.mxu0 0.0
        %5655 = vmatmul.mubr.f32.gmra.mrb[0].mxu0 %v3531
        %v5656 = vpop.f32.mrb[0].mxu0
        %v5657 = vadd.f32 %v5513, %v5656
        %v5658 = vpop.f32.mrb[0].mxu0
        %5659 = vmatprep.mubr.f32.mxu0 0.0
        %5660 = vmatmul.mubr.f32.gmra.mrb[0].mxu0 %v3534
        %v5661 = vpop.f32.mrb[0].mxu0
        %v5662 = vadd.f32 %v5513, %v5661
        %v5663 = vpop.f32.mrb[0].mxu0
        %5664 = vdwg.mxu0
        %5665 = vmatprep.subr.mxu0 0.0
        %5666 = vmatpush1.msra.mxu0 %v5504
        %5667 = vmatprep.subr.mxu0 0.0
        %5668 = vmatpush1.msra.mxu0 %v5505
        %5669 = vmatprep.subr.mxu0 0.0
        %5670 = vmatpush1.msra.mxu0 %v5506
        %5671 = vmatprep.subr.mxu0 0.0
        %5672 = vmatpush1.msra.mxu0 %v5507
        %5673 = vmatprep.subr.mxu0 0.0
        %5674 = vmatpush1.msra.mxu0 %v5508
        %5675 = vmatprep.subr.mxu0 0.0
        %5676 = vmatpush1.msra.mxu0 %v5509
        %5677 = vmatprep.subr.mxu0 0.0
        %5678 = vmatpush1.msra.mxu0 %v5510
        %5679 = vmatprep.subr.mxu0 0.0
        %5680 = vmatpush1.msra.mxu0 %v5511
        %5681 = vmatprep.subr.mxu0 0.0
        %5682 = vmatpush1.msra.mxu0 0.0
        %5683 = vmatprep.subr.mxu0 0.0
        %5684 = vmatpush1.msra.mxu0 0.0
        %5685 = vmatprep.subr.mxu0 0.0
        %5686 = vmatpush1.msra.mxu0 0.0
        %5687 = vmatprep.subr.mxu0 0.0
        %5688 = vmatpush1.msra.mxu0 0.0
        %5689 = vmatprep.subr.mxu0 0.0
        %5690 = vmatpush1.msra.mxu0 0.0
        %5691 = vmatprep.subr.mxu0 0.0
        %5692 = vmatpush1.msra.mxu0 0.0
        %5693 = vmatprep.subr.mxu0 0.0
        %5694 = vmatpush1.msra.mxu0 0.0
        %5695 = vmatprep.subr.mxu0 0.0
        %5696 = vmatpush1.msra.mxu0 0.0
        %5697 = vmatprep.subr.mxu0 0.0
        %5698 = vmatpush1.msra.mxu0 0.0
        %5699 = vmatprep.subr.mxu0 0.0
        %5700 = vmatpush1.msra.mxu0 0.0
        %5701 = vmatprep.subr.mxu0 0.0
        %5702 = vmatpush1.msra.mxu0 0.0
        %5703 = vmatprep.subr.mxu0 0.0
        %5704 = vmatpush1.msra.mxu0 0.0
        %5705 = vmatprep.subr.mxu0 0.0
        %5706 = vmatpush1.msra.mxu0 0.0
        %5707 = vmatprep.subr.mxu0 0.0
        %5708 = vmatpush1.msra.mxu0 0.0
        %5709 = vmatprep.subr.mxu0 0.0
        %5710 = vmatpush1.msra.mxu0 0.0
        %5711 = vmatprep.subr.mxu0 0.0
        %5712 = vmatpush1.msra.mxu0 0.0
        %5713 = vmatprep.subr.mxu0 0.0
        %5714 = vmatpush1.msra.mxu0 0.0
        %5715 = vmatprep.subr.mxu0 0.0
        %5716 = vmatpush1.msra.mxu0 0.0
        %5717 = vmatprep.subr.mxu0 0.0
        %5718 = vmatpush1.msra.mxu0 0.0
        %5719 = vmatprep.subr.mxu0 0.0
        %5720 = vmatpush1.msra.mxu0 0.0
        %5721 = vmatprep.subr.mxu0 0.0
        %5722 = vmatpush1.msra.mxu0 0.0
        %5723 = vmatprep.subr.mxu0 0.0
        %5724 = vmatpush1.msra.mxu0 0.0
        %5725 = vmatprep.subr.mxu0 0.0
        %5726 = vmatpush1.msra.mxu0 0.0
        %5727 = vmatprep.subr.mxu0 0.0
        %5728 = vmatpush1.msra.mxu0 0.0
        %5729 = vmatprep.mubr.f32.mxu0 0.0
        %5730 = vmatmul.mubr.f32.gmra.mrb[0].mxu0 %v3531
        %v5731 = vpop.f32.mrb[0].mxu0
        %v5732 = vadd.f32 %v5514, %v5731
        %v5733 = vpop.f32.mrb[0].mxu0
        %5734 = vmatprep.mubr.f32.mxu0 0.0
        %5735 = vmatmul.mubr.f32.gmra.mrb[0].mxu0 %v3534
        %v5736 = vpop.f32.mrb[0].mxu0
        %v5737 = vadd.f32 %v5514, %v5736
        %v5738 = vpop.f32.mrb[0].mxu0
        %5739 = vdwg.mxu0
        %v5741 = vsel %vm349, %v5582, 0
        %v5744 = vsel %vm349, %v5657, 0
        %5746 = vmatprep.subr.mxu0 0.0
        %5747 = vmatpush1.xpose.msra.mxu0 %v5744
        %5748 = vmatprep.subr.mxu0 0.0
        %5749 = vmatpush1.xpose.msra.mxu0 0.0
        %5750 = vmatprep.subr.mxu0 0.0
        %5751 = vmatpush1.xpose.msra.mxu0 0.0
        %5752 = vmatprep.subr.mxu0 0.0
        %5753 = vmatpush1.xpose.msra.mxu0 0.0
        %5754 = vmatprep.subr.mxu0 0.0
        %5755 = vmatpush1.xpose.msra.mxu0 0.0
        %5756 = vmatprep.subr.mxu0 0.0
        %5757 = vmatpush1.xpose.msra.mxu0 0.0
        %5758 = vmatprep.subr.mxu0 0.0
        %5759 = vmatpush1.xpose.msra.mxu0 0.0
        %5760 = vmatprep.subr.mxu0 0.0
        %5761 = vmatpush1.xpose.msra.mxu0 0.0
        %5762 = vmatprep.subr.mxu0 0.0
        %5763 = vmatpush1.xpose.msra.mxu0 0.0
        %5764 = vmatprep.subr.mxu0 0.0
        %5765 = vmatpush1.xpose.msra.mxu0 0.0
        %5766 = vmatprep.subr.mxu0 0.0
        %5767 = vmatpush1.xpose.msra.mxu0 0.0
        %5768 = vmatprep.subr.mxu0 0.0
        %5769 = vmatpush1.xpose.msra.mxu0 0.0
        %5770 = vmatprep.subr.mxu0 0.0
        %5771 = vmatpush1.xpose.msra.mxu0 0.0
        %5772 = vmatprep.subr.mxu0 0.0
        %5773 = vmatpush1.xpose.msra.mxu0 0.0
        %5774 = vmatprep.subr.mxu0 0.0
        %5775 = vmatpush1.xpose.msra.mxu0 0.0
        %5776 = vmatprep.subr.mxu0 0.0
        %5777 = vmatpush1.xpose.msra.mxu0 0.0
        %5778 = vmatprep.subr.mxu0 0.0
        %5779 = vmatpush1.xpose.msra.mxu0 0.0
        %5780 = vmatprep.subr.mxu0 0.0
        %5781 = vmatpush1.xpose.msra.mxu0 0.0
        %5782 = vmatprep.subr.mxu0 0.0
        %5783 = vmatpush1.xpose.msra.mxu0 0.0
        %5784 = vmatprep.subr.mxu0 0.0
        %5785 = vmatpush1.xpose.msra.mxu0 0.0
        %5786 = vmatprep.subr.mxu0 0.0
        %5787 = vmatpush1.xpose.msra.mxu0 0.0
        %5788 = vmatprep.subr.mxu0 0.0
        %5789 = vmatpush1.xpose.msra.mxu0 0.0
        %5790 = vmatprep.subr.mxu0 0.0
        %5791 = vmatpush1.xpose.msra.mxu0 0.0
        %5792 = vmatprep.subr.mxu0 0.0
        %5793 = vmatpush1.xpose.msra.mxu0 0.0
        %5794 = vmatprep.subr.mxu0 0.0
        %5795 = vmatpush1.xpose.msra.mxu0 0.0
        %5796 = vmatprep.subr.mxu0 0.0
        %5797 = vmatpush1.xpose.msra.mxu0 0.0
        %5798 = vmatprep.subr.mxu0 0.0
        %5799 = vmatpush1.xpose.msra.mxu0 0.0
        %5800 = vmatprep.subr.mxu0 0.0
        %5801 = vmatpush1.xpose.msra.mxu0 0.0
        %5802 = vmatprep.subr.mxu0 0.0
        %5803 = vmatpush1.xpose.msra.mxu0 0.0
        %5804 = vmatprep.subr.mxu0 0.0
        %5805 = vmatpush1.xpose.msra.mxu0 0.0
        %5806 = vmatprep.subr.mxu0 0.0
        %5807 = vmatpush1.xpose.msra.mxu0 0.0
        %5808 = vmatprep.subr.mxu0 0.0
        %5809 = vmatpush1.xpose.msra.mxu0 0.0
        %5810 = vmatprep.mubr.f32.mxu0 0.0
        %5811 = vmatmul.mubr.f32.gmra.mrb[0].mxu0 %v5741
        %v5812 = vpop.f32.mrb[0].mxu0
        %v5813 = vadd.f32 0.0, %v5812
        %v5814 = vpop.f32.mrb[0].mxu0
        %5815 = vdwg.mxu0
        %v5817 = vsel %vm349, %v5587, 0
        %v5820 = vsel %vm349, %v5662, 0
        %5822 = vmatprep.subr.mxu0 0.0
        %5823 = vmatpush1.xpose.msra.mxu0 %v5820
        %5824 = vmatprep.subr.mxu0 0.0
        %5825 = vmatpush1.xpose.msra.mxu0 0.0
        %5826 = vmatprep.subr.mxu0 0.0
        %5827 = vmatpush1.xpose.msra.mxu0 0.0
        %5828 = vmatprep.subr.mxu0 0.0
        %5829 = vmatpush1.xpose.msra.mxu0 0.0
        %5830 = vmatprep.subr.mxu0 0.0
        %5831 = vmatpush1.xpose.msra.mxu0 0.0
        %5832 = vmatprep.subr.mxu0 0.0
        %5833 = vmatpush1.xpose.msra.mxu0 0.0
        %5834 = vmatprep.subr.mxu0 0.0
        %5835 = vmatpush1.xpose.msra.mxu0 0.0
        %5836 = vmatprep.subr.mxu0 0.0
        %5837 = vmatpush1.xpose.msra.mxu0 0.0
        %5838 = vmatprep.subr.mxu0 0.0
        %5839 = vmatpush1.xpose.msra.mxu0 0.0
        %5840 = vmatprep.subr.mxu0 0.0
        %5841 = vmatpush1.xpose.msra.mxu0 0.0
        %5842 = vmatprep.subr.mxu0 0.0
        %5843 = vmatpush1.xpose.msra.mxu0 0.0
        %5844 = vmatprep.subr.mxu0 0.0
        %5845 = vmatpush1.xpose.msra.mxu0 0.0
        %5846 = vmatprep.subr.mxu0 0.0
        %5847 = vmatpush1.xpose.msra.mxu0 0.0
        %5848 = vmatprep.subr.mxu0 0.0
        %5849 = vmatpush1.xpose.msra.mxu0 0.0
        %5850 = vmatprep.subr.mxu0 0.0
        %5851 = vmatpush1.xpose.msra.mxu0 0.0
        %5852 = vmatprep.subr.mxu0 0.0
        %5853 = vmatpush1.xpose.msra.mxu0 0.0
        %5854 = vmatprep.subr.mxu0 0.0
        %5855 = vmatpush1.xpose.msra.mxu0 0.0
        %5856 = vmatprep.subr.mxu0 0.0
        %5857 = vmatpush1.xpose.msra.mxu0 0.0
        %5858 = vmatprep.subr.mxu0 0.0
        %5859 = vmatpush1.xpose.msra.mxu0 0.0
        %5860 = vmatprep.subr.mxu0 0.0
        %5861 = vmatpush1.xpose.msra.mxu0 0.0
        %5862 = vmatprep.subr.mxu0 0.0
        %5863 = vmatpush1.xpose.msra.mxu0 0.0
        %5864 = vmatprep.subr.mxu0 0.0
        %5865 = vmatpush1.xpose.msra.mxu0 0.0
        %5866 = vmatprep.subr.mxu0 0.0
        %5867 = vmatpush1.xpose.msra.mxu0 0.0
        %5868 = vmatprep.subr.mxu0 0.0
        %5869 = vmatpush1.xpose.msra.mxu0 0.0
        %5870 = vmatprep.subr.mxu0 0.0
        %5871 = vmatpush1.xpose.msra.mxu0 0.0
        %5872 = vmatprep.subr.mxu0 0.0
        %5873 = vmatpush1.xpose.msra.mxu0 0.0
        %5874 = vmatprep.subr.mxu0 0.0
        %5875 = vmatpush1.xpose.msra.mxu0 0.0
        %5876 = vmatprep.subr.mxu0 0.0
        %5877 = vmatpush1.xpose.msra.mxu0 0.0
        %5878 = vmatprep.subr.mxu0 0.0
        %5879 = vmatpush1.xpose.msra.mxu0 0.0
        %5880 = vmatprep.subr.mxu0 0.0
        %5881 = vmatpush1.xpose.msra.mxu0 0.0
        %5882 = vmatprep.subr.mxu0 0.0
        %5883 = vmatpush1.xpose.msra.mxu0 0.0
        %5884 = vmatprep.subr.mxu0 0.0
        %5885 = vmatpush1.xpose.msra.mxu0 0.0
        %5886 = vmatprep.mubr.f32.mxu0 0.0
        %5887 = vmatmul.mubr.f32.gmra.mrb[0].mxu0 %v5817
        %v5888 = vpop.f32.mrb[0].mxu0
        %v5889 = vadd.f32 0.0, %v5888
        %v5890 = vpop.f32.mrb[0].mxu0
        %5891 = vdwg.mxu0
        %v5892 = vmul.f32 %v5813, 0.25
        %v5893 = vmul.f32 %v5889, 0.25
        %v5894 = vadd.f32 %v5892, %v165
        %v5895 = vadd.f32 %v5893, %v165
        %v5896 = vsel %vm929, %v5894, -inf
        %5897 = vmax.xlane.f32.xlu0 %v5896
        %v5898 = vpop.xlane.xlu0 %5897
        %v5899 = vsel %vm929, %v5895, -inf
        %5900 = vmax.xlane.f32.xlu0 %v5899
        %v5901 = vpop.xlane.xlu0 %5900
        %v5902 = vsub.f32 %v5894, %v5898
        %v5903 = vsub.f32 %v5895, %v5901
        %v5904 = vmul.f32 %v5902, 1.442695
        %v5905 = vpow.pop %v5904
        %v5906 = vmul.f32 %v5903, 1.442695
        %v5907 = vpow.pop %v5906
        %v5908 = vsel %vm929, %v5905, 0.0
        %5909 = vadd.xlane.f32.xlu0 %v5908
        %v5910 = vpop.xlane.xlu0 %5909
        %v5911 = vsel %vm929, %v5907, 0.0
        %5912 = vadd.xlane.f32.xlu0 %v5911
        %v5913 = vpop.xlane.xlu0 %5912
        %v5914 = vrcp.pop %v5910
        %v5915 = vrcp.pop %v5913
        %v5916 = vmul.f32 %v5905, %v5914
        %v5917 = vmul.f32 %v5907, %v5915
        %v5919 = vsel %vm929, %v5916, 0
        %5921 = vmatprep.subr.mxu0 0.0
        %5922 = vmatpush1.msra.mxu0 %v5732
        %5923 = vmatprep.subr.mxu0 0.0
        %5924 = vmatpush1.msra.mxu0 0.0
        %5925 = vmatprep.subr.mxu0 0.0
        %5926 = vmatpush1.msra.mxu0 0.0
        %5927 = vmatprep.subr.mxu0 0.0
        %5928 = vmatpush1.msra.mxu0 0.0
        %5929 = vmatprep.subr.mxu0 0.0
        %5930 = vmatpush1.msra.mxu0 0.0
        %5931 = vmatprep.subr.mxu0 0.0
        %5932 = vmatpush1.msra.mxu0 0.0
        %5933 = vmatprep.subr.mxu0 0.0
        %5934 = vmatpush1.msra.mxu0 0.0
        %5935 = vmatprep.subr.mxu0 0.0
        %5936 = vmatpush1.msra.mxu0 0.0
        %5937 = vmatprep.subr.mxu0 0.0
        %5938 = vmatpush1.msra.mxu0 0.0
        %5939 = vmatprep.subr.mxu0 0.0
        %5940 = vmatpush1.msra.mxu0 0.0
        %5941 = vmatprep.subr.mxu0 0.0
        %5942 = vmatpush1.msra.mxu0 0.0
        %5943 = vmatprep.subr.mxu0 0.0
        %5944 = vmatpush1.msra.mxu0 0.0
        %5945 = vmatprep.subr.mxu0 0.0
        %5946 = vmatpush1.msra.mxu0 0.0
        %5947 = vmatprep.subr.mxu0 0.0
        %5948 = vmatpush1.msra.mxu0 0.0
        %5949 = vmatprep.subr.mxu0 0.0
        %5950 = vmatpush1.msra.mxu0 0.0
        %5951 = vmatprep.subr.mxu0 0.0
        %5952 = vmatpush1.msra.mxu0 0.0
        %5953 = vmatprep.subr.mxu0 0.0
        %5954 = vmatpush1.msra.mxu0 0.0
        %5955 = vmatprep.subr.mxu0 0.0
        %5956 = vmatpush1.msra.mxu0 0.0
        %5957 = vmatprep.subr.mxu0 0.0
        %5958 = vmatpush1.msra.mxu0 0.0
        %5959 = vmatprep.subr.mxu0 0.0
        %5960 = vmatpush1.msra.mxu0 0.0
        %5961 = vmatprep.subr.mxu0 0.0
        %5962 = vmatpush1.msra.mxu0 0.0
        %5963 = vmatprep.subr.mxu0 0.0
        %5964 = vmatpush1.msra.mxu0 0.0
        %5965 = vmatprep.subr.mxu0 0.0
        %5966 = vmatpush1.msra.mxu0 0.0
        %5967 = vmatprep.subr.mxu0 0.0
        %5968 = vmatpush1.msra.mxu0 0.0
        %5969 = vmatprep.subr.mxu0 0.0
        %5970 = vmatpush1.msra.mxu0 0.0
        %5971 = vmatprep.subr.mxu0 0.0
        %5972 = vmatpush1.msra.mxu0 0.0
        %5973 = vmatprep.subr.mxu0 0.0
        %5974 = vmatpush1.msra.mxu0 0.0
        %5975 = vmatprep.subr.mxu0 0.0
        %5976 = vmatpush1.msra.mxu0 0.0
        %5977 = vmatprep.subr.mxu0 0.0
        %5978 = vmatpush1.msra.mxu0 0.0
        %5979 = vmatprep.subr.mxu0 0.0
        %5980 = vmatpush1.msra.mxu0 0.0
        %5981 = vmatprep.subr.mxu0 0.0
        %5982 = vmatpush1.msra.mxu0 0.0
        %5983 = vmatprep.subr.mxu0 0.0
        %5984 = vmatpush1.msra.mxu0 0.0
        %5985 = vmatprep.mubr.f32.mxu0 0.0
        %5986 = vmatmul.mubr.f32.gmra.mrb[0].mxu0 %v5919
        %v5987 = vpop.f32.mrb[0].mxu0
        %v5988 = vadd.f32 0.0, %v5987
        %v5989 = vpop.f32.mrb[0].mxu0
        %5990 = vdwg.mxu0
        %v5992 = vsel %vm929, %v5917, 0
        %5994 = vmatprep.subr.mxu0 0.0
        %5995 = vmatpush1.msra.mxu0 %v5737
        %5996 = vmatprep.subr.mxu0 0.0
        %5997 = vmatpush1.msra.mxu0 0.0
        %5998 = vmatprep.subr.mxu0 0.0
        %5999 = vmatpush1.msra.mxu0 0.0
        %6000 = vmatprep.subr.mxu0 0.0
        %6001 = vmatpush1.msra.mxu0 0.0
        %6002 = vmatprep.subr.mxu0 0.0
        %6003 = vmatpush1.msra.mxu0 0.0
        %6004 = vmatprep.subr.mxu0 0.0
        %6005 = vmatpush1.msra.mxu0 0.0
        %6006 = vmatprep.subr.mxu0 0.0
        %6007 = vmatpush1.msra.mxu0 0.0
        %6008 = vmatprep.subr.mxu0 0.0
        %6009 = vmatpush1.msra.mxu0 0.0
        %6010 = vmatprep.subr.mxu0 0.0
        %6011 = vmatpush1.msra.mxu0 0.0
        %6012 = vmatprep.subr.mxu0 0.0
        %6013 = vmatpush1.msra.mxu0 0.0
        %6014 = vmatprep.subr.mxu0 0.0
        %6015 = vmatpush1.msra.mxu0 0.0
        %6016 = vmatprep.subr.mxu0 0.0
        %6017 = vmatpush1.msra.mxu0 0.0
        %6018 = vmatprep.subr.mxu0 0.0
        %6019 = vmatpush1.msra.mxu0 0.0
        %6020 = vmatprep.subr.mxu0 0.0
        %6021 = vmatpush1.msra.mxu0 0.0
        %6022 = vmatprep.subr.mxu0 0.0
        %6023 = vmatpush1.msra.mxu0 0.0
        %6024 = vmatprep.subr.mxu0 0.0
        %6025 = vmatpush1.msra.mxu0 0.0
        %6026 = vmatprep.subr.mxu0 0.0
        %6027 = vmatpush1.msra.mxu0 0.0
        %6028 = vmatprep.subr.mxu0 0.0
        %6029 = vmatpush1.msra.mxu0 0.0
        %6030 = vmatprep.subr.mxu0 0.0
        %6031 = vmatpush1.msra.mxu0 0.0
        %6032 = vmatprep.subr.mxu0 0.0
        %6033 = vmatpush1.msra.mxu0 0.0
        %6034 = vmatprep.subr.mxu0 0.0
        %6035 = vmatpush1.msra.mxu0 0.0
        %6036 = vmatprep.subr.mxu0 0.0
        %6037 = vmatpush1.msra.mxu0 0.0
        %6038 = vmatprep.subr.mxu0 0.0
        %6039 = vmatpush1.msra.mxu0 0.0
        %6040 = vmatprep.subr.mxu0 0.0
        %6041 = vmatpush1.msra.mxu0 0.0
        %6042 = vmatprep.subr.mxu0 0.0
        %6043 = vmatpush1.msra.mxu0 0.0
        %6044 = vmatprep.subr.mxu0 0.0
        %6045 = vmatpush1.msra.mxu0 0.0
        %6046 = vmatprep.subr.mxu0 0.0
        %6047 = vmatpush1.msra.mxu0 0.0
        %6048 = vmatprep.subr.mxu0 0.0
        %6049 = vmatpush1.msra.mxu0 0.0
        %6050 = vmatprep.subr.mxu0 0.0
        %6051 = vmatpush1.msra.mxu0 0.0
        %6052 = vmatprep.subr.mxu0 0.0
        %6053 = vmatpush1.msra.mxu0 0.0
        %6054 = vmatprep.subr.mxu0 0.0
        %6055 = vmatpush1.msra.mxu0 0.0
        %6056 = vmatprep.subr.mxu0 0.0
        %6057 = vmatpush1.msra.mxu0 0.0
        %6058 = vmatprep.mubr.f32.mxu0 0.0
        %6059 = vmatmul.mubr.f32.gmra.mrb[0].mxu0 %v5992
        %v6060 = vpop.f32.mrb[0].mxu0
        %v6061 = vadd.f32 0.0, %v6060
        %v6062 = vpop.f32.mrb[0].mxu0
        %6063 = vdwg.mxu0
        %v6064 = vld [vmem:[#allocation2 + $0x1100] sm:$0xff]
        %v6065 = vld [vmem:[#allocation2 + $0x1110] sm:$0xff]
        %v6067 = vsel %vm349, %v5988, 0
        %v6070 = vsel %vm349, %v6061, 0
        %6072 = vmatprep.subr.mxu0 0.0
        %6073 = vmatpush1.msra.mxu0 %v6064
        %6074 = vmatprep.subr.mxu0 0.0
        %6075 = vmatpush1.msra.mxu0 %v6065
        %6076 = vmatprep.subr.mxu0 0.0
        %6077 = vmatpush1.msra.mxu0 0.0
        %6078 = vmatprep.subr.mxu0 0.0
        %6079 = vmatpush1.msra.mxu0 0.0
        %6080 = vmatprep.subr.mxu0 0.0
        %6081 = vmatpush1.msra.mxu0 0.0
        %6082 = vmatprep.subr.mxu0 0.0
        %6083 = vmatpush1.msra.mxu0 0.0
        %6084 = vmatprep.subr.mxu0 0.0
        %6085 = vmatpush1.msra.mxu0 0.0
        %6086 = vmatprep.subr.mxu0 0.0
        %6087 = vmatpush1.msra.mxu0 0.0
        %6088 = vmatprep.subr.mxu0 0.0
        %6089 = vmatpush1.msra.mxu0 0.0
        %6090 = vmatprep.subr.mxu0 0.0
        %6091 = vmatpush1.msra.mxu0 0.0
        %6092 = vmatprep.subr.mxu0 0.0
        %6093 = vmatpush1.msra.mxu0 0.0
        %6094 = vmatprep.subr.mxu0 0.0
        %6095 = vmatpush1.msra.mxu0 0.0
        %6096 = vmatprep.subr.mxu0 0.0
        %6097 = vmatpush1.msra.mxu0 0.0
        %6098 = vmatprep.subr.mxu0 0.0
        %6099 = vmatpush1.msra.mxu0 0.0
        %6100 = vmatprep.subr.mxu0 0.0
        %6101 = vmatpush1.msra.mxu0 0.0
        %6102 = vmatprep.subr.mxu0 0.0
        %6103 = vmatpush1.msra.mxu0 0.0
        %6104 = vmatprep.subr.mxu0 0.0
        %6105 = vmatpush1.msra.mxu0 0.0
        %6106 = vmatprep.subr.mxu0 0.0
        %6107 = vmatpush1.msra.mxu0 0.0
        %6108 = vmatprep.subr.mxu0 0.0
        %6109 = vmatpush1.msra.mxu0 0.0
        %6110 = vmatprep.subr.mxu0 0.0
        %6111 = vmatpush1.msra.mxu0 0.0
        %6112 = vmatprep.subr.mxu0 0.0
        %6113 = vmatpush1.msra.mxu0 0.0
        %6114 = vmatprep.subr.mxu0 0.0
        %6115 = vmatpush1.msra.mxu0 0.0
        %6116 = vmatprep.subr.mxu0 0.0
        %6117 = vmatpush1.msra.mxu0 0.0
        %6118 = vmatprep.subr.mxu0 0.0
        %6119 = vmatpush1.msra.mxu0 0.0
        %6120 = vmatprep.subr.mxu0 0.0
        %6121 = vmatpush1.msra.mxu0 0.0
        %6122 = vmatprep.subr.mxu0 0.0
        %6123 = vmatpush1.msra.mxu0 0.0
        %6124 = vmatprep.subr.mxu0 0.0
        %6125 = vmatpush1.msra.mxu0 0.0
        %6126 = vmatprep.subr.mxu0 0.0
        %6127 = vmatpush1.msra.mxu0 0.0
        %6128 = vmatprep.subr.mxu0 0.0
        %6129 = vmatpush1.msra.mxu0 0.0
        %6130 = vmatprep.subr.mxu0 0.0
        %6131 = vmatpush1.msra.mxu0 0.0
        %6132 = vmatprep.subr.mxu0 0.0
        %6133 = vmatpush1.msra.mxu0 0.0
        %6134 = vmatprep.subr.mxu0 0.0
        %6135 = vmatpush1.msra.mxu0 0.0
        %6136 = vmatprep.mubr.f32.mxu0 0.0
        %6137 = vmatmul.mubr.f32.gmra.mrb[0].mxu0 %v6067
        %v6138 = vpop.f32.mrb[0].mxu0
        %v6139 = vadd.f32 0.0, %v6138
        %v6140 = vpop.f32.mrb[0].mxu0
        %6141 = vmatprep.mubr.f32.mxu0 0.0
        %6142 = vmatmul.mubr.f32.gmra.mrb[0].mxu0 %v6070
        %v6143 = vpop.f32.mrb[0].mxu0
        %v6144 = vadd.f32 0.0, %v6143
        %v6145 = vpop.f32.mrb[0].mxu0
        %6146 = vdwg.mxu0
        %v6147 = vadd.f32 %v5486, %v6139
        %v6148 = vadd.f32 %v5487, %v6144
        %v6149 = vadd.f32 %v3462, %v6147
        %v6150 = vadd.f32 %v3463, %v6148
        %v6151 = vld [vmem:[#allocation2 + $0x1120] ss:$0 sm:$0xff]
        %v6152 = vadd.f32 %v6149, %v6151
        %v6153 = vadd.f32 %v6150, %v6151
        %v6154 = vld [vmem:[#allocation2 + $0x1130] sm:$0x3]
        %v6155 = vsel %vm436, %v6152, 0.0
        %6156 = vadd.xlane.f32.xlu0 %v6155
        %v6157 = vpop.xlane.xlu0 %6156
        %v6158 = vsel %vm436, %v6153, 0.0
        %6159 = vadd.xlane.f32.xlu0 %v6158
        %v6160 = vpop.xlane.xlu0 %6159
        %v6161 = vmul.f32 %v6157, %v443
        %v6162 = vmul.f32 %v6160, %v443
        %v6163 = vsub.f32 %v6152, %v6161
        %v6164 = vsub.f32 %v6153, %v6162
        %v6165 = vmul.f32 %v6163, %v6163
        %v6166 = vmul.f32 %v6164, %v6164
        %v6167 = vsel %vm436, %v6165, 0.0
        %6168 = vadd.xlane.f32.xlu0 %v6167
        %v6169 = vpop.xlane.xlu0 %6168
        %v6170 = vsel %vm436, %v6166, 0.0
        %6171 = vadd.xlane.f32.xlu0 %v6170
        %v6172 = vpop.xlane.xlu0 %6171
        %v6173 = vmul.f32 %v6169, %v443
        %v6174 = vmul.f32 %v6172, %v443
        %v6175 = vadd.f32 %v6173, 1e-05
        %v6176 = vadd.f32 %v6174, 1e-05
        %v6177 = vrsqrt.pop %v6175
        %v6178 = vrsqrt.pop %v6176
        %v6179 = vmul.f32 %v6163, %v6177
        %v6180 = vmul.f32 %v6164, %v6178
        %v6181 = vlaneseq
        %v6182 = vshrl.u32 %v6181, 7
        %v6183 = vsub.s32 0, %v6182
        %v6184 = vrot.slane %v6154, %v6183
        %v6185 = vmul.f32 %v6179, %v6184
        %v6186 = vmul.f32 %v6180, %v6184
        %v6187 = vlaneseq
        %v6188 = vshrl.u32 %v6187, 7
        %v6189 = vsub.s32 1, %v6188
        %v6190 = vrot.slane %v6154, %v6189
        %v6191 = vadd.f32 %v6185, %v6190
        %v6192 = vadd.f32 %v6186, %v6190
        %v6193 = vld [vmem:[#allocation2 + $0x1140] sm:$0xff]
        %v6194 = vld [vmem:[#allocation2 + $0x1148] sm:$0xff]
        %v6195 = vld [vmem:[#allocation2 + $0x1150] sm:$0xff]
        %v6196 = vld [vmem:[#allocation2 + $0x1158] sm:$0xff]
        %v6197 = vld [vmem:[#allocation2 + $0x1160] sm:$0xff]
        %v6198 = vld [vmem:[#allocation2 + $0x1168] sm:$0xff]
        %v6199 = vld [vmem:[#allocation2 + $0x1170] sm:$0xff]
        %v6200 = vld [vmem:[#allocation2 + $0x1178] sm:$0xff]
        %v6201 = vld [vmem:[#allocation2 + $0x1180] sm:$0xff]
        %v6202 = vld [vmem:[#allocation2 + $0x1188] sm:$0xff]
        %v6203 = vld [vmem:[#allocation2 + $0x1190] sm:$0xff]
        %v6204 = vld [vmem:[#allocation2 + $0x1198] sm:$0xff]
        %v6205 = vld [vmem:[#allocation2 + $0x11a0] sm:$0xff]
        %v6206 = vld [vmem:[#allocation2 + $0x11a8] sm:$0xff]
        %v6207 = vld [vmem:[#allocation2 + $0x11b0] sm:$0xff]
        %v6208 = vld [vmem:[#allocation2 + $0x11b8] sm:$0xff]
        %s6209 = scalar_lea.vmem [#allocation2], 4544
        %v6210 = vld [vmem:[%s6209] ss:$8 sm:$0x3]
        %v6212 = vlaneseq
        %v6213 = vshrl.u32 %v6212, 7
        %v6214 = vsub.s32 0, %v6213
        %v6215 = vrot.slane %v6210, %v6214
        %v6216 = vlaneseq
        %v6217 = vshrl.u32 %v6216, 7
        %v6218 = vsub.s32 1, %v6217
        %v6219 = vrot.slane %v6210, %v6218
        %v6223 = vsel %vm436, %v6191, 0
        %v6226 = vsel %vm436, %v6192, 0
        %6228 = vmatprep.subr.mxu0 %v6194
        %6229 = vmatpush1.msra.mxu0 %v6193
        %6230 = vmatprep.subr.mxu0 %v6196
        %6231 = vmatpush1.msra.mxu0 %v6195
        %6232 = vmatprep.subr.mxu0 %v6198
        %6233 = vmatpush1.msra.mxu0 %v6197
        %6234 = vmatprep.subr.mxu0 %v6200
        %6235 = vmatpush1.msra.mxu0 %v6199
        %6236 = vmatprep.subr.mxu0 %v6202
        %6237 = vmatpush1.msra.mxu0 %v6201
        %6238 = vmatprep.subr.mxu0 %v6204
        %6239 = vmatpush1.msra.mxu0 %v6203
        %6240 = vmatprep.subr.mxu0 %v6206
        %6241 = vmatpush1.msra.mxu0 %v6205
        %6242 = vmatprep.subr.mxu0 %v6208
        %6243 = vmatpush1.msra.mxu0 %v6207
        %6244 = vmatprep.subr.mxu0 0.0
        %6245 = vmatpush1.msra.mxu0 0.0
        %6246 = vmatprep.subr.mxu0 0.0
        %6247 = vmatpush1.msra.mxu0 0.0
        %6248 = vmatprep.subr.mxu0 0.0
        %6249 = vmatpush1.msra.mxu0 0.0
        %6250 = vmatprep.subr.mxu0 0.0
        %6251 = vmatpush1.msra.mxu0 0.0
        %6252 = vmatprep.subr.mxu0 0.0
        %6253 = vmatpush1.msra.mxu0 0.0
        %6254 = vmatprep.subr.mxu0 0.0
        %6255 = vmatpush1.msra.mxu0 0.0
        %6256 = vmatprep.subr.mxu0 0.0
        %6257 = vmatpush1.msra.mxu0 0.0
        %6258 = vmatprep.subr.mxu0 0.0
        %6259 = vmatpush1.msra.mxu0 0.0
        %6260 = vmatprep.subr.mxu0 0.0
        %6261 = vmatpush1.msra.mxu0 0.0
        %6262 = vmatprep.subr.mxu0 0.0
        %6263 = vmatpush1.msra.mxu0 0.0
        %6264 = vmatprep.subr.mxu0 0.0
        %6265 = vmatpush1.msra.mxu0 0.0
        %6266 = vmatprep.subr.mxu0 0.0
        %6267 = vmatpush1.msra.mxu0 0.0
        %6268 = vmatprep.subr.mxu0 0.0
        %6269 = vmatpush1.msra.mxu0 0.0
        %6270 = vmatprep.subr.mxu0 0.0
        %6271 = vmatpush1.msra.mxu0 0.0
        %6272 = vmatprep.subr.mxu0 0.0
        %6273 = vmatpush1.msra.mxu0 0.0
        %6274 = vmatprep.subr.mxu0 0.0
        %6275 = vmatpush1.msra.mxu0 0.0
        %6276 = vmatprep.subr.mxu0 0.0
        %6277 = vmatpush1.msra.mxu0 0.0
        %6278 = vmatprep.subr.mxu0 0.0
        %6279 = vmatpush1.msra.mxu0 0.0
        %6280 = vmatprep.subr.mxu0 0.0
        %6281 = vmatpush1.msra.mxu0 0.0
        %6282 = vmatprep.subr.mxu0 0.0
        %6283 = vmatpush1.msra.mxu0 0.0
        %6284 = vmatprep.subr.mxu0 0.0
        %6285 = vmatpush1.msra.mxu0 0.0
        %6286 = vmatprep.subr.mxu0 0.0
        %6287 = vmatpush1.msra.mxu0 0.0
        %6288 = vmatprep.subr.mxu0 0.0
        %6289 = vmatpush1.msra.mxu0 0.0
        %6290 = vmatprep.subr.mxu0 0.0
        %6291 = vmatpush1.msra.mxu0 0.0
        %6292 = vmatprep.mubr.f32.mxu0 0.0
        %6293 = vmatmul.mubr.f32.gmra.mrb[0].mxu0 %v6223
        %v6294 = vpop.f32.mrb[0].mxu0
        %v6295 = vadd.f32 %v6215, %v6294
        %v6296 = vpop.f32.mrb[0].mxu0
        %v6297 = vadd.f32 %v6219, %v6296
        %6298 = vmatprep.mubr.f32.mxu0 0.0
        %6299 = vmatmul.mubr.f32.gmra.mrb[0].mxu0 %v6226
        %v6300 = vpop.f32.mrb[0].mxu0
        %v6301 = vadd.f32 %v6215, %v6300
        %v6302 = vpop.f32.mrb[0].mxu0
        %v6303 = vadd.f32 %v6219, %v6302
        %6304 = vdwg.mxu0
        %v6305 = vmul.f32 %v6295, 0.5
        %v6306 = vmul.f32 %v6297, 0.5
        %v6307 = vmul.f32 %v6301, 0.5
        %v6308 = vmul.f32 %v6303, 0.5
        %v6309 = vmul.f32 %v6295, %v6295
        %v6310 = vmul.f32 %v6297, %v6297
        %v6311 = vmul.f32 %v6301, %v6301
        %v6312 = vmul.f32 %v6303, %v6303
        %v6313 = vmul.f32 %v6309, %v6295
        %v6314 = vmul.f32 %v6310, %v6297
        %v6315 = vmul.f32 %v6311, %v6301
        %v6316 = vmul.f32 %v6312, %v6303
        %v6317 = vmul.f32 %v6313, 0.044715
        %v6318 = vmul.f32 %v6314, 0.044715
        %v6319 = vmul.f32 %v6315, 0.044715
        %v6320 = vmul.f32 %v6316, 0.044715
        %v6321 = vadd.f32 %v6295, %v6317
        %v6322 = vadd.f32 %v6297, %v6318
        %v6323 = vadd.f32 %v6301, %v6319
        %v6324 = vadd.f32 %v6303, %v6320
        %v6325 = vmul.f32 %v6321, 0.7978846
        %v6326 = vmul.f32 %v6322, 0.7978846
        %v6327 = vmul.f32 %v6323, 0.7978846
        %v6328 = vmul.f32 %v6324, 0.7978846
        %v6329 = vtanh.pop %v6325
        %v6330 = vtanh.pop %v6326
        %v6331 = vtanh.pop %v6327
        %v6332 = vtanh.pop %v6328
        %v6333 = vadd.f32 %v6329, 1.0
        %v6334 = vadd.f32 %v6330, 1.0
        %v6335 = vadd.f32 %v6331, 1.0
        %v6336 = vadd.f32 %v6332, 1.0
        %v6337 = vmul.f32 %v6305, %v6333
        %v6338 = vmul.f32 %v6306, %v6334
        %v6339 = vmul.f32 %v6307, %v6335
        %v6340 = vmul.f32 %v6308, %v6336
        %v6341 = vld [vmem:[#allocation2 + $0x11d0] sm:$0xff]
        %v6342 = vld [vmem:[#allocation2 + $0x11e0] sm:$0xff]
        %v6343 = vld [vmem:[#allocation2 + $0x11f0] sm:$0xff]
        %v6344 = vld [vmem:[#allocation2 + $0x1200] sm:$0xff]
        %v6345 = vld [vmem:[#allocation2 + $0x1210] sm:$0xff]
        %v6346 = vld [vmem:[#allocation2 + $0x1220] sm:$0xff]
        %v6347 = vld [vmem:[#allocation2 + $0x1230] sm:$0xff]
        %v6348 = vld [vmem:[#allocation2 + $0x1240] sm:$0xff]
        %v6349 = vld [vmem:[#allocation2 + $0x1250] sm:$0xff]
        %v6350 = vld [vmem:[#allocation2 + $0x1260] sm:$0xff]
        %v6351 = vld [vmem:[#allocation2 + $0x1270] sm:$0xff]
        %v6352 = vld [vmem:[#allocation2 + $0x1280] sm:$0xff]
        %v6353 = vld [vmem:[#allocation2 + $0x1290] sm:$0xff]
        %v6354 = vld [vmem:[#allocation2 + $0x12a0] sm:$0xff]
        %v6355 = vld [vmem:[#allocation2 + $0x12b0] sm:$0xff]
        %v6356 = vld [vmem:[#allocation2 + $0x12c0] sm:$0xff]
        %v6357 = vld [vmem:[#allocation2 + $0x12d0] sm:$0xff]
        %v6358 = vld [vmem:[#allocation2 + $0x12e0] sm:$0xff]
        %v6359 = vld [vmem:[#allocation2 + $0x12f0] sm:$0xff]
        %v6360 = vld [vmem:[#allocation2 + $0x1300] sm:$0xff]
        %v6361 = vld [vmem:[#allocation2 + $0x1310] sm:$0xff]
        %v6362 = vld [vmem:[#allocation2 + $0x1320] sm:$0xff]
        %v6363 = vld [vmem:[#allocation2 + $0x1330] sm:$0xff]
        %v6364 = vld [vmem:[#allocation2 + $0x1340] sm:$0xff]
        %v6365 = vld [vmem:[#allocation2 + $0x1350] sm:$0xff]
        %v6366 = vld [vmem:[#allocation2 + $0x1360] sm:$0xff]
        %v6367 = vld [vmem:[#allocation2 + $0x1370] sm:$0xff]
        %v6368 = vld [vmem:[#allocation2 + $0x1380] sm:$0xff]
        %v6369 = vld [vmem:[#allocation2 + $0x1390] sm:$0xff]
        %v6370 = vld [vmem:[#allocation2 + $0x13a0] sm:$0xff]
        %v6371 = vld [vmem:[#allocation2 + $0x13b0] sm:$0xff]
        %v6372 = vld [vmem:[#allocation2 + $0x13c0] sm:$0xff]
        %v6373 = vld [vmem:[#allocation2 + $0x13d0] ss:$0 sm:$0xff]
        %6374 = vmatprep.subr.mxu0 0.0
        %6375 = vmatpush1.msra.mxu0 %v6341
        %6376 = vmatprep.subr.mxu0 0.0
        %6377 = vmatpush1.msra.mxu0 %v6342
        %6378 = vmatprep.subr.mxu0 0.0
        %6379 = vmatpush1.msra.mxu0 %v6343
        %6380 = vmatprep.subr.mxu0 0.0
        %6381 = vmatpush1.msra.mxu0 %v6344
        %6382 = vmatprep.subr.mxu0 0.0
        %6383 = vmatpush1.msra.mxu0 %v6345
        %6384 = vmatprep.subr.mxu0 0.0
        %6385 = vmatpush1.msra.mxu0 %v6346
        %6386 = vmatprep.subr.mxu0 0.0
        %6387 = vmatpush1.msra.mxu0 %v6347
        %6388 = vmatprep.subr.mxu0 0.0
        %6389 = vmatpush1.msra.mxu0 %v6348
        %6390 = vmatprep.subr.mxu0 0.0
        %6391 = vmatpush1.msra.mxu0 %v6349
        %6392 = vmatprep.subr.mxu0 0.0
        %6393 = vmatpush1.msra.mxu0 %v6350
        %6394 = vmatprep.subr.mxu0 0.0
        %6395 = vmatpush1.msra.mxu0 %v6351
        %6396 = vmatprep.subr.mxu0 0.0
        %6397 = vmatpush1.msra.mxu0 %v6352
        %6398 = vmatprep.subr.mxu0 0.0
        %6399 = vmatpush1.msra.mxu0 %v6353
        %6400 = vmatprep.subr.mxu0 0.0
        %6401 = vmatpush1.msra.mxu0 %v6354
        %6402 = vmatprep.subr.mxu0 0.0
        %6403 = vmatpush1.msra.mxu0 %v6355
        %6404 = vmatprep.subr.mxu0 0.0
        %6405 = vmatpush1.msra.mxu0 %v6356
        %6406 = vmatprep.subr.mxu0 0.0
        %6407 = vmatpush1.msra.mxu0 %v6357
        %6408 = vmatprep.subr.mxu0 0.0
        %6409 = vmatpush1.msra.mxu0 %v6358
        %6410 = vmatprep.subr.mxu0 0.0
        %6411 = vmatpush1.msra.mxu0 %v6359
        %6412 = vmatprep.subr.mxu0 0.0
        %6413 = vmatpush1.msra.mxu0 %v6360
        %6414 = vmatprep.subr.mxu0 0.0
        %6415 = vmatpush1.msra.mxu0 %v6361
        %6416 = vmatprep.subr.mxu0 0.0
        %6417 = vmatpush1.msra.mxu0 %v6362
        %6418 = vmatprep.subr.mxu0 0.0
        %6419 = vmatpush1.msra.mxu0 %v6363
        %6420 = vmatprep.subr.mxu0 0.0
        %6421 = vmatpush1.msra.mxu0 %v6364
        %6422 = vmatprep.subr.mxu0 0.0
        %6423 = vmatpush1.msra.mxu0 %v6365
        %6424 = vmatprep.subr.mxu0 0.0
        %6425 = vmatpush1.msra.mxu0 %v6366
        %6426 = vmatprep.subr.mxu0 0.0
        %6427 = vmatpush1.msra.mxu0 %v6367
        %6428 = vmatprep.subr.mxu0 0.0
        %6429 = vmatpush1.msra.mxu0 %v6368
        %6430 = vmatprep.subr.mxu0 0.0
        %6431 = vmatpush1.msra.mxu0 %v6369
        %6432 = vmatprep.subr.mxu0 0.0
        %6433 = vmatpush1.msra.mxu0 %v6370
        %6434 = vmatprep.subr.mxu0 0.0
        %6435 = vmatpush1.msra.mxu0 %v6371
        %6436 = vmatprep.subr.mxu0 0.0
        %6437 = vmatpush1.msra.mxu0 %v6372
        %6438 = vmatprep.mubr.f32.mxu0 %v6338
        %6439 = vmatmul.mubr.f32.gmra.mrb[0].mxu0 %v6337
        %v6440 = vpop.f32.mrb[0].mxu0
        %v6441 = vadd.f32 %v6373, %v6440
        %v6442 = vpop.f32.mrb[0].mxu0
        %6443 = vmatprep.mubr.f32.mxu0 %v6340
        %6444 = vmatmul.mubr.f32.gmra.mrb[0].mxu0 %v6339
        %v6445 = vpop.f32.mrb[0].mxu0
        %v6446 = vadd.f32 %v6373, %v6445
        %v6447 = vpop.f32.mrb[0].mxu0
        %6448 = vdwg.mxu0
        %v6449 = vadd.f32 %v6152, %v6441
        %v6450 = vadd.f32 %v6153, %v6446
        %v6451 = vld [vmem:[#allocation2 + $0x13e0] sm:$0x3]
        %v6452 = vsel %vm436, %v6449, 0.0
        %6453 = vadd.xlane.f32.xlu0 %v6452
        %v6454 = vpop.xlane.xlu0 %6453
        %v6455 = vsel %vm436, %v6450, 0.0
        %6456 = vadd.xlane.f32.xlu0 %v6455
        %v6457 = vpop.xlane.xlu0 %6456
        %v6458 = vmul.f32 %v6454, %v443
        %v6459 = vmul.f32 %v6457, %v443
        %v6460 = vsub.f32 %v6449, %v6458
        %v6461 = vsub.f32 %v6450, %v6459
        %v6462 = vmul.f32 %v6460, %v6460
        %v6463 = vmul.f32 %v6461, %v6461
        %v6464 = vsel %vm436, %v6462, 0.0
        %6465 = vadd.xlane.f32.xlu0 %v6464
        %v6466 = vpop.xlane.xlu0 %6465
        %v6467 = vsel %vm436, %v6463, 0.0
        %6468 = vadd.xlane.f32.xlu0 %v6467
        %v6469 = vpop.xlane.xlu0 %6468
        %v6470 = vmul.f32 %v6466, %v443
        %v6471 = vmul.f32 %v6469, %v443
        %v6472 = vadd.f32 %v6470, 1e-05
        %v6473 = vadd.f32 %v6471, 1e-05
        %v6474 = vrsqrt.pop %v6472
        %v6475 = vrsqrt.pop %v6473
        %v6476 = vmul.f32 %v6460, %v6474
        %v6477 = vmul.f32 %v6461, %v6475
        %v6478 = vlaneseq
        %v6479 = vshrl.u32 %v6478, 7
        %v6480 = vsub.s32 0, %v6479
        %v6481 = vrot.slane %v6451, %v6480
        %v6482 = vmul.f32 %v6476, %v6481
        %v6483 = vmul.f32 %v6477, %v6481
        %v6484 = vlaneseq
        %v6485 = vshrl.u32 %v6484, 7
        %v6486 = vsub.s32 1, %v6485
        %v6487 = vrot.slane %v6451, %v6486
        %v6488 = vadd.f32 %v6482, %v6487
        %v6489 = vadd.f32 %v6483, %v6487
        %v6490 = vld [vmem:[#allocation2 + $0x13f0] sm:$0xff]
        %v6491 = vld [vmem:[#allocation2 + $0x1400] sm:$0xff]
        %v6492 = vld [vmem:[#allocation2 + $0x1410] sm:$0xff]
        %v6493 = vld [vmem:[#allocation2 + $0x1420] sm:$0xff]
        %v6494 = vld [vmem:[#allocation2 + $0x1430] sm:$0xff]
        %v6495 = vld [vmem:[#allocation2 + $0x1440] sm:$0xff]
        %v6496 = vld [vmem:[#allocation2 + $0x1450] sm:$0xff]
        %v6497 = vld [vmem:[#allocation2 + $0x1460] sm:$0xff]
        %v6498 = vld [vmem:[#allocation2 + $0x1470] ss:$0 sm:$0xff]
        %v6500 = vsel %vm436, %v6488, 0
        %v6503 = vsel %vm436, %v6489, 0
        %6505 = vmatprep.subr.mxu0 0.0
        %6506 = vmatpush1.msra.mxu0 %v6490
        %6507 = vmatprep.subr.mxu0 0.0
        %6508 = vmatpush1.msra.mxu0 %v6491
        %6509 = vmatprep.subr.mxu0 0.0
        %6510 = vmatpush1.msra.mxu0 %v6492
        %6511 = vmatprep.subr.mxu0 0.0
        %6512 = vmatpush1.msra.mxu0 %v6493
        %6513 = vmatprep.subr.mxu0 0.0
        %6514 = vmatpush1.msra.mxu0 %v6494
        %6515 = vmatprep.subr.mxu0 0.0
        %6516 = vmatpush1.msra.mxu0 %v6495
        %6517 = vmatprep.subr.mxu0 0.0
        %6518 = vmatpush1.msra.mxu0 %v6496
        %6519 = vmatprep.subr.mxu0 0.0
        %6520 = vmatpush1.msra.mxu0 %v6497
        %6521 = vmatprep.subr.mxu0 0.0
        %6522 = vmatpush1.msra.mxu0 0.0
        %6523 = vmatprep.subr.mxu0 0.0
        %6524 = vmatpush1.msra.mxu0 0.0
        %6525 = vmatprep.subr.mxu0 0.0
        %6526 = vmatpush1.msra.mxu0 0.0
        %6527 = vmatprep.subr.mxu0 0.0
        %6528 = vmatpush1.msra.mxu0 0.0
        %6529 = vmatprep.subr.mxu0 0.0
        %6530 = vmatpush1.msra.mxu0 0.0
        %6531 = vmatprep.subr.mxu0 0.0
        %6532 = vmatpush1.msra.mxu0 0.0
        %6533 = vmatprep.subr.mxu0 0.0
        %6534 = vmatpush1.msra.mxu0 0.0
        %6535 = vmatprep.subr.mxu0 0.0
        %6536 = vmatpush1.msra.mxu0 0.0
        %6537 = vmatprep.subr.mxu0 0.0
        %6538 = vmatpush1.msra.mxu0 0.0
        %6539 = vmatprep.subr.mxu0 0.0
        %6540 = vmatpush1.msra.mxu0 0.0
        %6541 = vmatprep.subr.mxu0 0.0
        %6542 = vmatpush1.msra.mxu0 0.0
        %6543 = vmatprep.subr.mxu0 0.0
        %6544 = vmatpush1.msra.mxu0 0.0
        %6545 = vmatprep.subr.mxu0 0.0
        %6546 = vmatpush1.msra.mxu0 0.0
        %6547 = vmatprep.subr.mxu0 0.0
        %6548 = vmatpush1.msra.mxu0 0.0
        %6549 = vmatprep.subr.mxu0 0.0
        %6550 = vmatpush1.msra.mxu0 0.0
        %6551 = vmatprep.subr.mxu0 0.0
        %6552 = vmatpush1.msra.mxu0 0.0
        %6553 = vmatprep.subr.mxu0 0.0
        %6554 = vmatpush1.msra.mxu0 0.0
        %6555 = vmatprep.subr.mxu0 0.0
        %6556 = vmatpush1.msra.mxu0 0.0
        %6557 = vmatprep.subr.mxu0 0.0
        %6558 = vmatpush1.msra.mxu0 0.0
        %6559 = vmatprep.subr.mxu0 0.0
        %6560 = vmatpush1.msra.mxu0 0.0
        %6561 = vmatprep.subr.mxu0 0.0
        %6562 = vmatpush1.msra.mxu0 0.0
        %6563 = vmatprep.subr.mxu0 0.0
        %6564 = vmatpush1.msra.mxu0 0.0
        %6565 = vmatprep.subr.mxu0 0.0
        %6566 = vmatpush1.msra.mxu0 0.0
        %6567 = vmatprep.subr.mxu0 0.0
        %6568 = vmatpush1.msra.mxu0 0.0
        %6569 = vmatprep.mubr.f32.mxu0 0.0
        %6570 = vmatmul.mubr.f32.gmra.mrb[0].mxu0 %v6500
        %v6571 = vpop.f32.mrb[0].mxu0
        %v6572 = vadd.f32 %v6498, %v6571
        %v6573 = vpop.f32.mrb[0].mxu0
        %6574 = vmatprep.mubr.f32.mxu0 0.0
        %6575 = vmatmul.mubr.f32.gmra.mrb[0].mxu0 %v6503
        %v6576 = vpop.f32.mrb[0].mxu0
        %v6577 = vadd.f32 %v6498, %v6576
        %v6578 = vpop.f32.mrb[0].mxu0
        %6579 = vdwg.mxu0
        %v6580 = vmax.f32 %v6572, 0.0
        %v6581 = vmax.f32 %v6577, 0.0
        %v6582 = vld [vmem:[#allocation2 + $0x1480] sm:$0xff]
        %v6583 = vld [vmem:[#allocation2 + $0x1490] sm:$0xff]
        %v6584 = vld [vmem:[#allocation2 + $0x14a0] sm:$0xff]
        %v6585 = vld [vmem:[#allocation2 + $0x14b0] sm:$0xff]
        %v6586 = vld [vmem:[#allocation2 + $0x14c0] ss:$0 sm:$0xff]
        %v6588 = vsel %vm264, %v6580, 0
        %v6591 = vsel %vm264, %v6581, 0
        %6593 = vmatprep.subr.mxu0 0.0
        %6594 = vmatpush1.msra.mxu0 %v6582
        %6595 = vmatprep.subr.mxu0 0.0
        %6596 = vmatpush1.msra.mxu0 %v6583
        %6597 = vmatprep.subr.mxu0 0.0
        %6598 = vmatpush1.msra.mxu0 %v6584
        %6599 = vmatprep.subr.mxu0 0.0
        %6600 = vmatpush1.msra.mxu0 %v6585
        %6601 = vmatprep.subr.mxu0 0.0
        %6602 = vmatpush1.msra.mxu0 0.0
        %6603 = vmatprep.subr.mxu0 0.0
        %6604 = vmatpush1.msra.mxu0 0.0
        %6605 = vmatprep.subr.mxu0 0.0
        %6606 = vmatpush1.msra.mxu0 0.0
        %6607 = vmatprep.subr.mxu0 0.0
        %6608 = vmatpush1.msra.mxu0 0.0
        %6609 = vmatprep.subr.mxu0 0.0
        %6610 = vmatpush1.msra.mxu0 0.0
        %6611 = vmatprep.subr.mxu0 0.0
        %6612 = vmatpush1.msra.mxu0 0.0
        %6613 = vmatprep.subr.mxu0 0.0
        %6614 = vmatpush1.msra.mxu0 0.0
        %6615 = vmatprep.subr.mxu0 0.0
        %6616 = vmatpush1.msra.mxu0 0.0
        %6617 = vmatprep.subr.mxu0 0.0
        %6618 = vmatpush1.msra.mxu0 0.0
        %6619 = vmatprep.subr.mxu0 0.0
        %6620 = vmatpush1.msra.mxu0 0.0
        %6621 = vmatprep.subr.mxu0 0.0
        %6622 = vmatpush1.msra.mxu0 0.0
        %6623 = vmatprep.subr.mxu0 0.0
        %6624 = vmatpush1.msra.mxu0 0.0
        %6625 = vmatprep.subr.mxu0 0.0
        %6626 = vmatpush1.msra.mxu0 0.0
        %6627 = vmatprep.subr.mxu0 0.0
        %6628 = vmatpush1.msra.mxu0 0.0
        %6629 = vmatprep.subr.mxu0 0.0
        %6630 = vmatpush1.msra.mxu0 0.0
        %6631 = vmatprep.subr.mxu0 0.0
        %6632 = vmatpush1.msra.mxu0 0.0
        %6633 = vmatprep.subr.mxu0 0.0
        %6634 = vmatpush1.msra.mxu0 0.0
        %6635 = vmatprep.subr.mxu0 0.0
        %6636 = vmatpush1.msra.mxu0 0.0
        %6637 = vmatprep.subr.mxu0 0.0
        %6638 = vmatpush1.msra.mxu0 0.0
        %6639 = vmatprep.subr.mxu0 0.0
        %6640 = vmatpush1.msra.mxu0 0.0
        %6641 = vmatprep.subr.mxu0 0.0
        %6642 = vmatpush1.msra.mxu0 0.0
        %6643 = vmatprep.subr.mxu0 0.0
        %6644 = vmatpush1.msra.mxu0 0.0
        %6645 = vmatprep.subr.mxu0 0.0
        %6646 = vmatpush1.msra.mxu0 0.0
        %6647 = vmatprep.subr.mxu0 0.0
        %6648 = vmatpush1.msra.mxu0 0.0
        %6649 = vmatprep.subr.mxu0 0.0
        %6650 = vmatpush1.msra.mxu0 0.0
        %6651 = vmatprep.subr.mxu0 0.0
        %6652 = vmatpush1.msra.mxu0 0.0
        %6653 = vmatprep.subr.mxu0 0.0
        %6654 = vmatpush1.msra.mxu0 0.0
        %6655 = vmatprep.subr.mxu0 0.0
        %6656 = vmatpush1.msra.mxu0 0.0
        %6657 = vmatprep.mubr.f32.mxu0 0.0
        %6658 = vmatmul.mubr.f32.gmra.mrb[0].mxu0 %v6588
        %v6659 = vpop.f32.mrb[0].mxu0
        %v6660 = vadd.f32 %v6586, %v6659
        %v6661 = vpop.f32.mrb[0].mxu0
        %6662 = vmatprep.mubr.f32.mxu0 0.0
        %6663 = vmatmul.mubr.f32.gmra.mrb[0].mxu0 %v6591
        %v6664 = vpop.f32.mrb[0].mxu0
        %v6665 = vadd.f32 %v6586, %v6664
        %v6666 = vpop.f32.mrb[0].mxu0
        %6667 = vdwg.mxu0
        %6668 = vst [vmem:[%s152] sm:$0xff] %v6660
        %6669 = vst [vmem:[%s152 + $0x8] sm:$0xff] %v6665
        %s6670 = sand.u32 %s72, 1
        %s6671 = scalar_lea.sflag [#allocation4], %s6670
        %s6672 = sand.u32 %s72, 1
        %s6673 = smul.addr %s6672, 16
        %s6674 = scalar_lea.vmem [#allocation5], %s6673
        // Predicated region
        $region33: #{tpu_custom_call.1} parent=27 // pred_check
          %p6675 = pneg %p82
        $region34: #{tpu_custom_call.1} parent=27 // pred_check_branch
          %6677 = sbr.rel (%p6675) target = $region36
        $region35: #{tpu_custom_call.1} parent=27 // pred_region
          %s6678 = smul.u32 2, %s17
          %s6680 = ssub.s32 256, 256
          %6681 = vsyncadd %s6671, %s6680
          %s6682 = smul.addr %s6678, 128
          %s6683 = scalar_lea.hbm %s2, %s6682
          %s6684 = sshll.u32 %s6674, 4
          %s6685 = int_to_ptr.vmem [resolvable:$true] %s6684
          %6690 = dma.vmem_to_hbm [thread:$0]  %s6685, 256, %s6683, %s6671, 128, 128, 8
        $region36: #{tpu_custom_call.1} parent=27 // pred_fallthru
          _
      $region28: #{tpu_custom_call.1} parent=5 // pred_fallthru
        _
      %p6691 = scmp.le.s32.totalorder 2, %s12
      // Predicated region
      $region37: #{tpu_custom_call.1} parent=5 // pred_check
        %p6692 = pneg %p6691
      $region38: #{tpu_custom_call.1} parent=5 // pred_check_branch
        %6694 = sbr.rel (%p6692) target = $region40
      $region39: #{tpu_custom_call.1} parent=5 // pred_region
        %s6695 = ssub.s32 %s12, 2
        // Predicated region
        $region41: #{tpu_custom_call.1} parent=39 // pred_check
          %p6696 = pneg %p88
        $region42: #{tpu_custom_call.1} parent=39 // pred_check_branch
          %6698 = sbr.rel (%p6696) target = $region44
        $region43: #{tpu_custom_call.1} parent=39 // pred_region
          %s6699 = sand.u32 %s73, 1
          %s6700 = scalar_lea.sflag [#allocation4], %s6699
          %s6701 = sand.u32 %s73, 1
          %s6702 = smul.addr %s6701, 16
          %s6703 = scalar_lea.vmem [#allocation5], %s6702
          %6704 = dma.done %s6700, 256
        $region44: #{tpu_custom_call.1} parent=39 // pred_fallthru
          _
      $region40: #{tpu_custom_call.1} parent=5 // pred_fallthru
        _
    $region6: #{tpu_custom_call.1} parent=1 // loop_footer
      %s16 = sadd.s32 1, %s12
    $region7: #{tpu_custom_call.1} parent=1 // loop_footer_branch
      %11 = sbr.rel target = $region3
    $region8: #{tpu_custom_call.1} parent=1 // loop_exit
      _
    %6705 = vsyncpa [#allocation3], 1
    %s6706 = scalar_lea.sflag [#allocation3], 1
    %6707 = vsyncpa %s6706, 1
    %6708 = vsyncpa [#allocation4], 1
    %s6709 = scalar_lea.sflag [#allocation4], 1
    %6710 = vsyncpa %s6709, 1

</llo_original>
